<compile_context>
chip_gen: v7x
topology: tpu7x:2x2x1
jax: 0.10.0
libtpu: 0.0.40
codegen_flags: <defaults>
</compile_context>

<pallas_src>
import numpy as np
import jax
import jax.numpy as jnp
from jax import lax
from jax.experimental import pallas as pl
from jax.experimental.pallas import tpu as pltpu


# ----------------------------------------------------------------------------
# Static interpolation tables (align_corners=True semantics, built in numpy).
# ----------------------------------------------------------------------------

def _source_pos(o, out_size, in_size):
    if out_size <= 1 or in_size <= 1:
        return 0.0
    return o * (in_size - 1) / (out_size - 1)


def _interp_matrix(out_size, in_size):
    """Dense (out, in) 1-D linear interpolation matrix."""
    m = np.zeros((out_size, in_size), dtype=np.float32)
    for o in range(out_size):
        pos = _source_pos(o, out_size, in_size)
        i0 = min(int(np.floor(pos)), in_size - 1)
        i1 = min(i0 + 1, in_size - 1)
        w = pos - i0
        m[o, i0] += 1.0 - w
        m[o, i1] += w
    return m


def _lerp_taps(out_size, in_size):
    """Static per-output-index 2-tap tables (i0, i1, w0, w1) for one axis."""
    taps = []
    for o in range(out_size):
        pos = _source_pos(o, out_size, in_size)
        i0 = min(int(np.floor(pos)), in_size - 1)
        i1 = min(i0 + 1, in_size - 1)
        w1 = float(pos - i0)
        taps.append((i0, i1, 1.0 - w1, w1))
    return taps


# ----------------------------------------------------------------------------
# VMEM budgeting helpers.
# ----------------------------------------------------------------------------

_VMEM_BUDGET_BYTES = 16 * 1024 * 1024   # per-grid-step working-set target
_VMEM_LIMIT_BYTES = 40 * 1024 * 1024    # scoped VMEM limit (fits v7x's 64 MiB)
_FUSED_HW_MAX_BYTES = 2 * 1024 * 1024   # max size of the fused (H*W, Ho*Wo) weight


def _vmem_bytes(shape, itemsize=4):
    """Conservative VMEM footprint of an f32 array with (8, 128) tile padding."""
    shape = tuple(int(s) for s in shape)
    if len(shape) == 1:
        shape = (1,) + shape
    lead = int(np.prod(shape[:-2], dtype=np.int64)) if len(shape) > 2 else 1
    sub = ((shape[-2] + 7) // 8) * 8
    lane = ((shape[-1] + 127) // 128) * 128
    return lead * sub * lane * itemsize


def _pick_channel_batch(nc, bytes_for_b, budget_bytes):
    """Largest divisor B of nc that fits the budget and keeps >=2 grid steps."""
    best = 1
    for b in range(1, nc + 1):
        if nc % b:
            continue
        if nc >= 2 and nc // b < 2:   # keep both v7x TensorCores busy
            continue
        if bytes_for_b(b) <= budget_bytes:
            best = b
    return best


# ----------------------------------------------------------------------------
# Kernels.
# ----------------------------------------------------------------------------

def _make_separable_kernel(B, D, H, W, Ho, Wo, d_taps):
    """W and H axes via batched MXU matmuls, D axis via unrolled 2-tap lerp."""
    BD = B * D

    def kernel(mw_t_ref, mh_ref, x_ref, o_ref):
        f32 = jnp.float32
        # (B, D, H, W) -> (B*D, H, W): leading-dim merge only (layout no-op).
        x = x_ref[...].reshape(BD, H, W)

        # ---- W axis: (H, W) @ (W, Wo), batched over B*D.
        mw_b = jnp.broadcast_to(mw_t_ref[...], (BD, W, Wo))
        y = lax.dot_general(x, mw_b, (((2,), (1,)), ((0,), (0,))),
                            preferred_element_type=f32)          # (B*D, H, Wo)

        # ---- H axis: (Ho, H) @ (H, Wo), batched over B*D.
        mh_b = jnp.broadcast_to(mh_ref[...], (BD, Ho, H))
        y = lax.dot_general(mh_b, y, (((2,), (1,)), ((0,), (0,))),
                            preferred_element_type=f32)          # (B*D, Ho, Wo)

        # (B*D, Ho, Wo) -> (B, D, Ho, Wo): leading-dim split only (layout no-op).
        y = y.reshape(B, D, Ho, Wo)

        # ---- D axis: 2-tap lerp with static indices/weights, written straight
        #      into the output block (VPU work, no extra matmul / relayout).
        for do, (i0, i1, w0, w1) in enumerate(d_taps):
            lo = y[:, i0:i0 + 1]                                 # (B, 1, Ho, Wo)
            hi = y[:, i1:i1 + 1]
            o_ref[:, do:do + 1] = (w0 * lo + w1 * hi).astype(o_ref.dtype)

    return kernel


def _make_fused_hw_kernel(B, D, HW, HoWo, d_taps):
    """Small-spatial path: H and W folded into one (H*W -> Ho*Wo) matmul so the
    DMA'd input and the stored output blocks are lane-dense even for tiny W."""

    def kernel(mhw_t_ref, x_ref, o_ref):
        f32 = jnp.float32
        x = x_ref[...]                                           # (B, D, H*W)
        w = jnp.broadcast_to(mhw_t_ref[...], (B, HW, HoWo))
        y = lax.dot_general(x, w, (((2,), (1,)), ((0,), (0,))),
                            preferred_element_type=f32)          # (B, D, Ho*Wo)
        for do, (i0, i1, w0, w1) in enumerate(d_taps):
            lo = y[:, i0:i0 + 1, :]                              # (B, 1, Ho*Wo)
            hi = y[:, i1:i1 + 1, :]
            o_ref[:, do:do + 1, :] = (w0 * lo + w1 * hi).astype(o_ref.dtype)

    return kernel


# ----------------------------------------------------------------------------
# Wrapper.
# ----------------------------------------------------------------------------

def interpolate_trilinear(x: jax.Array, scale_factor) -> jax.Array:
    """x: (N, C, D, H, W). Trilinear, align_corners=True, like F.interpolate."""
    N, C, D, H, W = x.shape
    if isinstance(scale_factor, (tuple, list)):
        sd, sh, sw = (float(s) for s in scale_factor)
    else:
        sd = sh = sw = float(scale_factor)
    Do = int(np.floor(D * sd))
    Ho = int(np.floor(H * sh))
    Wo = int(np.floor(W * sw))
    NC = N * C

    d_taps = _lerp_taps(Do, D)
    mh = _interp_matrix(Ho, H)            # (Ho, H)
    mw = _interp_matrix(Wo, W)            # (Wo, W)

    compiler_params = pltpu.CompilerParams(
        dimension_semantics=("parallel",),
        vmem_limit_bytes=_VMEM_LIMIT_BYTES)

    # Use the fused-HW (lane-folded) path when Wo is not already lane aligned
    # and the fused weight stays small; otherwise the separable path is already
    # lane-dense and does the minimal number of MACs.
    use_fused_hw = (Wo % 128 != 0) and (H * W * Ho * Wo * 4 <= _FUSED_HW_MAX_BYTES)

    if use_fused_hw:
        HW, HoWo = H * W, Ho * Wo
        mhw_t = jnp.asarray(np.kron(mh, mw).T)                   # (H*W, Ho*Wo)
        x3 = x.reshape(NC, D, HW)

        def bytes_for(b):
            return (2 * _vmem_bytes((b, D, HW))
                    + 2 * _vmem_bytes((b, Do, HoWo))
                    + 2 * _vmem_bytes((b, D, HoWo))
                    + _vmem_bytes((b, HW, HoWo))                  # bcast weight (worst case)
                    + 2 * _vmem_bytes((HW, HoWo)))

        B = _pick_channel_batch(NC, bytes_for, _VMEM_BUDGET_BYTES)
        out = pl.pallas_call(
            _make_fused_hw_kernel(B, D, HW, HoWo, d_taps),
            out_shape=jax.ShapeDtypeStruct((NC, Do, HoWo), x.dtype),
            grid=(NC // B,),
            in_specs=[
                pl.BlockSpec((HW, HoWo), lambda i: (0, 0)),
                pl.BlockSpec((B, D, HW), lambda i: (i, 0, 0)),
            ],
            out_specs=pl.BlockSpec((B, Do, HoWo), lambda i: (i, 0, 0)),
            compiler_params=compiler_params,
        )(mhw_t, x3)
        return out.reshape(N, C, Do, Ho, Wo)

    mw_t = jnp.asarray(mw.T)                                      # (W, Wo)
    mh_j = jnp.asarray(mh)                                        # (Ho, H)
    x4 = x.reshape(NC, D, H, W)

    def bytes_for(b):
        bd = b * D
        return (2 * _vmem_bytes((b, D, H, W))
                + 2 * _vmem_bytes((b, Do, Ho, Wo))
                + _vmem_bytes((bd, H, Wo))
                + 2 * _vmem_bytes((bd, Ho, Wo))
                + _vmem_bytes((bd, W, Wo))                        # bcast mw (worst case)
                + _vmem_bytes((bd, Ho, H))
                + 2 * (_vmem_bytes((W, Wo)) + _vmem_bytes((Ho, H))))

    B = _pick_channel_batch(NC, bytes_for, _VMEM_BUDGET_BYTES)
    out = pl.pallas_call(
        _make_separable_kernel(B, D, H, W, Ho, Wo, d_taps),
        out_shape=jax.ShapeDtypeStruct((NC, Do, Ho, Wo), x.dtype),
        grid=(NC // B,),
        in_specs=[
            pl.BlockSpec((W, Wo), lambda i: (0, 0)),
            pl.BlockSpec((Ho, H), lambda i: (0, 0)),
            pl.BlockSpec((B, D, H, W), lambda i: (i, 0, 0, 0)),
        ],
        out_specs=pl.BlockSpec((B, Do, Ho, Wo), lambda i: (i, 0, 0, 0)),
        compiler_params=compiler_params,
    )(mw_t, mh_j, x4)
    return out.reshape(N, C, Do, Ho, Wo)


# ----------------------------------------------------------------------------
# Independent numpy reference (align_corners=True), handles tuple scale_factor.
# ----------------------------------------------------------------------------

def _reference_trilinear(x: np.ndarray, scale_factor) -> np.ndarray:
    N, C, D, H, W = x.shape
    if isinstance(scale_factor, (tuple, list)):
        sd, sh, sw = (float(s) for s in scale_factor)
    else:
        sd = sh = sw = float(scale_factor)
    Do, Ho, Wo = int(np.floor(D * sd)), int(np.floor(H * sh)), int(np.floor(W * sw))
    md = _interp_matrix(Do, D)
    mh = _interp_matrix(Ho, H)
    mw = _interp_matrix(Wo, W)
    y = np.einsum('ncdhw,ow->ncdho', x, mw)
    y = np.einsum('ncdhw,oh->ncdow', y, mh)
    y = np.einsum('ncdhw,od->ncohw', y, md)
    return y.astype(np.float32)


if __name__ == "__main__":
    # Main check: lane-aligned shapes (W, Wo multiples of 128 -> dense DMA/stores),
    # exercises the separable (large-spatial) path.
    N, C, D, H, W = 2, 4, 8, 8, 128
    scale_factor = 2
    x = jax.random.normal(jax.random.PRNGKey(0), (N, C, D, H, W), dtype=jnp.float32)
    out = jax.block_until_ready(interpolate_trilinear(x, scale_factor))
    ref = _reference_trilinear(np.asarray(x), scale_factor)
    assert out.shape == ref.shape, (out.shape, ref.shape)
    np.testing.assert_allclose(np.asarray(out), ref, rtol=1e-5, atol=1e-5)

    # Secondary check: tiny odd spatial dims, exercises the fused-HW (lane-folded) path.
    x2 = jax.random.normal(jax.random.PRNGKey(1), (2, 3, 4, 5, 6), dtype=jnp.float32)
    out2 = jax.block_until_ready(interpolate_trilinear(x2, scale_factor))
    ref2 = _reference_trilinear(np.asarray(x2), scale_factor)
    assert out2.shape == ref2.shape, (out2.shape, ref2.shape)
    np.testing.assert_allclose(np.asarray(out2), ref2, rtol=1e-5, atol=1e-5)

    print("KERNEL_OK")
</pallas_src>

<mosaic_0001>
module attributes {stable_mosaic.version = 11 : i64} {
  func.func @kernel(%arg0: i32, %arg1: memref<128x256xf32, #tpu.memory_space<vmem>>, %arg2: memref<16x8xf32, #tpu.memory_space<vmem>>, %arg3: memref<4x8x8x128xf32, #tpu.memory_space<vmem>>, %arg4: memref<4x16x16x256xf32, #tpu.memory_space<vmem>>) attributes {dimension_semantics = [#tpu.dimension_semantics<parallel>], iteration_bounds = array<i64: 2>, scalar_prefetch = 0 : i64, scratch_operands = 0 : i64, tpu.core_type = #tpu.core_type<tc>, window_params = [{pipeline_mode = #tpu.pipeline_mode<synchronous>, transform_indices = @transform_0, window_bounds = array<i64: 128, 256>}, {pipeline_mode = #tpu.pipeline_mode<synchronous>, transform_indices = @transform_1, window_bounds = array<i64: 16, 8>}, {transform_indices = @transform_2, window_bounds = array<i64: 4, 8, 8, 128>}, {transform_indices = @transform_3, window_bounds = array<i64: 4, 16, 16, 256>}]} {
    %c0 = arith.constant 0 : index
    %c0_0 = arith.constant 0 : index
    %c0_1 = arith.constant 0 : index
    %c0_2 = arith.constant 0 : index
    %0 = vector.load %arg3[%c0, %c0_0, %c0_1, %c0_2] : memref<4x8x8x128xf32, #tpu.memory_space<vmem>>, vector<4x8x8x128xf32>
    %1 = vector.shape_cast %0 : vector<4x8x8x128xf32> to vector<32x8x128xf32>
    %c0_3 = arith.constant 0 : index
    %c0_4 = arith.constant 0 : index
    %2 = vector.load %arg1[%c0_3, %c0_4] : memref<128x256xf32, #tpu.memory_space<vmem>>, vector<128x256xf32>
    %3 = vector.shape_cast %2 : vector<128x256xf32> to vector<1x128x256xf32>
    %4 = vector.broadcast %3 : vector<1x128x256xf32> to vector<32x128x256xf32>
    %cst = arith.constant dense<0.000000e+00> : vector<32x8x256xf32>
    %5 = tpu.matmul %1, %4, %cst {dimension_numbers = #tpu.dot_dimension_numbers<[2], [1], [1], [2], [0, 0, 0, 1, 1, 2], [0], [0]>} : vector<32x8x128xf32>, vector<32x128x256xf32>, vector<32x8x256xf32> -> vector<32x8x256xf32>
    %c0_5 = arith.constant 0 : index
    %c0_6 = arith.constant 0 : index
    %6 = vector.load %arg2[%c0_5, %c0_6] : memref<16x8xf32, #tpu.memory_space<vmem>>, vector<16x8xf32>
    %7 = vector.shape_cast %6 : vector<16x8xf32> to vector<1x16x8xf32>
    %8 = vector.broadcast %7 : vector<1x16x8xf32> to vector<32x16x8xf32>
    %cst_7 = arith.constant dense<0.000000e+00> : vector<32x16x256xf32>
    %9 = tpu.matmul %8, %5, %cst_7 {dimension_numbers = #tpu.dot_dimension_numbers<[2], [1], [1], [2], [0, 0, 0, 1, 1, 2], [0], [0]>} : vector<32x16x8xf32>, vector<32x8x256xf32>, vector<32x16x256xf32> -> vector<32x16x256xf32>
    %10 = vector.shape_cast %9 : vector<32x16x256xf32> to vector<4x8x16x256xf32>
    %11 = vector.extract_strided_slice %10 {offsets = [0, 0, 0, 0], sizes = [4, 1, 16, 256], strides = [1, 1, 1, 1]} : vector<4x8x16x256xf32> to vector<4x1x16x256xf32>
    %12 = vector.extract_strided_slice %10 {offsets = [0, 1, 0, 0], sizes = [4, 1, 16, 256], strides = [1, 1, 1, 1]} : vector<4x8x16x256xf32> to vector<4x1x16x256xf32>
    %cst_8 = arith.constant 1.000000e+00 : f32
    %13 = vector.broadcast %cst_8 : f32 to vector<4x1x16x256xf32>
    %14 = arith.mulf %13, %11 : vector<4x1x16x256xf32>
    %cst_9 = arith.constant 0.000000e+00 : f32
    %15 = vector.broadcast %cst_9 : f32 to vector<4x1x16x256xf32>
    %16 = arith.mulf %15, %12 : vector<4x1x16x256xf32>
    %17 = arith.addf %14, %16 : vector<4x1x16x256xf32>
    %c0_10 = arith.constant 0 : index
    %c0_11 = arith.constant 0 : index
    %c0_12 = arith.constant 0 : index
    %c0_13 = arith.constant 0 : index
    %18 = vector.load %arg4[%c0_10, %c0_11, %c0_12, %c0_13] : memref<4x16x16x256xf32, #tpu.memory_space<vmem>>, vector<4x1x16x256xf32>
    tpu.vector_store %arg4[%c0_10, %c0_11, %c0_12, %c0_13], %17 {strides = array<i32>} : memref<4x16x16x256xf32, #tpu.memory_space<vmem>>, vector<4x1x16x256xf32>,
    %19 = vector.extract_strided_slice %10 {offsets = [0, 0, 0, 0], sizes = [4, 1, 16, 256], strides = [1, 1, 1, 1]} : vector<4x8x16x256xf32> to vector<4x1x16x256xf32>
    %20 = vector.extract_strided_slice %10 {offsets = [0, 1, 0, 0], sizes = [4, 1, 16, 256], strides = [1, 1, 1, 1]} : vector<4x8x16x256xf32> to vector<4x1x16x256xf32>
    %cst_14 = arith.constant 0.533333361 : f32
    %21 = vector.broadcast %cst_14 : f32 to vector<4x1x16x256xf32>
    %22 = arith.mulf %21, %19 : vector<4x1x16x256xf32>
    %cst_15 = arith.constant 0.466666669 : f32
    %23 = vector.broadcast %cst_15 : f32 to vector<4x1x16x256xf32>
    %24 = arith.mulf %23, %20 : vector<4x1x16x256xf32>
    %25 = arith.addf %22, %24 : vector<4x1x16x256xf32>
    %c0_16 = arith.constant 0 : index
    %c1 = arith.constant 1 : index
    %c0_17 = arith.constant 0 : index
    %c0_18 = arith.constant 0 : index
    %26 = vector.load %arg4[%c0_16, %c1, %c0_17, %c0_18] : memref<4x16x16x256xf32, #tpu.memory_space<vmem>>, vector<4x1x16x256xf32>
    tpu.vector_store %arg4[%c0_16, %c1, %c0_17, %c0_18], %25 {strides = array<i32>} : memref<4x16x16x256xf32, #tpu.memory_space<vmem>>, vector<4x1x16x256xf32>,
    %27 = vector.extract_strided_slice %10 {offsets = [0, 0, 0, 0], sizes = [4, 1, 16, 256], strides = [1, 1, 1, 1]} : vector<4x8x16x256xf32> to vector<4x1x16x256xf32>
    %28 = vector.extract_strided_slice %10 {offsets = [0, 1, 0, 0], sizes = [4, 1, 16, 256], strides = [1, 1, 1, 1]} : vector<4x8x16x256xf32> to vector<4x1x16x256xf32>
    %cst_19 = arith.constant 0.0666666701 : f32
    %29 = vector.broadcast %cst_19 : f32 to vector<4x1x16x256xf32>
    %30 = arith.mulf %29, %27 : vector<4x1x16x256xf32>
    %cst_20 = arith.constant 0.933333337 : f32
    %31 = vector.broadcast %cst_20 : f32 to vector<4x1x16x256xf32>
    %32 = arith.mulf %31, %28 : vector<4x1x16x256xf32>
    %33 = arith.addf %30, %32 : vector<4x1x16x256xf32>
    %c0_21 = arith.constant 0 : index
    %c2 = arith.constant 2 : index
    %c0_22 = arith.constant 0 : index
    %c0_23 = arith.constant 0 : index
    %34 = vector.load %arg4[%c0_21, %c2, %c0_22, %c0_23] : memref<4x16x16x256xf32, #tpu.memory_space<vmem>>, vector<4x1x16x256xf32>
    tpu.vector_store %arg4[%c0_21, %c2, %c0_22, %c0_23], %33 {strides = array<i32>} : memref<4x16x16x256xf32, #tpu.memory_space<vmem>>, vector<4x1x16x256xf32>,
    %35 = vector.extract_strided_slice %10 {offsets = [0, 1, 0, 0], sizes = [4, 1, 16, 256], strides = [1, 1, 1, 1]} : vector<4x8x16x256xf32> to vector<4x1x16x256xf32>
    %36 = vector.extract_strided_slice %10 {offsets = [0, 2, 0, 0], sizes = [4, 1, 16, 256], strides = [1, 1, 1, 1]} : vector<4x8x16x256xf32> to vector<4x1x16x256xf32>
    %cst_24 = arith.constant 6.000000e-01 : f32
    %37 = vector.broadcast %cst_24 : f32 to vector<4x1x16x256xf32>
    %38 = arith.mulf %37, %35 : vector<4x1x16x256xf32>
    %cst_25 = arith.constant 4.000000e-01 : f32
    %39 = vector.broadcast %cst_25 : f32 to vector<4x1x16x256xf32>
    %40 = arith.mulf %39, %36 : vector<4x1x16x256xf32>
    %41 = arith.addf %38, %40 : vector<4x1x16x256xf32>
    %c0_26 = arith.constant 0 : index
    %c3 = arith.constant 3 : index
    %c0_27 = arith.constant 0 : index
    %c0_28 = arith.constant 0 : index
    %42 = vector.load %arg4[%c0_26, %c3, %c0_27, %c0_28] : memref<4x16x16x256xf32, #tpu.memory_space<vmem>>, vector<4x1x16x256xf32>
    tpu.vector_store %arg4[%c0_26, %c3, %c0_27, %c0_28], %41 {strides = array<i32>} : memref<4x16x16x256xf32, #tpu.memory_space<vmem>>, vector<4x1x16x256xf32>,
    %43 = vector.extract_strided_slice %10 {offsets = [0, 1, 0, 0], sizes = [4, 1, 16, 256], strides = [1, 1, 1, 1]} : vector<4x8x16x256xf32> to vector<4x1x16x256xf32>
    %44 = vector.extract_strided_slice %10 {offsets = [0, 2, 0, 0], sizes = [4, 1, 16, 256], strides = [1, 1, 1, 1]} : vector<4x8x16x256xf32> to vector<4x1x16x256xf32>
    %cst_29 = arith.constant 0.13333334 : f32
    %45 = vector.broadcast %cst_29 : f32 to vector<4x1x16x256xf32>
    %46 = arith.mulf %45, %43 : vector<4x1x16x256xf32>
    %cst_30 = arith.constant 0.866666674 : f32
    %47 = vector.broadcast %cst_30 : f32 to vector<4x1x16x256xf32>
    %48 = arith.mulf %47, %44 : vector<4x1x16x256xf32>
    %49 = arith.addf %46, %48 : vector<4x1x16x256xf32>
    %c0_31 = arith.constant 0 : index
    %c4 = arith.constant 4 : index
    %c0_32 = arith.constant 0 : index
    %c0_33 = arith.constant 0 : index
    %50 = vector.load %arg4[%c0_31, %c4, %c0_32, %c0_33] : memref<4x16x16x256xf32, #tpu.memory_space<vmem>>, vector<4x1x16x256xf32>
    tpu.vector_store %arg4[%c0_31, %c4, %c0_32, %c0_33], %49 {strides = array<i32>} : memref<4x16x16x256xf32, #tpu.memory_space<vmem>>, vector<4x1x16x256xf32>,
    %51 = vector.extract_strided_slice %10 {offsets = [0, 2, 0, 0], sizes = [4, 1, 16, 256], strides = [1, 1, 1, 1]} : vector<4x8x16x256xf32> to vector<4x1x16x256xf32>
    %52 = vector.extract_strided_slice %10 {offsets = [0, 3, 0, 0], sizes = [4, 1, 16, 256], strides = [1, 1, 1, 1]} : vector<4x8x16x256xf32> to vector<4x1x16x256xf32>
    %cst_34 = arith.constant 0.666666686 : f32
    %53 = vector.broadcast %cst_34 : f32 to vector<4x1x16x256xf32>
    %54 = arith.mulf %53, %51 : vector<4x1x16x256xf32>
    %cst_35 = arith.constant 0.333333343 : f32
    %55 = vector.broadcast %cst_35 : f32 to vector<4x1x16x256xf32>
    %56 = arith.mulf %55, %52 : vector<4x1x16x256xf32>
    %57 = arith.addf %54, %56 : vector<4x1x16x256xf32>
    %c0_36 = arith.constant 0 : index
    %c5 = arith.constant 5 : index
    %c0_37 = arith.constant 0 : index
    %c0_38 = arith.constant 0 : index
    %58 = vector.load %arg4[%c0_36, %c5, %c0_37, %c0_38] : memref<4x16x16x256xf32, #tpu.memory_space<vmem>>, vector<4x1x16x256xf32>
    tpu.vector_store %arg4[%c0_36, %c5, %c0_37, %c0_38], %57 {strides = array<i32>} : memref<4x16x16x256xf32, #tpu.memory_space<vmem>>, vector<4x1x16x256xf32>,
    %59 = vector.extract_strided_slice %10 {offsets = [0, 2, 0, 0], sizes = [4, 1, 16, 256], strides = [1, 1, 1, 1]} : vector<4x8x16x256xf32> to vector<4x1x16x256xf32>
    %60 = vector.extract_strided_slice %10 {offsets = [0, 3, 0, 0], sizes = [4, 1, 16, 256], strides = [1, 1, 1, 1]} : vector<4x8x16x256xf32> to vector<4x1x16x256xf32>
    %cst_39 = arith.constant 2.000000e-01 : f32
    %61 = vector.broadcast %cst_39 : f32 to vector<4x1x16x256xf32>
    %62 = arith.mulf %61, %59 : vector<4x1x16x256xf32>
    %cst_40 = arith.constant 8.000000e-01 : f32
    %63 = vector.broadcast %cst_40 : f32 to vector<4x1x16x256xf32>
    %64 = arith.mulf %63, %60 : vector<4x1x16x256xf32>
    %65 = arith.addf %62, %64 : vector<4x1x16x256xf32>
    %c0_41 = arith.constant 0 : index
    %c6 = arith.constant 6 : index
    %c0_42 = arith.constant 0 : index
    %c0_43 = arith.constant 0 : index
    %66 = vector.load %arg4[%c0_41, %c6, %c0_42, %c0_43] : memref<4x16x16x256xf32, #tpu.memory_space<vmem>>, vector<4x1x16x256xf32>
    tpu.vector_store %arg4[%c0_41, %c6, %c0_42, %c0_43], %65 {strides = array<i32>} : memref<4x16x16x256xf32, #tpu.memory_space<vmem>>, vector<4x1x16x256xf32>,
    %67 = vector.extract_strided_slice %10 {offsets = [0, 3, 0, 0], sizes = [4, 1, 16, 256], strides = [1, 1, 1, 1]} : vector<4x8x16x256xf32> to vector<4x1x16x256xf32>
    %68 = vector.extract_strided_slice %10 {offsets = [0, 4, 0, 0], sizes = [4, 1, 16, 256], strides = [1, 1, 1, 1]} : vector<4x8x16x256xf32> to vector<4x1x16x256xf32>
    %cst_44 = arith.constant 0.733333349 : f32
    %69 = vector.broadcast %cst_44 : f32 to vector<4x1x16x256xf32>
    %70 = arith.mulf %69, %67 : vector<4x1x16x256xf32>
    %cst_45 = arith.constant 0.266666681 : f32
    %71 = vector.broadcast %cst_45 : f32 to vector<4x1x16x256xf32>
    %72 = arith.mulf %71, %68 : vector<4x1x16x256xf32>
    %73 = arith.addf %70, %72 : vector<4x1x16x256xf32>
    %c0_46 = arith.constant 0 : index
    %c7 = arith.constant 7 : index
    %c0_47 = arith.constant 0 : index
    %c0_48 = arith.constant 0 : index
    %74 = vector.load %arg4[%c0_46, %c7, %c0_47, %c0_48] : memref<4x16x16x256xf32, #tpu.memory_space<vmem>>, vector<4x1x16x256xf32>
    tpu.vector_store %arg4[%c0_46, %c7, %c0_47, %c0_48], %73 {strides = array<i32>} : memref<4x16x16x256xf32, #tpu.memory_space<vmem>>, vector<4x1x16x256xf32>,
    %75 = vector.extract_strided_slice %10 {offsets = [0, 3, 0, 0], sizes = [4, 1, 16, 256], strides = [1, 1, 1, 1]} : vector<4x8x16x256xf32> to vector<4x1x16x256xf32>
    %76 = vector.extract_strided_slice %10 {offsets = [0, 4, 0, 0], sizes = [4, 1, 16, 256], strides = [1, 1, 1, 1]} : vector<4x8x16x256xf32> to vector<4x1x16x256xf32>
    %cst_49 = arith.constant 0.266666681 : f32
    %77 = vector.broadcast %cst_49 : f32 to vector<4x1x16x256xf32>
    %78 = arith.mulf %77, %75 : vector<4x1x16x256xf32>
    %cst_50 = arith.constant 0.733333349 : f32
    %79 = vector.broadcast %cst_50 : f32 to vector<4x1x16x256xf32>
    %80 = arith.mulf %79, %76 : vector<4x1x16x256xf32>
    %81 = arith.addf %78, %80 : vector<4x1x16x256xf32>
    %c0_51 = arith.constant 0 : index
    %c8 = arith.constant 8 : index
    %c0_52 = arith.constant 0 : index
    %c0_53 = arith.constant 0 : index
    %82 = vector.load %arg4[%c0_51, %c8, %c0_52, %c0_53] : memref<4x16x16x256xf32, #tpu.memory_space<vmem>>, vector<4x1x16x256xf32>
    tpu.vector_store %arg4[%c0_51, %c8, %c0_52, %c0_53], %81 {strides = array<i32>} : memref<4x16x16x256xf32, #tpu.memory_space<vmem>>, vector<4x1x16x256xf32>,
    %83 = vector.extract_strided_slice %10 {offsets = [0, 4, 0, 0], sizes = [4, 1, 16, 256], strides = [1, 1, 1, 1]} : vector<4x8x16x256xf32> to vector<4x1x16x256xf32>
    %84 = vector.extract_strided_slice %10 {offsets = [0, 5, 0, 0], sizes = [4, 1, 16, 256], strides = [1, 1, 1, 1]} : vector<4x8x16x256xf32> to vector<4x1x16x256xf32>
    %cst_54 = arith.constant 8.000000e-01 : f32
    %85 = vector.broadcast %cst_54 : f32 to vector<4x1x16x256xf32>
    %86 = arith.mulf %85, %83 : vector<4x1x16x256xf32>
    %cst_55 = arith.constant 2.000000e-01 : f32
    %87 = vector.broadcast %cst_55 : f32 to vector<4x1x16x256xf32>
    %88 = arith.mulf %87, %84 : vector<4x1x16x256xf32>
    %89 = arith.addf %86, %88 : vector<4x1x16x256xf32>
    %c0_56 = arith.constant 0 : index
    %c9 = arith.constant 9 : index
    %c0_57 = arith.constant 0 : index
    %c0_58 = arith.constant 0 : index
    %90 = vector.load %arg4[%c0_56, %c9, %c0_57, %c0_58] : memref<4x16x16x256xf32, #tpu.memory_space<vmem>>, vector<4x1x16x256xf32>
    tpu.vector_store %arg4[%c0_56, %c9, %c0_57, %c0_58], %89 {strides = array<i32>} : memref<4x16x16x256xf32, #tpu.memory_space<vmem>>, vector<4x1x16x256xf32>,
    %91 = vector.extract_strided_slice %10 {offsets = [0, 4, 0, 0], sizes = [4, 1, 16, 256], strides = [1, 1, 1, 1]} : vector<4x8x16x256xf32> to vector<4x1x16x256xf32>
    %92 = vector.extract_strided_slice %10 {offsets = [0, 5, 0, 0], sizes = [4, 1, 16, 256], strides = [1, 1, 1, 1]} : vector<4x8x16x256xf32> to vector<4x1x16x256xf32>
    %cst_59 = arith.constant 0.333333343 : f32
    %93 = vector.broadcast %cst_59 : f32 to vector<4x1x16x256xf32>
    %94 = arith.mulf %93, %91 : vector<4x1x16x256xf32>
    %cst_60 = arith.constant 0.666666686 : f32
    %95 = vector.broadcast %cst_60 : f32 to vector<4x1x16x256xf32>
    %96 = arith.mulf %95, %92 : vector<4x1x16x256xf32>
    %97 = arith.addf %94, %96 : vector<4x1x16x256xf32>
    %c0_61 = arith.constant 0 : index
    %c10 = arith.constant 10 : index
    %c0_62 = arith.constant 0 : index
    %c0_63 = arith.constant 0 : index
    %98 = vector.load %arg4[%c0_61, %c10, %c0_62, %c0_63] : memref<4x16x16x256xf32, #tpu.memory_space<vmem>>, vector<4x1x16x256xf32>
    tpu.vector_store %arg4[%c0_61, %c10, %c0_62, %c0_63], %97 {strides = array<i32>} : memref<4x16x16x256xf32, #tpu.memory_space<vmem>>, vector<4x1x16x256xf32>,
    %99 = vector.extract_strided_slice %10 {offsets = [0, 5, 0, 0], sizes = [4, 1, 16, 256], strides = [1, 1, 1, 1]} : vector<4x8x16x256xf32> to vector<4x1x16x256xf32>
    %100 = vector.extract_strided_slice %10 {offsets = [0, 6, 0, 0], sizes = [4, 1, 16, 256], strides = [1, 1, 1, 1]} : vector<4x8x16x256xf32> to vector<4x1x16x256xf32>
    %cst_64 = arith.constant 0.866666674 : f32
    %101 = vector.broadcast %cst_64 : f32 to vector<4x1x16x256xf32>
    %102 = arith.mulf %101, %99 : vector<4x1x16x256xf32>
    %cst_65 = arith.constant 0.13333334 : f32
    %103 = vector.broadcast %cst_65 : f32 to vector<4x1x16x256xf32>
    %104 = arith.mulf %103, %100 : vector<4x1x16x256xf32>
    %105 = arith.addf %102, %104 : vector<4x1x16x256xf32>
    %c0_66 = arith.constant 0 : index
    %c11 = arith.constant 11 : index
    %c0_67 = arith.constant 0 : index
    %c0_68 = arith.constant 0 : index
    %106 = vector.load %arg4[%c0_66, %c11, %c0_67, %c0_68] : memref<4x16x16x256xf32, #tpu.memory_space<vmem>>, vector<4x1x16x256xf32>
    tpu.vector_store %arg4[%c0_66, %c11, %c0_67, %c0_68], %105 {strides = array<i32>} : memref<4x16x16x256xf32, #tpu.memory_space<vmem>>, vector<4x1x16x256xf32>,
    %107 = vector.extract_strided_slice %10 {offsets = [0, 5, 0, 0], sizes = [4, 1, 16, 256], strides = [1, 1, 1, 1]} : vector<4x8x16x256xf32> to vector<4x1x16x256xf32>
    %108 = vector.extract_strided_slice %10 {offsets = [0, 6, 0, 0], sizes = [4, 1, 16, 256], strides = [1, 1, 1, 1]} : vector<4x8x16x256xf32> to vector<4x1x16x256xf32>
    %cst_69 = arith.constant 4.000000e-01 : f32
    %109 = vector.broadcast %cst_69 : f32 to vector<4x1x16x256xf32>
    %110 = arith.mulf %109, %107 : vector<4x1x16x256xf32>
    %cst_70 = arith.constant 6.000000e-01 : f32
    %111 = vector.broadcast %cst_70 : f32 to vector<4x1x16x256xf32>
    %112 = arith.mulf %111, %108 : vector<4x1x16x256xf32>
    %113 = arith.addf %110, %112 : vector<4x1x16x256xf32>
    %c0_71 = arith.constant 0 : index
    %c12 = arith.constant 12 : index
    %c0_72 = arith.constant 0 : index
    %c0_73 = arith.constant 0 : index
    %114 = vector.load %arg4[%c0_71, %c12, %c0_72, %c0_73] : memref<4x16x16x256xf32, #tpu.memory_space<vmem>>, vector<4x1x16x256xf32>
    tpu.vector_store %arg4[%c0_71, %c12, %c0_72, %c0_73], %113 {strides = array<i32>} : memref<4x16x16x256xf32, #tpu.memory_space<vmem>>, vector<4x1x16x256xf32>,
    %115 = vector.extract_strided_slice %10 {offsets = [0, 6, 0, 0], sizes = [4, 1, 16, 256], strides = [1, 1, 1, 1]} : vector<4x8x16x256xf32> to vector<4x1x16x256xf32>
    %116 = vector.extract_strided_slice %10 {offsets = [0, 7, 0, 0], sizes = [4, 1, 16, 256], strides = [1, 1, 1, 1]} : vector<4x8x16x256xf32> to vector<4x1x16x256xf32>
    %cst_74 = arith.constant 0.933333337 : f32
    %117 = vector.broadcast %cst_74 : f32 to vector<4x1x16x256xf32>
    %118 = arith.mulf %117, %115 : vector<4x1x16x256xf32>
    %cst_75 = arith.constant 0.0666666701 : f32
    %119 = vector.broadcast %cst_75 : f32 to vector<4x1x16x256xf32>
    %120 = arith.mulf %119, %116 : vector<4x1x16x256xf32>
    %121 = arith.addf %118, %120 : vector<4x1x16x256xf32>
    %c0_76 = arith.constant 0 : index
    %c13 = arith.constant 13 : index
    %c0_77 = arith.constant 0 : index
    %c0_78 = arith.constant 0 : index
    %122 = vector.load %arg4[%c0_76, %c13, %c0_77, %c0_78] : memref<4x16x16x256xf32, #tpu.memory_space<vmem>>, vector<4x1x16x256xf32>
    tpu.vector_store %arg4[%c0_76, %c13, %c0_77, %c0_78], %121 {strides = array<i32>} : memref<4x16x16x256xf32, #tpu.memory_space<vmem>>, vector<4x1x16x256xf32>,
    %123 = vector.extract_strided_slice %10 {offsets = [0, 6, 0, 0], sizes = [4, 1, 16, 256], strides = [1, 1, 1, 1]} : vector<4x8x16x256xf32> to vector<4x1x16x256xf32>
    %124 = vector.extract_strided_slice %10 {offsets = [0, 7, 0, 0], sizes = [4, 1, 16, 256], strides = [1, 1, 1, 1]} : vector<4x8x16x256xf32> to vector<4x1x16x256xf32>
    %cst_79 = arith.constant 0.466666669 : f32
    %125 = vector.broadcast %cst_79 : f32 to vector<4x1x16x256xf32>
    %126 = arith.mulf %125, %123 : vector<4x1x16x256xf32>
    %cst_80 = arith.constant 0.533333361 : f32
    %127 = vector.broadcast %cst_80 : f32 to vector<4x1x16x256xf32>
    %128 = arith.mulf %127, %124 : vector<4x1x16x256xf32>
    %129 = arith.addf %126, %128 : vector<4x1x16x256xf32>
    %c0_81 = arith.constant 0 : index
    %c14 = arith.constant 14 : index
    %c0_82 = arith.constant 0 : index
    %c0_83 = arith.constant 0 : index
    %130 = vector.load %arg4[%c0_81, %c14, %c0_82, %c0_83] : memref<4x16x16x256xf32, #tpu.memory_space<vmem>>, vector<4x1x16x256xf32>
    tpu.vector_store %arg4[%c0_81, %c14, %c0_82, %c0_83], %129 {strides = array<i32>} : memref<4x16x16x256xf32, #tpu.memory_space<vmem>>, vector<4x1x16x256xf32>,
    %131 = vector.extract_strided_slice %10 {offsets = [0, 7, 0, 0], sizes = [4, 1, 16, 256], strides = [1, 1, 1, 1]} : vector<4x8x16x256xf32> to vector<4x1x16x256xf32>
    %132 = vector.extract_strided_slice %10 {offsets = [0, 7, 0, 0], sizes = [4, 1, 16, 256], strides = [1, 1, 1, 1]} : vector<4x8x16x256xf32> to vector<4x1x16x256xf32>
    %cst_84 = arith.constant 1.000000e+00 : f32
    %133 = vector.broadcast %cst_84 : f32 to vector<4x1x16x256xf32>
    %134 = arith.mulf %133, %131 : vector<4x1x16x256xf32>
    %cst_85 = arith.constant 0.000000e+00 : f32
    %135 = vector.broadcast %cst_85 : f32 to vector<4x1x16x256xf32>
    %136 = arith.mulf %135, %132 : vector<4x1x16x256xf32>
    %137 = arith.addf %134, %136 : vector<4x1x16x256xf32>
    %c0_86 = arith.constant 0 : index
    %c15 = arith.constant 15 : index
    %c0_87 = arith.constant 0 : index
    %c0_88 = arith.constant 0 : index
    %138 = vector.load %arg4[%c0_86, %c15, %c0_87, %c0_88] : memref<4x16x16x256xf32, #tpu.memory_space<vmem>>, vector<4x1x16x256xf32>
    tpu.vector_store %arg4[%c0_86, %c15, %c0_87, %c0_88], %137 {strides = array<i32>} : memref<4x16x16x256xf32, #tpu.memory_space<vmem>>, vector<4x1x16x256xf32>,
    return
  }
  func.func @transform_0(%arg0: i32) -> (i32, i32) {
    %c0_i32 = arith.constant 0 : i32
    %c0_i32_0 = arith.constant 0 : i32
    %c0_i32_1 = arith.constant 0 : i32
    return %c0_i32, %c0_i32_0 : i32, i32
  }
  func.func @transform_1(%arg0: i32) -> (i32, i32) {
    %c0_i32 = arith.constant 0 : i32
    %c0_i32_0 = arith.constant 0 : i32
    %c0_i32_1 = arith.constant 0 : i32
    return %c0_i32, %c0_i32_0 : i32, i32
  }
  func.func @transform_2(%arg0: i32) -> (i32, i32, i32, i32) {
    %c0_i32 = arith.constant 0 : i32
    %c0_i32_0 = arith.constant 0 : i32
    %c0_i32_1 = arith.constant 0 : i32
    %c0_i32_2 = arith.constant 0 : i32
    return %arg0, %c0_i32, %c0_i32_0, %c0_i32_1 : i32, i32, i32, i32
  }
  func.func @transform_3(%arg0: i32) -> (i32, i32, i32, i32) {
    %c0_i32 = arith.constant 0 : i32
    %c0_i32_0 = arith.constant 0 : i32
    %c0_i32_1 = arith.constant 0 : i32
    %c0_i32_2 = arith.constant 0 : i32
    return %arg0, %c0_i32, %c0_i32_0, %c0_i32_1 : i32, i32, i32, i32
  }
}

</mosaic_0001>

<llo_original>
// kernel: tpu_custom_call.1
$region0: #{tpu_custom_call.1}
  #allocation0 [shape = 'u32[]', space=smem, size = 0x4, offset = 0x4, fixed_abs, tag = 'smem constant byte address 0x4 - core index']
  #allocation1 [shape = 'u32[144,128]{1,0:T(1,128)}', space=vmem, size = 0x12000, scoped, tag = 'internal scratch']
  %s0 = inlined_call_operand.hbm [shape: f32[128,256], index: 0, kind: input, shape index: {}]
  %s1 = inlined_call_operand.vmem [shape: f32[16,8], index: 1, kind: input, shape index: {}]
  %s2 = inlined_call_operand.hbm [shape: f32[8,8,8,128], index: 2, kind: input, shape index: {}]
  %s3 = inlined_call_operand.hbm [shape: f32[8,16,16,256], index: 3, kind: output, shape index: {}]
  %s4 = sld [smem:[#allocation0]]
  $region53: #{tpu_custom_call.1} parent=0
    _
  %s6 = ssub.s32 1, %s4
  %s7 = scalar_select 0, %s6, %s4
  $region1: #{tpu_custom_call.1} parent=0
    #allocation2 [shape = 'u8[131072]{0}', space=vmem, size = 0x20000, scoped, tag = 'input window, operand 0, single buffered']
    #allocation3 [shape = 's32[2]{0}', space=sflag, size = 0x8, scoped, tag = 'scoped memory for tpu_custom_call.1']
    #allocation4 [shape = 's32[2]{0}', space=sflag, size = 0x8, scoped, tag = 'scoped memory for tpu_custom_call.1']
    #allocation5 [shape = 'u8[262144]{0}', space=vmem, size = 0x40000, scoped, tag = 'input window, operand 2']
    #allocation6 [shape = 's32[2]{0}', space=sflag, size = 0x8, scoped, tag = 'scoped memory for tpu_custom_call.1']
    #allocation7 [shape = 'u8[2097152]{0}', space=vmem, size = 0x200000, scoped, tag = 'output window, operand 0']
    %8 = vsyncpa [#allocation3], 0
    %9 = vsyncpa [#allocation6], 0
    %s10 = scalar_lea.sflag [#allocation6], 1
    %11 = vsyncpa %s10, 0
    %12 = vsyncpa [#allocation4], 0
    %s13 = scalar_lea.sflag [#allocation4], 1
    %14 = vsyncpa %s13, 0
    loop: start=0, step=1, limit=4
    $region2: #{tpu_custom_call.1} parent=1 // loop_pre_header
      _
    $region3: #{tpu_custom_call.1} parent=1 // loop_header
      %s16 = sphi 0, %s20
      %p17 = scmp.ge.s32.totalorder %s16, 4
      %s24 = sphi 0, %s24
      %s26 = sphi 0, %s24
      %s27 = sphi 0, %s26
      %s41 = sphi 0, %s27
      %s45 = sphi 0, %s45
      %s47 = sphi 0, %s45
      %s48 = sphi 0, %s47
      %s62 = sphi 0, %s48
      %s68 = sphi 0, %s70
      %s71 = sphi 0, %s68
      %s72 = sphi 0, %s71
      %s88 = sphi 0, %s72
      %s94 = sphi 0, %s96
      %s97 = sphi 0, %s94
      %s98 = sphi 0, %s97
      %s114 = sphi 0, %s98
    $region4: #{tpu_custom_call.1} parent=1 // loop_header_branch
      %19 = sbr.rel (%p17) target = $region8
    $region5: #{tpu_custom_call.1} parent=1 // loop_body
      %s21 = ssub.s32 %s16, 1
      %s22 = ssub.s32 %s16, 2
      %s23 = sadd.s32 %s16, 1
      %s25 = sadd.s32 %s24, 1
      %p28 = scmp.eq.s32.totalorder %s16, 1
      %p29 = scmp.ne.s32.totalorder %s24, %s26
      %p30 = scmp.eq.s32.totalorder %s16, 0
      %p31 = por %p29, %p30
      %p32 = scmp.ne.s32.totalorder %s24, %s26
      %p33 = scmp.eq.s32.totalorder %s21, 1
      %p34 = por %p32, %p33
      %p35 = scmp.ne.s32.totalorder %s26, %s27
      %p36 = scmp.eq.s32.totalorder %s21, 0
      %p37 = por %p35, %p36
      %p38 = scmp.ne.s32.totalorder %s26, %s27
      %p39 = scmp.eq.s32.totalorder %s22, 1
      %p40 = por %p38, %p39
      %p42 = scmp.ne.s32.totalorder %s27, %s41
      %p43 = scmp.eq.s32.totalorder %s22, 0
      %p44 = por %p42, %p43
      %s46 = sadd.s32 %s45, 1
      %p49 = scmp.eq.s32.totalorder %s16, 1
      %p50 = scmp.ne.s32.totalorder %s45, %s47
      %p51 = scmp.eq.s32.totalorder %s16, 0
      %p52 = por %p50, %p51
      %p53 = scmp.ne.s32.totalorder %s45, %s47
      %p54 = scmp.eq.s32.totalorder %s21, 1
      %p55 = por %p53, %p54
      %p56 = scmp.ne.s32.totalorder %s47, %s48
      %p57 = scmp.eq.s32.totalorder %s21, 0
      %p58 = por %p56, %p57
      %p59 = scmp.ne.s32.totalorder %s47, %s48
      %p60 = scmp.eq.s32.totalorder %s22, 1
      %p61 = por %p59, %p60
      %p63 = scmp.ne.s32.totalorder %s48, %s62
      %p64 = scmp.eq.s32.totalorder %s22, 0
      %p65 = por %p63, %p64
      %s66 = ssub.s32 %s16, %s23
      %p67 = scmp.eq.s32.totalorder %s66, 0
      %s69 = sadd.s32 %s68, 1
      %s70 = scalar_select %p67, %s68, %s69
      %p73 = pneg %p67
      %p74 = scmp.eq.s32.totalorder %s16, 1
      %p75 = por %p73, %p74
      %p76 = scmp.ne.s32.totalorder %s68, %s71
      %p77 = scmp.eq.s32.totalorder %s16, 0
      %p78 = por %p76, %p77
      %p79 = scmp.ne.s32.totalorder %s68, %s71
      %p80 = scmp.eq.s32.totalorder %s21, 1
      %p81 = por %p79, %p80
      %p82 = scmp.ne.s32.totalorder %s71, %s72
      %p83 = scmp.eq.s32.totalorder %s21, 0
      %p84 = por %p82, %p83
      %p85 = scmp.ne.s32.totalorder %s71, %s72
      %p86 = scmp.eq.s32.totalorder %s22, 1
      %p87 = por %p85, %p86
      %p89 = scmp.ne.s32.totalorder %s72, %s88
      %p90 = scmp.eq.s32.totalorder %s22, 0
      %p91 = por %p89, %p90
      %s92 = ssub.s32 %s16, %s23
      %p93 = scmp.eq.s32.totalorder %s92, 0
      %s95 = sadd.s32 %s94, 1
      %s96 = scalar_select %p93, %s94, %s95
      %p99 = pneg %p93
      %p100 = scmp.eq.s32.totalorder %s16, 1
      %p101 = por %p99, %p100
      %p102 = scmp.ne.s32.totalorder %s94, %s97
      %p103 = scmp.eq.s32.totalorder %s16, 0
      %p104 = por %p102, %p103
      %p105 = scmp.ne.s32.totalorder %s94, %s97
      %p106 = scmp.eq.s32.totalorder %s21, 1
      %p107 = por %p105, %p106
      %p108 = scmp.ne.s32.totalorder %s97, %s98
      %p109 = scmp.eq.s32.totalorder %s21, 0
      %p110 = por %p108, %p109
      %p111 = scmp.ne.s32.totalorder %s97, %s98
      %p112 = scmp.eq.s32.totalorder %s22, 1
      %p113 = por %p111, %p112
      %p115 = scmp.ne.s32.totalorder %s98, %s114
      %p116 = scmp.eq.s32.totalorder %s22, 0
      %p117 = por %p115, %p116
      %p118 = scmp.le.s32.totalorder 1, %s16
      %p119 = scmp.lt.s32.totalorder %s16, 3
      %p120 = pnand %p118, %p119
      %p121 = pneg %p120
      // Predicated region
      $region9: #{tpu_custom_call.1} parent=5 // pred_check
        _
      $region10: #{tpu_custom_call.1} parent=5 // pred_check_branch
        %123 = sbr.rel (%p120) target = $region12
      $region11: #{tpu_custom_call.1} parent=5 // pred_region
        %s124 = ssub.s32 %s16, 1
        // Predicated region
        $region13: #{tpu_custom_call.1} parent=11 // pred_check
          %p125 = pneg %p37
        $region14: #{tpu_custom_call.1} parent=11 // pred_check_branch
          %127 = sbr.rel (%p125) target = $region16
        $region15: #{tpu_custom_call.1} parent=11 // pred_region
          %s129 = ssub.s32 4096, 4096
          %130 = vsyncadd [#allocation3], %s129
          %s131 = sshll.u32 [#allocation2], 4
          %s132 = int_to_ptr.vmem [resolvable:$true] %s131
          %137 = dma.hbm_to_vmem [thread:$0]  %s0, 4096, %s132, [#allocation3], 256, 256, 16
        $region16: #{tpu_custom_call.1} parent=11 // pred_fallthru
          _
        // Predicated region
        $region17: #{tpu_custom_call.1} parent=11 // pred_check
          %p138 = pneg %p58
        $region18: #{tpu_custom_call.1} parent=11 // pred_check_branch
          %140 = sbr.rel (%p138) target = $region20
        $region19: #{tpu_custom_call.1} parent=11 // pred_region
          _
        $region20: #{tpu_custom_call.1} parent=11 // pred_fallthru
          _
      $region12: #{tpu_custom_call.1} parent=5 // pred_fallthru
        _
      %p141 = scmp.lt.s32.totalorder %s16, 2
      // Predicated region
      $region21: #{tpu_custom_call.1} parent=5 // pred_check
        %p142 = pneg %p141
      $region22: #{tpu_custom_call.1} parent=5 // pred_check_branch
        %144 = sbr.rel (%p142) target = $region24
      $region23: #{tpu_custom_call.1} parent=5 // pred_region
        // Predicated region
        $region25: #{tpu_custom_call.1} parent=23 // pred_check
          %p145 = pneg %p78
        $region26: #{tpu_custom_call.1} parent=23 // pred_check_branch
          %147 = sbr.rel (%p145) target = $region28
        $region27: #{tpu_custom_call.1} parent=23 // pred_region
          %s148 = sand.u32 %s68, 1
          %s149 = scalar_lea.sflag [#allocation6], %s148
          %s150 = sand.u32 %s68, 1
          %s151 = smul.addr %s150, 256
          %s152 = scalar_lea.vmem [#allocation5], %s151
          %s153 = smul.u32 4, %s16
          %s155 = ssub.s32 4096, 4096
          %156 = vsyncadd %s149, %s155
          %s157 = smul.addr %s153, 8
          %s158 = smul.addr %s157, 128
          %s159 = scalar_lea.hbm %s2, %s158
          %s160 = sshll.u32 %s152, 4
          %s161 = int_to_ptr.vmem [resolvable:$true] %s160
          %166 = dma.hbm_to_vmem [thread:$0]  %s159, 4096, %s161, %s149, 128, 128, 8
        $region28: #{tpu_custom_call.1} parent=23 // pred_fallthru
          _
      $region24: #{tpu_custom_call.1} parent=5 // pred_fallthru
        _
      %p167 = scmp.le.s32.totalorder 1, %s16
      %p168 = scmp.lt.s32.totalorder %s16, 3
      %p169 = pnand %p167, %p168
      %p170 = pneg %p169
      // Predicated region
      $region29: #{tpu_custom_call.1} parent=5 // pred_check
        _
      $region30: #{tpu_custom_call.1} parent=5 // pred_check_branch
        %172 = sbr.rel (%p169) target = $region32
      $region31: #{tpu_custom_call.1} parent=5 // pred_region
        %s173 = ssub.s32 %s16, 1
        // Predicated region
        $region33: #{tpu_custom_call.1} parent=31 // pred_check
          %p174 = pneg %p37
        $region34: #{tpu_custom_call.1} parent=31 // pred_check_branch
          %176 = sbr.rel (%p174) target = $region36
        $region35: #{tpu_custom_call.1} parent=31 // pred_region
          %177 = dma.done [#allocation3], 4096
        $region36: #{tpu_custom_call.1} parent=31 // pred_fallthru
          _
        %s178 = sand.u32 %s71, 1
        %s179 = scalar_lea.sflag [#allocation6], %s178
        %s180 = sand.u32 %s71, 1
        %s181 = smul.addr %s180, 256
        %s182 = scalar_lea.vmem [#allocation5], %s181
        // Predicated region
        $region37: #{tpu_custom_call.1} parent=31 // pred_check
          %p183 = pneg %p84
        $region38: #{tpu_custom_call.1} parent=31 // pred_check_branch
          %185 = sbr.rel (%p183) target = $region40
        $region39: #{tpu_custom_call.1} parent=31 // pred_region
          %186 = dma.done %s179, 4096
        $region40: #{tpu_custom_call.1} parent=31 // pred_fallthru
          _
        %p187 = pneg %p37
        %p188 = pneg %p34
        %p189 = pneg %p58
        %p190 = pneg %p55
        %s191 = sand.u32 %s71, 1
        %s192 = scalar_lea.sflag [#allocation6], %s191
        %s193 = sand.u32 %s71, 1
        %s194 = smul.addr %s193, 256
        %s195 = scalar_lea.vmem [#allocation5], %s194
        %p196 = pneg %p84
        %p197 = pneg %p81
        %p198 = pneg %p110
        %p199 = pneg %p107
        %s200 = sand.u32 %s97, 1
        %s201 = scalar_lea.sflag [#allocation4], %s200
        %s202 = sand.u32 %s97, 1
        %s203 = smul.addr %s202, 2048
        %s204 = scalar_lea.vmem [#allocation7], %s203
        %s205 = smul.u32 4, %s21
        %s206 = smul.u32 4, %s21
        %v207 = vld [vmem:[%s182] sm:$0xff]
        %v208 = vld [vmem:[%s182 + $0x8] sm:$0xff]
        %v209 = vld [vmem:[%s182 + $0x10] sm:$0xff]
        %v210 = vld [vmem:[%s182 + $0x18] sm:$0xff]
        %v211 = vld [vmem:[%s182 + $0x20] sm:$0xff]
        %v212 = vld [vmem:[%s182 + $0x28] sm:$0xff]
        %v213 = vld [vmem:[%s182 + $0x30] sm:$0xff]
        %v214 = vld [vmem:[%s182 + $0x38] sm:$0xff]
        %v215 = vld [vmem:[%s182 + $0x40] sm:$0xff]
        %v216 = vld [vmem:[%s182 + $0x48] sm:$0xff]
        %v217 = vld [vmem:[%s182 + $0x50] sm:$0xff]
        %v218 = vld [vmem:[%s182 + $0x58] sm:$0xff]
        %v219 = vld [vmem:[%s182 + $0x60] sm:$0xff]
        %v220 = vld [vmem:[%s182 + $0x68] sm:$0xff]
        %v221 = vld [vmem:[%s182 + $0x70] sm:$0xff]
        %v222 = vld [vmem:[%s182 + $0x78] sm:$0xff]
        %v223 = vld [vmem:[%s182 + $0x80] sm:$0xff]
        %v224 = vld [vmem:[%s182 + $0x88] sm:$0xff]
        %v225 = vld [vmem:[%s182 + $0x90] sm:$0xff]
        %v226 = vld [vmem:[%s182 + $0x98] sm:$0xff]
        %v227 = vld [vmem:[%s182 + $0xa0] sm:$0xff]
        %v228 = vld [vmem:[%s182 + $0xa8] sm:$0xff]
        %v229 = vld [vmem:[%s182 + $0xb0] sm:$0xff]
        %v230 = vld [vmem:[%s182 + $0xb8] sm:$0xff]
        %v231 = vld [vmem:[%s182 + $0xc0] sm:$0xff]
        %v232 = vld [vmem:[%s182 + $0xc8] sm:$0xff]
        %v233 = vld [vmem:[%s182 + $0xd0] sm:$0xff]
        %v234 = vld [vmem:[%s182 + $0xd8] sm:$0xff]
        %v235 = vld [vmem:[%s182 + $0xe0] sm:$0xff]
        %v236 = vld [vmem:[%s182 + $0xe8] sm:$0xff]
        %v237 = vld [vmem:[%s182 + $0xf0] sm:$0xff]
        %v238 = vld [vmem:[%s182 + $0xf8] sm:$0xff]
        %v239 = vld [vmem:[#allocation2] sm:$0xff]
        %v240 = vld [vmem:[#allocation2 + $0x8] sm:$0xff]
        %v241 = vld [vmem:[#allocation2 + $0x10] sm:$0xff]
        %v242 = vld [vmem:[#allocation2 + $0x18] sm:$0xff]
        %v243 = vld [vmem:[#allocation2 + $0x20] sm:$0xff]
        %v244 = vld [vmem:[#allocation2 + $0x28] sm:$0xff]
        %v245 = vld [vmem:[#allocation2 + $0x30] sm:$0xff]
        %v246 = vld [vmem:[#allocation2 + $0x38] sm:$0xff]
        %v247 = vld [vmem:[#allocation2 + $0x40] sm:$0xff]
        %v248 = vld [vmem:[#allocation2 + $0x48] sm:$0xff]
        %v249 = vld [vmem:[#allocation2 + $0x50] sm:$0xff]
        %v250 = vld [vmem:[#allocation2 + $0x58] sm:$0xff]
        %v251 = vld [vmem:[#allocation2 + $0x60] sm:$0xff]
        %v252 = vld [vmem:[#allocation2 + $0x68] sm:$0xff]
        %v253 = vld [vmem:[#allocation2 + $0x70] sm:$0xff]
        %v254 = vld [vmem:[#allocation2 + $0x78] sm:$0xff]
        %v255 = vld [vmem:[#allocation2 + $0x80] sm:$0xff]
        %v256 = vld [vmem:[#allocation2 + $0x88] sm:$0xff]
        %v257 = vld [vmem:[#allocation2 + $0x90] sm:$0xff]
        %v258 = vld [vmem:[#allocation2 + $0x98] sm:$0xff]
        %v259 = vld [vmem:[#allocation2 + $0xa0] sm:$0xff]
        %v260 = vld [vmem:[#allocation2 + $0xa8] sm:$0xff]
        %v261 = vld [vmem:[#allocation2 + $0xb0] sm:$0xff]
        %v262 = vld [vmem:[#allocation2 + $0xb8] sm:$0xff]
        %v263 = vld [vmem:[#allocation2 + $0xc0] sm:$0xff]
        %v264 = vld [vmem:[#allocation2 + $0xc8] sm:$0xff]
        %v265 = vld [vmem:[#allocation2 + $0xd0] sm:$0xff]
        %v266 = vld [vmem:[#allocation2 + $0xd8] sm:$0xff]
        %v267 = vld [vmem:[#allocation2 + $0xe0] sm:$0xff]
        %v268 = vld [vmem:[#allocation2 + $0xe8] sm:$0xff]
        %v269 = vld [vmem:[#allocation2 + $0xf0] sm:$0xff]
        %v270 = vld [vmem:[#allocation2 + $0xf8] sm:$0xff]
        %271 = vmatprep.subr.mxu0 %v240
        %272 = vmatpush1.msra.mxu0 %v239
        %273 = vmatprep.subr.mxu0 %v242
        %274 = vmatpush1.msra.mxu0 %v241
        %275 = vmatprep.subr.mxu0 %v244
        %276 = vmatpush1.msra.mxu0 %v243
        %277 = vmatprep.subr.mxu0 %v246
        %278 = vmatpush1.msra.mxu0 %v245
        %279 = vmatprep.subr.mxu0 %v248
        %280 = vmatpush1.msra.mxu0 %v247
        %281 = vmatprep.subr.mxu0 %v250
        %282 = vmatpush1.msra.mxu0 %v249
        %283 = vmatprep.subr.mxu0 %v252
        %284 = vmatpush1.msra.mxu0 %v251
        %285 = vmatprep.subr.mxu0 %v254
        %286 = vmatpush1.msra.mxu0 %v253
        %287 = vmatprep.subr.mxu0 %v256
        %288 = vmatpush1.msra.mxu0 %v255
        %289 = vmatprep.subr.mxu0 %v258
        %290 = vmatpush1.msra.mxu0 %v257
        %291 = vmatprep.subr.mxu0 %v260
        %292 = vmatpush1.msra.mxu0 %v259
        %293 = vmatprep.subr.mxu0 %v262
        %294 = vmatpush1.msra.mxu0 %v261
        %295 = vmatprep.subr.mxu0 %v264
        %296 = vmatpush1.msra.mxu0 %v263
        %297 = vmatprep.subr.mxu0 %v266
        %298 = vmatpush1.msra.mxu0 %v265
        %299 = vmatprep.subr.mxu0 %v268
        %300 = vmatpush1.msra.mxu0 %v267
        %301 = vmatprep.subr.mxu0 %v270
        %302 = vmatpush1.msra.mxu0 %v269
        %303 = vmatprep.subr.mxu0 0.0
        %304 = vmatpush1.msra.mxu0 0.0
        %305 = vmatprep.subr.mxu0 0.0
        %306 = vmatpush1.msra.mxu0 0.0
        %307 = vmatprep.subr.mxu0 0.0
        %308 = vmatpush1.msra.mxu0 0.0
        %309 = vmatprep.subr.mxu0 0.0
        %310 = vmatpush1.msra.mxu0 0.0
        %311 = vmatprep.subr.mxu0 0.0
        %312 = vmatpush1.msra.mxu0 0.0
        %313 = vmatprep.subr.mxu0 0.0
        %314 = vmatpush1.msra.mxu0 0.0
        %315 = vmatprep.subr.mxu0 0.0
        %316 = vmatpush1.msra.mxu0 0.0
        %317 = vmatprep.subr.mxu0 0.0
        %318 = vmatpush1.msra.mxu0 0.0
        %319 = vmatprep.subr.mxu0 0.0
        %320 = vmatpush1.msra.mxu0 0.0
        %321 = vmatprep.subr.mxu0 0.0
        %322 = vmatpush1.msra.mxu0 0.0
        %323 = vmatprep.subr.mxu0 0.0
        %324 = vmatpush1.msra.mxu0 0.0
        %325 = vmatprep.subr.mxu0 0.0
        %326 = vmatpush1.msra.mxu0 0.0
        %327 = vmatprep.subr.mxu0 0.0
        %328 = vmatpush1.msra.mxu0 0.0
        %329 = vmatprep.subr.mxu0 0.0
        %330 = vmatpush1.msra.mxu0 0.0
        %331 = vmatprep.subr.mxu0 0.0
        %332 = vmatpush1.msra.mxu0 0.0
        %333 = vmatprep.subr.mxu0 0.0
        %334 = vmatpush1.msra.mxu0 0.0
        %335 = vmatprep.mubr.f32.mxu0 0.0
        %336 = vmatmul.mubr.f32.gmra.mrb[0].mxu0 %v207
        %v337 = vpop.f32.mrb[0].mxu0
        %v338 = vadd.f32 0.0, %v337
        %v339 = vpop.f32.mrb[0].mxu0
        %v340 = vadd.f32 0.0, %v339
        %341 = vdwg.mxu0
        %342 = vmatprep.subr.mxu0 %v240
        %343 = vmatpush1.msra.mxu0 %v239
        %344 = vmatprep.subr.mxu0 %v242
        %345 = vmatpush1.msra.mxu0 %v241
        %346 = vmatprep.subr.mxu0 %v244
        %347 = vmatpush1.msra.mxu0 %v243
        %348 = vmatprep.subr.mxu0 %v246
        %349 = vmatpush1.msra.mxu0 %v245
        %350 = vmatprep.subr.mxu0 %v248
        %351 = vmatpush1.msra.mxu0 %v247
        %352 = vmatprep.subr.mxu0 %v250
        %353 = vmatpush1.msra.mxu0 %v249
        %354 = vmatprep.subr.mxu0 %v252
        %355 = vmatpush1.msra.mxu0 %v251
        %356 = vmatprep.subr.mxu0 %v254
        %357 = vmatpush1.msra.mxu0 %v253
        %358 = vmatprep.subr.mxu0 %v256
        %359 = vmatpush1.msra.mxu0 %v255
        %360 = vmatprep.subr.mxu0 %v258
        %361 = vmatpush1.msra.mxu0 %v257
        %362 = vmatprep.subr.mxu0 %v260
        %363 = vmatpush1.msra.mxu0 %v259
        %364 = vmatprep.subr.mxu0 %v262
        %365 = vmatpush1.msra.mxu0 %v261
        %366 = vmatprep.subr.mxu0 %v264
        %367 = vmatpush1.msra.mxu0 %v263
        %368 = vmatprep.subr.mxu0 %v266
        %369 = vmatpush1.msra.mxu0 %v265
        %370 = vmatprep.subr.mxu0 %v268
        %371 = vmatpush1.msra.mxu0 %v267
        %372 = vmatprep.subr.mxu0 %v270
        %373 = vmatpush1.msra.mxu0 %v269
        %374 = vmatprep.subr.mxu0 0.0
        %375 = vmatpush1.msra.mxu0 0.0
        %376 = vmatprep.subr.mxu0 0.0
        %377 = vmatpush1.msra.mxu0 0.0
        %378 = vmatprep.subr.mxu0 0.0
        %379 = vmatpush1.msra.mxu0 0.0
        %380 = vmatprep.subr.mxu0 0.0
        %381 = vmatpush1.msra.mxu0 0.0
        %382 = vmatprep.subr.mxu0 0.0
        %383 = vmatpush1.msra.mxu0 0.0
        %384 = vmatprep.subr.mxu0 0.0
        %385 = vmatpush1.msra.mxu0 0.0
        %386 = vmatprep.subr.mxu0 0.0
        %387 = vmatpush1.msra.mxu0 0.0
        %388 = vmatprep.subr.mxu0 0.0
        %389 = vmatpush1.msra.mxu0 0.0
        %390 = vmatprep.subr.mxu0 0.0
        %391 = vmatpush1.msra.mxu0 0.0
        %392 = vmatprep.subr.mxu0 0.0
        %393 = vmatpush1.msra.mxu0 0.0
        %394 = vmatprep.subr.mxu0 0.0
        %395 = vmatpush1.msra.mxu0 0.0
        %396 = vmatprep.subr.mxu0 0.0
        %397 = vmatpush1.msra.mxu0 0.0
        %398 = vmatprep.subr.mxu0 0.0
        %399 = vmatpush1.msra.mxu0 0.0
        %400 = vmatprep.subr.mxu0 0.0
        %401 = vmatpush1.msra.mxu0 0.0
        %402 = vmatprep.subr.mxu0 0.0
        %403 = vmatpush1.msra.mxu0 0.0
        %404 = vmatprep.subr.mxu0 0.0
        %405 = vmatpush1.msra.mxu0 0.0
        %406 = vmatprep.mubr.f32.mxu0 0.0
        %407 = vmatmul.mubr.f32.gmra.mrb[0].mxu0 %v208
        %v408 = vpop.f32.mrb[0].mxu0
        %v409 = vadd.f32 0.0, %v408
        %v410 = vpop.f32.mrb[0].mxu0
        %v411 = vadd.f32 0.0, %v410
        %412 = vdwg.mxu0
        %413 = vmatprep.subr.mxu0 %v240
        %414 = vmatpush1.msra.mxu0 %v239
        %415 = vmatprep.subr.mxu0 %v242
        %416 = vmatpush1.msra.mxu0 %v241
        %417 = vmatprep.subr.mxu0 %v244
        %418 = vmatpush1.msra.mxu0 %v243
        %419 = vmatprep.subr.mxu0 %v246
        %420 = vmatpush1.msra.mxu0 %v245
        %421 = vmatprep.subr.mxu0 %v248
        %422 = vmatpush1.msra.mxu0 %v247
        %423 = vmatprep.subr.mxu0 %v250
        %424 = vmatpush1.msra.mxu0 %v249
        %425 = vmatprep.subr.mxu0 %v252
        %426 = vmatpush1.msra.mxu0 %v251
        %427 = vmatprep.subr.mxu0 %v254
        %428 = vmatpush1.msra.mxu0 %v253
        %429 = vmatprep.subr.mxu0 %v256
        %430 = vmatpush1.msra.mxu0 %v255
        %431 = vmatprep.subr.mxu0 %v258
        %432 = vmatpush1.msra.mxu0 %v257
        %433 = vmatprep.subr.mxu0 %v260
        %434 = vmatpush1.msra.mxu0 %v259
        %435 = vmatprep.subr.mxu0 %v262
        %436 = vmatpush1.msra.mxu0 %v261
        %437 = vmatprep.subr.mxu0 %v264
        %438 = vmatpush1.msra.mxu0 %v263
        %439 = vmatprep.subr.mxu0 %v266
        %440 = vmatpush1.msra.mxu0 %v265
        %441 = vmatprep.subr.mxu0 %v268
        %442 = vmatpush1.msra.mxu0 %v267
        %443 = vmatprep.subr.mxu0 %v270
        %444 = vmatpush1.msra.mxu0 %v269
        %445 = vmatprep.subr.mxu0 0.0
        %446 = vmatpush1.msra.mxu0 0.0
        %447 = vmatprep.subr.mxu0 0.0
        %448 = vmatpush1.msra.mxu0 0.0
        %449 = vmatprep.subr.mxu0 0.0
        %450 = vmatpush1.msra.mxu0 0.0
        %451 = vmatprep.subr.mxu0 0.0
        %452 = vmatpush1.msra.mxu0 0.0
        %453 = vmatprep.subr.mxu0 0.0
        %454 = vmatpush1.msra.mxu0 0.0
        %455 = vmatprep.subr.mxu0 0.0
        %456 = vmatpush1.msra.mxu0 0.0
        %457 = vmatprep.subr.mxu0 0.0
        %458 = vmatpush1.msra.mxu0 0.0
        %459 = vmatprep.subr.mxu0 0.0
        %460 = vmatpush1.msra.mxu0 0.0
        %461 = vmatprep.subr.mxu0 0.0
        %462 = vmatpush1.msra.mxu0 0.0
        %463 = vmatprep.subr.mxu0 0.0
        %464 = vmatpush1.msra.mxu0 0.0
        %465 = vmatprep.subr.mxu0 0.0
        %466 = vmatpush1.msra.mxu0 0.0
        %467 = vmatprep.subr.mxu0 0.0
        %468 = vmatpush1.msra.mxu0 0.0
        %469 = vmatprep.subr.mxu0 0.0
        %470 = vmatpush1.msra.mxu0 0.0
        %471 = vmatprep.subr.mxu0 0.0
        %472 = vmatpush1.msra.mxu0 0.0
        %473 = vmatprep.subr.mxu0 0.0
        %474 = vmatpush1.msra.mxu0 0.0
        %475 = vmatprep.subr.mxu0 0.0
        %476 = vmatpush1.msra.mxu0 0.0
        %477 = vmatprep.mubr.f32.mxu0 0.0
        %478 = vmatmul.mubr.f32.gmra.mrb[0].mxu0 %v209
        %v479 = vpop.f32.mrb[0].mxu0
        %v480 = vadd.f32 0.0, %v479
        %v481 = vpop.f32.mrb[0].mxu0
        %v482 = vadd.f32 0.0, %v481
        %483 = vdwg.mxu0
        %484 = vmatprep.subr.mxu0 %v240
        %485 = vmatpush1.msra.mxu0 %v239
        %486 = vmatprep.subr.mxu0 %v242
        %487 = vmatpush1.msra.mxu0 %v241
        %488 = vmatprep.subr.mxu0 %v244
        %489 = vmatpush1.msra.mxu0 %v243
        %490 = vmatprep.subr.mxu0 %v246
        %491 = vmatpush1.msra.mxu0 %v245
        %492 = vmatprep.subr.mxu0 %v248
        %493 = vmatpush1.msra.mxu0 %v247
        %494 = vmatprep.subr.mxu0 %v250
        %495 = vmatpush1.msra.mxu0 %v249
        %496 = vmatprep.subr.mxu0 %v252
        %497 = vmatpush1.msra.mxu0 %v251
        %498 = vmatprep.subr.mxu0 %v254
        %499 = vmatpush1.msra.mxu0 %v253
        %500 = vmatprep.subr.mxu0 %v256
        %501 = vmatpush1.msra.mxu0 %v255
        %502 = vmatprep.subr.mxu0 %v258
        %503 = vmatpush1.msra.mxu0 %v257
        %504 = vmatprep.subr.mxu0 %v260
        %505 = vmatpush1.msra.mxu0 %v259
        %506 = vmatprep.subr.mxu0 %v262
        %507 = vmatpush1.msra.mxu0 %v261
        %508 = vmatprep.subr.mxu0 %v264
        %509 = vmatpush1.msra.mxu0 %v263
        %510 = vmatprep.subr.mxu0 %v266
        %511 = vmatpush1.msra.mxu0 %v265
        %512 = vmatprep.subr.mxu0 %v268
        %513 = vmatpush1.msra.mxu0 %v267
        %514 = vmatprep.subr.mxu0 %v270
        %515 = vmatpush1.msra.mxu0 %v269
        %516 = vmatprep.subr.mxu0 0.0
        %517 = vmatpush1.msra.mxu0 0.0
        %518 = vmatprep.subr.mxu0 0.0
        %519 = vmatpush1.msra.mxu0 0.0
        %520 = vmatprep.subr.mxu0 0.0
        %521 = vmatpush1.msra.mxu0 0.0
        %522 = vmatprep.subr.mxu0 0.0
        %523 = vmatpush1.msra.mxu0 0.0
        %524 = vmatprep.subr.mxu0 0.0
        %525 = vmatpush1.msra.mxu0 0.0
        %526 = vmatprep.subr.mxu0 0.0
        %527 = vmatpush1.msra.mxu0 0.0
        %528 = vmatprep.subr.mxu0 0.0
        %529 = vmatpush1.msra.mxu0 0.0
        %530 = vmatprep.subr.mxu0 0.0
        %531 = vmatpush1.msra.mxu0 0.0
        %532 = vmatprep.subr.mxu0 0.0
        %533 = vmatpush1.msra.mxu0 0.0
        %534 = vmatprep.subr.mxu0 0.0
        %535 = vmatpush1.msra.mxu0 0.0
        %536 = vmatprep.subr.mxu0 0.0
        %537 = vmatpush1.msra.mxu0 0.0
        %538 = vmatprep.subr.mxu0 0.0
        %539 = vmatpush1.msra.mxu0 0.0
        %540 = vmatprep.subr.mxu0 0.0
        %541 = vmatpush1.msra.mxu0 0.0
        %542 = vmatprep.subr.mxu0 0.0
        %543 = vmatpush1.msra.mxu0 0.0
        %544 = vmatprep.subr.mxu0 0.0
        %545 = vmatpush1.msra.mxu0 0.0
        %546 = vmatprep.subr.mxu0 0.0
        %547 = vmatpush1.msra.mxu0 0.0
        %548 = vmatprep.mubr.f32.mxu0 0.0
        %549 = vmatmul.mubr.f32.gmra.mrb[0].mxu0 %v210
        %v550 = vpop.f32.mrb[0].mxu0
        %v551 = vadd.f32 0.0, %v550
        %v552 = vpop.f32.mrb[0].mxu0
        %v553 = vadd.f32 0.0, %v552
        %554 = vdwg.mxu0
        %555 = vmatprep.subr.mxu0 %v240
        %556 = vmatpush1.msra.mxu0 %v239
        %557 = vmatprep.subr.mxu0 %v242
        %558 = vmatpush1.msra.mxu0 %v241
        %559 = vmatprep.subr.mxu0 %v244
        %560 = vmatpush1.msra.mxu0 %v243
        %561 = vmatprep.subr.mxu0 %v246
        %562 = vmatpush1.msra.mxu0 %v245
        %563 = vmatprep.subr.mxu0 %v248
        %564 = vmatpush1.msra.mxu0 %v247
        %565 = vmatprep.subr.mxu0 %v250
        %566 = vmatpush1.msra.mxu0 %v249
        %567 = vmatprep.subr.mxu0 %v252
        %568 = vmatpush1.msra.mxu0 %v251
        %569 = vmatprep.subr.mxu0 %v254
        %570 = vmatpush1.msra.mxu0 %v253
        %571 = vmatprep.subr.mxu0 %v256
        %572 = vmatpush1.msra.mxu0 %v255
        %573 = vmatprep.subr.mxu0 %v258
        %574 = vmatpush1.msra.mxu0 %v257
        %575 = vmatprep.subr.mxu0 %v260
        %576 = vmatpush1.msra.mxu0 %v259
        %577 = vmatprep.subr.mxu0 %v262
        %578 = vmatpush1.msra.mxu0 %v261
        %579 = vmatprep.subr.mxu0 %v264
        %580 = vmatpush1.msra.mxu0 %v263
        %581 = vmatprep.subr.mxu0 %v266
        %582 = vmatpush1.msra.mxu0 %v265
        %583 = vmatprep.subr.mxu0 %v268
        %584 = vmatpush1.msra.mxu0 %v267
        %585 = vmatprep.subr.mxu0 %v270
        %586 = vmatpush1.msra.mxu0 %v269
        %587 = vmatprep.subr.mxu0 0.0
        %588 = vmatpush1.msra.mxu0 0.0
        %589 = vmatprep.subr.mxu0 0.0
        %590 = vmatpush1.msra.mxu0 0.0
        %591 = vmatprep.subr.mxu0 0.0
        %592 = vmatpush1.msra.mxu0 0.0
        %593 = vmatprep.subr.mxu0 0.0
        %594 = vmatpush1.msra.mxu0 0.0
        %595 = vmatprep.subr.mxu0 0.0
        %596 = vmatpush1.msra.mxu0 0.0
        %597 = vmatprep.subr.mxu0 0.0
        %598 = vmatpush1.msra.mxu0 0.0
        %599 = vmatprep.subr.mxu0 0.0
        %600 = vmatpush1.msra.mxu0 0.0
        %601 = vmatprep.subr.mxu0 0.0
        %602 = vmatpush1.msra.mxu0 0.0
        %603 = vmatprep.subr.mxu0 0.0
        %604 = vmatpush1.msra.mxu0 0.0
        %605 = vmatprep.subr.mxu0 0.0
        %606 = vmatpush1.msra.mxu0 0.0
        %607 = vmatprep.subr.mxu0 0.0
        %608 = vmatpush1.msra.mxu0 0.0
        %609 = vmatprep.subr.mxu0 0.0
        %610 = vmatpush1.msra.mxu0 0.0
        %611 = vmatprep.subr.mxu0 0.0
        %612 = vmatpush1.msra.mxu0 0.0
        %613 = vmatprep.subr.mxu0 0.0
        %614 = vmatpush1.msra.mxu0 0.0
        %615 = vmatprep.subr.mxu0 0.0
        %616 = vmatpush1.msra.mxu0 0.0
        %617 = vmatprep.subr.mxu0 0.0
        %618 = vmatpush1.msra.mxu0 0.0
        %619 = vmatprep.mubr.f32.mxu0 0.0
        %620 = vmatmul.mubr.f32.gmra.mrb[0].mxu0 %v211
        %v621 = vpop.f32.mrb[0].mxu0
        %v622 = vadd.f32 0.0, %v621
        %v623 = vpop.f32.mrb[0].mxu0
        %v624 = vadd.f32 0.0, %v623
        %625 = vdwg.mxu0
        %626 = vmatprep.subr.mxu0 %v240
        %627 = vmatpush1.msra.mxu0 %v239
        %628 = vmatprep.subr.mxu0 %v242
        %629 = vmatpush1.msra.mxu0 %v241
        %630 = vmatprep.subr.mxu0 %v244
        %631 = vmatpush1.msra.mxu0 %v243
        %632 = vmatprep.subr.mxu0 %v246
        %633 = vmatpush1.msra.mxu0 %v245
        %634 = vmatprep.subr.mxu0 %v248
        %635 = vmatpush1.msra.mxu0 %v247
        %636 = vmatprep.subr.mxu0 %v250
        %637 = vmatpush1.msra.mxu0 %v249
        %638 = vmatprep.subr.mxu0 %v252
        %639 = vmatpush1.msra.mxu0 %v251
        %640 = vmatprep.subr.mxu0 %v254
        %641 = vmatpush1.msra.mxu0 %v253
        %642 = vmatprep.subr.mxu0 %v256
        %643 = vmatpush1.msra.mxu0 %v255
        %644 = vmatprep.subr.mxu0 %v258
        %645 = vmatpush1.msra.mxu0 %v257
        %646 = vmatprep.subr.mxu0 %v260
        %647 = vmatpush1.msra.mxu0 %v259
        %648 = vmatprep.subr.mxu0 %v262
        %649 = vmatpush1.msra.mxu0 %v261
        %650 = vmatprep.subr.mxu0 %v264
        %651 = vmatpush1.msra.mxu0 %v263
        %652 = vmatprep.subr.mxu0 %v266
        %653 = vmatpush1.msra.mxu0 %v265
        %654 = vmatprep.subr.mxu0 %v268
        %655 = vmatpush1.msra.mxu0 %v267
        %656 = vmatprep.subr.mxu0 %v270
        %657 = vmatpush1.msra.mxu0 %v269
        %658 = vmatprep.subr.mxu0 0.0
        %659 = vmatpush1.msra.mxu0 0.0
        %660 = vmatprep.subr.mxu0 0.0
        %661 = vmatpush1.msra.mxu0 0.0
        %662 = vmatprep.subr.mxu0 0.0
        %663 = vmatpush1.msra.mxu0 0.0
        %664 = vmatprep.subr.mxu0 0.0
        %665 = vmatpush1.msra.mxu0 0.0
        %666 = vmatprep.subr.mxu0 0.0
        %667 = vmatpush1.msra.mxu0 0.0
        %668 = vmatprep.subr.mxu0 0.0
        %669 = vmatpush1.msra.mxu0 0.0
        %670 = vmatprep.subr.mxu0 0.0
        %671 = vmatpush1.msra.mxu0 0.0
        %672 = vmatprep.subr.mxu0 0.0
        %673 = vmatpush1.msra.mxu0 0.0
        %674 = vmatprep.subr.mxu0 0.0
        %675 = vmatpush1.msra.mxu0 0.0
        %676 = vmatprep.subr.mxu0 0.0
        %677 = vmatpush1.msra.mxu0 0.0
        %678 = vmatprep.subr.mxu0 0.0
        %679 = vmatpush1.msra.mxu0 0.0
        %680 = vmatprep.subr.mxu0 0.0
        %681 = vmatpush1.msra.mxu0 0.0
        %682 = vmatprep.subr.mxu0 0.0
        %683 = vmatpush1.msra.mxu0 0.0
        %684 = vmatprep.subr.mxu0 0.0
        %685 = vmatpush1.msra.mxu0 0.0
        %686 = vmatprep.subr.mxu0 0.0
        %687 = vmatpush1.msra.mxu0 0.0
        %688 = vmatprep.subr.mxu0 0.0
        %689 = vmatpush1.msra.mxu0 0.0
        %690 = vmatprep.mubr.f32.mxu0 0.0
        %691 = vmatmul.mubr.f32.gmra.mrb[0].mxu0 %v212
        %v692 = vpop.f32.mrb[0].mxu0
        %v693 = vadd.f32 0.0, %v692
        %v694 = vpop.f32.mrb[0].mxu0
        %v695 = vadd.f32 0.0, %v694
        %696 = vdwg.mxu0
        %697 = vmatprep.subr.mxu0 %v240
        %698 = vmatpush1.msra.mxu0 %v239
        %699 = vmatprep.subr.mxu0 %v242
        %700 = vmatpush1.msra.mxu0 %v241
        %701 = vmatprep.subr.mxu0 %v244
        %702 = vmatpush1.msra.mxu0 %v243
        %703 = vmatprep.subr.mxu0 %v246
        %704 = vmatpush1.msra.mxu0 %v245
        %705 = vmatprep.subr.mxu0 %v248
        %706 = vmatpush1.msra.mxu0 %v247
        %707 = vmatprep.subr.mxu0 %v250
        %708 = vmatpush1.msra.mxu0 %v249
        %709 = vmatprep.subr.mxu0 %v252
        %710 = vmatpush1.msra.mxu0 %v251
        %711 = vmatprep.subr.mxu0 %v254
        %712 = vmatpush1.msra.mxu0 %v253
        %713 = vmatprep.subr.mxu0 %v256
        %714 = vmatpush1.msra.mxu0 %v255
        %715 = vmatprep.subr.mxu0 %v258
        %716 = vmatpush1.msra.mxu0 %v257
        %717 = vmatprep.subr.mxu0 %v260
        %718 = vmatpush1.msra.mxu0 %v259
        %719 = vmatprep.subr.mxu0 %v262
        %720 = vmatpush1.msra.mxu0 %v261
        %721 = vmatprep.subr.mxu0 %v264
        %722 = vmatpush1.msra.mxu0 %v263
        %723 = vmatprep.subr.mxu0 %v266
        %724 = vmatpush1.msra.mxu0 %v265
        %725 = vmatprep.subr.mxu0 %v268
        %726 = vmatpush1.msra.mxu0 %v267
        %727 = vmatprep.subr.mxu0 %v270
        %728 = vmatpush1.msra.mxu0 %v269
        %729 = vmatprep.subr.mxu0 0.0
        %730 = vmatpush1.msra.mxu0 0.0
        %731 = vmatprep.subr.mxu0 0.0
        %732 = vmatpush1.msra.mxu0 0.0
        %733 = vmatprep.subr.mxu0 0.0
        %734 = vmatpush1.msra.mxu0 0.0
        %735 = vmatprep.subr.mxu0 0.0
        %736 = vmatpush1.msra.mxu0 0.0
        %737 = vmatprep.subr.mxu0 0.0
        %738 = vmatpush1.msra.mxu0 0.0
        %739 = vmatprep.subr.mxu0 0.0
        %740 = vmatpush1.msra.mxu0 0.0
        %741 = vmatprep.subr.mxu0 0.0
        %742 = vmatpush1.msra.mxu0 0.0
        %743 = vmatprep.subr.mxu0 0.0
        %744 = vmatpush1.msra.mxu0 0.0
        %745 = vmatprep.subr.mxu0 0.0
        %746 = vmatpush1.msra.mxu0 0.0
        %747 = vmatprep.subr.mxu0 0.0
        %748 = vmatpush1.msra.mxu0 0.0
        %749 = vmatprep.subr.mxu0 0.0
        %750 = vmatpush1.msra.mxu0 0.0
        %751 = vmatprep.subr.mxu0 0.0
        %752 = vmatpush1.msra.mxu0 0.0
        %753 = vmatprep.subr.mxu0 0.0
        %754 = vmatpush1.msra.mxu0 0.0
        %755 = vmatprep.subr.mxu0 0.0
        %756 = vmatpush1.msra.mxu0 0.0
        %757 = vmatprep.subr.mxu0 0.0
        %758 = vmatpush1.msra.mxu0 0.0
        %759 = vmatprep.subr.mxu0 0.0
        %760 = vmatpush1.msra.mxu0 0.0
        %761 = vmatprep.mubr.f32.mxu0 0.0
        %762 = vmatmul.mubr.f32.gmra.mrb[0].mxu0 %v213
        %v763 = vpop.f32.mrb[0].mxu0
        %v764 = vadd.f32 0.0, %v763
        %v765 = vpop.f32.mrb[0].mxu0
        %v766 = vadd.f32 0.0, %v765
        %767 = vdwg.mxu0
        %768 = vmatprep.subr.mxu0 %v240
        %769 = vmatpush1.msra.mxu0 %v239
        %770 = vmatprep.subr.mxu0 %v242
        %771 = vmatpush1.msra.mxu0 %v241
        %772 = vmatprep.subr.mxu0 %v244
        %773 = vmatpush1.msra.mxu0 %v243
        %774 = vmatprep.subr.mxu0 %v246
        %775 = vmatpush1.msra.mxu0 %v245
        %776 = vmatprep.subr.mxu0 %v248
        %777 = vmatpush1.msra.mxu0 %v247
        %778 = vmatprep.subr.mxu0 %v250
        %779 = vmatpush1.msra.mxu0 %v249
        %780 = vmatprep.subr.mxu0 %v252
        %781 = vmatpush1.msra.mxu0 %v251
        %782 = vmatprep.subr.mxu0 %v254
        %783 = vmatpush1.msra.mxu0 %v253
        %784 = vmatprep.subr.mxu0 %v256
        %785 = vmatpush1.msra.mxu0 %v255
        %786 = vmatprep.subr.mxu0 %v258
        %787 = vmatpush1.msra.mxu0 %v257
        %788 = vmatprep.subr.mxu0 %v260
        %789 = vmatpush1.msra.mxu0 %v259
        %790 = vmatprep.subr.mxu0 %v262
        %791 = vmatpush1.msra.mxu0 %v261
        %792 = vmatprep.subr.mxu0 %v264
        %793 = vmatpush1.msra.mxu0 %v263
        %794 = vmatprep.subr.mxu0 %v266
        %795 = vmatpush1.msra.mxu0 %v265
        %796 = vmatprep.subr.mxu0 %v268
        %797 = vmatpush1.msra.mxu0 %v267
        %798 = vmatprep.subr.mxu0 %v270
        %799 = vmatpush1.msra.mxu0 %v269
        %800 = vmatprep.subr.mxu0 0.0
        %801 = vmatpush1.msra.mxu0 0.0
        %802 = vmatprep.subr.mxu0 0.0
        %803 = vmatpush1.msra.mxu0 0.0
        %804 = vmatprep.subr.mxu0 0.0
        %805 = vmatpush1.msra.mxu0 0.0
        %806 = vmatprep.subr.mxu0 0.0
        %807 = vmatpush1.msra.mxu0 0.0
        %808 = vmatprep.subr.mxu0 0.0
        %809 = vmatpush1.msra.mxu0 0.0
        %810 = vmatprep.subr.mxu0 0.0
        %811 = vmatpush1.msra.mxu0 0.0
        %812 = vmatprep.subr.mxu0 0.0
        %813 = vmatpush1.msra.mxu0 0.0
        %814 = vmatprep.subr.mxu0 0.0
        %815 = vmatpush1.msra.mxu0 0.0
        %816 = vmatprep.subr.mxu0 0.0
        %817 = vmatpush1.msra.mxu0 0.0
        %818 = vmatprep.subr.mxu0 0.0
        %819 = vmatpush1.msra.mxu0 0.0
        %820 = vmatprep.subr.mxu0 0.0
        %821 = vmatpush1.msra.mxu0 0.0
        %822 = vmatprep.subr.mxu0 0.0
        %823 = vmatpush1.msra.mxu0 0.0
        %824 = vmatprep.subr.mxu0 0.0
        %825 = vmatpush1.msra.mxu0 0.0
        %826 = vmatprep.subr.mxu0 0.0
        %827 = vmatpush1.msra.mxu0 0.0
        %828 = vmatprep.subr.mxu0 0.0
        %829 = vmatpush1.msra.mxu0 0.0
        %830 = vmatprep.subr.mxu0 0.0
        %831 = vmatpush1.msra.mxu0 0.0
        %832 = vmatprep.mubr.f32.mxu0 0.0
        %833 = vmatmul.mubr.f32.gmra.mrb[0].mxu0 %v214
        %v834 = vpop.f32.mrb[0].mxu0
        %v835 = vadd.f32 0.0, %v834
        %v836 = vpop.f32.mrb[0].mxu0
        %v837 = vadd.f32 0.0, %v836
        %838 = vdwg.mxu0
        %839 = vmatprep.subr.mxu0 %v240
        %840 = vmatpush1.msra.mxu0 %v239
        %841 = vmatprep.subr.mxu0 %v242
        %842 = vmatpush1.msra.mxu0 %v241
        %843 = vmatprep.subr.mxu0 %v244
        %844 = vmatpush1.msra.mxu0 %v243
        %845 = vmatprep.subr.mxu0 %v246
        %846 = vmatpush1.msra.mxu0 %v245
        %847 = vmatprep.subr.mxu0 %v248
        %848 = vmatpush1.msra.mxu0 %v247
        %849 = vmatprep.subr.mxu0 %v250
        %850 = vmatpush1.msra.mxu0 %v249
        %851 = vmatprep.subr.mxu0 %v252
        %852 = vmatpush1.msra.mxu0 %v251
        %853 = vmatprep.subr.mxu0 %v254
        %854 = vmatpush1.msra.mxu0 %v253
        %855 = vmatprep.subr.mxu0 %v256
        %856 = vmatpush1.msra.mxu0 %v255
        %857 = vmatprep.subr.mxu0 %v258
        %858 = vmatpush1.msra.mxu0 %v257
        %859 = vmatprep.subr.mxu0 %v260
        %860 = vmatpush1.msra.mxu0 %v259
        %861 = vmatprep.subr.mxu0 %v262
        %862 = vmatpush1.msra.mxu0 %v261
        %863 = vmatprep.subr.mxu0 %v264
        %864 = vmatpush1.msra.mxu0 %v263
        %865 = vmatprep.subr.mxu0 %v266
        %866 = vmatpush1.msra.mxu0 %v265
        %867 = vmatprep.subr.mxu0 %v268
        %868 = vmatpush1.msra.mxu0 %v267
        %869 = vmatprep.subr.mxu0 %v270
        %870 = vmatpush1.msra.mxu0 %v269
        %871 = vmatprep.subr.mxu0 0.0
        %872 = vmatpush1.msra.mxu0 0.0
        %873 = vmatprep.subr.mxu0 0.0
        %874 = vmatpush1.msra.mxu0 0.0
        %875 = vmatprep.subr.mxu0 0.0
        %876 = vmatpush1.msra.mxu0 0.0
        %877 = vmatprep.subr.mxu0 0.0
        %878 = vmatpush1.msra.mxu0 0.0
        %879 = vmatprep.subr.mxu0 0.0
        %880 = vmatpush1.msra.mxu0 0.0
        %881 = vmatprep.subr.mxu0 0.0
        %882 = vmatpush1.msra.mxu0 0.0
        %883 = vmatprep.subr.mxu0 0.0
        %884 = vmatpush1.msra.mxu0 0.0
        %885 = vmatprep.subr.mxu0 0.0
        %886 = vmatpush1.msra.mxu0 0.0
        %887 = vmatprep.subr.mxu0 0.0
        %888 = vmatpush1.msra.mxu0 0.0
        %889 = vmatprep.subr.mxu0 0.0
        %890 = vmatpush1.msra.mxu0 0.0
        %891 = vmatprep.subr.mxu0 0.0
        %892 = vmatpush1.msra.mxu0 0.0
        %893 = vmatprep.subr.mxu0 0.0
        %894 = vmatpush1.msra.mxu0 0.0
        %895 = vmatprep.subr.mxu0 0.0
        %896 = vmatpush1.msra.mxu0 0.0
        %897 = vmatprep.subr.mxu0 0.0
        %898 = vmatpush1.msra.mxu0 0.0
        %899 = vmatprep.subr.mxu0 0.0
        %900 = vmatpush1.msra.mxu0 0.0
        %901 = vmatprep.subr.mxu0 0.0
        %902 = vmatpush1.msra.mxu0 0.0
        %903 = vmatprep.mubr.f32.mxu0 0.0
        %904 = vmatmul.mubr.f32.gmra.mrb[0].mxu0 %v215
        %v905 = vpop.f32.mrb[0].mxu0
        %v906 = vadd.f32 0.0, %v905
        %v907 = vpop.f32.mrb[0].mxu0
        %v908 = vadd.f32 0.0, %v907
        %909 = vdwg.mxu0
        %910 = vmatprep.subr.mxu0 %v240
        %911 = vmatpush1.msra.mxu0 %v239
        %912 = vmatprep.subr.mxu0 %v242
        %913 = vmatpush1.msra.mxu0 %v241
        %914 = vmatprep.subr.mxu0 %v244
        %915 = vmatpush1.msra.mxu0 %v243
        %916 = vmatprep.subr.mxu0 %v246
        %917 = vmatpush1.msra.mxu0 %v245
        %918 = vmatprep.subr.mxu0 %v248
        %919 = vmatpush1.msra.mxu0 %v247
        %920 = vmatprep.subr.mxu0 %v250
        %921 = vmatpush1.msra.mxu0 %v249
        %922 = vmatprep.subr.mxu0 %v252
        %923 = vmatpush1.msra.mxu0 %v251
        %924 = vmatprep.subr.mxu0 %v254
        %925 = vmatpush1.msra.mxu0 %v253
        %926 = vmatprep.subr.mxu0 %v256
        %927 = vmatpush1.msra.mxu0 %v255
        %928 = vmatprep.subr.mxu0 %v258
        %929 = vmatpush1.msra.mxu0 %v257
        %930 = vmatprep.subr.mxu0 %v260
        %931 = vmatpush1.msra.mxu0 %v259
        %932 = vmatprep.subr.mxu0 %v262
        %933 = vmatpush1.msra.mxu0 %v261
        %934 = vmatprep.subr.mxu0 %v264
        %935 = vmatpush1.msra.mxu0 %v263
        %936 = vmatprep.subr.mxu0 %v266
        %937 = vmatpush1.msra.mxu0 %v265
        %938 = vmatprep.subr.mxu0 %v268
        %939 = vmatpush1.msra.mxu0 %v267
        %940 = vmatprep.subr.mxu0 %v270
        %941 = vmatpush1.msra.mxu0 %v269
        %942 = vmatprep.subr.mxu0 0.0
        %943 = vmatpush1.msra.mxu0 0.0
        %944 = vmatprep.subr.mxu0 0.0
        %945 = vmatpush1.msra.mxu0 0.0
        %946 = vmatprep.subr.mxu0 0.0
        %947 = vmatpush1.msra.mxu0 0.0
        %948 = vmatprep.subr.mxu0 0.0
        %949 = vmatpush1.msra.mxu0 0.0
        %950 = vmatprep.subr.mxu0 0.0
        %951 = vmatpush1.msra.mxu0 0.0
        %952 = vmatprep.subr.mxu0 0.0
        %953 = vmatpush1.msra.mxu0 0.0
        %954 = vmatprep.subr.mxu0 0.0
        %955 = vmatpush1.msra.mxu0 0.0
        %956 = vmatprep.subr.mxu0 0.0
        %957 = vmatpush1.msra.mxu0 0.0
        %958 = vmatprep.subr.mxu0 0.0
        %959 = vmatpush1.msra.mxu0 0.0
        %960 = vmatprep.subr.mxu0 0.0
        %961 = vmatpush1.msra.mxu0 0.0
        %962 = vmatprep.subr.mxu0 0.0
        %963 = vmatpush1.msra.mxu0 0.0
        %964 = vmatprep.subr.mxu0 0.0
        %965 = vmatpush1.msra.mxu0 0.0
        %966 = vmatprep.subr.mxu0 0.0
        %967 = vmatpush1.msra.mxu0 0.0
        %968 = vmatprep.subr.mxu0 0.0
        %969 = vmatpush1.msra.mxu0 0.0
        %970 = vmatprep.subr.mxu0 0.0
        %971 = vmatpush1.msra.mxu0 0.0
        %972 = vmatprep.subr.mxu0 0.0
        %973 = vmatpush1.msra.mxu0 0.0
        %974 = vmatprep.mubr.f32.mxu0 0.0
        %975 = vmatmul.mubr.f32.gmra.mrb[0].mxu0 %v216
        %v976 = vpop.f32.mrb[0].mxu0
        %v977 = vadd.f32 0.0, %v976
        %v978 = vpop.f32.mrb[0].mxu0
        %v979 = vadd.f32 0.0, %v978
        %980 = vdwg.mxu0
        %981 = vmatprep.subr.mxu0 %v240
        %982 = vmatpush1.msra.mxu0 %v239
        %983 = vmatprep.subr.mxu0 %v242
        %984 = vmatpush1.msra.mxu0 %v241
        %985 = vmatprep.subr.mxu0 %v244
        %986 = vmatpush1.msra.mxu0 %v243
        %987 = vmatprep.subr.mxu0 %v246
        %988 = vmatpush1.msra.mxu0 %v245
        %989 = vmatprep.subr.mxu0 %v248
        %990 = vmatpush1.msra.mxu0 %v247
        %991 = vmatprep.subr.mxu0 %v250
        %992 = vmatpush1.msra.mxu0 %v249
        %993 = vmatprep.subr.mxu0 %v252
        %994 = vmatpush1.msra.mxu0 %v251
        %995 = vmatprep.subr.mxu0 %v254
        %996 = vmatpush1.msra.mxu0 %v253
        %997 = vmatprep.subr.mxu0 %v256
        %998 = vmatpush1.msra.mxu0 %v255
        %999 = vmatprep.subr.mxu0 %v258
        %1000 = vmatpush1.msra.mxu0 %v257
        %1001 = vmatprep.subr.mxu0 %v260
        %1002 = vmatpush1.msra.mxu0 %v259
        %1003 = vmatprep.subr.mxu0 %v262
        %1004 = vmatpush1.msra.mxu0 %v261
        %1005 = vmatprep.subr.mxu0 %v264
        %1006 = vmatpush1.msra.mxu0 %v263
        %1007 = vmatprep.subr.mxu0 %v266
        %1008 = vmatpush1.msra.mxu0 %v265
        %1009 = vmatprep.subr.mxu0 %v268
        %1010 = vmatpush1.msra.mxu0 %v267
        %1011 = vmatprep.subr.mxu0 %v270
        %1012 = vmatpush1.msra.mxu0 %v269
        %1013 = vmatprep.subr.mxu0 0.0
        %1014 = vmatpush1.msra.mxu0 0.0
        %1015 = vmatprep.subr.mxu0 0.0
        %1016 = vmatpush1.msra.mxu0 0.0
        %1017 = vmatprep.subr.mxu0 0.0
        %1018 = vmatpush1.msra.mxu0 0.0
        %1019 = vmatprep.subr.mxu0 0.0
        %1020 = vmatpush1.msra.mxu0 0.0
        %1021 = vmatprep.subr.mxu0 0.0
        %1022 = vmatpush1.msra.mxu0 0.0
        %1023 = vmatprep.subr.mxu0 0.0
        %1024 = vmatpush1.msra.mxu0 0.0
        %1025 = vmatprep.subr.mxu0 0.0
        %1026 = vmatpush1.msra.mxu0 0.0
        %1027 = vmatprep.subr.mxu0 0.0
        %1028 = vmatpush1.msra.mxu0 0.0
        %1029 = vmatprep.subr.mxu0 0.0
        %1030 = vmatpush1.msra.mxu0 0.0
        %1031 = vmatprep.subr.mxu0 0.0
        %1032 = vmatpush1.msra.mxu0 0.0
        %1033 = vmatprep.subr.mxu0 0.0
        %1034 = vmatpush1.msra.mxu0 0.0
        %1035 = vmatprep.subr.mxu0 0.0
        %1036 = vmatpush1.msra.mxu0 0.0
        %1037 = vmatprep.subr.mxu0 0.0
        %1038 = vmatpush1.msra.mxu0 0.0
        %1039 = vmatprep.subr.mxu0 0.0
        %1040 = vmatpush1.msra.mxu0 0.0
        %1041 = vmatprep.subr.mxu0 0.0
        %1042 = vmatpush1.msra.mxu0 0.0
        %1043 = vmatprep.subr.mxu0 0.0
        %1044 = vmatpush1.msra.mxu0 0.0
        %1045 = vmatprep.mubr.f32.mxu0 0.0
        %1046 = vmatmul.mubr.f32.gmra.mrb[0].mxu0 %v217
        %v1047 = vpop.f32.mrb[0].mxu0
        %v1048 = vadd.f32 0.0, %v1047
        %v1049 = vpop.f32.mrb[0].mxu0
        %v1050 = vadd.f32 0.0, %v1049
        %1051 = vdwg.mxu0
        %1052 = vmatprep.subr.mxu0 %v240
        %1053 = vmatpush1.msra.mxu0 %v239
        %1054 = vmatprep.subr.mxu0 %v242
        %1055 = vmatpush1.msra.mxu0 %v241
        %1056 = vmatprep.subr.mxu0 %v244
        %1057 = vmatpush1.msra.mxu0 %v243
        %1058 = vmatprep.subr.mxu0 %v246
        %1059 = vmatpush1.msra.mxu0 %v245
        %1060 = vmatprep.subr.mxu0 %v248
        %1061 = vmatpush1.msra.mxu0 %v247
        %1062 = vmatprep.subr.mxu0 %v250
        %1063 = vmatpush1.msra.mxu0 %v249
        %1064 = vmatprep.subr.mxu0 %v252
        %1065 = vmatpush1.msra.mxu0 %v251
        %1066 = vmatprep.subr.mxu0 %v254
        %1067 = vmatpush1.msra.mxu0 %v253
        %1068 = vmatprep.subr.mxu0 %v256
        %1069 = vmatpush1.msra.mxu0 %v255
        %1070 = vmatprep.subr.mxu0 %v258
        %1071 = vmatpush1.msra.mxu0 %v257
        %1072 = vmatprep.subr.mxu0 %v260
        %1073 = vmatpush1.msra.mxu0 %v259
        %1074 = vmatprep.subr.mxu0 %v262
        %1075 = vmatpush1.msra.mxu0 %v261
        %1076 = vmatprep.subr.mxu0 %v264
        %1077 = vmatpush1.msra.mxu0 %v263
        %1078 = vmatprep.subr.mxu0 %v266
        %1079 = vmatpush1.msra.mxu0 %v265
        %1080 = vmatprep.subr.mxu0 %v268
        %1081 = vmatpush1.msra.mxu0 %v267
        %1082 = vmatprep.subr.mxu0 %v270
        %1083 = vmatpush1.msra.mxu0 %v269
        %1084 = vmatprep.subr.mxu0 0.0
        %1085 = vmatpush1.msra.mxu0 0.0
        %1086 = vmatprep.subr.mxu0 0.0
        %1087 = vmatpush1.msra.mxu0 0.0
        %1088 = vmatprep.subr.mxu0 0.0
        %1089 = vmatpush1.msra.mxu0 0.0
        %1090 = vmatprep.subr.mxu0 0.0
        %1091 = vmatpush1.msra.mxu0 0.0
        %1092 = vmatprep.subr.mxu0 0.0
        %1093 = vmatpush1.msra.mxu0 0.0
        %1094 = vmatprep.subr.mxu0 0.0
        %1095 = vmatpush1.msra.mxu0 0.0
        %1096 = vmatprep.subr.mxu0 0.0
        %1097 = vmatpush1.msra.mxu0 0.0
        %1098 = vmatprep.subr.mxu0 0.0
        %1099 = vmatpush1.msra.mxu0 0.0
        %1100 = vmatprep.subr.mxu0 0.0
        %1101 = vmatpush1.msra.mxu0 0.0
        %1102 = vmatprep.subr.mxu0 0.0
        %1103 = vmatpush1.msra.mxu0 0.0
        %1104 = vmatprep.subr.mxu0 0.0
        %1105 = vmatpush1.msra.mxu0 0.0
        %1106 = vmatprep.subr.mxu0 0.0
        %1107 = vmatpush1.msra.mxu0 0.0
        %1108 = vmatprep.subr.mxu0 0.0
        %1109 = vmatpush1.msra.mxu0 0.0
        %1110 = vmatprep.subr.mxu0 0.0
        %1111 = vmatpush1.msra.mxu0 0.0
        %1112 = vmatprep.subr.mxu0 0.0
        %1113 = vmatpush1.msra.mxu0 0.0
        %1114 = vmatprep.subr.mxu0 0.0
        %1115 = vmatpush1.msra.mxu0 0.0
        %1116 = vmatprep.mubr.f32.mxu0 0.0
        %1117 = vmatmul.mubr.f32.gmra.mrb[0].mxu0 %v218
        %v1118 = vpop.f32.mrb[0].mxu0
        %v1119 = vadd.f32 0.0, %v1118
        %v1120 = vpop.f32.mrb[0].mxu0
        %v1121 = vadd.f32 0.0, %v1120
        %1122 = vdwg.mxu0
        %1123 = vmatprep.subr.mxu0 %v240
        %1124 = vmatpush1.msra.mxu0 %v239
        %1125 = vmatprep.subr.mxu0 %v242
        %1126 = vmatpush1.msra.mxu0 %v241
        %1127 = vmatprep.subr.mxu0 %v244
        %1128 = vmatpush1.msra.mxu0 %v243
        %1129 = vmatprep.subr.mxu0 %v246
        %1130 = vmatpush1.msra.mxu0 %v245
        %1131 = vmatprep.subr.mxu0 %v248
        %1132 = vmatpush1.msra.mxu0 %v247
        %1133 = vmatprep.subr.mxu0 %v250
        %1134 = vmatpush1.msra.mxu0 %v249
        %1135 = vmatprep.subr.mxu0 %v252
        %1136 = vmatpush1.msra.mxu0 %v251
        %1137 = vmatprep.subr.mxu0 %v254
        %1138 = vmatpush1.msra.mxu0 %v253
        %1139 = vmatprep.subr.mxu0 %v256
        %1140 = vmatpush1.msra.mxu0 %v255
        %1141 = vmatprep.subr.mxu0 %v258
        %1142 = vmatpush1.msra.mxu0 %v257
        %1143 = vmatprep.subr.mxu0 %v260
        %1144 = vmatpush1.msra.mxu0 %v259
        %1145 = vmatprep.subr.mxu0 %v262
        %1146 = vmatpush1.msra.mxu0 %v261
        %1147 = vmatprep.subr.mxu0 %v264
        %1148 = vmatpush1.msra.mxu0 %v263
        %1149 = vmatprep.subr.mxu0 %v266
        %1150 = vmatpush1.msra.mxu0 %v265
        %1151 = vmatprep.subr.mxu0 %v268
        %1152 = vmatpush1.msra.mxu0 %v267
        %1153 = vmatprep.subr.mxu0 %v270
        %1154 = vmatpush1.msra.mxu0 %v269
        %1155 = vmatprep.subr.mxu0 0.0
        %1156 = vmatpush1.msra.mxu0 0.0
        %1157 = vmatprep.subr.mxu0 0.0
        %1158 = vmatpush1.msra.mxu0 0.0
        %1159 = vmatprep.subr.mxu0 0.0
        %1160 = vmatpush1.msra.mxu0 0.0
        %1161 = vmatprep.subr.mxu0 0.0
        %1162 = vmatpush1.msra.mxu0 0.0
        %1163 = vmatprep.subr.mxu0 0.0
        %1164 = vmatpush1.msra.mxu0 0.0
        %1165 = vmatprep.subr.mxu0 0.0
        %1166 = vmatpush1.msra.mxu0 0.0
        %1167 = vmatprep.subr.mxu0 0.0
        %1168 = vmatpush1.msra.mxu0 0.0
        %1169 = vmatprep.subr.mxu0 0.0
        %1170 = vmatpush1.msra.mxu0 0.0
        %1171 = vmatprep.subr.mxu0 0.0
        %1172 = vmatpush1.msra.mxu0 0.0
        %1173 = vmatprep.subr.mxu0 0.0
        %1174 = vmatpush1.msra.mxu0 0.0
        %1175 = vmatprep.subr.mxu0 0.0
        %1176 = vmatpush1.msra.mxu0 0.0
        %1177 = vmatprep.subr.mxu0 0.0
        %1178 = vmatpush1.msra.mxu0 0.0
        %1179 = vmatprep.subr.mxu0 0.0
        %1180 = vmatpush1.msra.mxu0 0.0
        %1181 = vmatprep.subr.mxu0 0.0
        %1182 = vmatpush1.msra.mxu0 0.0
        %1183 = vmatprep.subr.mxu0 0.0
        %1184 = vmatpush1.msra.mxu0 0.0
        %1185 = vmatprep.subr.mxu0 0.0
        %1186 = vmatpush1.msra.mxu0 0.0
        %1187 = vmatprep.mubr.f32.mxu0 0.0
        %1188 = vmatmul.mubr.f32.gmra.mrb[0].mxu0 %v219
        %v1189 = vpop.f32.mrb[0].mxu0
        %v1190 = vadd.f32 0.0, %v1189
        %v1191 = vpop.f32.mrb[0].mxu0
        %v1192 = vadd.f32 0.0, %v1191
        %1193 = vdwg.mxu0
        %1194 = vmatprep.subr.mxu0 %v240
        %1195 = vmatpush1.msra.mxu0 %v239
        %1196 = vmatprep.subr.mxu0 %v242
        %1197 = vmatpush1.msra.mxu0 %v241
        %1198 = vmatprep.subr.mxu0 %v244
        %1199 = vmatpush1.msra.mxu0 %v243
        %1200 = vmatprep.subr.mxu0 %v246
        %1201 = vmatpush1.msra.mxu0 %v245
        %1202 = vmatprep.subr.mxu0 %v248
        %1203 = vmatpush1.msra.mxu0 %v247
        %1204 = vmatprep.subr.mxu0 %v250
        %1205 = vmatpush1.msra.mxu0 %v249
        %1206 = vmatprep.subr.mxu0 %v252
        %1207 = vmatpush1.msra.mxu0 %v251
        %1208 = vmatprep.subr.mxu0 %v254
        %1209 = vmatpush1.msra.mxu0 %v253
        %1210 = vmatprep.subr.mxu0 %v256
        %1211 = vmatpush1.msra.mxu0 %v255
        %1212 = vmatprep.subr.mxu0 %v258
        %1213 = vmatpush1.msra.mxu0 %v257
        %1214 = vmatprep.subr.mxu0 %v260
        %1215 = vmatpush1.msra.mxu0 %v259
        %1216 = vmatprep.subr.mxu0 %v262
        %1217 = vmatpush1.msra.mxu0 %v261
        %1218 = vmatprep.subr.mxu0 %v264
        %1219 = vmatpush1.msra.mxu0 %v263
        %1220 = vmatprep.subr.mxu0 %v266
        %1221 = vmatpush1.msra.mxu0 %v265
        %1222 = vmatprep.subr.mxu0 %v268
        %1223 = vmatpush1.msra.mxu0 %v267
        %1224 = vmatprep.subr.mxu0 %v270
        %1225 = vmatpush1.msra.mxu0 %v269
        %1226 = vmatprep.subr.mxu0 0.0
        %1227 = vmatpush1.msra.mxu0 0.0
        %1228 = vmatprep.subr.mxu0 0.0
        %1229 = vmatpush1.msra.mxu0 0.0
        %1230 = vmatprep.subr.mxu0 0.0
        %1231 = vmatpush1.msra.mxu0 0.0
        %1232 = vmatprep.subr.mxu0 0.0
        %1233 = vmatpush1.msra.mxu0 0.0
        %1234 = vmatprep.subr.mxu0 0.0
        %1235 = vmatpush1.msra.mxu0 0.0
        %1236 = vmatprep.subr.mxu0 0.0
        %1237 = vmatpush1.msra.mxu0 0.0
        %1238 = vmatprep.subr.mxu0 0.0
        %1239 = vmatpush1.msra.mxu0 0.0
        %1240 = vmatprep.subr.mxu0 0.0
        %1241 = vmatpush1.msra.mxu0 0.0
        %1242 = vmatprep.subr.mxu0 0.0
        %1243 = vmatpush1.msra.mxu0 0.0
        %1244 = vmatprep.subr.mxu0 0.0
        %1245 = vmatpush1.msra.mxu0 0.0
        %1246 = vmatprep.subr.mxu0 0.0
        %1247 = vmatpush1.msra.mxu0 0.0
        %1248 = vmatprep.subr.mxu0 0.0
        %1249 = vmatpush1.msra.mxu0 0.0
        %1250 = vmatprep.subr.mxu0 0.0
        %1251 = vmatpush1.msra.mxu0 0.0
        %1252 = vmatprep.subr.mxu0 0.0
        %1253 = vmatpush1.msra.mxu0 0.0
        %1254 = vmatprep.subr.mxu0 0.0
        %1255 = vmatpush1.msra.mxu0 0.0
        %1256 = vmatprep.subr.mxu0 0.0
        %1257 = vmatpush1.msra.mxu0 0.0
        %1258 = vmatprep.mubr.f32.mxu0 0.0
        %1259 = vmatmul.mubr.f32.gmra.mrb[0].mxu0 %v220
        %v1260 = vpop.f32.mrb[0].mxu0
        %v1261 = vadd.f32 0.0, %v1260
        %v1262 = vpop.f32.mrb[0].mxu0
        %v1263 = vadd.f32 0.0, %v1262
        %1264 = vdwg.mxu0
        %1265 = vmatprep.subr.mxu0 %v240
        %1266 = vmatpush1.msra.mxu0 %v239
        %1267 = vmatprep.subr.mxu0 %v242
        %1268 = vmatpush1.msra.mxu0 %v241
        %1269 = vmatprep.subr.mxu0 %v244
        %1270 = vmatpush1.msra.mxu0 %v243
        %1271 = vmatprep.subr.mxu0 %v246
        %1272 = vmatpush1.msra.mxu0 %v245
        %1273 = vmatprep.subr.mxu0 %v248
        %1274 = vmatpush1.msra.mxu0 %v247
        %1275 = vmatprep.subr.mxu0 %v250
        %1276 = vmatpush1.msra.mxu0 %v249
        %1277 = vmatprep.subr.mxu0 %v252
        %1278 = vmatpush1.msra.mxu0 %v251
        %1279 = vmatprep.subr.mxu0 %v254
        %1280 = vmatpush1.msra.mxu0 %v253
        %1281 = vmatprep.subr.mxu0 %v256
        %1282 = vmatpush1.msra.mxu0 %v255
        %1283 = vmatprep.subr.mxu0 %v258
        %1284 = vmatpush1.msra.mxu0 %v257
        %1285 = vmatprep.subr.mxu0 %v260
        %1286 = vmatpush1.msra.mxu0 %v259
        %1287 = vmatprep.subr.mxu0 %v262
        %1288 = vmatpush1.msra.mxu0 %v261
        %1289 = vmatprep.subr.mxu0 %v264
        %1290 = vmatpush1.msra.mxu0 %v263
        %1291 = vmatprep.subr.mxu0 %v266
        %1292 = vmatpush1.msra.mxu0 %v265
        %1293 = vmatprep.subr.mxu0 %v268
        %1294 = vmatpush1.msra.mxu0 %v267
        %1295 = vmatprep.subr.mxu0 %v270
        %1296 = vmatpush1.msra.mxu0 %v269
        %1297 = vmatprep.subr.mxu0 0.0
        %1298 = vmatpush1.msra.mxu0 0.0
        %1299 = vmatprep.subr.mxu0 0.0
        %1300 = vmatpush1.msra.mxu0 0.0
        %1301 = vmatprep.subr.mxu0 0.0
        %1302 = vmatpush1.msra.mxu0 0.0
        %1303 = vmatprep.subr.mxu0 0.0
        %1304 = vmatpush1.msra.mxu0 0.0
        %1305 = vmatprep.subr.mxu0 0.0
        %1306 = vmatpush1.msra.mxu0 0.0
        %1307 = vmatprep.subr.mxu0 0.0
        %1308 = vmatpush1.msra.mxu0 0.0
        %1309 = vmatprep.subr.mxu0 0.0
        %1310 = vmatpush1.msra.mxu0 0.0
        %1311 = vmatprep.subr.mxu0 0.0
        %1312 = vmatpush1.msra.mxu0 0.0
        %1313 = vmatprep.subr.mxu0 0.0
        %1314 = vmatpush1.msra.mxu0 0.0
        %1315 = vmatprep.subr.mxu0 0.0
        %1316 = vmatpush1.msra.mxu0 0.0
        %1317 = vmatprep.subr.mxu0 0.0
        %1318 = vmatpush1.msra.mxu0 0.0
        %1319 = vmatprep.subr.mxu0 0.0
        %1320 = vmatpush1.msra.mxu0 0.0
        %1321 = vmatprep.subr.mxu0 0.0
        %1322 = vmatpush1.msra.mxu0 0.0
        %1323 = vmatprep.subr.mxu0 0.0
        %1324 = vmatpush1.msra.mxu0 0.0
        %1325 = vmatprep.subr.mxu0 0.0
        %1326 = vmatpush1.msra.mxu0 0.0
        %1327 = vmatprep.subr.mxu0 0.0
        %1328 = vmatpush1.msra.mxu0 0.0
        %1329 = vmatprep.mubr.f32.mxu0 0.0
        %1330 = vmatmul.mubr.f32.gmra.mrb[0].mxu0 %v221
        %v1331 = vpop.f32.mrb[0].mxu0
        %v1332 = vadd.f32 0.0, %v1331
        %v1333 = vpop.f32.mrb[0].mxu0
        %v1334 = vadd.f32 0.0, %v1333
        %1335 = vdwg.mxu0
        %1336 = vmatprep.subr.mxu0 %v240
        %1337 = vmatpush1.msra.mxu0 %v239
        %1338 = vmatprep.subr.mxu0 %v242
        %1339 = vmatpush1.msra.mxu0 %v241
        %1340 = vmatprep.subr.mxu0 %v244
        %1341 = vmatpush1.msra.mxu0 %v243
        %1342 = vmatprep.subr.mxu0 %v246
        %1343 = vmatpush1.msra.mxu0 %v245
        %1344 = vmatprep.subr.mxu0 %v248
        %1345 = vmatpush1.msra.mxu0 %v247
        %1346 = vmatprep.subr.mxu0 %v250
        %1347 = vmatpush1.msra.mxu0 %v249
        %1348 = vmatprep.subr.mxu0 %v252
        %1349 = vmatpush1.msra.mxu0 %v251
        %1350 = vmatprep.subr.mxu0 %v254
        %1351 = vmatpush1.msra.mxu0 %v253
        %1352 = vmatprep.subr.mxu0 %v256
        %1353 = vmatpush1.msra.mxu0 %v255
        %1354 = vmatprep.subr.mxu0 %v258
        %1355 = vmatpush1.msra.mxu0 %v257
        %1356 = vmatprep.subr.mxu0 %v260
        %1357 = vmatpush1.msra.mxu0 %v259
        %1358 = vmatprep.subr.mxu0 %v262
        %1359 = vmatpush1.msra.mxu0 %v261
        %1360 = vmatprep.subr.mxu0 %v264
        %1361 = vmatpush1.msra.mxu0 %v263
        %1362 = vmatprep.subr.mxu0 %v266
        %1363 = vmatpush1.msra.mxu0 %v265
        %1364 = vmatprep.subr.mxu0 %v268
        %1365 = vmatpush1.msra.mxu0 %v267
        %1366 = vmatprep.subr.mxu0 %v270
        %1367 = vmatpush1.msra.mxu0 %v269
        %1368 = vmatprep.subr.mxu0 0.0
        %1369 = vmatpush1.msra.mxu0 0.0
        %1370 = vmatprep.subr.mxu0 0.0
        %1371 = vmatpush1.msra.mxu0 0.0
        %1372 = vmatprep.subr.mxu0 0.0
        %1373 = vmatpush1.msra.mxu0 0.0
        %1374 = vmatprep.subr.mxu0 0.0
        %1375 = vmatpush1.msra.mxu0 0.0
        %1376 = vmatprep.subr.mxu0 0.0
        %1377 = vmatpush1.msra.mxu0 0.0
        %1378 = vmatprep.subr.mxu0 0.0
        %1379 = vmatpush1.msra.mxu0 0.0
        %1380 = vmatprep.subr.mxu0 0.0
        %1381 = vmatpush1.msra.mxu0 0.0
        %1382 = vmatprep.subr.mxu0 0.0
        %1383 = vmatpush1.msra.mxu0 0.0
        %1384 = vmatprep.subr.mxu0 0.0
        %1385 = vmatpush1.msra.mxu0 0.0
        %1386 = vmatprep.subr.mxu0 0.0
        %1387 = vmatpush1.msra.mxu0 0.0
        %1388 = vmatprep.subr.mxu0 0.0
        %1389 = vmatpush1.msra.mxu0 0.0
        %1390 = vmatprep.subr.mxu0 0.0
        %1391 = vmatpush1.msra.mxu0 0.0
        %1392 = vmatprep.subr.mxu0 0.0
        %1393 = vmatpush1.msra.mxu0 0.0
        %1394 = vmatprep.subr.mxu0 0.0
        %1395 = vmatpush1.msra.mxu0 0.0
        %1396 = vmatprep.subr.mxu0 0.0
        %1397 = vmatpush1.msra.mxu0 0.0
        %1398 = vmatprep.subr.mxu0 0.0
        %1399 = vmatpush1.msra.mxu0 0.0
        %1400 = vmatprep.mubr.f32.mxu0 0.0
        %1401 = vmatmul.mubr.f32.gmra.mrb[0].mxu0 %v222
        %v1402 = vpop.f32.mrb[0].mxu0
        %v1403 = vadd.f32 0.0, %v1402
        %v1404 = vpop.f32.mrb[0].mxu0
        %v1405 = vadd.f32 0.0, %v1404
        %1406 = vdwg.mxu0
        %1407 = vmatprep.subr.mxu0 %v240
        %1408 = vmatpush1.msra.mxu0 %v239
        %1409 = vmatprep.subr.mxu0 %v242
        %1410 = vmatpush1.msra.mxu0 %v241
        %1411 = vmatprep.subr.mxu0 %v244
        %1412 = vmatpush1.msra.mxu0 %v243
        %1413 = vmatprep.subr.mxu0 %v246
        %1414 = vmatpush1.msra.mxu0 %v245
        %1415 = vmatprep.subr.mxu0 %v248
        %1416 = vmatpush1.msra.mxu0 %v247
        %1417 = vmatprep.subr.mxu0 %v250
        %1418 = vmatpush1.msra.mxu0 %v249
        %1419 = vmatprep.subr.mxu0 %v252
        %1420 = vmatpush1.msra.mxu0 %v251
        %1421 = vmatprep.subr.mxu0 %v254
        %1422 = vmatpush1.msra.mxu0 %v253
        %1423 = vmatprep.subr.mxu0 %v256
        %1424 = vmatpush1.msra.mxu0 %v255
        %1425 = vmatprep.subr.mxu0 %v258
        %1426 = vmatpush1.msra.mxu0 %v257
        %1427 = vmatprep.subr.mxu0 %v260
        %1428 = vmatpush1.msra.mxu0 %v259
        %1429 = vmatprep.subr.mxu0 %v262
        %1430 = vmatpush1.msra.mxu0 %v261
        %1431 = vmatprep.subr.mxu0 %v264
        %1432 = vmatpush1.msra.mxu0 %v263
        %1433 = vmatprep.subr.mxu0 %v266
        %1434 = vmatpush1.msra.mxu0 %v265
        %1435 = vmatprep.subr.mxu0 %v268
        %1436 = vmatpush1.msra.mxu0 %v267
        %1437 = vmatprep.subr.mxu0 %v270
        %1438 = vmatpush1.msra.mxu0 %v269
        %1439 = vmatprep.subr.mxu0 0.0
        %1440 = vmatpush1.msra.mxu0 0.0
        %1441 = vmatprep.subr.mxu0 0.0
        %1442 = vmatpush1.msra.mxu0 0.0
        %1443 = vmatprep.subr.mxu0 0.0
        %1444 = vmatpush1.msra.mxu0 0.0
        %1445 = vmatprep.subr.mxu0 0.0
        %1446 = vmatpush1.msra.mxu0 0.0
        %1447 = vmatprep.subr.mxu0 0.0
        %1448 = vmatpush1.msra.mxu0 0.0
        %1449 = vmatprep.subr.mxu0 0.0
        %1450 = vmatpush1.msra.mxu0 0.0
        %1451 = vmatprep.subr.mxu0 0.0
        %1452 = vmatpush1.msra.mxu0 0.0
        %1453 = vmatprep.subr.mxu0 0.0
        %1454 = vmatpush1.msra.mxu0 0.0
        %1455 = vmatprep.subr.mxu0 0.0
        %1456 = vmatpush1.msra.mxu0 0.0
        %1457 = vmatprep.subr.mxu0 0.0
        %1458 = vmatpush1.msra.mxu0 0.0
        %1459 = vmatprep.subr.mxu0 0.0
        %1460 = vmatpush1.msra.mxu0 0.0
        %1461 = vmatprep.subr.mxu0 0.0
        %1462 = vmatpush1.msra.mxu0 0.0
        %1463 = vmatprep.subr.mxu0 0.0
        %1464 = vmatpush1.msra.mxu0 0.0
        %1465 = vmatprep.subr.mxu0 0.0
        %1466 = vmatpush1.msra.mxu0 0.0
        %1467 = vmatprep.subr.mxu0 0.0
        %1468 = vmatpush1.msra.mxu0 0.0
        %1469 = vmatprep.subr.mxu0 0.0
        %1470 = vmatpush1.msra.mxu0 0.0
        %1471 = vmatprep.mubr.f32.mxu0 0.0
        %1472 = vmatmul.mubr.f32.gmra.mrb[0].mxu0 %v223
        %v1473 = vpop.f32.mrb[0].mxu0
        %v1474 = vadd.f32 0.0, %v1473
        %v1475 = vpop.f32.mrb[0].mxu0
        %v1476 = vadd.f32 0.0, %v1475
        %1477 = vdwg.mxu0
        %1478 = vmatprep.subr.mxu0 %v240
        %1479 = vmatpush1.msra.mxu0 %v239
        %1480 = vmatprep.subr.mxu0 %v242
        %1481 = vmatpush1.msra.mxu0 %v241
        %1482 = vmatprep.subr.mxu0 %v244
        %1483 = vmatpush1.msra.mxu0 %v243
        %1484 = vmatprep.subr.mxu0 %v246
        %1485 = vmatpush1.msra.mxu0 %v245
        %1486 = vmatprep.subr.mxu0 %v248
        %1487 = vmatpush1.msra.mxu0 %v247
        %1488 = vmatprep.subr.mxu0 %v250
        %1489 = vmatpush1.msra.mxu0 %v249
        %1490 = vmatprep.subr.mxu0 %v252
        %1491 = vmatpush1.msra.mxu0 %v251
        %1492 = vmatprep.subr.mxu0 %v254
        %1493 = vmatpush1.msra.mxu0 %v253
        %1494 = vmatprep.subr.mxu0 %v256
        %1495 = vmatpush1.msra.mxu0 %v255
        %1496 = vmatprep.subr.mxu0 %v258
        %1497 = vmatpush1.msra.mxu0 %v257
        %1498 = vmatprep.subr.mxu0 %v260
        %1499 = vmatpush1.msra.mxu0 %v259
        %1500 = vmatprep.subr.mxu0 %v262
        %1501 = vmatpush1.msra.mxu0 %v261
        %1502 = vmatprep.subr.mxu0 %v264
        %1503 = vmatpush1.msra.mxu0 %v263
        %1504 = vmatprep.subr.mxu0 %v266
        %1505 = vmatpush1.msra.mxu0 %v265
        %1506 = vmatprep.subr.mxu0 %v268
        %1507 = vmatpush1.msra.mxu0 %v267
        %1508 = vmatprep.subr.mxu0 %v270
        %1509 = vmatpush1.msra.mxu0 %v269
        %1510 = vmatprep.subr.mxu0 0.0
        %1511 = vmatpush1.msra.mxu0 0.0
        %1512 = vmatprep.subr.mxu0 0.0
        %1513 = vmatpush1.msra.mxu0 0.0
        %1514 = vmatprep.subr.mxu0 0.0
        %1515 = vmatpush1.msra.mxu0 0.0
        %1516 = vmatprep.subr.mxu0 0.0
        %1517 = vmatpush1.msra.mxu0 0.0
        %1518 = vmatprep.subr.mxu0 0.0
        %1519 = vmatpush1.msra.mxu0 0.0
        %1520 = vmatprep.subr.mxu0 0.0
        %1521 = vmatpush1.msra.mxu0 0.0
        %1522 = vmatprep.subr.mxu0 0.0
        %1523 = vmatpush1.msra.mxu0 0.0
        %1524 = vmatprep.subr.mxu0 0.0
        %1525 = vmatpush1.msra.mxu0 0.0
        %1526 = vmatprep.subr.mxu0 0.0
        %1527 = vmatpush1.msra.mxu0 0.0
        %1528 = vmatprep.subr.mxu0 0.0
        %1529 = vmatpush1.msra.mxu0 0.0
        %1530 = vmatprep.subr.mxu0 0.0
        %1531 = vmatpush1.msra.mxu0 0.0
        %1532 = vmatprep.subr.mxu0 0.0
        %1533 = vmatpush1.msra.mxu0 0.0
        %1534 = vmatprep.subr.mxu0 0.0
        %1535 = vmatpush1.msra.mxu0 0.0
        %1536 = vmatprep.subr.mxu0 0.0
        %1537 = vmatpush1.msra.mxu0 0.0
        %1538 = vmatprep.subr.mxu0 0.0
        %1539 = vmatpush1.msra.mxu0 0.0
        %1540 = vmatprep.subr.mxu0 0.0
        %1541 = vmatpush1.msra.mxu0 0.0
        %1542 = vmatprep.mubr.f32.mxu0 0.0
        %1543 = vmatmul.mubr.f32.gmra.mrb[0].mxu0 %v224
        %v1544 = vpop.f32.mrb[0].mxu0
        %v1545 = vadd.f32 0.0, %v1544
        %v1546 = vpop.f32.mrb[0].mxu0
        %v1547 = vadd.f32 0.0, %v1546
        %1548 = vdwg.mxu0
        %1549 = vmatprep.subr.mxu0 %v240
        %1550 = vmatpush1.msra.mxu0 %v239
        %1551 = vmatprep.subr.mxu0 %v242
        %1552 = vmatpush1.msra.mxu0 %v241
        %1553 = vmatprep.subr.mxu0 %v244
        %1554 = vmatpush1.msra.mxu0 %v243
        %1555 = vmatprep.subr.mxu0 %v246
        %1556 = vmatpush1.msra.mxu0 %v245
        %1557 = vmatprep.subr.mxu0 %v248
        %1558 = vmatpush1.msra.mxu0 %v247
        %1559 = vmatprep.subr.mxu0 %v250
        %1560 = vmatpush1.msra.mxu0 %v249
        %1561 = vmatprep.subr.mxu0 %v252
        %1562 = vmatpush1.msra.mxu0 %v251
        %1563 = vmatprep.subr.mxu0 %v254
        %1564 = vmatpush1.msra.mxu0 %v253
        %1565 = vmatprep.subr.mxu0 %v256
        %1566 = vmatpush1.msra.mxu0 %v255
        %1567 = vmatprep.subr.mxu0 %v258
        %1568 = vmatpush1.msra.mxu0 %v257
        %1569 = vmatprep.subr.mxu0 %v260
        %1570 = vmatpush1.msra.mxu0 %v259
        %1571 = vmatprep.subr.mxu0 %v262
        %1572 = vmatpush1.msra.mxu0 %v261
        %1573 = vmatprep.subr.mxu0 %v264
        %1574 = vmatpush1.msra.mxu0 %v263
        %1575 = vmatprep.subr.mxu0 %v266
        %1576 = vmatpush1.msra.mxu0 %v265
        %1577 = vmatprep.subr.mxu0 %v268
        %1578 = vmatpush1.msra.mxu0 %v267
        %1579 = vmatprep.subr.mxu0 %v270
        %1580 = vmatpush1.msra.mxu0 %v269
        %1581 = vmatprep.subr.mxu0 0.0
        %1582 = vmatpush1.msra.mxu0 0.0
        %1583 = vmatprep.subr.mxu0 0.0
        %1584 = vmatpush1.msra.mxu0 0.0
        %1585 = vmatprep.subr.mxu0 0.0
        %1586 = vmatpush1.msra.mxu0 0.0
        %1587 = vmatprep.subr.mxu0 0.0
        %1588 = vmatpush1.msra.mxu0 0.0
        %1589 = vmatprep.subr.mxu0 0.0
        %1590 = vmatpush1.msra.mxu0 0.0
        %1591 = vmatprep.subr.mxu0 0.0
        %1592 = vmatpush1.msra.mxu0 0.0
        %1593 = vmatprep.subr.mxu0 0.0
        %1594 = vmatpush1.msra.mxu0 0.0
        %1595 = vmatprep.subr.mxu0 0.0
        %1596 = vmatpush1.msra.mxu0 0.0
        %1597 = vmatprep.subr.mxu0 0.0
        %1598 = vmatpush1.msra.mxu0 0.0
        %1599 = vmatprep.subr.mxu0 0.0
        %1600 = vmatpush1.msra.mxu0 0.0
        %1601 = vmatprep.subr.mxu0 0.0
        %1602 = vmatpush1.msra.mxu0 0.0
        %1603 = vmatprep.subr.mxu0 0.0
        %1604 = vmatpush1.msra.mxu0 0.0
        %1605 = vmatprep.subr.mxu0 0.0
        %1606 = vmatpush1.msra.mxu0 0.0
        %1607 = vmatprep.subr.mxu0 0.0
        %1608 = vmatpush1.msra.mxu0 0.0
        %1609 = vmatprep.subr.mxu0 0.0
        %1610 = vmatpush1.msra.mxu0 0.0
        %1611 = vmatprep.subr.mxu0 0.0
        %1612 = vmatpush1.msra.mxu0 0.0
        %1613 = vmatprep.mubr.f32.mxu0 0.0
        %1614 = vmatmul.mubr.f32.gmra.mrb[0].mxu0 %v225
        %v1615 = vpop.f32.mrb[0].mxu0
        %v1616 = vadd.f32 0.0, %v1615
        %v1617 = vpop.f32.mrb[0].mxu0
        %v1618 = vadd.f32 0.0, %v1617
        %1619 = vdwg.mxu0
        %1620 = vmatprep.subr.mxu0 %v240
        %1621 = vmatpush1.msra.mxu0 %v239
        %1622 = vmatprep.subr.mxu0 %v242
        %1623 = vmatpush1.msra.mxu0 %v241
        %1624 = vmatprep.subr.mxu0 %v244
        %1625 = vmatpush1.msra.mxu0 %v243
        %1626 = vmatprep.subr.mxu0 %v246
        %1627 = vmatpush1.msra.mxu0 %v245
        %1628 = vmatprep.subr.mxu0 %v248
        %1629 = vmatpush1.msra.mxu0 %v247
        %1630 = vmatprep.subr.mxu0 %v250
        %1631 = vmatpush1.msra.mxu0 %v249
        %1632 = vmatprep.subr.mxu0 %v252
        %1633 = vmatpush1.msra.mxu0 %v251
        %1634 = vmatprep.subr.mxu0 %v254
        %1635 = vmatpush1.msra.mxu0 %v253
        %1636 = vmatprep.subr.mxu0 %v256
        %1637 = vmatpush1.msra.mxu0 %v255
        %1638 = vmatprep.subr.mxu0 %v258
        %1639 = vmatpush1.msra.mxu0 %v257
        %1640 = vmatprep.subr.mxu0 %v260
        %1641 = vmatpush1.msra.mxu0 %v259
        %1642 = vmatprep.subr.mxu0 %v262
        %1643 = vmatpush1.msra.mxu0 %v261
        %1644 = vmatprep.subr.mxu0 %v264
        %1645 = vmatpush1.msra.mxu0 %v263
        %1646 = vmatprep.subr.mxu0 %v266
        %1647 = vmatpush1.msra.mxu0 %v265
        %1648 = vmatprep.subr.mxu0 %v268
        %1649 = vmatpush1.msra.mxu0 %v267
        %1650 = vmatprep.subr.mxu0 %v270
        %1651 = vmatpush1.msra.mxu0 %v269
        %1652 = vmatprep.subr.mxu0 0.0
        %1653 = vmatpush1.msra.mxu0 0.0
        %1654 = vmatprep.subr.mxu0 0.0
        %1655 = vmatpush1.msra.mxu0 0.0
        %1656 = vmatprep.subr.mxu0 0.0
        %1657 = vmatpush1.msra.mxu0 0.0
        %1658 = vmatprep.subr.mxu0 0.0
        %1659 = vmatpush1.msra.mxu0 0.0
        %1660 = vmatprep.subr.mxu0 0.0
        %1661 = vmatpush1.msra.mxu0 0.0
        %1662 = vmatprep.subr.mxu0 0.0
        %1663 = vmatpush1.msra.mxu0 0.0
        %1664 = vmatprep.subr.mxu0 0.0
        %1665 = vmatpush1.msra.mxu0 0.0
        %1666 = vmatprep.subr.mxu0 0.0
        %1667 = vmatpush1.msra.mxu0 0.0
        %1668 = vmatprep.subr.mxu0 0.0
        %1669 = vmatpush1.msra.mxu0 0.0
        %1670 = vmatprep.subr.mxu0 0.0
        %1671 = vmatpush1.msra.mxu0 0.0
        %1672 = vmatprep.subr.mxu0 0.0
        %1673 = vmatpush1.msra.mxu0 0.0
        %1674 = vmatprep.subr.mxu0 0.0
        %1675 = vmatpush1.msra.mxu0 0.0
        %1676 = vmatprep.subr.mxu0 0.0
        %1677 = vmatpush1.msra.mxu0 0.0
        %1678 = vmatprep.subr.mxu0 0.0
        %1679 = vmatpush1.msra.mxu0 0.0
        %1680 = vmatprep.subr.mxu0 0.0
        %1681 = vmatpush1.msra.mxu0 0.0
        %1682 = vmatprep.subr.mxu0 0.0
        %1683 = vmatpush1.msra.mxu0 0.0
        %1684 = vmatprep.mubr.f32.mxu0 0.0
        %1685 = vmatmul.mubr.f32.gmra.mrb[0].mxu0 %v226
        %v1686 = vpop.f32.mrb[0].mxu0
        %v1687 = vadd.f32 0.0, %v1686
        %v1688 = vpop.f32.mrb[0].mxu0
        %v1689 = vadd.f32 0.0, %v1688
        %1690 = vdwg.mxu0
        %1691 = vmatprep.subr.mxu0 %v240
        %1692 = vmatpush1.msra.mxu0 %v239
        %1693 = vmatprep.subr.mxu0 %v242
        %1694 = vmatpush1.msra.mxu0 %v241
        %1695 = vmatprep.subr.mxu0 %v244
        %1696 = vmatpush1.msra.mxu0 %v243
        %1697 = vmatprep.subr.mxu0 %v246
        %1698 = vmatpush1.msra.mxu0 %v245
        %1699 = vmatprep.subr.mxu0 %v248
        %1700 = vmatpush1.msra.mxu0 %v247
        %1701 = vmatprep.subr.mxu0 %v250
        %1702 = vmatpush1.msra.mxu0 %v249
        %1703 = vmatprep.subr.mxu0 %v252
        %1704 = vmatpush1.msra.mxu0 %v251
        %1705 = vmatprep.subr.mxu0 %v254
        %1706 = vmatpush1.msra.mxu0 %v253
        %1707 = vmatprep.subr.mxu0 %v256
        %1708 = vmatpush1.msra.mxu0 %v255
        %1709 = vmatprep.subr.mxu0 %v258
        %1710 = vmatpush1.msra.mxu0 %v257
        %1711 = vmatprep.subr.mxu0 %v260
        %1712 = vmatpush1.msra.mxu0 %v259
        %1713 = vmatprep.subr.mxu0 %v262
        %1714 = vmatpush1.msra.mxu0 %v261
        %1715 = vmatprep.subr.mxu0 %v264
        %1716 = vmatpush1.msra.mxu0 %v263
        %1717 = vmatprep.subr.mxu0 %v266
        %1718 = vmatpush1.msra.mxu0 %v265
        %1719 = vmatprep.subr.mxu0 %v268
        %1720 = vmatpush1.msra.mxu0 %v267
        %1721 = vmatprep.subr.mxu0 %v270
        %1722 = vmatpush1.msra.mxu0 %v269
        %1723 = vmatprep.subr.mxu0 0.0
        %1724 = vmatpush1.msra.mxu0 0.0
        %1725 = vmatprep.subr.mxu0 0.0
        %1726 = vmatpush1.msra.mxu0 0.0
        %1727 = vmatprep.subr.mxu0 0.0
        %1728 = vmatpush1.msra.mxu0 0.0
        %1729 = vmatprep.subr.mxu0 0.0
        %1730 = vmatpush1.msra.mxu0 0.0
        %1731 = vmatprep.subr.mxu0 0.0
        %1732 = vmatpush1.msra.mxu0 0.0
        %1733 = vmatprep.subr.mxu0 0.0
        %1734 = vmatpush1.msra.mxu0 0.0
        %1735 = vmatprep.subr.mxu0 0.0
        %1736 = vmatpush1.msra.mxu0 0.0
        %1737 = vmatprep.subr.mxu0 0.0
        %1738 = vmatpush1.msra.mxu0 0.0
        %1739 = vmatprep.subr.mxu0 0.0
        %1740 = vmatpush1.msra.mxu0 0.0
        %1741 = vmatprep.subr.mxu0 0.0
        %1742 = vmatpush1.msra.mxu0 0.0
        %1743 = vmatprep.subr.mxu0 0.0
        %1744 = vmatpush1.msra.mxu0 0.0
        %1745 = vmatprep.subr.mxu0 0.0
        %1746 = vmatpush1.msra.mxu0 0.0
        %1747 = vmatprep.subr.mxu0 0.0
        %1748 = vmatpush1.msra.mxu0 0.0
        %1749 = vmatprep.subr.mxu0 0.0
        %1750 = vmatpush1.msra.mxu0 0.0
        %1751 = vmatprep.subr.mxu0 0.0
        %1752 = vmatpush1.msra.mxu0 0.0
        %1753 = vmatprep.subr.mxu0 0.0
        %1754 = vmatpush1.msra.mxu0 0.0
        %1755 = vmatprep.mubr.f32.mxu0 0.0
        %1756 = vmatmul.mubr.f32.gmra.mrb[0].mxu0 %v227
        %v1757 = vpop.f32.mrb[0].mxu0
        %v1758 = vadd.f32 0.0, %v1757
        %v1759 = vpop.f32.mrb[0].mxu0
        %v1760 = vadd.f32 0.0, %v1759
        %1761 = vdwg.mxu0
        %1762 = vmatprep.subr.mxu0 %v240
        %1763 = vmatpush1.msra.mxu0 %v239
        %1764 = vmatprep.subr.mxu0 %v242
        %1765 = vmatpush1.msra.mxu0 %v241
        %1766 = vmatprep.subr.mxu0 %v244
        %1767 = vmatpush1.msra.mxu0 %v243
        %1768 = vmatprep.subr.mxu0 %v246
        %1769 = vmatpush1.msra.mxu0 %v245
        %1770 = vmatprep.subr.mxu0 %v248
        %1771 = vmatpush1.msra.mxu0 %v247
        %1772 = vmatprep.subr.mxu0 %v250
        %1773 = vmatpush1.msra.mxu0 %v249
        %1774 = vmatprep.subr.mxu0 %v252
        %1775 = vmatpush1.msra.mxu0 %v251
        %1776 = vmatprep.subr.mxu0 %v254
        %1777 = vmatpush1.msra.mxu0 %v253
        %1778 = vmatprep.subr.mxu0 %v256
        %1779 = vmatpush1.msra.mxu0 %v255
        %1780 = vmatprep.subr.mxu0 %v258
        %1781 = vmatpush1.msra.mxu0 %v257
        %1782 = vmatprep.subr.mxu0 %v260
        %1783 = vmatpush1.msra.mxu0 %v259
        %1784 = vmatprep.subr.mxu0 %v262
        %1785 = vmatpush1.msra.mxu0 %v261
        %1786 = vmatprep.subr.mxu0 %v264
        %1787 = vmatpush1.msra.mxu0 %v263
        %1788 = vmatprep.subr.mxu0 %v266
        %1789 = vmatpush1.msra.mxu0 %v265
        %1790 = vmatprep.subr.mxu0 %v268
        %1791 = vmatpush1.msra.mxu0 %v267
        %1792 = vmatprep.subr.mxu0 %v270
        %1793 = vmatpush1.msra.mxu0 %v269
        %1794 = vmatprep.subr.mxu0 0.0
        %1795 = vmatpush1.msra.mxu0 0.0
        %1796 = vmatprep.subr.mxu0 0.0
        %1797 = vmatpush1.msra.mxu0 0.0
        %1798 = vmatprep.subr.mxu0 0.0
        %1799 = vmatpush1.msra.mxu0 0.0
        %1800 = vmatprep.subr.mxu0 0.0
        %1801 = vmatpush1.msra.mxu0 0.0
        %1802 = vmatprep.subr.mxu0 0.0
        %1803 = vmatpush1.msra.mxu0 0.0
        %1804 = vmatprep.subr.mxu0 0.0
        %1805 = vmatpush1.msra.mxu0 0.0
        %1806 = vmatprep.subr.mxu0 0.0
        %1807 = vmatpush1.msra.mxu0 0.0
        %1808 = vmatprep.subr.mxu0 0.0
        %1809 = vmatpush1.msra.mxu0 0.0
        %1810 = vmatprep.subr.mxu0 0.0
        %1811 = vmatpush1.msra.mxu0 0.0
        %1812 = vmatprep.subr.mxu0 0.0
        %1813 = vmatpush1.msra.mxu0 0.0
        %1814 = vmatprep.subr.mxu0 0.0
        %1815 = vmatpush1.msra.mxu0 0.0
        %1816 = vmatprep.subr.mxu0 0.0
        %1817 = vmatpush1.msra.mxu0 0.0
        %1818 = vmatprep.subr.mxu0 0.0
        %1819 = vmatpush1.msra.mxu0 0.0
        %1820 = vmatprep.subr.mxu0 0.0
        %1821 = vmatpush1.msra.mxu0 0.0
        %1822 = vmatprep.subr.mxu0 0.0
        %1823 = vmatpush1.msra.mxu0 0.0
        %1824 = vmatprep.subr.mxu0 0.0
        %1825 = vmatpush1.msra.mxu0 0.0
        %1826 = vmatprep.mubr.f32.mxu0 0.0
        %1827 = vmatmul.mubr.f32.gmra.mrb[0].mxu0 %v228
        %v1828 = vpop.f32.mrb[0].mxu0
        %v1829 = vadd.f32 0.0, %v1828
        %v1830 = vpop.f32.mrb[0].mxu0
        %v1831 = vadd.f32 0.0, %v1830
        %1832 = vdwg.mxu0
        %1833 = vmatprep.subr.mxu0 %v240
        %1834 = vmatpush1.msra.mxu0 %v239
        %1835 = vmatprep.subr.mxu0 %v242
        %1836 = vmatpush1.msra.mxu0 %v241
        %1837 = vmatprep.subr.mxu0 %v244
        %1838 = vmatpush1.msra.mxu0 %v243
        %1839 = vmatprep.subr.mxu0 %v246
        %1840 = vmatpush1.msra.mxu0 %v245
        %1841 = vmatprep.subr.mxu0 %v248
        %1842 = vmatpush1.msra.mxu0 %v247
        %1843 = vmatprep.subr.mxu0 %v250
        %1844 = vmatpush1.msra.mxu0 %v249
        %1845 = vmatprep.subr.mxu0 %v252
        %1846 = vmatpush1.msra.mxu0 %v251
        %1847 = vmatprep.subr.mxu0 %v254
        %1848 = vmatpush1.msra.mxu0 %v253
        %1849 = vmatprep.subr.mxu0 %v256
        %1850 = vmatpush1.msra.mxu0 %v255
        %1851 = vmatprep.subr.mxu0 %v258
        %1852 = vmatpush1.msra.mxu0 %v257
        %1853 = vmatprep.subr.mxu0 %v260
        %1854 = vmatpush1.msra.mxu0 %v259
        %1855 = vmatprep.subr.mxu0 %v262
        %1856 = vmatpush1.msra.mxu0 %v261
        %1857 = vmatprep.subr.mxu0 %v264
        %1858 = vmatpush1.msra.mxu0 %v263
        %1859 = vmatprep.subr.mxu0 %v266
        %1860 = vmatpush1.msra.mxu0 %v265
        %1861 = vmatprep.subr.mxu0 %v268
        %1862 = vmatpush1.msra.mxu0 %v267
        %1863 = vmatprep.subr.mxu0 %v270
        %1864 = vmatpush1.msra.mxu0 %v269
        %1865 = vmatprep.subr.mxu0 0.0
        %1866 = vmatpush1.msra.mxu0 0.0
        %1867 = vmatprep.subr.mxu0 0.0
        %1868 = vmatpush1.msra.mxu0 0.0
        %1869 = vmatprep.subr.mxu0 0.0
        %1870 = vmatpush1.msra.mxu0 0.0
        %1871 = vmatprep.subr.mxu0 0.0
        %1872 = vmatpush1.msra.mxu0 0.0
        %1873 = vmatprep.subr.mxu0 0.0
        %1874 = vmatpush1.msra.mxu0 0.0
        %1875 = vmatprep.subr.mxu0 0.0
        %1876 = vmatpush1.msra.mxu0 0.0
        %1877 = vmatprep.subr.mxu0 0.0
        %1878 = vmatpush1.msra.mxu0 0.0
        %1879 = vmatprep.subr.mxu0 0.0
        %1880 = vmatpush1.msra.mxu0 0.0
        %1881 = vmatprep.subr.mxu0 0.0
        %1882 = vmatpush1.msra.mxu0 0.0
        %1883 = vmatprep.subr.mxu0 0.0
        %1884 = vmatpush1.msra.mxu0 0.0
        %1885 = vmatprep.subr.mxu0 0.0
        %1886 = vmatpush1.msra.mxu0 0.0
        %1887 = vmatprep.subr.mxu0 0.0
        %1888 = vmatpush1.msra.mxu0 0.0
        %1889 = vmatprep.subr.mxu0 0.0
        %1890 = vmatpush1.msra.mxu0 0.0
        %1891 = vmatprep.subr.mxu0 0.0
        %1892 = vmatpush1.msra.mxu0 0.0
        %1893 = vmatprep.subr.mxu0 0.0
        %1894 = vmatpush1.msra.mxu0 0.0
        %1895 = vmatprep.subr.mxu0 0.0
        %1896 = vmatpush1.msra.mxu0 0.0
        %1897 = vmatprep.mubr.f32.mxu0 0.0
        %1898 = vmatmul.mubr.f32.gmra.mrb[0].mxu0 %v229
        %v1899 = vpop.f32.mrb[0].mxu0
        %v1900 = vadd.f32 0.0, %v1899
        %v1901 = vpop.f32.mrb[0].mxu0
        %v1902 = vadd.f32 0.0, %v1901
        %1903 = vdwg.mxu0
        %1904 = vmatprep.subr.mxu0 %v240
        %1905 = vmatpush1.msra.mxu0 %v239
        %1906 = vmatprep.subr.mxu0 %v242
        %1907 = vmatpush1.msra.mxu0 %v241
        %1908 = vmatprep.subr.mxu0 %v244
        %1909 = vmatpush1.msra.mxu0 %v243
        %1910 = vmatprep.subr.mxu0 %v246
        %1911 = vmatpush1.msra.mxu0 %v245
        %1912 = vmatprep.subr.mxu0 %v248
        %1913 = vmatpush1.msra.mxu0 %v247
        %1914 = vmatprep.subr.mxu0 %v250
        %1915 = vmatpush1.msra.mxu0 %v249
        %1916 = vmatprep.subr.mxu0 %v252
        %1917 = vmatpush1.msra.mxu0 %v251
        %1918 = vmatprep.subr.mxu0 %v254
        %1919 = vmatpush1.msra.mxu0 %v253
        %1920 = vmatprep.subr.mxu0 %v256
        %1921 = vmatpush1.msra.mxu0 %v255
        %1922 = vmatprep.subr.mxu0 %v258
        %1923 = vmatpush1.msra.mxu0 %v257
        %1924 = vmatprep.subr.mxu0 %v260
        %1925 = vmatpush1.msra.mxu0 %v259
        %1926 = vmatprep.subr.mxu0 %v262
        %1927 = vmatpush1.msra.mxu0 %v261
        %1928 = vmatprep.subr.mxu0 %v264
        %1929 = vmatpush1.msra.mxu0 %v263
        %1930 = vmatprep.subr.mxu0 %v266
        %1931 = vmatpush1.msra.mxu0 %v265
        %1932 = vmatprep.subr.mxu0 %v268
        %1933 = vmatpush1.msra.mxu0 %v267
        %1934 = vmatprep.subr.mxu0 %v270
        %1935 = vmatpush1.msra.mxu0 %v269
        %1936 = vmatprep.subr.mxu0 0.0
        %1937 = vmatpush1.msra.mxu0 0.0
        %1938 = vmatprep.subr.mxu0 0.0
        %1939 = vmatpush1.msra.mxu0 0.0
        %1940 = vmatprep.subr.mxu0 0.0
        %1941 = vmatpush1.msra.mxu0 0.0
        %1942 = vmatprep.subr.mxu0 0.0
        %1943 = vmatpush1.msra.mxu0 0.0
        %1944 = vmatprep.subr.mxu0 0.0
        %1945 = vmatpush1.msra.mxu0 0.0
        %1946 = vmatprep.subr.mxu0 0.0
        %1947 = vmatpush1.msra.mxu0 0.0
        %1948 = vmatprep.subr.mxu0 0.0
        %1949 = vmatpush1.msra.mxu0 0.0
        %1950 = vmatprep.subr.mxu0 0.0
        %1951 = vmatpush1.msra.mxu0 0.0
        %1952 = vmatprep.subr.mxu0 0.0
        %1953 = vmatpush1.msra.mxu0 0.0
        %1954 = vmatprep.subr.mxu0 0.0
        %1955 = vmatpush1.msra.mxu0 0.0
        %1956 = vmatprep.subr.mxu0 0.0
        %1957 = vmatpush1.msra.mxu0 0.0
        %1958 = vmatprep.subr.mxu0 0.0
        %1959 = vmatpush1.msra.mxu0 0.0
        %1960 = vmatprep.subr.mxu0 0.0
        %1961 = vmatpush1.msra.mxu0 0.0
        %1962 = vmatprep.subr.mxu0 0.0
        %1963 = vmatpush1.msra.mxu0 0.0
        %1964 = vmatprep.subr.mxu0 0.0
        %1965 = vmatpush1.msra.mxu0 0.0
        %1966 = vmatprep.subr.mxu0 0.0
        %1967 = vmatpush1.msra.mxu0 0.0
        %1968 = vmatprep.mubr.f32.mxu0 0.0
        %1969 = vmatmul.mubr.f32.gmra.mrb[0].mxu0 %v230
        %v1970 = vpop.f32.mrb[0].mxu0
        %v1971 = vadd.f32 0.0, %v1970
        %v1972 = vpop.f32.mrb[0].mxu0
        %v1973 = vadd.f32 0.0, %v1972
        %1974 = vdwg.mxu0
        %1975 = vmatprep.subr.mxu0 %v240
        %1976 = vmatpush1.msra.mxu0 %v239
        %1977 = vmatprep.subr.mxu0 %v242
        %1978 = vmatpush1.msra.mxu0 %v241
        %1979 = vmatprep.subr.mxu0 %v244
        %1980 = vmatpush1.msra.mxu0 %v243
        %1981 = vmatprep.subr.mxu0 %v246
        %1982 = vmatpush1.msra.mxu0 %v245
        %1983 = vmatprep.subr.mxu0 %v248
        %1984 = vmatpush1.msra.mxu0 %v247
        %1985 = vmatprep.subr.mxu0 %v250
        %1986 = vmatpush1.msra.mxu0 %v249
        %1987 = vmatprep.subr.mxu0 %v252
        %1988 = vmatpush1.msra.mxu0 %v251
        %1989 = vmatprep.subr.mxu0 %v254
        %1990 = vmatpush1.msra.mxu0 %v253
        %1991 = vmatprep.subr.mxu0 %v256
        %1992 = vmatpush1.msra.mxu0 %v255
        %1993 = vmatprep.subr.mxu0 %v258
        %1994 = vmatpush1.msra.mxu0 %v257
        %1995 = vmatprep.subr.mxu0 %v260
        %1996 = vmatpush1.msra.mxu0 %v259
        %1997 = vmatprep.subr.mxu0 %v262
        %1998 = vmatpush1.msra.mxu0 %v261
        %1999 = vmatprep.subr.mxu0 %v264
        %2000 = vmatpush1.msra.mxu0 %v263
        %2001 = vmatprep.subr.mxu0 %v266
        %2002 = vmatpush1.msra.mxu0 %v265
        %2003 = vmatprep.subr.mxu0 %v268
        %2004 = vmatpush1.msra.mxu0 %v267
        %2005 = vmatprep.subr.mxu0 %v270
        %2006 = vmatpush1.msra.mxu0 %v269
        %2007 = vmatprep.subr.mxu0 0.0
        %2008 = vmatpush1.msra.mxu0 0.0
        %2009 = vmatprep.subr.mxu0 0.0
        %2010 = vmatpush1.msra.mxu0 0.0
        %2011 = vmatprep.subr.mxu0 0.0
        %2012 = vmatpush1.msra.mxu0 0.0
        %2013 = vmatprep.subr.mxu0 0.0
        %2014 = vmatpush1.msra.mxu0 0.0
        %2015 = vmatprep.subr.mxu0 0.0
        %2016 = vmatpush1.msra.mxu0 0.0
        %2017 = vmatprep.subr.mxu0 0.0
        %2018 = vmatpush1.msra.mxu0 0.0
        %2019 = vmatprep.subr.mxu0 0.0
        %2020 = vmatpush1.msra.mxu0 0.0
        %2021 = vmatprep.subr.mxu0 0.0
        %2022 = vmatpush1.msra.mxu0 0.0
        %2023 = vmatprep.subr.mxu0 0.0
        %2024 = vmatpush1.msra.mxu0 0.0
        %2025 = vmatprep.subr.mxu0 0.0
        %2026 = vmatpush1.msra.mxu0 0.0
        %2027 = vmatprep.subr.mxu0 0.0
        %2028 = vmatpush1.msra.mxu0 0.0
        %2029 = vmatprep.subr.mxu0 0.0
        %2030 = vmatpush1.msra.mxu0 0.0
        %2031 = vmatprep.subr.mxu0 0.0
        %2032 = vmatpush1.msra.mxu0 0.0
        %2033 = vmatprep.subr.mxu0 0.0
        %2034 = vmatpush1.msra.mxu0 0.0
        %2035 = vmatprep.subr.mxu0 0.0
        %2036 = vmatpush1.msra.mxu0 0.0
        %2037 = vmatprep.subr.mxu0 0.0
        %2038 = vmatpush1.msra.mxu0 0.0
        %2039 = vmatprep.mubr.f32.mxu0 0.0
        %2040 = vmatmul.mubr.f32.gmra.mrb[0].mxu0 %v231
        %v2041 = vpop.f32.mrb[0].mxu0
        %v2042 = vadd.f32 0.0, %v2041
        %v2043 = vpop.f32.mrb[0].mxu0
        %v2044 = vadd.f32 0.0, %v2043
        %2045 = vdwg.mxu0
        %2046 = vmatprep.subr.mxu0 %v240
        %2047 = vmatpush1.msra.mxu0 %v239
        %2048 = vmatprep.subr.mxu0 %v242
        %2049 = vmatpush1.msra.mxu0 %v241
        %2050 = vmatprep.subr.mxu0 %v244
        %2051 = vmatpush1.msra.mxu0 %v243
        %2052 = vmatprep.subr.mxu0 %v246
        %2053 = vmatpush1.msra.mxu0 %v245
        %2054 = vmatprep.subr.mxu0 %v248
        %2055 = vmatpush1.msra.mxu0 %v247
        %2056 = vmatprep.subr.mxu0 %v250
        %2057 = vmatpush1.msra.mxu0 %v249
        %2058 = vmatprep.subr.mxu0 %v252
        %2059 = vmatpush1.msra.mxu0 %v251
        %2060 = vmatprep.subr.mxu0 %v254
        %2061 = vmatpush1.msra.mxu0 %v253
        %2062 = vmatprep.subr.mxu0 %v256
        %2063 = vmatpush1.msra.mxu0 %v255
        %2064 = vmatprep.subr.mxu0 %v258
        %2065 = vmatpush1.msra.mxu0 %v257
        %2066 = vmatprep.subr.mxu0 %v260
        %2067 = vmatpush1.msra.mxu0 %v259
        %2068 = vmatprep.subr.mxu0 %v262
        %2069 = vmatpush1.msra.mxu0 %v261
        %2070 = vmatprep.subr.mxu0 %v264
        %2071 = vmatpush1.msra.mxu0 %v263
        %2072 = vmatprep.subr.mxu0 %v266
        %2073 = vmatpush1.msra.mxu0 %v265
        %2074 = vmatprep.subr.mxu0 %v268
        %2075 = vmatpush1.msra.mxu0 %v267
        %2076 = vmatprep.subr.mxu0 %v270
        %2077 = vmatpush1.msra.mxu0 %v269
        %2078 = vmatprep.subr.mxu0 0.0
        %2079 = vmatpush1.msra.mxu0 0.0
        %2080 = vmatprep.subr.mxu0 0.0
        %2081 = vmatpush1.msra.mxu0 0.0
        %2082 = vmatprep.subr.mxu0 0.0
        %2083 = vmatpush1.msra.mxu0 0.0
        %2084 = vmatprep.subr.mxu0 0.0
        %2085 = vmatpush1.msra.mxu0 0.0
        %2086 = vmatprep.subr.mxu0 0.0
        %2087 = vmatpush1.msra.mxu0 0.0
        %2088 = vmatprep.subr.mxu0 0.0
        %2089 = vmatpush1.msra.mxu0 0.0
        %2090 = vmatprep.subr.mxu0 0.0
        %2091 = vmatpush1.msra.mxu0 0.0
        %2092 = vmatprep.subr.mxu0 0.0
        %2093 = vmatpush1.msra.mxu0 0.0
        %2094 = vmatprep.subr.mxu0 0.0
        %2095 = vmatpush1.msra.mxu0 0.0
        %2096 = vmatprep.subr.mxu0 0.0
        %2097 = vmatpush1.msra.mxu0 0.0
        %2098 = vmatprep.subr.mxu0 0.0
        %2099 = vmatpush1.msra.mxu0 0.0
        %2100 = vmatprep.subr.mxu0 0.0
        %2101 = vmatpush1.msra.mxu0 0.0
        %2102 = vmatprep.subr.mxu0 0.0
        %2103 = vmatpush1.msra.mxu0 0.0
        %2104 = vmatprep.subr.mxu0 0.0
        %2105 = vmatpush1.msra.mxu0 0.0
        %2106 = vmatprep.subr.mxu0 0.0
        %2107 = vmatpush1.msra.mxu0 0.0
        %2108 = vmatprep.subr.mxu0 0.0
        %2109 = vmatpush1.msra.mxu0 0.0
        %2110 = vmatprep.mubr.f32.mxu0 0.0
        %2111 = vmatmul.mubr.f32.gmra.mrb[0].mxu0 %v232
        %v2112 = vpop.f32.mrb[0].mxu0
        %v2113 = vadd.f32 0.0, %v2112
        %v2114 = vpop.f32.mrb[0].mxu0
        %v2115 = vadd.f32 0.0, %v2114
        %2116 = vdwg.mxu0
        %2117 = vmatprep.subr.mxu0 %v240
        %2118 = vmatpush1.msra.mxu0 %v239
        %2119 = vmatprep.subr.mxu0 %v242
        %2120 = vmatpush1.msra.mxu0 %v241
        %2121 = vmatprep.subr.mxu0 %v244
        %2122 = vmatpush1.msra.mxu0 %v243
        %2123 = vmatprep.subr.mxu0 %v246
        %2124 = vmatpush1.msra.mxu0 %v245
        %2125 = vmatprep.subr.mxu0 %v248
        %2126 = vmatpush1.msra.mxu0 %v247
        %2127 = vmatprep.subr.mxu0 %v250
        %2128 = vmatpush1.msra.mxu0 %v249
        %2129 = vmatprep.subr.mxu0 %v252
        %2130 = vmatpush1.msra.mxu0 %v251
        %2131 = vmatprep.subr.mxu0 %v254
        %2132 = vmatpush1.msra.mxu0 %v253
        %2133 = vmatprep.subr.mxu0 %v256
        %2134 = vmatpush1.msra.mxu0 %v255
        %2135 = vmatprep.subr.mxu0 %v258
        %2136 = vmatpush1.msra.mxu0 %v257
        %2137 = vmatprep.subr.mxu0 %v260
        %2138 = vmatpush1.msra.mxu0 %v259
        %2139 = vmatprep.subr.mxu0 %v262
        %2140 = vmatpush1.msra.mxu0 %v261
        %2141 = vmatprep.subr.mxu0 %v264
        %2142 = vmatpush1.msra.mxu0 %v263
        %2143 = vmatprep.subr.mxu0 %v266
        %2144 = vmatpush1.msra.mxu0 %v265
        %2145 = vmatprep.subr.mxu0 %v268
        %2146 = vmatpush1.msra.mxu0 %v267
        %2147 = vmatprep.subr.mxu0 %v270
        %2148 = vmatpush1.msra.mxu0 %v269
        %2149 = vmatprep.subr.mxu0 0.0
        %2150 = vmatpush1.msra.mxu0 0.0
        %2151 = vmatprep.subr.mxu0 0.0
        %2152 = vmatpush1.msra.mxu0 0.0
        %2153 = vmatprep.subr.mxu0 0.0
        %2154 = vmatpush1.msra.mxu0 0.0
        %2155 = vmatprep.subr.mxu0 0.0
        %2156 = vmatpush1.msra.mxu0 0.0
        %2157 = vmatprep.subr.mxu0 0.0
        %2158 = vmatpush1.msra.mxu0 0.0
        %2159 = vmatprep.subr.mxu0 0.0
        %2160 = vmatpush1.msra.mxu0 0.0
        %2161 = vmatprep.subr.mxu0 0.0
        %2162 = vmatpush1.msra.mxu0 0.0
        %2163 = vmatprep.subr.mxu0 0.0
        %2164 = vmatpush1.msra.mxu0 0.0
        %2165 = vmatprep.subr.mxu0 0.0
        %2166 = vmatpush1.msra.mxu0 0.0
        %2167 = vmatprep.subr.mxu0 0.0
        %2168 = vmatpush1.msra.mxu0 0.0
        %2169 = vmatprep.subr.mxu0 0.0
        %2170 = vmatpush1.msra.mxu0 0.0
        %2171 = vmatprep.subr.mxu0 0.0
        %2172 = vmatpush1.msra.mxu0 0.0
        %2173 = vmatprep.subr.mxu0 0.0
        %2174 = vmatpush1.msra.mxu0 0.0
        %2175 = vmatprep.subr.mxu0 0.0
        %2176 = vmatpush1.msra.mxu0 0.0
        %2177 = vmatprep.subr.mxu0 0.0
        %2178 = vmatpush1.msra.mxu0 0.0
        %2179 = vmatprep.subr.mxu0 0.0
        %2180 = vmatpush1.msra.mxu0 0.0
        %2181 = vmatprep.mubr.f32.mxu0 0.0
        %2182 = vmatmul.mubr.f32.gmra.mrb[0].mxu0 %v233
        %v2183 = vpop.f32.mrb[0].mxu0
        %v2184 = vadd.f32 0.0, %v2183
        %v2185 = vpop.f32.mrb[0].mxu0
        %v2186 = vadd.f32 0.0, %v2185
        %2187 = vdwg.mxu0
        %2188 = vmatprep.subr.mxu0 %v240
        %2189 = vmatpush1.msra.mxu0 %v239
        %2190 = vmatprep.subr.mxu0 %v242
        %2191 = vmatpush1.msra.mxu0 %v241
        %2192 = vmatprep.subr.mxu0 %v244
        %2193 = vmatpush1.msra.mxu0 %v243
        %2194 = vmatprep.subr.mxu0 %v246
        %2195 = vmatpush1.msra.mxu0 %v245
        %2196 = vmatprep.subr.mxu0 %v248
        %2197 = vmatpush1.msra.mxu0 %v247
        %2198 = vmatprep.subr.mxu0 %v250
        %2199 = vmatpush1.msra.mxu0 %v249
        %2200 = vmatprep.subr.mxu0 %v252
        %2201 = vmatpush1.msra.mxu0 %v251
        %2202 = vmatprep.subr.mxu0 %v254
        %2203 = vmatpush1.msra.mxu0 %v253
        %2204 = vmatprep.subr.mxu0 %v256
        %2205 = vmatpush1.msra.mxu0 %v255
        %2206 = vmatprep.subr.mxu0 %v258
        %2207 = vmatpush1.msra.mxu0 %v257
        %2208 = vmatprep.subr.mxu0 %v260
        %2209 = vmatpush1.msra.mxu0 %v259
        %2210 = vmatprep.subr.mxu0 %v262
        %2211 = vmatpush1.msra.mxu0 %v261
        %2212 = vmatprep.subr.mxu0 %v264
        %2213 = vmatpush1.msra.mxu0 %v263
        %2214 = vmatprep.subr.mxu0 %v266
        %2215 = vmatpush1.msra.mxu0 %v265
        %2216 = vmatprep.subr.mxu0 %v268
        %2217 = vmatpush1.msra.mxu0 %v267
        %2218 = vmatprep.subr.mxu0 %v270
        %2219 = vmatpush1.msra.mxu0 %v269
        %2220 = vmatprep.subr.mxu0 0.0
        %2221 = vmatpush1.msra.mxu0 0.0
        %2222 = vmatprep.subr.mxu0 0.0
        %2223 = vmatpush1.msra.mxu0 0.0
        %2224 = vmatprep.subr.mxu0 0.0
        %2225 = vmatpush1.msra.mxu0 0.0
        %2226 = vmatprep.subr.mxu0 0.0
        %2227 = vmatpush1.msra.mxu0 0.0
        %2228 = vmatprep.subr.mxu0 0.0
        %2229 = vmatpush1.msra.mxu0 0.0
        %2230 = vmatprep.subr.mxu0 0.0
        %2231 = vmatpush1.msra.mxu0 0.0
        %2232 = vmatprep.subr.mxu0 0.0
        %2233 = vmatpush1.msra.mxu0 0.0
        %2234 = vmatprep.subr.mxu0 0.0
        %2235 = vmatpush1.msra.mxu0 0.0
        %2236 = vmatprep.subr.mxu0 0.0
        %2237 = vmatpush1.msra.mxu0 0.0
        %2238 = vmatprep.subr.mxu0 0.0
        %2239 = vmatpush1.msra.mxu0 0.0
        %2240 = vmatprep.subr.mxu0 0.0
        %2241 = vmatpush1.msra.mxu0 0.0
        %2242 = vmatprep.subr.mxu0 0.0
        %2243 = vmatpush1.msra.mxu0 0.0
        %2244 = vmatprep.subr.mxu0 0.0
        %2245 = vmatpush1.msra.mxu0 0.0
        %2246 = vmatprep.subr.mxu0 0.0
        %2247 = vmatpush1.msra.mxu0 0.0
        %2248 = vmatprep.subr.mxu0 0.0
        %2249 = vmatpush1.msra.mxu0 0.0
        %2250 = vmatprep.subr.mxu0 0.0
        %2251 = vmatpush1.msra.mxu0 0.0
        %2252 = vmatprep.mubr.f32.mxu0 0.0
        %2253 = vmatmul.mubr.f32.gmra.mrb[0].mxu0 %v234
        %v2254 = vpop.f32.mrb[0].mxu0
        %v2255 = vadd.f32 0.0, %v2254
        %v2256 = vpop.f32.mrb[0].mxu0
        %v2257 = vadd.f32 0.0, %v2256
        %2258 = vdwg.mxu0
        %2259 = vmatprep.subr.mxu0 %v240
        %2260 = vmatpush1.msra.mxu0 %v239
        %2261 = vmatprep.subr.mxu0 %v242
        %2262 = vmatpush1.msra.mxu0 %v241
        %2263 = vmatprep.subr.mxu0 %v244
        %2264 = vmatpush1.msra.mxu0 %v243
        %2265 = vmatprep.subr.mxu0 %v246
        %2266 = vmatpush1.msra.mxu0 %v245
        %2267 = vmatprep.subr.mxu0 %v248
        %2268 = vmatpush1.msra.mxu0 %v247
        %2269 = vmatprep.subr.mxu0 %v250
        %2270 = vmatpush1.msra.mxu0 %v249
        %2271 = vmatprep.subr.mxu0 %v252
        %2272 = vmatpush1.msra.mxu0 %v251
        %2273 = vmatprep.subr.mxu0 %v254
        %2274 = vmatpush1.msra.mxu0 %v253
        %2275 = vmatprep.subr.mxu0 %v256
        %2276 = vmatpush1.msra.mxu0 %v255
        %2277 = vmatprep.subr.mxu0 %v258
        %2278 = vmatpush1.msra.mxu0 %v257
        %2279 = vmatprep.subr.mxu0 %v260
        %2280 = vmatpush1.msra.mxu0 %v259
        %2281 = vmatprep.subr.mxu0 %v262
        %2282 = vmatpush1.msra.mxu0 %v261
        %2283 = vmatprep.subr.mxu0 %v264
        %2284 = vmatpush1.msra.mxu0 %v263
        %2285 = vmatprep.subr.mxu0 %v266
        %2286 = vmatpush1.msra.mxu0 %v265
        %2287 = vmatprep.subr.mxu0 %v268
        %2288 = vmatpush1.msra.mxu0 %v267
        %2289 = vmatprep.subr.mxu0 %v270
        %2290 = vmatpush1.msra.mxu0 %v269
        %2291 = vmatprep.subr.mxu0 0.0
        %2292 = vmatpush1.msra.mxu0 0.0
        %2293 = vmatprep.subr.mxu0 0.0
        %2294 = vmatpush1.msra.mxu0 0.0
        %2295 = vmatprep.subr.mxu0 0.0
        %2296 = vmatpush1.msra.mxu0 0.0
        %2297 = vmatprep.subr.mxu0 0.0
        %2298 = vmatpush1.msra.mxu0 0.0
        %2299 = vmatprep.subr.mxu0 0.0
        %2300 = vmatpush1.msra.mxu0 0.0
        %2301 = vmatprep.subr.mxu0 0.0
        %2302 = vmatpush1.msra.mxu0 0.0
        %2303 = vmatprep.subr.mxu0 0.0
        %2304 = vmatpush1.msra.mxu0 0.0
        %2305 = vmatprep.subr.mxu0 0.0
        %2306 = vmatpush1.msra.mxu0 0.0
        %2307 = vmatprep.subr.mxu0 0.0
        %2308 = vmatpush1.msra.mxu0 0.0
        %2309 = vmatprep.subr.mxu0 0.0
        %2310 = vmatpush1.msra.mxu0 0.0
        %2311 = vmatprep.subr.mxu0 0.0
        %2312 = vmatpush1.msra.mxu0 0.0
        %2313 = vmatprep.subr.mxu0 0.0
        %2314 = vmatpush1.msra.mxu0 0.0
        %2315 = vmatprep.subr.mxu0 0.0
        %2316 = vmatpush1.msra.mxu0 0.0
        %2317 = vmatprep.subr.mxu0 0.0
        %2318 = vmatpush1.msra.mxu0 0.0
        %2319 = vmatprep.subr.mxu0 0.0
        %2320 = vmatpush1.msra.mxu0 0.0
        %2321 = vmatprep.subr.mxu0 0.0
        %2322 = vmatpush1.msra.mxu0 0.0
        %2323 = vmatprep.mubr.f32.mxu0 0.0
        %2324 = vmatmul.mubr.f32.gmra.mrb[0].mxu0 %v235
        %v2325 = vpop.f32.mrb[0].mxu0
        %v2326 = vadd.f32 0.0, %v2325
        %v2327 = vpop.f32.mrb[0].mxu0
        %v2328 = vadd.f32 0.0, %v2327
        %2329 = vdwg.mxu0
        %2330 = vmatprep.subr.mxu0 %v240
        %2331 = vmatpush1.msra.mxu0 %v239
        %2332 = vmatprep.subr.mxu0 %v242
        %2333 = vmatpush1.msra.mxu0 %v241
        %2334 = vmatprep.subr.mxu0 %v244
        %2335 = vmatpush1.msra.mxu0 %v243
        %2336 = vmatprep.subr.mxu0 %v246
        %2337 = vmatpush1.msra.mxu0 %v245
        %2338 = vmatprep.subr.mxu0 %v248
        %2339 = vmatpush1.msra.mxu0 %v247
        %2340 = vmatprep.subr.mxu0 %v250
        %2341 = vmatpush1.msra.mxu0 %v249
        %2342 = vmatprep.subr.mxu0 %v252
        %2343 = vmatpush1.msra.mxu0 %v251
        %2344 = vmatprep.subr.mxu0 %v254
        %2345 = vmatpush1.msra.mxu0 %v253
        %2346 = vmatprep.subr.mxu0 %v256
        %2347 = vmatpush1.msra.mxu0 %v255
        %2348 = vmatprep.subr.mxu0 %v258
        %2349 = vmatpush1.msra.mxu0 %v257
        %2350 = vmatprep.subr.mxu0 %v260
        %2351 = vmatpush1.msra.mxu0 %v259
        %2352 = vmatprep.subr.mxu0 %v262
        %2353 = vmatpush1.msra.mxu0 %v261
        %2354 = vmatprep.subr.mxu0 %v264
        %2355 = vmatpush1.msra.mxu0 %v263
        %2356 = vmatprep.subr.mxu0 %v266
        %2357 = vmatpush1.msra.mxu0 %v265
        %2358 = vmatprep.subr.mxu0 %v268
        %2359 = vmatpush1.msra.mxu0 %v267
        %2360 = vmatprep.subr.mxu0 %v270
        %2361 = vmatpush1.msra.mxu0 %v269
        %2362 = vmatprep.subr.mxu0 0.0
        %2363 = vmatpush1.msra.mxu0 0.0
        %2364 = vmatprep.subr.mxu0 0.0
        %2365 = vmatpush1.msra.mxu0 0.0
        %2366 = vmatprep.subr.mxu0 0.0
        %2367 = vmatpush1.msra.mxu0 0.0
        %2368 = vmatprep.subr.mxu0 0.0
        %2369 = vmatpush1.msra.mxu0 0.0
        %2370 = vmatprep.subr.mxu0 0.0
        %2371 = vmatpush1.msra.mxu0 0.0
        %2372 = vmatprep.subr.mxu0 0.0
        %2373 = vmatpush1.msra.mxu0 0.0
        %2374 = vmatprep.subr.mxu0 0.0
        %2375 = vmatpush1.msra.mxu0 0.0
        %2376 = vmatprep.subr.mxu0 0.0
        %2377 = vmatpush1.msra.mxu0 0.0
        %2378 = vmatprep.subr.mxu0 0.0
        %2379 = vmatpush1.msra.mxu0 0.0
        %2380 = vmatprep.subr.mxu0 0.0
        %2381 = vmatpush1.msra.mxu0 0.0
        %2382 = vmatprep.subr.mxu0 0.0
        %2383 = vmatpush1.msra.mxu0 0.0
        %2384 = vmatprep.subr.mxu0 0.0
        %2385 = vmatpush1.msra.mxu0 0.0
        %2386 = vmatprep.subr.mxu0 0.0
        %2387 = vmatpush1.msra.mxu0 0.0
        %2388 = vmatprep.subr.mxu0 0.0
        %2389 = vmatpush1.msra.mxu0 0.0
        %2390 = vmatprep.subr.mxu0 0.0
        %2391 = vmatpush1.msra.mxu0 0.0
        %2392 = vmatprep.subr.mxu0 0.0
        %2393 = vmatpush1.msra.mxu0 0.0
        %2394 = vmatprep.mubr.f32.mxu0 0.0
        %2395 = vmatmul.mubr.f32.gmra.mrb[0].mxu0 %v236
        %v2396 = vpop.f32.mrb[0].mxu0
        %v2397 = vadd.f32 0.0, %v2396
        %v2398 = vpop.f32.mrb[0].mxu0
        %v2399 = vadd.f32 0.0, %v2398
        %2400 = vdwg.mxu0
        %2401 = vmatprep.subr.mxu0 %v240
        %2402 = vmatpush1.msra.mxu0 %v239
        %2403 = vmatprep.subr.mxu0 %v242
        %2404 = vmatpush1.msra.mxu0 %v241
        %2405 = vmatprep.subr.mxu0 %v244
        %2406 = vmatpush1.msra.mxu0 %v243
        %2407 = vmatprep.subr.mxu0 %v246
        %2408 = vmatpush1.msra.mxu0 %v245
        %2409 = vmatprep.subr.mxu0 %v248
        %2410 = vmatpush1.msra.mxu0 %v247
        %2411 = vmatprep.subr.mxu0 %v250
        %2412 = vmatpush1.msra.mxu0 %v249
        %2413 = vmatprep.subr.mxu0 %v252
        %2414 = vmatpush1.msra.mxu0 %v251
        %2415 = vmatprep.subr.mxu0 %v254
        %2416 = vmatpush1.msra.mxu0 %v253
        %2417 = vmatprep.subr.mxu0 %v256
        %2418 = vmatpush1.msra.mxu0 %v255
        %2419 = vmatprep.subr.mxu0 %v258
        %2420 = vmatpush1.msra.mxu0 %v257
        %2421 = vmatprep.subr.mxu0 %v260
        %2422 = vmatpush1.msra.mxu0 %v259
        %2423 = vmatprep.subr.mxu0 %v262
        %2424 = vmatpush1.msra.mxu0 %v261
        %2425 = vmatprep.subr.mxu0 %v264
        %2426 = vmatpush1.msra.mxu0 %v263
        %2427 = vmatprep.subr.mxu0 %v266
        %2428 = vmatpush1.msra.mxu0 %v265
        %2429 = vmatprep.subr.mxu0 %v268
        %2430 = vmatpush1.msra.mxu0 %v267
        %2431 = vmatprep.subr.mxu0 %v270
        %2432 = vmatpush1.msra.mxu0 %v269
        %2433 = vmatprep.subr.mxu0 0.0
        %2434 = vmatpush1.msra.mxu0 0.0
        %2435 = vmatprep.subr.mxu0 0.0
        %2436 = vmatpush1.msra.mxu0 0.0
        %2437 = vmatprep.subr.mxu0 0.0
        %2438 = vmatpush1.msra.mxu0 0.0
        %2439 = vmatprep.subr.mxu0 0.0
        %2440 = vmatpush1.msra.mxu0 0.0
        %2441 = vmatprep.subr.mxu0 0.0
        %2442 = vmatpush1.msra.mxu0 0.0
        %2443 = vmatprep.subr.mxu0 0.0
        %2444 = vmatpush1.msra.mxu0 0.0
        %2445 = vmatprep.subr.mxu0 0.0
        %2446 = vmatpush1.msra.mxu0 0.0
        %2447 = vmatprep.subr.mxu0 0.0
        %2448 = vmatpush1.msra.mxu0 0.0
        %2449 = vmatprep.subr.mxu0 0.0
        %2450 = vmatpush1.msra.mxu0 0.0
        %2451 = vmatprep.subr.mxu0 0.0
        %2452 = vmatpush1.msra.mxu0 0.0
        %2453 = vmatprep.subr.mxu0 0.0
        %2454 = vmatpush1.msra.mxu0 0.0
        %2455 = vmatprep.subr.mxu0 0.0
        %2456 = vmatpush1.msra.mxu0 0.0
        %2457 = vmatprep.subr.mxu0 0.0
        %2458 = vmatpush1.msra.mxu0 0.0
        %2459 = vmatprep.subr.mxu0 0.0
        %2460 = vmatpush1.msra.mxu0 0.0
        %2461 = vmatprep.subr.mxu0 0.0
        %2462 = vmatpush1.msra.mxu0 0.0
        %2463 = vmatprep.subr.mxu0 0.0
        %2464 = vmatpush1.msra.mxu0 0.0
        %2465 = vmatprep.mubr.f32.mxu0 0.0
        %2466 = vmatmul.mubr.f32.gmra.mrb[0].mxu0 %v237
        %v2467 = vpop.f32.mrb[0].mxu0
        %v2468 = vadd.f32 0.0, %v2467
        %v2469 = vpop.f32.mrb[0].mxu0
        %v2470 = vadd.f32 0.0, %v2469
        %2471 = vdwg.mxu0
        %2472 = vmatprep.subr.mxu0 %v240
        %2473 = vmatpush1.msra.mxu0 %v239
        %2474 = vmatprep.subr.mxu0 %v242
        %2475 = vmatpush1.msra.mxu0 %v241
        %2476 = vmatprep.subr.mxu0 %v244
        %2477 = vmatpush1.msra.mxu0 %v243
        %2478 = vmatprep.subr.mxu0 %v246
        %2479 = vmatpush1.msra.mxu0 %v245
        %2480 = vmatprep.subr.mxu0 %v248
        %2481 = vmatpush1.msra.mxu0 %v247
        %2482 = vmatprep.subr.mxu0 %v250
        %2483 = vmatpush1.msra.mxu0 %v249
        %2484 = vmatprep.subr.mxu0 %v252
        %2485 = vmatpush1.msra.mxu0 %v251
        %2486 = vmatprep.subr.mxu0 %v254
        %2487 = vmatpush1.msra.mxu0 %v253
        %2488 = vmatprep.subr.mxu0 %v256
        %2489 = vmatpush1.msra.mxu0 %v255
        %2490 = vmatprep.subr.mxu0 %v258
        %2491 = vmatpush1.msra.mxu0 %v257
        %2492 = vmatprep.subr.mxu0 %v260
        %2493 = vmatpush1.msra.mxu0 %v259
        %2494 = vmatprep.subr.mxu0 %v262
        %2495 = vmatpush1.msra.mxu0 %v261
        %2496 = vmatprep.subr.mxu0 %v264
        %2497 = vmatpush1.msra.mxu0 %v263
        %2498 = vmatprep.subr.mxu0 %v266
        %2499 = vmatpush1.msra.mxu0 %v265
        %2500 = vmatprep.subr.mxu0 %v268
        %2501 = vmatpush1.msra.mxu0 %v267
        %2502 = vmatprep.subr.mxu0 %v270
        %2503 = vmatpush1.msra.mxu0 %v269
        %2504 = vmatprep.subr.mxu0 0.0
        %2505 = vmatpush1.msra.mxu0 0.0
        %2506 = vmatprep.subr.mxu0 0.0
        %2507 = vmatpush1.msra.mxu0 0.0
        %2508 = vmatprep.subr.mxu0 0.0
        %2509 = vmatpush1.msra.mxu0 0.0
        %2510 = vmatprep.subr.mxu0 0.0
        %2511 = vmatpush1.msra.mxu0 0.0
        %2512 = vmatprep.subr.mxu0 0.0
        %2513 = vmatpush1.msra.mxu0 0.0
        %2514 = vmatprep.subr.mxu0 0.0
        %2515 = vmatpush1.msra.mxu0 0.0
        %2516 = vmatprep.subr.mxu0 0.0
        %2517 = vmatpush1.msra.mxu0 0.0
        %2518 = vmatprep.subr.mxu0 0.0
        %2519 = vmatpush1.msra.mxu0 0.0
        %2520 = vmatprep.subr.mxu0 0.0
        %2521 = vmatpush1.msra.mxu0 0.0
        %2522 = vmatprep.subr.mxu0 0.0
        %2523 = vmatpush1.msra.mxu0 0.0
        %2524 = vmatprep.subr.mxu0 0.0
        %2525 = vmatpush1.msra.mxu0 0.0
        %2526 = vmatprep.subr.mxu0 0.0
        %2527 = vmatpush1.msra.mxu0 0.0
        %2528 = vmatprep.subr.mxu0 0.0
        %2529 = vmatpush1.msra.mxu0 0.0
        %2530 = vmatprep.subr.mxu0 0.0
        %2531 = vmatpush1.msra.mxu0 0.0
        %2532 = vmatprep.subr.mxu0 0.0
        %2533 = vmatpush1.msra.mxu0 0.0
        %2534 = vmatprep.subr.mxu0 0.0
        %2535 = vmatpush1.msra.mxu0 0.0
        %2536 = vmatprep.mubr.f32.mxu0 0.0
        %2537 = vmatmul.mubr.f32.gmra.mrb[0].mxu0 %v238
        %v2538 = vpop.f32.mrb[0].mxu0
        %v2539 = vadd.f32 0.0, %v2538
        %v2540 = vpop.f32.mrb[0].mxu0
        %v2541 = vadd.f32 0.0, %v2540
        %2542 = vdwg.mxu0
        %v2543 = vld [vmem:[%s1] sm:$0xff]
        %v2544 = vld [vmem:[%s1 + $0x8] sm:$0xff]
        %vm2545 = vcmask 64512
        %v2547 = vsel %vm2545, %v2543, 0
        %v2550 = vsel %vm2545, %v2544, 0
        %2552 = vmatprep.subr.mxu0 %v340
        %2553 = vmatpush1.msra.mxu0 %v338
        %2554 = vmatprep.subr.mxu0 0.0
        %2555 = vmatpush1.msra.mxu0 0.0
        %2556 = vmatprep.subr.mxu0 0.0
        %2557 = vmatpush1.msra.mxu0 0.0
        %2558 = vmatprep.subr.mxu0 0.0
        %2559 = vmatpush1.msra.mxu0 0.0
        %2560 = vmatprep.subr.mxu0 0.0
        %2561 = vmatpush1.msra.mxu0 0.0
        %2562 = vmatprep.subr.mxu0 0.0
        %2563 = vmatpush1.msra.mxu0 0.0
        %2564 = vmatprep.subr.mxu0 0.0
        %2565 = vmatpush1.msra.mxu0 0.0
        %2566 = vmatprep.subr.mxu0 0.0
        %2567 = vmatpush1.msra.mxu0 0.0
        %2568 = vmatprep.subr.mxu0 0.0
        %2569 = vmatpush1.msra.mxu0 0.0
        %2570 = vmatprep.subr.mxu0 0.0
        %2571 = vmatpush1.msra.mxu0 0.0
        %2572 = vmatprep.subr.mxu0 0.0
        %2573 = vmatpush1.msra.mxu0 0.0
        %2574 = vmatprep.subr.mxu0 0.0
        %2575 = vmatpush1.msra.mxu0 0.0
        %2576 = vmatprep.subr.mxu0 0.0
        %2577 = vmatpush1.msra.mxu0 0.0
        %2578 = vmatprep.subr.mxu0 0.0
        %2579 = vmatpush1.msra.mxu0 0.0
        %2580 = vmatprep.subr.mxu0 0.0
        %2581 = vmatpush1.msra.mxu0 0.0
        %2582 = vmatprep.subr.mxu0 0.0
        %2583 = vmatpush1.msra.mxu0 0.0
        %2584 = vmatprep.subr.mxu0 0.0
        %2585 = vmatpush1.msra.mxu0 0.0
        %2586 = vmatprep.subr.mxu0 0.0
        %2587 = vmatpush1.msra.mxu0 0.0
        %2588 = vmatprep.subr.mxu0 0.0
        %2589 = vmatpush1.msra.mxu0 0.0
        %2590 = vmatprep.subr.mxu0 0.0
        %2591 = vmatpush1.msra.mxu0 0.0
        %2592 = vmatprep.subr.mxu0 0.0
        %2593 = vmatpush1.msra.mxu0 0.0
        %2594 = vmatprep.subr.mxu0 0.0
        %2595 = vmatpush1.msra.mxu0 0.0
        %2596 = vmatprep.subr.mxu0 0.0
        %2597 = vmatpush1.msra.mxu0 0.0
        %2598 = vmatprep.subr.mxu0 0.0
        %2599 = vmatpush1.msra.mxu0 0.0
        %2600 = vmatprep.subr.mxu0 0.0
        %2601 = vmatpush1.msra.mxu0 0.0
        %2602 = vmatprep.subr.mxu0 0.0
        %2603 = vmatpush1.msra.mxu0 0.0
        %2604 = vmatprep.subr.mxu0 0.0
        %2605 = vmatpush1.msra.mxu0 0.0
        %2606 = vmatprep.subr.mxu0 0.0
        %2607 = vmatpush1.msra.mxu0 0.0
        %2608 = vmatprep.subr.mxu0 0.0
        %2609 = vmatpush1.msra.mxu0 0.0
        %2610 = vmatprep.subr.mxu0 0.0
        %2611 = vmatpush1.msra.mxu0 0.0
        %2612 = vmatprep.subr.mxu0 0.0
        %2613 = vmatpush1.msra.mxu0 0.0
        %2614 = vmatprep.subr.mxu0 0.0
        %2615 = vmatpush1.msra.mxu0 0.0
        %2616 = vmatprep.mubr.f32.mxu0 0.0
        %2617 = vmatmul.mubr.f32.gmra.mrb[0].mxu0 %v2547
        %v2618 = vpop.f32.mrb[0].mxu0
        %v2619 = vadd.f32 0.0, %v2618
        %v2620 = vpop.f32.mrb[0].mxu0
        %v2621 = vadd.f32 0.0, %v2620
        %2622 = vmatprep.mubr.f32.mxu0 0.0
        %2623 = vmatmul.mubr.f32.gmra.mrb[0].mxu0 %v2550
        %v2624 = vpop.f32.mrb[0].mxu0
        %v2625 = vadd.f32 0.0, %v2624
        %v2626 = vpop.f32.mrb[0].mxu0
        %v2627 = vadd.f32 0.0, %v2626
        %2628 = vdwg.mxu0
        %2629 = vmatprep.subr.mxu0 %v411
        %2630 = vmatpush1.msra.mxu0 %v409
        %2631 = vmatprep.subr.mxu0 0.0
        %2632 = vmatpush1.msra.mxu0 0.0
        %2633 = vmatprep.subr.mxu0 0.0
        %2634 = vmatpush1.msra.mxu0 0.0
        %2635 = vmatprep.subr.mxu0 0.0
        %2636 = vmatpush1.msra.mxu0 0.0
        %2637 = vmatprep.subr.mxu0 0.0
        %2638 = vmatpush1.msra.mxu0 0.0
        %2639 = vmatprep.subr.mxu0 0.0
        %2640 = vmatpush1.msra.mxu0 0.0
        %2641 = vmatprep.subr.mxu0 0.0
        %2642 = vmatpush1.msra.mxu0 0.0
        %2643 = vmatprep.subr.mxu0 0.0
        %2644 = vmatpush1.msra.mxu0 0.0
        %2645 = vmatprep.subr.mxu0 0.0
        %2646 = vmatpush1.msra.mxu0 0.0
        %2647 = vmatprep.subr.mxu0 0.0
        %2648 = vmatpush1.msra.mxu0 0.0
        %2649 = vmatprep.subr.mxu0 0.0
        %2650 = vmatpush1.msra.mxu0 0.0
        %2651 = vmatprep.subr.mxu0 0.0
        %2652 = vmatpush1.msra.mxu0 0.0
        %2653 = vmatprep.subr.mxu0 0.0
        %2654 = vmatpush1.msra.mxu0 0.0
        %2655 = vmatprep.subr.mxu0 0.0
        %2656 = vmatpush1.msra.mxu0 0.0
        %2657 = vmatprep.subr.mxu0 0.0
        %2658 = vmatpush1.msra.mxu0 0.0
        %2659 = vmatprep.subr.mxu0 0.0
        %2660 = vmatpush1.msra.mxu0 0.0
        %2661 = vmatprep.subr.mxu0 0.0
        %2662 = vmatpush1.msra.mxu0 0.0
        %2663 = vmatprep.subr.mxu0 0.0
        %2664 = vmatpush1.msra.mxu0 0.0
        %2665 = vmatprep.subr.mxu0 0.0
        %2666 = vmatpush1.msra.mxu0 0.0
        %2667 = vmatprep.subr.mxu0 0.0
        %2668 = vmatpush1.msra.mxu0 0.0
        %2669 = vmatprep.subr.mxu0 0.0
        %2670 = vmatpush1.msra.mxu0 0.0
        %2671 = vmatprep.subr.mxu0 0.0
        %2672 = vmatpush1.msra.mxu0 0.0
        %2673 = vmatprep.subr.mxu0 0.0
        %2674 = vmatpush1.msra.mxu0 0.0
        %2675 = vmatprep.subr.mxu0 0.0
        %2676 = vmatpush1.msra.mxu0 0.0
        %2677 = vmatprep.subr.mxu0 0.0
        %2678 = vmatpush1.msra.mxu0 0.0
        %2679 = vmatprep.subr.mxu0 0.0
        %2680 = vmatpush1.msra.mxu0 0.0
        %2681 = vmatprep.subr.mxu0 0.0
        %2682 = vmatpush1.msra.mxu0 0.0
        %2683 = vmatprep.subr.mxu0 0.0
        %2684 = vmatpush1.msra.mxu0 0.0
        %2685 = vmatprep.subr.mxu0 0.0
        %2686 = vmatpush1.msra.mxu0 0.0
        %2687 = vmatprep.subr.mxu0 0.0
        %2688 = vmatpush1.msra.mxu0 0.0
        %2689 = vmatprep.subr.mxu0 0.0
        %2690 = vmatpush1.msra.mxu0 0.0
        %2691 = vmatprep.subr.mxu0 0.0
        %2692 = vmatpush1.msra.mxu0 0.0
        %2693 = vmatprep.mubr.f32.mxu0 0.0
        %2694 = vmatmul.mubr.f32.gmra.mrb[0].mxu0 %v2547
        %v2695 = vpop.f32.mrb[0].mxu0
        %v2696 = vadd.f32 0.0, %v2695
        %v2697 = vpop.f32.mrb[0].mxu0
        %v2698 = vadd.f32 0.0, %v2697
        %2699 = vmatprep.mubr.f32.mxu0 0.0
        %2700 = vmatmul.mubr.f32.gmra.mrb[0].mxu0 %v2550
        %v2701 = vpop.f32.mrb[0].mxu0
        %v2702 = vadd.f32 0.0, %v2701
        %v2703 = vpop.f32.mrb[0].mxu0
        %v2704 = vadd.f32 0.0, %v2703
        %2705 = vdwg.mxu0
        %2706 = vmatprep.subr.mxu0 %v482
        %2707 = vmatpush1.msra.mxu0 %v480
        %2708 = vmatprep.subr.mxu0 0.0
        %2709 = vmatpush1.msra.mxu0 0.0
        %2710 = vmatprep.subr.mxu0 0.0
        %2711 = vmatpush1.msra.mxu0 0.0
        %2712 = vmatprep.subr.mxu0 0.0
        %2713 = vmatpush1.msra.mxu0 0.0
        %2714 = vmatprep.subr.mxu0 0.0
        %2715 = vmatpush1.msra.mxu0 0.0
        %2716 = vmatprep.subr.mxu0 0.0
        %2717 = vmatpush1.msra.mxu0 0.0
        %2718 = vmatprep.subr.mxu0 0.0
        %2719 = vmatpush1.msra.mxu0 0.0
        %2720 = vmatprep.subr.mxu0 0.0
        %2721 = vmatpush1.msra.mxu0 0.0
        %2722 = vmatprep.subr.mxu0 0.0
        %2723 = vmatpush1.msra.mxu0 0.0
        %2724 = vmatprep.subr.mxu0 0.0
        %2725 = vmatpush1.msra.mxu0 0.0
        %2726 = vmatprep.subr.mxu0 0.0
        %2727 = vmatpush1.msra.mxu0 0.0
        %2728 = vmatprep.subr.mxu0 0.0
        %2729 = vmatpush1.msra.mxu0 0.0
        %2730 = vmatprep.subr.mxu0 0.0
        %2731 = vmatpush1.msra.mxu0 0.0
        %2732 = vmatprep.subr.mxu0 0.0
        %2733 = vmatpush1.msra.mxu0 0.0
        %2734 = vmatprep.subr.mxu0 0.0
        %2735 = vmatpush1.msra.mxu0 0.0
        %2736 = vmatprep.subr.mxu0 0.0
        %2737 = vmatpush1.msra.mxu0 0.0
        %2738 = vmatprep.subr.mxu0 0.0
        %2739 = vmatpush1.msra.mxu0 0.0
        %2740 = vmatprep.subr.mxu0 0.0
        %2741 = vmatpush1.msra.mxu0 0.0
        %2742 = vmatprep.subr.mxu0 0.0
        %2743 = vmatpush1.msra.mxu0 0.0
        %2744 = vmatprep.subr.mxu0 0.0
        %2745 = vmatpush1.msra.mxu0 0.0
        %2746 = vmatprep.subr.mxu0 0.0
        %2747 = vmatpush1.msra.mxu0 0.0
        %2748 = vmatprep.subr.mxu0 0.0
        %2749 = vmatpush1.msra.mxu0 0.0
        %2750 = vmatprep.subr.mxu0 0.0
        %2751 = vmatpush1.msra.mxu0 0.0
        %2752 = vmatprep.subr.mxu0 0.0
        %2753 = vmatpush1.msra.mxu0 0.0
        %2754 = vmatprep.subr.mxu0 0.0
        %2755 = vmatpush1.msra.mxu0 0.0
        %2756 = vmatprep.subr.mxu0 0.0
        %2757 = vmatpush1.msra.mxu0 0.0
        %2758 = vmatprep.subr.mxu0 0.0
        %2759 = vmatpush1.msra.mxu0 0.0
        %2760 = vmatprep.subr.mxu0 0.0
        %2761 = vmatpush1.msra.mxu0 0.0
        %2762 = vmatprep.subr.mxu0 0.0
        %2763 = vmatpush1.msra.mxu0 0.0
        %2764 = vmatprep.subr.mxu0 0.0
        %2765 = vmatpush1.msra.mxu0 0.0
        %2766 = vmatprep.subr.mxu0 0.0
        %2767 = vmatpush1.msra.mxu0 0.0
        %2768 = vmatprep.subr.mxu0 0.0
        %2769 = vmatpush1.msra.mxu0 0.0
        %2770 = vmatprep.mubr.f32.mxu0 0.0
        %2771 = vmatmul.mubr.f32.gmra.mrb[0].mxu0 %v2547
        %v2772 = vpop.f32.mrb[0].mxu0
        %v2773 = vadd.f32 0.0, %v2772
        %v2774 = vpop.f32.mrb[0].mxu0
        %v2775 = vadd.f32 0.0, %v2774
        %2776 = vmatprep.mubr.f32.mxu0 0.0
        %2777 = vmatmul.mubr.f32.gmra.mrb[0].mxu0 %v2550
        %v2778 = vpop.f32.mrb[0].mxu0
        %v2779 = vadd.f32 0.0, %v2778
        %v2780 = vpop.f32.mrb[0].mxu0
        %v2781 = vadd.f32 0.0, %v2780
        %2782 = vdwg.mxu0
        %2783 = vmatprep.subr.mxu0 %v553
        %2784 = vmatpush1.msra.mxu0 %v551
        %2785 = vmatprep.subr.mxu0 0.0
        %2786 = vmatpush1.msra.mxu0 0.0
        %2787 = vmatprep.subr.mxu0 0.0
        %2788 = vmatpush1.msra.mxu0 0.0
        %2789 = vmatprep.subr.mxu0 0.0
        %2790 = vmatpush1.msra.mxu0 0.0
        %2791 = vmatprep.subr.mxu0 0.0
        %2792 = vmatpush1.msra.mxu0 0.0
        %2793 = vmatprep.subr.mxu0 0.0
        %2794 = vmatpush1.msra.mxu0 0.0
        %2795 = vmatprep.subr.mxu0 0.0
        %2796 = vmatpush1.msra.mxu0 0.0
        %2797 = vmatprep.subr.mxu0 0.0
        %2798 = vmatpush1.msra.mxu0 0.0
        %2799 = vmatprep.subr.mxu0 0.0
        %2800 = vmatpush1.msra.mxu0 0.0
        %2801 = vmatprep.subr.mxu0 0.0
        %2802 = vmatpush1.msra.mxu0 0.0
        %2803 = vmatprep.subr.mxu0 0.0
        %2804 = vmatpush1.msra.mxu0 0.0
        %2805 = vmatprep.subr.mxu0 0.0
        %2806 = vmatpush1.msra.mxu0 0.0
        %2807 = vmatprep.subr.mxu0 0.0
        %2808 = vmatpush1.msra.mxu0 0.0
        %2809 = vmatprep.subr.mxu0 0.0
        %2810 = vmatpush1.msra.mxu0 0.0
        %2811 = vmatprep.subr.mxu0 0.0
        %2812 = vmatpush1.msra.mxu0 0.0
        %2813 = vmatprep.subr.mxu0 0.0
        %2814 = vmatpush1.msra.mxu0 0.0
        %2815 = vmatprep.subr.mxu0 0.0
        %2816 = vmatpush1.msra.mxu0 0.0
        %2817 = vmatprep.subr.mxu0 0.0
        %2818 = vmatpush1.msra.mxu0 0.0
        %2819 = vmatprep.subr.mxu0 0.0
        %2820 = vmatpush1.msra.mxu0 0.0
        %2821 = vmatprep.subr.mxu0 0.0
        %2822 = vmatpush1.msra.mxu0 0.0
        %2823 = vmatprep.subr.mxu0 0.0
        %2824 = vmatpush1.msra.mxu0 0.0
        %2825 = vmatprep.subr.mxu0 0.0
        %2826 = vmatpush1.msra.mxu0 0.0
        %2827 = vmatprep.subr.mxu0 0.0
        %2828 = vmatpush1.msra.mxu0 0.0
        %2829 = vmatprep.subr.mxu0 0.0
        %2830 = vmatpush1.msra.mxu0 0.0
        %2831 = vmatprep.subr.mxu0 0.0
        %2832 = vmatpush1.msra.mxu0 0.0
        %2833 = vmatprep.subr.mxu0 0.0
        %2834 = vmatpush1.msra.mxu0 0.0
        %2835 = vmatprep.subr.mxu0 0.0
        %2836 = vmatpush1.msra.mxu0 0.0
        %2837 = vmatprep.subr.mxu0 0.0
        %2838 = vmatpush1.msra.mxu0 0.0
        %2839 = vmatprep.subr.mxu0 0.0
        %2840 = vmatpush1.msra.mxu0 0.0
        %2841 = vmatprep.subr.mxu0 0.0
        %2842 = vmatpush1.msra.mxu0 0.0
        %2843 = vmatprep.subr.mxu0 0.0
        %2844 = vmatpush1.msra.mxu0 0.0
        %2845 = vmatprep.subr.mxu0 0.0
        %2846 = vmatpush1.msra.mxu0 0.0
        %2847 = vmatprep.mubr.f32.mxu0 0.0
        %2848 = vmatmul.mubr.f32.gmra.mrb[0].mxu0 %v2547
        %v2849 = vpop.f32.mrb[0].mxu0
        %v2850 = vadd.f32 0.0, %v2849
        %v2851 = vpop.f32.mrb[0].mxu0
        %v2852 = vadd.f32 0.0, %v2851
        %2853 = vmatprep.mubr.f32.mxu0 0.0
        %2854 = vmatmul.mubr.f32.gmra.mrb[0].mxu0 %v2550
        %v2855 = vpop.f32.mrb[0].mxu0
        %v2856 = vadd.f32 0.0, %v2855
        %v2857 = vpop.f32.mrb[0].mxu0
        %v2858 = vadd.f32 0.0, %v2857
        %2859 = vdwg.mxu0
        %2860 = vmatprep.subr.mxu0 %v624
        %2861 = vmatpush1.msra.mxu0 %v622
        %2862 = vmatprep.subr.mxu0 0.0
        %2863 = vmatpush1.msra.mxu0 0.0
        %2864 = vmatprep.subr.mxu0 0.0
        %2865 = vmatpush1.msra.mxu0 0.0
        %2866 = vmatprep.subr.mxu0 0.0
        %2867 = vmatpush1.msra.mxu0 0.0
        %2868 = vmatprep.subr.mxu0 0.0
        %2869 = vmatpush1.msra.mxu0 0.0
        %2870 = vmatprep.subr.mxu0 0.0
        %2871 = vmatpush1.msra.mxu0 0.0
        %2872 = vmatprep.subr.mxu0 0.0
        %2873 = vmatpush1.msra.mxu0 0.0
        %2874 = vmatprep.subr.mxu0 0.0
        %2875 = vmatpush1.msra.mxu0 0.0
        %2876 = vmatprep.subr.mxu0 0.0
        %2877 = vmatpush1.msra.mxu0 0.0
        %2878 = vmatprep.subr.mxu0 0.0
        %2879 = vmatpush1.msra.mxu0 0.0
        %2880 = vmatprep.subr.mxu0 0.0
        %2881 = vmatpush1.msra.mxu0 0.0
        %2882 = vmatprep.subr.mxu0 0.0
        %2883 = vmatpush1.msra.mxu0 0.0
        %2884 = vmatprep.subr.mxu0 0.0
        %2885 = vmatpush1.msra.mxu0 0.0
        %2886 = vmatprep.subr.mxu0 0.0
        %2887 = vmatpush1.msra.mxu0 0.0
        %2888 = vmatprep.subr.mxu0 0.0
        %2889 = vmatpush1.msra.mxu0 0.0
        %2890 = vmatprep.subr.mxu0 0.0
        %2891 = vmatpush1.msra.mxu0 0.0
        %2892 = vmatprep.subr.mxu0 0.0
        %2893 = vmatpush1.msra.mxu0 0.0
        %2894 = vmatprep.subr.mxu0 0.0
        %2895 = vmatpush1.msra.mxu0 0.0
        %2896 = vmatprep.subr.mxu0 0.0
        %2897 = vmatpush1.msra.mxu0 0.0
        %2898 = vmatprep.subr.mxu0 0.0
        %2899 = vmatpush1.msra.mxu0 0.0
        %2900 = vmatprep.subr.mxu0 0.0
        %2901 = vmatpush1.msra.mxu0 0.0
        %2902 = vmatprep.subr.mxu0 0.0
        %2903 = vmatpush1.msra.mxu0 0.0
        %2904 = vmatprep.subr.mxu0 0.0
        %2905 = vmatpush1.msra.mxu0 0.0
        %2906 = vmatprep.subr.mxu0 0.0
        %2907 = vmatpush1.msra.mxu0 0.0
        %2908 = vmatprep.subr.mxu0 0.0
        %2909 = vmatpush1.msra.mxu0 0.0
        %2910 = vmatprep.subr.mxu0 0.0
        %2911 = vmatpush1.msra.mxu0 0.0
        %2912 = vmatprep.subr.mxu0 0.0
        %2913 = vmatpush1.msra.mxu0 0.0
        %2914 = vmatprep.subr.mxu0 0.0
        %2915 = vmatpush1.msra.mxu0 0.0
        %2916 = vmatprep.subr.mxu0 0.0
        %2917 = vmatpush1.msra.mxu0 0.0
        %2918 = vmatprep.subr.mxu0 0.0
        %2919 = vmatpush1.msra.mxu0 0.0
        %2920 = vmatprep.subr.mxu0 0.0
        %2921 = vmatpush1.msra.mxu0 0.0
        %2922 = vmatprep.subr.mxu0 0.0
        %2923 = vmatpush1.msra.mxu0 0.0
        %2924 = vmatprep.mubr.f32.mxu0 0.0
        %2925 = vmatmul.mubr.f32.gmra.mrb[0].mxu0 %v2547
        %v2926 = vpop.f32.mrb[0].mxu0
        %v2927 = vadd.f32 0.0, %v2926
        %v2928 = vpop.f32.mrb[0].mxu0
        %v2929 = vadd.f32 0.0, %v2928
        %2930 = vmatprep.mubr.f32.mxu0 0.0
        %2931 = vmatmul.mubr.f32.gmra.mrb[0].mxu0 %v2550
        %v2932 = vpop.f32.mrb[0].mxu0
        %v2933 = vadd.f32 0.0, %v2932
        %v2934 = vpop.f32.mrb[0].mxu0
        %v2935 = vadd.f32 0.0, %v2934
        %2936 = vdwg.mxu0
        %2937 = vmatprep.subr.mxu0 %v695
        %2938 = vmatpush1.msra.mxu0 %v693
        %2939 = vmatprep.subr.mxu0 0.0
        %2940 = vmatpush1.msra.mxu0 0.0
        %2941 = vmatprep.subr.mxu0 0.0
        %2942 = vmatpush1.msra.mxu0 0.0
        %2943 = vmatprep.subr.mxu0 0.0
        %2944 = vmatpush1.msra.mxu0 0.0
        %2945 = vmatprep.subr.mxu0 0.0
        %2946 = vmatpush1.msra.mxu0 0.0
        %2947 = vmatprep.subr.mxu0 0.0
        %2948 = vmatpush1.msra.mxu0 0.0
        %2949 = vmatprep.subr.mxu0 0.0
        %2950 = vmatpush1.msra.mxu0 0.0
        %2951 = vmatprep.subr.mxu0 0.0
        %2952 = vmatpush1.msra.mxu0 0.0
        %2953 = vmatprep.subr.mxu0 0.0
        %2954 = vmatpush1.msra.mxu0 0.0
        %2955 = vmatprep.subr.mxu0 0.0
        %2956 = vmatpush1.msra.mxu0 0.0
        %2957 = vmatprep.subr.mxu0 0.0
        %2958 = vmatpush1.msra.mxu0 0.0
        %2959 = vmatprep.subr.mxu0 0.0
        %2960 = vmatpush1.msra.mxu0 0.0
        %2961 = vmatprep.subr.mxu0 0.0
        %2962 = vmatpush1.msra.mxu0 0.0
        %2963 = vmatprep.subr.mxu0 0.0
        %2964 = vmatpush1.msra.mxu0 0.0
        %2965 = vmatprep.subr.mxu0 0.0
        %2966 = vmatpush1.msra.mxu0 0.0
        %2967 = vmatprep.subr.mxu0 0.0
        %2968 = vmatpush1.msra.mxu0 0.0
        %2969 = vmatprep.subr.mxu0 0.0
        %2970 = vmatpush1.msra.mxu0 0.0
        %2971 = vmatprep.subr.mxu0 0.0
        %2972 = vmatpush1.msra.mxu0 0.0
        %2973 = vmatprep.subr.mxu0 0.0
        %2974 = vmatpush1.msra.mxu0 0.0
        %2975 = vmatprep.subr.mxu0 0.0
        %2976 = vmatpush1.msra.mxu0 0.0
        %2977 = vmatprep.subr.mxu0 0.0
        %2978 = vmatpush1.msra.mxu0 0.0
        %2979 = vmatprep.subr.mxu0 0.0
        %2980 = vmatpush1.msra.mxu0 0.0
        %2981 = vmatprep.subr.mxu0 0.0
        %2982 = vmatpush1.msra.mxu0 0.0
        %2983 = vmatprep.subr.mxu0 0.0
        %2984 = vmatpush1.msra.mxu0 0.0
        %2985 = vmatprep.subr.mxu0 0.0
        %2986 = vmatpush1.msra.mxu0 0.0
        %2987 = vmatprep.subr.mxu0 0.0
        %2988 = vmatpush1.msra.mxu0 0.0
        %2989 = vmatprep.subr.mxu0 0.0
        %2990 = vmatpush1.msra.mxu0 0.0
        %2991 = vmatprep.subr.mxu0 0.0
        %2992 = vmatpush1.msra.mxu0 0.0
        %2993 = vmatprep.subr.mxu0 0.0
        %2994 = vmatpush1.msra.mxu0 0.0
        %2995 = vmatprep.subr.mxu0 0.0
        %2996 = vmatpush1.msra.mxu0 0.0
        %2997 = vmatprep.subr.mxu0 0.0
        %2998 = vmatpush1.msra.mxu0 0.0
        %2999 = vmatprep.subr.mxu0 0.0
        %3000 = vmatpush1.msra.mxu0 0.0
        %3001 = vmatprep.mubr.f32.mxu0 0.0
        %3002 = vmatmul.mubr.f32.gmra.mrb[0].mxu0 %v2547
        %v3003 = vpop.f32.mrb[0].mxu0
        %v3004 = vadd.f32 0.0, %v3003
        %v3005 = vpop.f32.mrb[0].mxu0
        %v3006 = vadd.f32 0.0, %v3005
        %3007 = vmatprep.mubr.f32.mxu0 0.0
        %3008 = vmatmul.mubr.f32.gmra.mrb[0].mxu0 %v2550
        %v3009 = vpop.f32.mrb[0].mxu0
        %v3010 = vadd.f32 0.0, %v3009
        %v3011 = vpop.f32.mrb[0].mxu0
        %v3012 = vadd.f32 0.0, %v3011
        %3013 = vdwg.mxu0
        %3014 = vmatprep.subr.mxu0 %v766
        %3015 = vmatpush1.msra.mxu0 %v764
        %3016 = vmatprep.subr.mxu0 0.0
        %3017 = vmatpush1.msra.mxu0 0.0
        %3018 = vmatprep.subr.mxu0 0.0
        %3019 = vmatpush1.msra.mxu0 0.0
        %3020 = vmatprep.subr.mxu0 0.0
        %3021 = vmatpush1.msra.mxu0 0.0
        %3022 = vmatprep.subr.mxu0 0.0
        %3023 = vmatpush1.msra.mxu0 0.0
        %3024 = vmatprep.subr.mxu0 0.0
        %3025 = vmatpush1.msra.mxu0 0.0
        %3026 = vmatprep.subr.mxu0 0.0
        %3027 = vmatpush1.msra.mxu0 0.0
        %3028 = vmatprep.subr.mxu0 0.0
        %3029 = vmatpush1.msra.mxu0 0.0
        %3030 = vmatprep.subr.mxu0 0.0
        %3031 = vmatpush1.msra.mxu0 0.0
        %3032 = vmatprep.subr.mxu0 0.0
        %3033 = vmatpush1.msra.mxu0 0.0
        %3034 = vmatprep.subr.mxu0 0.0
        %3035 = vmatpush1.msra.mxu0 0.0
        %3036 = vmatprep.subr.mxu0 0.0
        %3037 = vmatpush1.msra.mxu0 0.0
        %3038 = vmatprep.subr.mxu0 0.0
        %3039 = vmatpush1.msra.mxu0 0.0
        %3040 = vmatprep.subr.mxu0 0.0
        %3041 = vmatpush1.msra.mxu0 0.0
        %3042 = vmatprep.subr.mxu0 0.0
        %3043 = vmatpush1.msra.mxu0 0.0
        %3044 = vmatprep.subr.mxu0 0.0
        %3045 = vmatpush1.msra.mxu0 0.0
        %3046 = vmatprep.subr.mxu0 0.0
        %3047 = vmatpush1.msra.mxu0 0.0
        %3048 = vmatprep.subr.mxu0 0.0
        %3049 = vmatpush1.msra.mxu0 0.0
        %3050 = vmatprep.subr.mxu0 0.0
        %3051 = vmatpush1.msra.mxu0 0.0
        %3052 = vmatprep.subr.mxu0 0.0
        %3053 = vmatpush1.msra.mxu0 0.0
        %3054 = vmatprep.subr.mxu0 0.0
        %3055 = vmatpush1.msra.mxu0 0.0
        %3056 = vmatprep.subr.mxu0 0.0
        %3057 = vmatpush1.msra.mxu0 0.0
        %3058 = vmatprep.subr.mxu0 0.0
        %3059 = vmatpush1.msra.mxu0 0.0
        %3060 = vmatprep.subr.mxu0 0.0
        %3061 = vmatpush1.msra.mxu0 0.0
        %3062 = vmatprep.subr.mxu0 0.0
        %3063 = vmatpush1.msra.mxu0 0.0
        %3064 = vmatprep.subr.mxu0 0.0
        %3065 = vmatpush1.msra.mxu0 0.0
        %3066 = vmatprep.subr.mxu0 0.0
        %3067 = vmatpush1.msra.mxu0 0.0
        %3068 = vmatprep.subr.mxu0 0.0
        %3069 = vmatpush1.msra.mxu0 0.0
        %3070 = vmatprep.subr.mxu0 0.0
        %3071 = vmatpush1.msra.mxu0 0.0
        %3072 = vmatprep.subr.mxu0 0.0
        %3073 = vmatpush1.msra.mxu0 0.0
        %3074 = vmatprep.subr.mxu0 0.0
        %3075 = vmatpush1.msra.mxu0 0.0
        %3076 = vmatprep.subr.mxu0 0.0
        %3077 = vmatpush1.msra.mxu0 0.0
        %3078 = vmatprep.mubr.f32.mxu0 0.0
        %3079 = vmatmul.mubr.f32.gmra.mrb[0].mxu0 %v2547
        %v3080 = vpop.f32.mrb[0].mxu0
        %v3081 = vadd.f32 0.0, %v3080
        %v3082 = vpop.f32.mrb[0].mxu0
        %v3083 = vadd.f32 0.0, %v3082
        %3084 = vmatprep.mubr.f32.mxu0 0.0
        %3085 = vmatmul.mubr.f32.gmra.mrb[0].mxu0 %v2550
        %v3086 = vpop.f32.mrb[0].mxu0
        %v3087 = vadd.f32 0.0, %v3086
        %v3088 = vpop.f32.mrb[0].mxu0
        %v3089 = vadd.f32 0.0, %v3088
        %3090 = vdwg.mxu0
        %3091 = vmatprep.subr.mxu0 %v837
        %3092 = vmatpush1.msra.mxu0 %v835
        %3093 = vmatprep.subr.mxu0 0.0
        %3094 = vmatpush1.msra.mxu0 0.0
        %3095 = vmatprep.subr.mxu0 0.0
        %3096 = vmatpush1.msra.mxu0 0.0
        %3097 = vmatprep.subr.mxu0 0.0
        %3098 = vmatpush1.msra.mxu0 0.0
        %3099 = vmatprep.subr.mxu0 0.0
        %3100 = vmatpush1.msra.mxu0 0.0
        %3101 = vmatprep.subr.mxu0 0.0
        %3102 = vmatpush1.msra.mxu0 0.0
        %3103 = vmatprep.subr.mxu0 0.0
        %3104 = vmatpush1.msra.mxu0 0.0
        %3105 = vmatprep.subr.mxu0 0.0
        %3106 = vmatpush1.msra.mxu0 0.0
        %3107 = vmatprep.subr.mxu0 0.0
        %3108 = vmatpush1.msra.mxu0 0.0
        %3109 = vmatprep.subr.mxu0 0.0
        %3110 = vmatpush1.msra.mxu0 0.0
        %3111 = vmatprep.subr.mxu0 0.0
        %3112 = vmatpush1.msra.mxu0 0.0
        %3113 = vmatprep.subr.mxu0 0.0
        %3114 = vmatpush1.msra.mxu0 0.0
        %3115 = vmatprep.subr.mxu0 0.0
        %3116 = vmatpush1.msra.mxu0 0.0
        %3117 = vmatprep.subr.mxu0 0.0
        %3118 = vmatpush1.msra.mxu0 0.0
        %3119 = vmatprep.subr.mxu0 0.0
        %3120 = vmatpush1.msra.mxu0 0.0
        %3121 = vmatprep.subr.mxu0 0.0
        %3122 = vmatpush1.msra.mxu0 0.0
        %3123 = vmatprep.subr.mxu0 0.0
        %3124 = vmatpush1.msra.mxu0 0.0
        %3125 = vmatprep.subr.mxu0 0.0
        %3126 = vmatpush1.msra.mxu0 0.0
        %3127 = vmatprep.subr.mxu0 0.0
        %3128 = vmatpush1.msra.mxu0 0.0
        %3129 = vmatprep.subr.mxu0 0.0
        %3130 = vmatpush1.msra.mxu0 0.0
        %3131 = vmatprep.subr.mxu0 0.0
        %3132 = vmatpush1.msra.mxu0 0.0
        %3133 = vmatprep.subr.mxu0 0.0
        %3134 = vmatpush1.msra.mxu0 0.0
        %3135 = vmatprep.subr.mxu0 0.0
        %3136 = vmatpush1.msra.mxu0 0.0
        %3137 = vmatprep.subr.mxu0 0.0
        %3138 = vmatpush1.msra.mxu0 0.0
        %3139 = vmatprep.subr.mxu0 0.0
        %3140 = vmatpush1.msra.mxu0 0.0
        %3141 = vmatprep.subr.mxu0 0.0
        %3142 = vmatpush1.msra.mxu0 0.0
        %3143 = vmatprep.subr.mxu0 0.0
        %3144 = vmatpush1.msra.mxu0 0.0
        %3145 = vmatprep.subr.mxu0 0.0
        %3146 = vmatpush1.msra.mxu0 0.0
        %3147 = vmatprep.subr.mxu0 0.0
        %3148 = vmatpush1.msra.mxu0 0.0
        %3149 = vmatprep.subr.mxu0 0.0
        %3150 = vmatpush1.msra.mxu0 0.0
        %3151 = vmatprep.subr.mxu0 0.0
        %3152 = vmatpush1.msra.mxu0 0.0
        %3153 = vmatprep.subr.mxu0 0.0
        %3154 = vmatpush1.msra.mxu0 0.0
        %3155 = vmatprep.mubr.f32.mxu0 0.0
        %3156 = vmatmul.mubr.f32.gmra.mrb[0].mxu0 %v2547
        %v3157 = vpop.f32.mrb[0].mxu0
        %v3158 = vadd.f32 0.0, %v3157
        %v3159 = vpop.f32.mrb[0].mxu0
        %v3160 = vadd.f32 0.0, %v3159
        %3161 = vmatprep.mubr.f32.mxu0 0.0
        %3162 = vmatmul.mubr.f32.gmra.mrb[0].mxu0 %v2550
        %v3163 = vpop.f32.mrb[0].mxu0
        %v3164 = vadd.f32 0.0, %v3163
        %v3165 = vpop.f32.mrb[0].mxu0
        %v3166 = vadd.f32 0.0, %v3165
        %3167 = vdwg.mxu0
        %3168 = vmatprep.subr.mxu0 %v908
        %3169 = vmatpush1.msra.mxu0 %v906
        %3170 = vmatprep.subr.mxu0 0.0
        %3171 = vmatpush1.msra.mxu0 0.0
        %3172 = vmatprep.subr.mxu0 0.0
        %3173 = vmatpush1.msra.mxu0 0.0
        %3174 = vmatprep.subr.mxu0 0.0
        %3175 = vmatpush1.msra.mxu0 0.0
        %3176 = vmatprep.subr.mxu0 0.0
        %3177 = vmatpush1.msra.mxu0 0.0
        %3178 = vmatprep.subr.mxu0 0.0
        %3179 = vmatpush1.msra.mxu0 0.0
        %3180 = vmatprep.subr.mxu0 0.0
        %3181 = vmatpush1.msra.mxu0 0.0
        %3182 = vmatprep.subr.mxu0 0.0
        %3183 = vmatpush1.msra.mxu0 0.0
        %3184 = vmatprep.subr.mxu0 0.0
        %3185 = vmatpush1.msra.mxu0 0.0
        %3186 = vmatprep.subr.mxu0 0.0
        %3187 = vmatpush1.msra.mxu0 0.0
        %3188 = vmatprep.subr.mxu0 0.0
        %3189 = vmatpush1.msra.mxu0 0.0
        %3190 = vmatprep.subr.mxu0 0.0
        %3191 = vmatpush1.msra.mxu0 0.0
        %3192 = vmatprep.subr.mxu0 0.0
        %3193 = vmatpush1.msra.mxu0 0.0
        %3194 = vmatprep.subr.mxu0 0.0
        %3195 = vmatpush1.msra.mxu0 0.0
        %3196 = vmatprep.subr.mxu0 0.0
        %3197 = vmatpush1.msra.mxu0 0.0
        %3198 = vmatprep.subr.mxu0 0.0
        %3199 = vmatpush1.msra.mxu0 0.0
        %3200 = vmatprep.subr.mxu0 0.0
        %3201 = vmatpush1.msra.mxu0 0.0
        %3202 = vmatprep.subr.mxu0 0.0
        %3203 = vmatpush1.msra.mxu0 0.0
        %3204 = vmatprep.subr.mxu0 0.0
        %3205 = vmatpush1.msra.mxu0 0.0
        %3206 = vmatprep.subr.mxu0 0.0
        %3207 = vmatpush1.msra.mxu0 0.0
        %3208 = vmatprep.subr.mxu0 0.0
        %3209 = vmatpush1.msra.mxu0 0.0
        %3210 = vmatprep.subr.mxu0 0.0
        %3211 = vmatpush1.msra.mxu0 0.0
        %3212 = vmatprep.subr.mxu0 0.0
        %3213 = vmatpush1.msra.mxu0 0.0
        %3214 = vmatprep.subr.mxu0 0.0
        %3215 = vmatpush1.msra.mxu0 0.0
        %3216 = vmatprep.subr.mxu0 0.0
        %3217 = vmatpush1.msra.mxu0 0.0
        %3218 = vmatprep.subr.mxu0 0.0
        %3219 = vmatpush1.msra.mxu0 0.0
        %3220 = vmatprep.subr.mxu0 0.0
        %3221 = vmatpush1.msra.mxu0 0.0
        %3222 = vmatprep.subr.mxu0 0.0
        %3223 = vmatpush1.msra.mxu0 0.0
        %3224 = vmatprep.subr.mxu0 0.0
        %3225 = vmatpush1.msra.mxu0 0.0
        %3226 = vmatprep.subr.mxu0 0.0
        %3227 = vmatpush1.msra.mxu0 0.0
        %3228 = vmatprep.subr.mxu0 0.0
        %3229 = vmatpush1.msra.mxu0 0.0
        %3230 = vmatprep.subr.mxu0 0.0
        %3231 = vmatpush1.msra.mxu0 0.0
        %3232 = vmatprep.mubr.f32.mxu0 0.0
        %3233 = vmatmul.mubr.f32.gmra.mrb[0].mxu0 %v2547
        %v3234 = vpop.f32.mrb[0].mxu0
        %v3235 = vadd.f32 0.0, %v3234
        %v3236 = vpop.f32.mrb[0].mxu0
        %v3237 = vadd.f32 0.0, %v3236
        %3238 = vmatprep.mubr.f32.mxu0 0.0
        %3239 = vmatmul.mubr.f32.gmra.mrb[0].mxu0 %v2550
        %v3240 = vpop.f32.mrb[0].mxu0
        %v3241 = vadd.f32 0.0, %v3240
        %v3242 = vpop.f32.mrb[0].mxu0
        %v3243 = vadd.f32 0.0, %v3242
        %3244 = vdwg.mxu0
        %3245 = vmatprep.subr.mxu0 %v979
        %3246 = vmatpush1.msra.mxu0 %v977
        %3247 = vmatprep.subr.mxu0 0.0
        %3248 = vmatpush1.msra.mxu0 0.0
        %3249 = vmatprep.subr.mxu0 0.0
        %3250 = vmatpush1.msra.mxu0 0.0
        %3251 = vmatprep.subr.mxu0 0.0
        %3252 = vmatpush1.msra.mxu0 0.0
        %3253 = vmatprep.subr.mxu0 0.0
        %3254 = vmatpush1.msra.mxu0 0.0
        %3255 = vmatprep.subr.mxu0 0.0
        %3256 = vmatpush1.msra.mxu0 0.0
        %3257 = vmatprep.subr.mxu0 0.0
        %3258 = vmatpush1.msra.mxu0 0.0
        %3259 = vmatprep.subr.mxu0 0.0
        %3260 = vmatpush1.msra.mxu0 0.0
        %3261 = vmatprep.subr.mxu0 0.0
        %3262 = vmatpush1.msra.mxu0 0.0
        %3263 = vmatprep.subr.mxu0 0.0
        %3264 = vmatpush1.msra.mxu0 0.0
        %3265 = vmatprep.subr.mxu0 0.0
        %3266 = vmatpush1.msra.mxu0 0.0
        %3267 = vmatprep.subr.mxu0 0.0
        %3268 = vmatpush1.msra.mxu0 0.0
        %3269 = vmatprep.subr.mxu0 0.0
        %3270 = vmatpush1.msra.mxu0 0.0
        %3271 = vmatprep.subr.mxu0 0.0
        %3272 = vmatpush1.msra.mxu0 0.0
        %3273 = vmatprep.subr.mxu0 0.0
        %3274 = vmatpush1.msra.mxu0 0.0
        %3275 = vmatprep.subr.mxu0 0.0
        %3276 = vmatpush1.msra.mxu0 0.0
        %3277 = vmatprep.subr.mxu0 0.0
        %3278 = vmatpush1.msra.mxu0 0.0
        %3279 = vmatprep.subr.mxu0 0.0
        %3280 = vmatpush1.msra.mxu0 0.0
        %3281 = vmatprep.subr.mxu0 0.0
        %3282 = vmatpush1.msra.mxu0 0.0
        %3283 = vmatprep.subr.mxu0 0.0
        %3284 = vmatpush1.msra.mxu0 0.0
        %3285 = vmatprep.subr.mxu0 0.0
        %3286 = vmatpush1.msra.mxu0 0.0
        %3287 = vmatprep.subr.mxu0 0.0
        %3288 = vmatpush1.msra.mxu0 0.0
        %3289 = vmatprep.subr.mxu0 0.0
        %3290 = vmatpush1.msra.mxu0 0.0
        %3291 = vmatprep.subr.mxu0 0.0
        %3292 = vmatpush1.msra.mxu0 0.0
        %3293 = vmatprep.subr.mxu0 0.0
        %3294 = vmatpush1.msra.mxu0 0.0
        %3295 = vmatprep.subr.mxu0 0.0
        %3296 = vmatpush1.msra.mxu0 0.0
        %3297 = vmatprep.subr.mxu0 0.0
        %3298 = vmatpush1.msra.mxu0 0.0
        %3299 = vmatprep.subr.mxu0 0.0
        %3300 = vmatpush1.msra.mxu0 0.0
        %3301 = vmatprep.subr.mxu0 0.0
        %3302 = vmatpush1.msra.mxu0 0.0
        %3303 = vmatprep.subr.mxu0 0.0
        %3304 = vmatpush1.msra.mxu0 0.0
        %3305 = vmatprep.subr.mxu0 0.0
        %3306 = vmatpush1.msra.mxu0 0.0
        %3307 = vmatprep.subr.mxu0 0.0
        %3308 = vmatpush1.msra.mxu0 0.0
        %3309 = vmatprep.mubr.f32.mxu0 0.0
        %3310 = vmatmul.mubr.f32.gmra.mrb[0].mxu0 %v2547
        %v3311 = vpop.f32.mrb[0].mxu0
        %v3312 = vadd.f32 0.0, %v3311
        %v3313 = vpop.f32.mrb[0].mxu0
        %v3314 = vadd.f32 0.0, %v3313
        %3315 = vmatprep.mubr.f32.mxu0 0.0
        %3316 = vmatmul.mubr.f32.gmra.mrb[0].mxu0 %v2550
        %v3317 = vpop.f32.mrb[0].mxu0
        %v3318 = vadd.f32 0.0, %v3317
        %v3319 = vpop.f32.mrb[0].mxu0
        %v3320 = vadd.f32 0.0, %v3319
        %3321 = vdwg.mxu0
        %3322 = vmatprep.subr.mxu0 %v1050
        %3323 = vmatpush1.msra.mxu0 %v1048
        %3324 = vmatprep.subr.mxu0 0.0
        %3325 = vmatpush1.msra.mxu0 0.0
        %3326 = vmatprep.subr.mxu0 0.0
        %3327 = vmatpush1.msra.mxu0 0.0
        %3328 = vmatprep.subr.mxu0 0.0
        %3329 = vmatpush1.msra.mxu0 0.0
        %3330 = vmatprep.subr.mxu0 0.0
        %3331 = vmatpush1.msra.mxu0 0.0
        %3332 = vmatprep.subr.mxu0 0.0
        %3333 = vmatpush1.msra.mxu0 0.0
        %3334 = vmatprep.subr.mxu0 0.0
        %3335 = vmatpush1.msra.mxu0 0.0
        %3336 = vmatprep.subr.mxu0 0.0
        %3337 = vmatpush1.msra.mxu0 0.0
        %3338 = vmatprep.subr.mxu0 0.0
        %3339 = vmatpush1.msra.mxu0 0.0
        %3340 = vmatprep.subr.mxu0 0.0
        %3341 = vmatpush1.msra.mxu0 0.0
        %3342 = vmatprep.subr.mxu0 0.0
        %3343 = vmatpush1.msra.mxu0 0.0
        %3344 = vmatprep.subr.mxu0 0.0
        %3345 = vmatpush1.msra.mxu0 0.0
        %3346 = vmatprep.subr.mxu0 0.0
        %3347 = vmatpush1.msra.mxu0 0.0
        %3348 = vmatprep.subr.mxu0 0.0
        %3349 = vmatpush1.msra.mxu0 0.0
        %3350 = vmatprep.subr.mxu0 0.0
        %3351 = vmatpush1.msra.mxu0 0.0
        %3352 = vmatprep.subr.mxu0 0.0
        %3353 = vmatpush1.msra.mxu0 0.0
        %3354 = vmatprep.subr.mxu0 0.0
        %3355 = vmatpush1.msra.mxu0 0.0
        %3356 = vmatprep.subr.mxu0 0.0
        %3357 = vmatpush1.msra.mxu0 0.0
        %3358 = vmatprep.subr.mxu0 0.0
        %3359 = vmatpush1.msra.mxu0 0.0
        %3360 = vmatprep.subr.mxu0 0.0
        %3361 = vmatpush1.msra.mxu0 0.0
        %3362 = vmatprep.subr.mxu0 0.0
        %3363 = vmatpush1.msra.mxu0 0.0
        %3364 = vmatprep.subr.mxu0 0.0
        %3365 = vmatpush1.msra.mxu0 0.0
        %3366 = vmatprep.subr.mxu0 0.0
        %3367 = vmatpush1.msra.mxu0 0.0
        %3368 = vmatprep.subr.mxu0 0.0
        %3369 = vmatpush1.msra.mxu0 0.0
        %3370 = vmatprep.subr.mxu0 0.0
        %3371 = vmatpush1.msra.mxu0 0.0
        %3372 = vmatprep.subr.mxu0 0.0
        %3373 = vmatpush1.msra.mxu0 0.0
        %3374 = vmatprep.subr.mxu0 0.0
        %3375 = vmatpush1.msra.mxu0 0.0
        %3376 = vmatprep.subr.mxu0 0.0
        %3377 = vmatpush1.msra.mxu0 0.0
        %3378 = vmatprep.subr.mxu0 0.0
        %3379 = vmatpush1.msra.mxu0 0.0
        %3380 = vmatprep.subr.mxu0 0.0
        %3381 = vmatpush1.msra.mxu0 0.0
        %3382 = vmatprep.subr.mxu0 0.0
        %3383 = vmatpush1.msra.mxu0 0.0
        %3384 = vmatprep.subr.mxu0 0.0
        %3385 = vmatpush1.msra.mxu0 0.0
        %3386 = vmatprep.mubr.f32.mxu0 0.0
        %3387 = vmatmul.mubr.f32.gmra.mrb[0].mxu0 %v2547
        %v3388 = vpop.f32.mrb[0].mxu0
        %v3389 = vadd.f32 0.0, %v3388
        %v3390 = vpop.f32.mrb[0].mxu0
        %v3391 = vadd.f32 0.0, %v3390
        %3392 = vmatprep.mubr.f32.mxu0 0.0
        %3393 = vmatmul.mubr.f32.gmra.mrb[0].mxu0 %v2550
        %v3394 = vpop.f32.mrb[0].mxu0
        %v3395 = vadd.f32 0.0, %v3394
        %v3396 = vpop.f32.mrb[0].mxu0
        %v3397 = vadd.f32 0.0, %v3396
        %3398 = vdwg.mxu0
        %3399 = vmatprep.subr.mxu0 %v1121
        %3400 = vmatpush1.msra.mxu0 %v1119
        %3401 = vmatprep.subr.mxu0 0.0
        %3402 = vmatpush1.msra.mxu0 0.0
        %3403 = vmatprep.subr.mxu0 0.0
        %3404 = vmatpush1.msra.mxu0 0.0
        %3405 = vmatprep.subr.mxu0 0.0
        %3406 = vmatpush1.msra.mxu0 0.0
        %3407 = vmatprep.subr.mxu0 0.0
        %3408 = vmatpush1.msra.mxu0 0.0
        %3409 = vmatprep.subr.mxu0 0.0
        %3410 = vmatpush1.msra.mxu0 0.0
        %3411 = vmatprep.subr.mxu0 0.0
        %3412 = vmatpush1.msra.mxu0 0.0
        %3413 = vmatprep.subr.mxu0 0.0
        %3414 = vmatpush1.msra.mxu0 0.0
        %3415 = vmatprep.subr.mxu0 0.0
        %3416 = vmatpush1.msra.mxu0 0.0
        %3417 = vmatprep.subr.mxu0 0.0
        %3418 = vmatpush1.msra.mxu0 0.0
        %3419 = vmatprep.subr.mxu0 0.0
        %3420 = vmatpush1.msra.mxu0 0.0
        %3421 = vmatprep.subr.mxu0 0.0
        %3422 = vmatpush1.msra.mxu0 0.0
        %3423 = vmatprep.subr.mxu0 0.0
        %3424 = vmatpush1.msra.mxu0 0.0
        %3425 = vmatprep.subr.mxu0 0.0
        %3426 = vmatpush1.msra.mxu0 0.0
        %3427 = vmatprep.subr.mxu0 0.0
        %3428 = vmatpush1.msra.mxu0 0.0
        %3429 = vmatprep.subr.mxu0 0.0
        %3430 = vmatpush1.msra.mxu0 0.0
        %3431 = vmatprep.subr.mxu0 0.0
        %3432 = vmatpush1.msra.mxu0 0.0
        %3433 = vmatprep.subr.mxu0 0.0
        %3434 = vmatpush1.msra.mxu0 0.0
        %3435 = vmatprep.subr.mxu0 0.0
        %3436 = vmatpush1.msra.mxu0 0.0
        %3437 = vmatprep.subr.mxu0 0.0
        %3438 = vmatpush1.msra.mxu0 0.0
        %3439 = vmatprep.subr.mxu0 0.0
        %3440 = vmatpush1.msra.mxu0 0.0
        %3441 = vmatprep.subr.mxu0 0.0
        %3442 = vmatpush1.msra.mxu0 0.0
        %3443 = vmatprep.subr.mxu0 0.0
        %3444 = vmatpush1.msra.mxu0 0.0
        %3445 = vmatprep.subr.mxu0 0.0
        %3446 = vmatpush1.msra.mxu0 0.0
        %3447 = vmatprep.subr.mxu0 0.0
        %3448 = vmatpush1.msra.mxu0 0.0
        %3449 = vmatprep.subr.mxu0 0.0
        %3450 = vmatpush1.msra.mxu0 0.0
        %3451 = vmatprep.subr.mxu0 0.0
        %3452 = vmatpush1.msra.mxu0 0.0
        %3453 = vmatprep.subr.mxu0 0.0
        %3454 = vmatpush1.msra.mxu0 0.0
        %3455 = vmatprep.subr.mxu0 0.0
        %3456 = vmatpush1.msra.mxu0 0.0
        %3457 = vmatprep.subr.mxu0 0.0
        %3458 = vmatpush1.msra.mxu0 0.0
        %3459 = vmatprep.subr.mxu0 0.0
        %3460 = vmatpush1.msra.mxu0 0.0
        %3461 = vmatprep.subr.mxu0 0.0
        %3462 = vmatpush1.msra.mxu0 0.0
        %3463 = vmatprep.mubr.f32.mxu0 0.0
        %3464 = vmatmul.mubr.f32.gmra.mrb[0].mxu0 %v2547
        %v3465 = vpop.f32.mrb[0].mxu0
        %v3466 = vadd.f32 0.0, %v3465
        %v3467 = vpop.f32.mrb[0].mxu0
        %v3468 = vadd.f32 0.0, %v3467
        %3469 = vmatprep.mubr.f32.mxu0 0.0
        %3470 = vmatmul.mubr.f32.gmra.mrb[0].mxu0 %v2550
        %v3471 = vpop.f32.mrb[0].mxu0
        %v3472 = vadd.f32 0.0, %v3471
        %v3473 = vpop.f32.mrb[0].mxu0
        %v3474 = vadd.f32 0.0, %v3473
        %3475 = vdwg.mxu0
        %3476 = vmatprep.subr.mxu0 %v1192
        %3477 = vmatpush1.msra.mxu0 %v1190
        %3478 = vmatprep.subr.mxu0 0.0
        %3479 = vmatpush1.msra.mxu0 0.0
        %3480 = vmatprep.subr.mxu0 0.0
        %3481 = vmatpush1.msra.mxu0 0.0
        %3482 = vmatprep.subr.mxu0 0.0
        %3483 = vmatpush1.msra.mxu0 0.0
        %3484 = vmatprep.subr.mxu0 0.0
        %3485 = vmatpush1.msra.mxu0 0.0
        %3486 = vmatprep.subr.mxu0 0.0
        %3487 = vmatpush1.msra.mxu0 0.0
        %3488 = vmatprep.subr.mxu0 0.0
        %3489 = vmatpush1.msra.mxu0 0.0
        %3490 = vmatprep.subr.mxu0 0.0
        %3491 = vmatpush1.msra.mxu0 0.0
        %3492 = vmatprep.subr.mxu0 0.0
        %3493 = vmatpush1.msra.mxu0 0.0
        %3494 = vmatprep.subr.mxu0 0.0
        %3495 = vmatpush1.msra.mxu0 0.0
        %3496 = vmatprep.subr.mxu0 0.0
        %3497 = vmatpush1.msra.mxu0 0.0
        %3498 = vmatprep.subr.mxu0 0.0
        %3499 = vmatpush1.msra.mxu0 0.0
        %3500 = vmatprep.subr.mxu0 0.0
        %3501 = vmatpush1.msra.mxu0 0.0
        %3502 = vmatprep.subr.mxu0 0.0
        %3503 = vmatpush1.msra.mxu0 0.0
        %3504 = vmatprep.subr.mxu0 0.0
        %3505 = vmatpush1.msra.mxu0 0.0
        %3506 = vmatprep.subr.mxu0 0.0
        %3507 = vmatpush1.msra.mxu0 0.0
        %3508 = vmatprep.subr.mxu0 0.0
        %3509 = vmatpush1.msra.mxu0 0.0
        %3510 = vmatprep.subr.mxu0 0.0
        %3511 = vmatpush1.msra.mxu0 0.0
        %3512 = vmatprep.subr.mxu0 0.0
        %3513 = vmatpush1.msra.mxu0 0.0
        %3514 = vmatprep.subr.mxu0 0.0
        %3515 = vmatpush1.msra.mxu0 0.0
        %3516 = vmatprep.subr.mxu0 0.0
        %3517 = vmatpush1.msra.mxu0 0.0
        %3518 = vmatprep.subr.mxu0 0.0
        %3519 = vmatpush1.msra.mxu0 0.0
        %3520 = vmatprep.subr.mxu0 0.0
        %3521 = vmatpush1.msra.mxu0 0.0
        %3522 = vmatprep.subr.mxu0 0.0
        %3523 = vmatpush1.msra.mxu0 0.0
        %3524 = vmatprep.subr.mxu0 0.0
        %3525 = vmatpush1.msra.mxu0 0.0
        %3526 = vmatprep.subr.mxu0 0.0
        %3527 = vmatpush1.msra.mxu0 0.0
        %3528 = vmatprep.subr.mxu0 0.0
        %3529 = vmatpush1.msra.mxu0 0.0
        %3530 = vmatprep.subr.mxu0 0.0
        %3531 = vmatpush1.msra.mxu0 0.0
        %3532 = vmatprep.subr.mxu0 0.0
        %3533 = vmatpush1.msra.mxu0 0.0
        %3534 = vmatprep.subr.mxu0 0.0
        %3535 = vmatpush1.msra.mxu0 0.0
        %3536 = vmatprep.subr.mxu0 0.0
        %3537 = vmatpush1.msra.mxu0 0.0
        %3538 = vmatprep.subr.mxu0 0.0
        %3539 = vmatpush1.msra.mxu0 0.0
        %3540 = vmatprep.mubr.f32.mxu0 0.0
        %3541 = vmatmul.mubr.f32.gmra.mrb[0].mxu0 %v2547
        %v3542 = vpop.f32.mrb[0].mxu0
        %v3543 = vadd.f32 0.0, %v3542
        %v3544 = vpop.f32.mrb[0].mxu0
        %v3545 = vadd.f32 0.0, %v3544
        %3546 = vmatprep.mubr.f32.mxu0 0.0
        %3547 = vmatmul.mubr.f32.gmra.mrb[0].mxu0 %v2550
        %v3548 = vpop.f32.mrb[0].mxu0
        %v3549 = vadd.f32 0.0, %v3548
        %v3550 = vpop.f32.mrb[0].mxu0
        %v3551 = vadd.f32 0.0, %v3550
        %3552 = vdwg.mxu0
        %3553 = vmatprep.subr.mxu0 %v1263
        %3554 = vmatpush1.msra.mxu0 %v1261
        %3555 = vmatprep.subr.mxu0 0.0
        %3556 = vmatpush1.msra.mxu0 0.0
        %3557 = vmatprep.subr.mxu0 0.0
        %3558 = vmatpush1.msra.mxu0 0.0
        %3559 = vmatprep.subr.mxu0 0.0
        %3560 = vmatpush1.msra.mxu0 0.0
        %3561 = vmatprep.subr.mxu0 0.0
        %3562 = vmatpush1.msra.mxu0 0.0
        %3563 = vmatprep.subr.mxu0 0.0
        %3564 = vmatpush1.msra.mxu0 0.0
        %3565 = vmatprep.subr.mxu0 0.0
        %3566 = vmatpush1.msra.mxu0 0.0
        %3567 = vmatprep.subr.mxu0 0.0
        %3568 = vmatpush1.msra.mxu0 0.0
        %3569 = vmatprep.subr.mxu0 0.0
        %3570 = vmatpush1.msra.mxu0 0.0
        %3571 = vmatprep.subr.mxu0 0.0
        %3572 = vmatpush1.msra.mxu0 0.0
        %3573 = vmatprep.subr.mxu0 0.0
        %3574 = vmatpush1.msra.mxu0 0.0
        %3575 = vmatprep.subr.mxu0 0.0
        %3576 = vmatpush1.msra.mxu0 0.0
        %3577 = vmatprep.subr.mxu0 0.0
        %3578 = vmatpush1.msra.mxu0 0.0
        %3579 = vmatprep.subr.mxu0 0.0
        %3580 = vmatpush1.msra.mxu0 0.0
        %3581 = vmatprep.subr.mxu0 0.0
        %3582 = vmatpush1.msra.mxu0 0.0
        %3583 = vmatprep.subr.mxu0 0.0
        %3584 = vmatpush1.msra.mxu0 0.0
        %3585 = vmatprep.subr.mxu0 0.0
        %3586 = vmatpush1.msra.mxu0 0.0
        %3587 = vmatprep.subr.mxu0 0.0
        %3588 = vmatpush1.msra.mxu0 0.0
        %3589 = vmatprep.subr.mxu0 0.0
        %3590 = vmatpush1.msra.mxu0 0.0
        %3591 = vmatprep.subr.mxu0 0.0
        %3592 = vmatpush1.msra.mxu0 0.0
        %3593 = vmatprep.subr.mxu0 0.0
        %3594 = vmatpush1.msra.mxu0 0.0
        %3595 = vmatprep.subr.mxu0 0.0
        %3596 = vmatpush1.msra.mxu0 0.0
        %3597 = vmatprep.subr.mxu0 0.0
        %3598 = vmatpush1.msra.mxu0 0.0
        %3599 = vmatprep.subr.mxu0 0.0
        %3600 = vmatpush1.msra.mxu0 0.0
        %3601 = vmatprep.subr.mxu0 0.0
        %3602 = vmatpush1.msra.mxu0 0.0
        %3603 = vmatprep.subr.mxu0 0.0
        %3604 = vmatpush1.msra.mxu0 0.0
        %3605 = vmatprep.subr.mxu0 0.0
        %3606 = vmatpush1.msra.mxu0 0.0
        %3607 = vmatprep.subr.mxu0 0.0
        %3608 = vmatpush1.msra.mxu0 0.0
        %3609 = vmatprep.subr.mxu0 0.0
        %3610 = vmatpush1.msra.mxu0 0.0
        %3611 = vmatprep.subr.mxu0 0.0
        %3612 = vmatpush1.msra.mxu0 0.0
        %3613 = vmatprep.subr.mxu0 0.0
        %3614 = vmatpush1.msra.mxu0 0.0
        %3615 = vmatprep.subr.mxu0 0.0
        %3616 = vmatpush1.msra.mxu0 0.0
        %3617 = vmatprep.mubr.f32.mxu0 0.0
        %3618 = vmatmul.mubr.f32.gmra.mrb[0].mxu0 %v2547
        %v3619 = vpop.f32.mrb[0].mxu0
        %v3620 = vadd.f32 0.0, %v3619
        %v3621 = vpop.f32.mrb[0].mxu0
        %v3622 = vadd.f32 0.0, %v3621
        %3623 = vmatprep.mubr.f32.mxu0 0.0
        %3624 = vmatmul.mubr.f32.gmra.mrb[0].mxu0 %v2550
        %v3625 = vpop.f32.mrb[0].mxu0
        %v3626 = vadd.f32 0.0, %v3625
        %v3627 = vpop.f32.mrb[0].mxu0
        %v3628 = vadd.f32 0.0, %v3627
        %3629 = vdwg.mxu0
        %3630 = vmatprep.subr.mxu0 %v1334
        %3631 = vmatpush1.msra.mxu0 %v1332
        %3632 = vmatprep.subr.mxu0 0.0
        %3633 = vmatpush1.msra.mxu0 0.0
        %3634 = vmatprep.subr.mxu0 0.0
        %3635 = vmatpush1.msra.mxu0 0.0
        %3636 = vmatprep.subr.mxu0 0.0
        %3637 = vmatpush1.msra.mxu0 0.0
        %3638 = vmatprep.subr.mxu0 0.0
        %3639 = vmatpush1.msra.mxu0 0.0
        %3640 = vmatprep.subr.mxu0 0.0
        %3641 = vmatpush1.msra.mxu0 0.0
        %3642 = vmatprep.subr.mxu0 0.0
        %3643 = vmatpush1.msra.mxu0 0.0
        %3644 = vmatprep.subr.mxu0 0.0
        %3645 = vmatpush1.msra.mxu0 0.0
        %3646 = vmatprep.subr.mxu0 0.0
        %3647 = vmatpush1.msra.mxu0 0.0
        %3648 = vmatprep.subr.mxu0 0.0
        %3649 = vmatpush1.msra.mxu0 0.0
        %3650 = vmatprep.subr.mxu0 0.0
        %3651 = vmatpush1.msra.mxu0 0.0
        %3652 = vmatprep.subr.mxu0 0.0
        %3653 = vmatpush1.msra.mxu0 0.0
        %3654 = vmatprep.subr.mxu0 0.0
        %3655 = vmatpush1.msra.mxu0 0.0
        %3656 = vmatprep.subr.mxu0 0.0
        %3657 = vmatpush1.msra.mxu0 0.0
        %3658 = vmatprep.subr.mxu0 0.0
        %3659 = vmatpush1.msra.mxu0 0.0
        %3660 = vmatprep.subr.mxu0 0.0
        %3661 = vmatpush1.msra.mxu0 0.0
        %3662 = vmatprep.subr.mxu0 0.0
        %3663 = vmatpush1.msra.mxu0 0.0
        %3664 = vmatprep.subr.mxu0 0.0
        %3665 = vmatpush1.msra.mxu0 0.0
        %3666 = vmatprep.subr.mxu0 0.0
        %3667 = vmatpush1.msra.mxu0 0.0
        %3668 = vmatprep.subr.mxu0 0.0
        %3669 = vmatpush1.msra.mxu0 0.0
        %3670 = vmatprep.subr.mxu0 0.0
        %3671 = vmatpush1.msra.mxu0 0.0
        %3672 = vmatprep.subr.mxu0 0.0
        %3673 = vmatpush1.msra.mxu0 0.0
        %3674 = vmatprep.subr.mxu0 0.0
        %3675 = vmatpush1.msra.mxu0 0.0
        %3676 = vmatprep.subr.mxu0 0.0
        %3677 = vmatpush1.msra.mxu0 0.0
        %3678 = vmatprep.subr.mxu0 0.0
        %3679 = vmatpush1.msra.mxu0 0.0
        %3680 = vmatprep.subr.mxu0 0.0
        %3681 = vmatpush1.msra.mxu0 0.0
        %3682 = vmatprep.subr.mxu0 0.0
        %3683 = vmatpush1.msra.mxu0 0.0
        %3684 = vmatprep.subr.mxu0 0.0
        %3685 = vmatpush1.msra.mxu0 0.0
        %3686 = vmatprep.subr.mxu0 0.0
        %3687 = vmatpush1.msra.mxu0 0.0
        %3688 = vmatprep.subr.mxu0 0.0
        %3689 = vmatpush1.msra.mxu0 0.0
        %3690 = vmatprep.subr.mxu0 0.0
        %3691 = vmatpush1.msra.mxu0 0.0
        %3692 = vmatprep.subr.mxu0 0.0
        %3693 = vmatpush1.msra.mxu0 0.0
        %3694 = vmatprep.mubr.f32.mxu0 0.0
        %3695 = vmatmul.mubr.f32.gmra.mrb[0].mxu0 %v2547
        %v3696 = vpop.f32.mrb[0].mxu0
        %v3697 = vadd.f32 0.0, %v3696
        %v3698 = vpop.f32.mrb[0].mxu0
        %v3699 = vadd.f32 0.0, %v3698
        %3700 = vmatprep.mubr.f32.mxu0 0.0
        %3701 = vmatmul.mubr.f32.gmra.mrb[0].mxu0 %v2550
        %v3702 = vpop.f32.mrb[0].mxu0
        %v3703 = vadd.f32 0.0, %v3702
        %v3704 = vpop.f32.mrb[0].mxu0
        %v3705 = vadd.f32 0.0, %v3704
        %3706 = vdwg.mxu0
        %3707 = vmatprep.subr.mxu0 %v1405
        %3708 = vmatpush1.msra.mxu0 %v1403
        %3709 = vmatprep.subr.mxu0 0.0
        %3710 = vmatpush1.msra.mxu0 0.0
        %3711 = vmatprep.subr.mxu0 0.0
        %3712 = vmatpush1.msra.mxu0 0.0
        %3713 = vmatprep.subr.mxu0 0.0
        %3714 = vmatpush1.msra.mxu0 0.0
        %3715 = vmatprep.subr.mxu0 0.0
        %3716 = vmatpush1.msra.mxu0 0.0
        %3717 = vmatprep.subr.mxu0 0.0
        %3718 = vmatpush1.msra.mxu0 0.0
        %3719 = vmatprep.subr.mxu0 0.0
        %3720 = vmatpush1.msra.mxu0 0.0
        %3721 = vmatprep.subr.mxu0 0.0
        %3722 = vmatpush1.msra.mxu0 0.0
        %3723 = vmatprep.subr.mxu0 0.0
        %3724 = vmatpush1.msra.mxu0 0.0
        %3725 = vmatprep.subr.mxu0 0.0
        %3726 = vmatpush1.msra.mxu0 0.0
        %3727 = vmatprep.subr.mxu0 0.0
        %3728 = vmatpush1.msra.mxu0 0.0
        %3729 = vmatprep.subr.mxu0 0.0
        %3730 = vmatpush1.msra.mxu0 0.0
        %3731 = vmatprep.subr.mxu0 0.0
        %3732 = vmatpush1.msra.mxu0 0.0
        %3733 = vmatprep.subr.mxu0 0.0
        %3734 = vmatpush1.msra.mxu0 0.0
        %3735 = vmatprep.subr.mxu0 0.0
        %3736 = vmatpush1.msra.mxu0 0.0
        %3737 = vmatprep.subr.mxu0 0.0
        %3738 = vmatpush1.msra.mxu0 0.0
        %3739 = vmatprep.subr.mxu0 0.0
        %3740 = vmatpush1.msra.mxu0 0.0
        %3741 = vmatprep.subr.mxu0 0.0
        %3742 = vmatpush1.msra.mxu0 0.0
        %3743 = vmatprep.subr.mxu0 0.0
        %3744 = vmatpush1.msra.mxu0 0.0
        %3745 = vmatprep.subr.mxu0 0.0
        %3746 = vmatpush1.msra.mxu0 0.0
        %3747 = vmatprep.subr.mxu0 0.0
        %3748 = vmatpush1.msra.mxu0 0.0
        %3749 = vmatprep.subr.mxu0 0.0
        %3750 = vmatpush1.msra.mxu0 0.0
        %3751 = vmatprep.subr.mxu0 0.0
        %3752 = vmatpush1.msra.mxu0 0.0
        %3753 = vmatprep.subr.mxu0 0.0
        %3754 = vmatpush1.msra.mxu0 0.0
        %3755 = vmatprep.subr.mxu0 0.0
        %3756 = vmatpush1.msra.mxu0 0.0
        %3757 = vmatprep.subr.mxu0 0.0
        %3758 = vmatpush1.msra.mxu0 0.0
        %3759 = vmatprep.subr.mxu0 0.0
        %3760 = vmatpush1.msra.mxu0 0.0
        %3761 = vmatprep.subr.mxu0 0.0
        %3762 = vmatpush1.msra.mxu0 0.0
        %3763 = vmatprep.subr.mxu0 0.0
        %3764 = vmatpush1.msra.mxu0 0.0
        %3765 = vmatprep.subr.mxu0 0.0
        %3766 = vmatpush1.msra.mxu0 0.0
        %3767 = vmatprep.subr.mxu0 0.0
        %3768 = vmatpush1.msra.mxu0 0.0
        %3769 = vmatprep.subr.mxu0 0.0
        %3770 = vmatpush1.msra.mxu0 0.0
        %3771 = vmatprep.mubr.f32.mxu0 0.0
        %3772 = vmatmul.mubr.f32.gmra.mrb[0].mxu0 %v2547
        %v3773 = vpop.f32.mrb[0].mxu0
        %v3774 = vadd.f32 0.0, %v3773
        %v3775 = vpop.f32.mrb[0].mxu0
        %v3776 = vadd.f32 0.0, %v3775
        %3777 = vmatprep.mubr.f32.mxu0 0.0
        %3778 = vmatmul.mubr.f32.gmra.mrb[0].mxu0 %v2550
        %v3779 = vpop.f32.mrb[0].mxu0
        %v3780 = vadd.f32 0.0, %v3779
        %v3781 = vpop.f32.mrb[0].mxu0
        %v3782 = vadd.f32 0.0, %v3781
        %3783 = vdwg.mxu0
        %3784 = vmatprep.subr.mxu0 %v1476
        %3785 = vmatpush1.msra.mxu0 %v1474
        %3786 = vmatprep.subr.mxu0 0.0
        %3787 = vmatpush1.msra.mxu0 0.0
        %3788 = vmatprep.subr.mxu0 0.0
        %3789 = vmatpush1.msra.mxu0 0.0
        %3790 = vmatprep.subr.mxu0 0.0
        %3791 = vmatpush1.msra.mxu0 0.0
        %3792 = vmatprep.subr.mxu0 0.0
        %3793 = vmatpush1.msra.mxu0 0.0
        %3794 = vmatprep.subr.mxu0 0.0
        %3795 = vmatpush1.msra.mxu0 0.0
        %3796 = vmatprep.subr.mxu0 0.0
        %3797 = vmatpush1.msra.mxu0 0.0
        %3798 = vmatprep.subr.mxu0 0.0
        %3799 = vmatpush1.msra.mxu0 0.0
        %3800 = vmatprep.subr.mxu0 0.0
        %3801 = vmatpush1.msra.mxu0 0.0
        %3802 = vmatprep.subr.mxu0 0.0
        %3803 = vmatpush1.msra.mxu0 0.0
        %3804 = vmatprep.subr.mxu0 0.0
        %3805 = vmatpush1.msra.mxu0 0.0
        %3806 = vmatprep.subr.mxu0 0.0
        %3807 = vmatpush1.msra.mxu0 0.0
        %3808 = vmatprep.subr.mxu0 0.0
        %3809 = vmatpush1.msra.mxu0 0.0
        %3810 = vmatprep.subr.mxu0 0.0
        %3811 = vmatpush1.msra.mxu0 0.0
        %3812 = vmatprep.subr.mxu0 0.0
        %3813 = vmatpush1.msra.mxu0 0.0
        %3814 = vmatprep.subr.mxu0 0.0
        %3815 = vmatpush1.msra.mxu0 0.0
        %3816 = vmatprep.subr.mxu0 0.0
        %3817 = vmatpush1.msra.mxu0 0.0
        %3818 = vmatprep.subr.mxu0 0.0
        %3819 = vmatpush1.msra.mxu0 0.0
        %3820 = vmatprep.subr.mxu0 0.0
        %3821 = vmatpush1.msra.mxu0 0.0
        %3822 = vmatprep.subr.mxu0 0.0
        %3823 = vmatpush1.msra.mxu0 0.0
        %3824 = vmatprep.subr.mxu0 0.0
        %3825 = vmatpush1.msra.mxu0 0.0
        %3826 = vmatprep.subr.mxu0 0.0
        %3827 = vmatpush1.msra.mxu0 0.0
        %3828 = vmatprep.subr.mxu0 0.0
        %3829 = vmatpush1.msra.mxu0 0.0
        %3830 = vmatprep.subr.mxu0 0.0
        %3831 = vmatpush1.msra.mxu0 0.0
        %3832 = vmatprep.subr.mxu0 0.0
        %3833 = vmatpush1.msra.mxu0 0.0
        %3834 = vmatprep.subr.mxu0 0.0
        %3835 = vmatpush1.msra.mxu0 0.0
        %3836 = vmatprep.subr.mxu0 0.0
        %3837 = vmatpush1.msra.mxu0 0.0
        %3838 = vmatprep.subr.mxu0 0.0
        %3839 = vmatpush1.msra.mxu0 0.0
        %3840 = vmatprep.subr.mxu0 0.0
        %3841 = vmatpush1.msra.mxu0 0.0
        %3842 = vmatprep.subr.mxu0 0.0
        %3843 = vmatpush1.msra.mxu0 0.0
        %3844 = vmatprep.subr.mxu0 0.0
        %3845 = vmatpush1.msra.mxu0 0.0
        %3846 = vmatprep.subr.mxu0 0.0
        %3847 = vmatpush1.msra.mxu0 0.0
        %3848 = vmatprep.mubr.f32.mxu0 0.0
        %3849 = vmatmul.mubr.f32.gmra.mrb[0].mxu0 %v2547
        %v3850 = vpop.f32.mrb[0].mxu0
        %v3851 = vadd.f32 0.0, %v3850
        %v3852 = vpop.f32.mrb[0].mxu0
        %v3853 = vadd.f32 0.0, %v3852
        %3854 = vmatprep.mubr.f32.mxu0 0.0
        %3855 = vmatmul.mubr.f32.gmra.mrb[0].mxu0 %v2550
        %v3856 = vpop.f32.mrb[0].mxu0
        %v3857 = vadd.f32 0.0, %v3856
        %v3858 = vpop.f32.mrb[0].mxu0
        %v3859 = vadd.f32 0.0, %v3858
        %3860 = vdwg.mxu0
        %3861 = vmatprep.subr.mxu0 %v1547
        %3862 = vmatpush1.msra.mxu0 %v1545
        %3863 = vmatprep.subr.mxu0 0.0
        %3864 = vmatpush1.msra.mxu0 0.0
        %3865 = vmatprep.subr.mxu0 0.0
        %3866 = vmatpush1.msra.mxu0 0.0
        %3867 = vmatprep.subr.mxu0 0.0
        %3868 = vmatpush1.msra.mxu0 0.0
        %3869 = vmatprep.subr.mxu0 0.0
        %3870 = vmatpush1.msra.mxu0 0.0
        %3871 = vmatprep.subr.mxu0 0.0
        %3872 = vmatpush1.msra.mxu0 0.0
        %3873 = vmatprep.subr.mxu0 0.0
        %3874 = vmatpush1.msra.mxu0 0.0
        %3875 = vmatprep.subr.mxu0 0.0
        %3876 = vmatpush1.msra.mxu0 0.0
        %3877 = vmatprep.subr.mxu0 0.0
        %3878 = vmatpush1.msra.mxu0 0.0
        %3879 = vmatprep.subr.mxu0 0.0
        %3880 = vmatpush1.msra.mxu0 0.0
        %3881 = vmatprep.subr.mxu0 0.0
        %3882 = vmatpush1.msra.mxu0 0.0
        %3883 = vmatprep.subr.mxu0 0.0
        %3884 = vmatpush1.msra.mxu0 0.0
        %3885 = vmatprep.subr.mxu0 0.0
        %3886 = vmatpush1.msra.mxu0 0.0
        %3887 = vmatprep.subr.mxu0 0.0
        %3888 = vmatpush1.msra.mxu0 0.0
        %3889 = vmatprep.subr.mxu0 0.0
        %3890 = vmatpush1.msra.mxu0 0.0
        %3891 = vmatprep.subr.mxu0 0.0
        %3892 = vmatpush1.msra.mxu0 0.0
        %3893 = vmatprep.subr.mxu0 0.0
        %3894 = vmatpush1.msra.mxu0 0.0
        %3895 = vmatprep.subr.mxu0 0.0
        %3896 = vmatpush1.msra.mxu0 0.0
        %3897 = vmatprep.subr.mxu0 0.0
        %3898 = vmatpush1.msra.mxu0 0.0
        %3899 = vmatprep.subr.mxu0 0.0
        %3900 = vmatpush1.msra.mxu0 0.0
        %3901 = vmatprep.subr.mxu0 0.0
        %3902 = vmatpush1.msra.mxu0 0.0
        %3903 = vmatprep.subr.mxu0 0.0
        %3904 = vmatpush1.msra.mxu0 0.0
        %3905 = vmatprep.subr.mxu0 0.0
        %3906 = vmatpush1.msra.mxu0 0.0
        %3907 = vmatprep.subr.mxu0 0.0
        %3908 = vmatpush1.msra.mxu0 0.0
        %3909 = vmatprep.subr.mxu0 0.0
        %3910 = vmatpush1.msra.mxu0 0.0
        %3911 = vmatprep.subr.mxu0 0.0
        %3912 = vmatpush1.msra.mxu0 0.0
        %3913 = vmatprep.subr.mxu0 0.0
        %3914 = vmatpush1.msra.mxu0 0.0
        %3915 = vmatprep.subr.mxu0 0.0
        %3916 = vmatpush1.msra.mxu0 0.0
        %3917 = vmatprep.subr.mxu0 0.0
        %3918 = vmatpush1.msra.mxu0 0.0
        %3919 = vmatprep.subr.mxu0 0.0
        %3920 = vmatpush1.msra.mxu0 0.0
        %3921 = vmatprep.subr.mxu0 0.0
        %3922 = vmatpush1.msra.mxu0 0.0
        %3923 = vmatprep.subr.mxu0 0.0
        %3924 = vmatpush1.msra.mxu0 0.0
        %3925 = vmatprep.mubr.f32.mxu0 0.0
        %3926 = vmatmul.mubr.f32.gmra.mrb[0].mxu0 %v2547
        %v3927 = vpop.f32.mrb[0].mxu0
        %v3928 = vadd.f32 0.0, %v3927
        %v3929 = vpop.f32.mrb[0].mxu0
        %v3930 = vadd.f32 0.0, %v3929
        %3931 = vmatprep.mubr.f32.mxu0 0.0
        %3932 = vmatmul.mubr.f32.gmra.mrb[0].mxu0 %v2550
        %v3933 = vpop.f32.mrb[0].mxu0
        %v3934 = vadd.f32 0.0, %v3933
        %v3935 = vpop.f32.mrb[0].mxu0
        %v3936 = vadd.f32 0.0, %v3935
        %3937 = vdwg.mxu0
        %3938 = vmatprep.subr.mxu0 %v1618
        %3939 = vmatpush1.msra.mxu0 %v1616
        %3940 = vmatprep.subr.mxu0 0.0
        %3941 = vmatpush1.msra.mxu0 0.0
        %3942 = vmatprep.subr.mxu0 0.0
        %3943 = vmatpush1.msra.mxu0 0.0
        %3944 = vmatprep.subr.mxu0 0.0
        %3945 = vmatpush1.msra.mxu0 0.0
        %3946 = vmatprep.subr.mxu0 0.0
        %3947 = vmatpush1.msra.mxu0 0.0
        %3948 = vmatprep.subr.mxu0 0.0
        %3949 = vmatpush1.msra.mxu0 0.0
        %3950 = vmatprep.subr.mxu0 0.0
        %3951 = vmatpush1.msra.mxu0 0.0
        %3952 = vmatprep.subr.mxu0 0.0
        %3953 = vmatpush1.msra.mxu0 0.0
        %3954 = vmatprep.subr.mxu0 0.0
        %3955 = vmatpush1.msra.mxu0 0.0
        %3956 = vmatprep.subr.mxu0 0.0
        %3957 = vmatpush1.msra.mxu0 0.0
        %3958 = vmatprep.subr.mxu0 0.0
        %3959 = vmatpush1.msra.mxu0 0.0
        %3960 = vmatprep.subr.mxu0 0.0
        %3961 = vmatpush1.msra.mxu0 0.0
        %3962 = vmatprep.subr.mxu0 0.0
        %3963 = vmatpush1.msra.mxu0 0.0
        %3964 = vmatprep.subr.mxu0 0.0
        %3965 = vmatpush1.msra.mxu0 0.0
        %3966 = vmatprep.subr.mxu0 0.0
        %3967 = vmatpush1.msra.mxu0 0.0
        %3968 = vmatprep.subr.mxu0 0.0
        %3969 = vmatpush1.msra.mxu0 0.0
        %3970 = vmatprep.subr.mxu0 0.0
        %3971 = vmatpush1.msra.mxu0 0.0
        %3972 = vmatprep.subr.mxu0 0.0
        %3973 = vmatpush1.msra.mxu0 0.0
        %3974 = vmatprep.subr.mxu0 0.0
        %3975 = vmatpush1.msra.mxu0 0.0
        %3976 = vmatprep.subr.mxu0 0.0
        %3977 = vmatpush1.msra.mxu0 0.0
        %3978 = vmatprep.subr.mxu0 0.0
        %3979 = vmatpush1.msra.mxu0 0.0
        %3980 = vmatprep.subr.mxu0 0.0
        %3981 = vmatpush1.msra.mxu0 0.0
        %3982 = vmatprep.subr.mxu0 0.0
        %3983 = vmatpush1.msra.mxu0 0.0
        %3984 = vmatprep.subr.mxu0 0.0
        %3985 = vmatpush1.msra.mxu0 0.0
        %3986 = vmatprep.subr.mxu0 0.0
        %3987 = vmatpush1.msra.mxu0 0.0
        %3988 = vmatprep.subr.mxu0 0.0
        %3989 = vmatpush1.msra.mxu0 0.0
        %3990 = vmatprep.subr.mxu0 0.0
        %3991 = vmatpush1.msra.mxu0 0.0
        %3992 = vmatprep.subr.mxu0 0.0
        %3993 = vmatpush1.msra.mxu0 0.0
        %3994 = vmatprep.subr.mxu0 0.0
        %3995 = vmatpush1.msra.mxu0 0.0
        %3996 = vmatprep.subr.mxu0 0.0
        %3997 = vmatpush1.msra.mxu0 0.0
        %3998 = vmatprep.subr.mxu0 0.0
        %3999 = vmatpush1.msra.mxu0 0.0
        %4000 = vmatprep.subr.mxu0 0.0
        %4001 = vmatpush1.msra.mxu0 0.0
        %4002 = vmatprep.mubr.f32.mxu0 0.0
        %4003 = vmatmul.mubr.f32.gmra.mrb[0].mxu0 %v2547
        %v4004 = vpop.f32.mrb[0].mxu0
        %v4005 = vadd.f32 0.0, %v4004
        %v4006 = vpop.f32.mrb[0].mxu0
        %v4007 = vadd.f32 0.0, %v4006
        %4008 = vmatprep.mubr.f32.mxu0 0.0
        %4009 = vmatmul.mubr.f32.gmra.mrb[0].mxu0 %v2550
        %v4010 = vpop.f32.mrb[0].mxu0
        %v4011 = vadd.f32 0.0, %v4010
        %v4012 = vpop.f32.mrb[0].mxu0
        %v4013 = vadd.f32 0.0, %v4012
        %4014 = vdwg.mxu0
        %4015 = vmatprep.subr.mxu0 %v1689
        %4016 = vmatpush1.msra.mxu0 %v1687
        %4017 = vmatprep.subr.mxu0 0.0
        %4018 = vmatpush1.msra.mxu0 0.0
        %4019 = vmatprep.subr.mxu0 0.0
        %4020 = vmatpush1.msra.mxu0 0.0
        %4021 = vmatprep.subr.mxu0 0.0
        %4022 = vmatpush1.msra.mxu0 0.0
        %4023 = vmatprep.subr.mxu0 0.0
        %4024 = vmatpush1.msra.mxu0 0.0
        %4025 = vmatprep.subr.mxu0 0.0
        %4026 = vmatpush1.msra.mxu0 0.0
        %4027 = vmatprep.subr.mxu0 0.0
        %4028 = vmatpush1.msra.mxu0 0.0
        %4029 = vmatprep.subr.mxu0 0.0
        %4030 = vmatpush1.msra.mxu0 0.0
        %4031 = vmatprep.subr.mxu0 0.0
        %4032 = vmatpush1.msra.mxu0 0.0
        %4033 = vmatprep.subr.mxu0 0.0
        %4034 = vmatpush1.msra.mxu0 0.0
        %4035 = vmatprep.subr.mxu0 0.0
        %4036 = vmatpush1.msra.mxu0 0.0
        %4037 = vmatprep.subr.mxu0 0.0
        %4038 = vmatpush1.msra.mxu0 0.0
        %4039 = vmatprep.subr.mxu0 0.0
        %4040 = vmatpush1.msra.mxu0 0.0
        %4041 = vmatprep.subr.mxu0 0.0
        %4042 = vmatpush1.msra.mxu0 0.0
        %4043 = vmatprep.subr.mxu0 0.0
        %4044 = vmatpush1.msra.mxu0 0.0
        %4045 = vmatprep.subr.mxu0 0.0
        %4046 = vmatpush1.msra.mxu0 0.0
        %4047 = vmatprep.subr.mxu0 0.0
        %4048 = vmatpush1.msra.mxu0 0.0
        %4049 = vmatprep.subr.mxu0 0.0
        %4050 = vmatpush1.msra.mxu0 0.0
        %4051 = vmatprep.subr.mxu0 0.0
        %4052 = vmatpush1.msra.mxu0 0.0
        %4053 = vmatprep.subr.mxu0 0.0
        %4054 = vmatpush1.msra.mxu0 0.0
        %4055 = vmatprep.subr.mxu0 0.0
        %4056 = vmatpush1.msra.mxu0 0.0
        %4057 = vmatprep.subr.mxu0 0.0
        %4058 = vmatpush1.msra.mxu0 0.0
        %4059 = vmatprep.subr.mxu0 0.0
        %4060 = vmatpush1.msra.mxu0 0.0
        %4061 = vmatprep.subr.mxu0 0.0
        %4062 = vmatpush1.msra.mxu0 0.0
        %4063 = vmatprep.subr.mxu0 0.0
        %4064 = vmatpush1.msra.mxu0 0.0
        %4065 = vmatprep.subr.mxu0 0.0
        %4066 = vmatpush1.msra.mxu0 0.0
        %4067 = vmatprep.subr.mxu0 0.0
        %4068 = vmatpush1.msra.mxu0 0.0
        %4069 = vmatprep.subr.mxu0 0.0
        %4070 = vmatpush1.msra.mxu0 0.0
        %4071 = vmatprep.subr.mxu0 0.0
        %4072 = vmatpush1.msra.mxu0 0.0
        %4073 = vmatprep.subr.mxu0 0.0
        %4074 = vmatpush1.msra.mxu0 0.0
        %4075 = vmatprep.subr.mxu0 0.0
        %4076 = vmatpush1.msra.mxu0 0.0
        %4077 = vmatprep.subr.mxu0 0.0
        %4078 = vmatpush1.msra.mxu0 0.0
        %4079 = vmatprep.mubr.f32.mxu0 0.0
        %4080 = vmatmul.mubr.f32.gmra.mrb[0].mxu0 %v2547
        %v4081 = vpop.f32.mrb[0].mxu0
        %v4082 = vadd.f32 0.0, %v4081
        %v4083 = vpop.f32.mrb[0].mxu0
        %v4084 = vadd.f32 0.0, %v4083
        %4085 = vmatprep.mubr.f32.mxu0 0.0
        %4086 = vmatmul.mubr.f32.gmra.mrb[0].mxu0 %v2550
        %v4087 = vpop.f32.mrb[0].mxu0
        %v4088 = vadd.f32 0.0, %v4087
        %v4089 = vpop.f32.mrb[0].mxu0
        %v4090 = vadd.f32 0.0, %v4089
        %4091 = vdwg.mxu0
        %4092 = vmatprep.subr.mxu0 %v1760
        %4093 = vmatpush1.msra.mxu0 %v1758
        %4094 = vmatprep.subr.mxu0 0.0
        %4095 = vmatpush1.msra.mxu0 0.0
        %4096 = vmatprep.subr.mxu0 0.0
        %4097 = vmatpush1.msra.mxu0 0.0
        %4098 = vmatprep.subr.mxu0 0.0
        %4099 = vmatpush1.msra.mxu0 0.0
        %4100 = vmatprep.subr.mxu0 0.0
        %4101 = vmatpush1.msra.mxu0 0.0
        %4102 = vmatprep.subr.mxu0 0.0
        %4103 = vmatpush1.msra.mxu0 0.0
        %4104 = vmatprep.subr.mxu0 0.0
        %4105 = vmatpush1.msra.mxu0 0.0
        %4106 = vmatprep.subr.mxu0 0.0
        %4107 = vmatpush1.msra.mxu0 0.0
        %4108 = vmatprep.subr.mxu0 0.0
        %4109 = vmatpush1.msra.mxu0 0.0
        %4110 = vmatprep.subr.mxu0 0.0
        %4111 = vmatpush1.msra.mxu0 0.0
        %4112 = vmatprep.subr.mxu0 0.0
        %4113 = vmatpush1.msra.mxu0 0.0
        %4114 = vmatprep.subr.mxu0 0.0
        %4115 = vmatpush1.msra.mxu0 0.0
        %4116 = vmatprep.subr.mxu0 0.0
        %4117 = vmatpush1.msra.mxu0 0.0
        %4118 = vmatprep.subr.mxu0 0.0
        %4119 = vmatpush1.msra.mxu0 0.0
        %4120 = vmatprep.subr.mxu0 0.0
        %4121 = vmatpush1.msra.mxu0 0.0
        %4122 = vmatprep.subr.mxu0 0.0
        %4123 = vmatpush1.msra.mxu0 0.0
        %4124 = vmatprep.subr.mxu0 0.0
        %4125 = vmatpush1.msra.mxu0 0.0
        %4126 = vmatprep.subr.mxu0 0.0
        %4127 = vmatpush1.msra.mxu0 0.0
        %4128 = vmatprep.subr.mxu0 0.0
        %4129 = vmatpush1.msra.mxu0 0.0
        %4130 = vmatprep.subr.mxu0 0.0
        %4131 = vmatpush1.msra.mxu0 0.0
        %4132 = vmatprep.subr.mxu0 0.0
        %4133 = vmatpush1.msra.mxu0 0.0
        %4134 = vmatprep.subr.mxu0 0.0
        %4135 = vmatpush1.msra.mxu0 0.0
        %4136 = vmatprep.subr.mxu0 0.0
        %4137 = vmatpush1.msra.mxu0 0.0
        %4138 = vmatprep.subr.mxu0 0.0
        %4139 = vmatpush1.msra.mxu0 0.0
        %4140 = vmatprep.subr.mxu0 0.0
        %4141 = vmatpush1.msra.mxu0 0.0
        %4142 = vmatprep.subr.mxu0 0.0
        %4143 = vmatpush1.msra.mxu0 0.0
        %4144 = vmatprep.subr.mxu0 0.0
        %4145 = vmatpush1.msra.mxu0 0.0
        %4146 = vmatprep.subr.mxu0 0.0
        %4147 = vmatpush1.msra.mxu0 0.0
        %4148 = vmatprep.subr.mxu0 0.0
        %4149 = vmatpush1.msra.mxu0 0.0
        %4150 = vmatprep.subr.mxu0 0.0
        %4151 = vmatpush1.msra.mxu0 0.0
        %4152 = vmatprep.subr.mxu0 0.0
        %4153 = vmatpush1.msra.mxu0 0.0
        %4154 = vmatprep.subr.mxu0 0.0
        %4155 = vmatpush1.msra.mxu0 0.0
        %4156 = vmatprep.mubr.f32.mxu0 0.0
        %4157 = vmatmul.mubr.f32.gmra.mrb[0].mxu0 %v2547
        %v4158 = vpop.f32.mrb[0].mxu0
        %v4159 = vadd.f32 0.0, %v4158
        %v4160 = vpop.f32.mrb[0].mxu0
        %v4161 = vadd.f32 0.0, %v4160
        %4162 = vmatprep.mubr.f32.mxu0 0.0
        %4163 = vmatmul.mubr.f32.gmra.mrb[0].mxu0 %v2550
        %v4164 = vpop.f32.mrb[0].mxu0
        %v4165 = vadd.f32 0.0, %v4164
        %v4166 = vpop.f32.mrb[0].mxu0
        %v4167 = vadd.f32 0.0, %v4166
        %4168 = vdwg.mxu0
        %4169 = vmatprep.subr.mxu0 %v1831
        %4170 = vmatpush1.msra.mxu0 %v1829
        %4171 = vmatprep.subr.mxu0 0.0
        %4172 = vmatpush1.msra.mxu0 0.0
        %4173 = vmatprep.subr.mxu0 0.0
        %4174 = vmatpush1.msra.mxu0 0.0
        %4175 = vmatprep.subr.mxu0 0.0
        %4176 = vmatpush1.msra.mxu0 0.0
        %4177 = vmatprep.subr.mxu0 0.0
        %4178 = vmatpush1.msra.mxu0 0.0
        %4179 = vmatprep.subr.mxu0 0.0
        %4180 = vmatpush1.msra.mxu0 0.0
        %4181 = vmatprep.subr.mxu0 0.0
        %4182 = vmatpush1.msra.mxu0 0.0
        %4183 = vmatprep.subr.mxu0 0.0
        %4184 = vmatpush1.msra.mxu0 0.0
        %4185 = vmatprep.subr.mxu0 0.0
        %4186 = vmatpush1.msra.mxu0 0.0
        %4187 = vmatprep.subr.mxu0 0.0
        %4188 = vmatpush1.msra.mxu0 0.0
        %4189 = vmatprep.subr.mxu0 0.0
        %4190 = vmatpush1.msra.mxu0 0.0
        %4191 = vmatprep.subr.mxu0 0.0
        %4192 = vmatpush1.msra.mxu0 0.0
        %4193 = vmatprep.subr.mxu0 0.0
        %4194 = vmatpush1.msra.mxu0 0.0
        %4195 = vmatprep.subr.mxu0 0.0
        %4196 = vmatpush1.msra.mxu0 0.0
        %4197 = vmatprep.subr.mxu0 0.0
        %4198 = vmatpush1.msra.mxu0 0.0
        %4199 = vmatprep.subr.mxu0 0.0
        %4200 = vmatpush1.msra.mxu0 0.0
        %4201 = vmatprep.subr.mxu0 0.0
        %4202 = vmatpush1.msra.mxu0 0.0
        %4203 = vmatprep.subr.mxu0 0.0
        %4204 = vmatpush1.msra.mxu0 0.0
        %4205 = vmatprep.subr.mxu0 0.0
        %4206 = vmatpush1.msra.mxu0 0.0
        %4207 = vmatprep.subr.mxu0 0.0
        %4208 = vmatpush1.msra.mxu0 0.0
        %4209 = vmatprep.subr.mxu0 0.0
        %4210 = vmatpush1.msra.mxu0 0.0
        %4211 = vmatprep.subr.mxu0 0.0
        %4212 = vmatpush1.msra.mxu0 0.0
        %4213 = vmatprep.subr.mxu0 0.0
        %4214 = vmatpush1.msra.mxu0 0.0
        %4215 = vmatprep.subr.mxu0 0.0
        %4216 = vmatpush1.msra.mxu0 0.0
        %4217 = vmatprep.subr.mxu0 0.0
        %4218 = vmatpush1.msra.mxu0 0.0
        %4219 = vmatprep.subr.mxu0 0.0
        %4220 = vmatpush1.msra.mxu0 0.0
        %4221 = vmatprep.subr.mxu0 0.0
        %4222 = vmatpush1.msra.mxu0 0.0
        %4223 = vmatprep.subr.mxu0 0.0
        %4224 = vmatpush1.msra.mxu0 0.0
        %4225 = vmatprep.subr.mxu0 0.0
        %4226 = vmatpush1.msra.mxu0 0.0
        %4227 = vmatprep.subr.mxu0 0.0
        %4228 = vmatpush1.msra.mxu0 0.0
        %4229 = vmatprep.subr.mxu0 0.0
        %4230 = vmatpush1.msra.mxu0 0.0
        %4231 = vmatprep.subr.mxu0 0.0
        %4232 = vmatpush1.msra.mxu0 0.0
        %4233 = vmatprep.mubr.f32.mxu0 0.0
        %4234 = vmatmul.mubr.f32.gmra.mrb[0].mxu0 %v2547
        %v4235 = vpop.f32.mrb[0].mxu0
        %v4236 = vadd.f32 0.0, %v4235
        %v4237 = vpop.f32.mrb[0].mxu0
        %v4238 = vadd.f32 0.0, %v4237
        %4239 = vmatprep.mubr.f32.mxu0 0.0
        %4240 = vmatmul.mubr.f32.gmra.mrb[0].mxu0 %v2550
        %v4241 = vpop.f32.mrb[0].mxu0
        %v4242 = vadd.f32 0.0, %v4241
        %v4243 = vpop.f32.mrb[0].mxu0
        %v4244 = vadd.f32 0.0, %v4243
        %4245 = vdwg.mxu0
        %4246 = vmatprep.subr.mxu0 %v1902
        %4247 = vmatpush1.msra.mxu0 %v1900
        %4248 = vmatprep.subr.mxu0 0.0
        %4249 = vmatpush1.msra.mxu0 0.0
        %4250 = vmatprep.subr.mxu0 0.0
        %4251 = vmatpush1.msra.mxu0 0.0
        %4252 = vmatprep.subr.mxu0 0.0
        %4253 = vmatpush1.msra.mxu0 0.0
        %4254 = vmatprep.subr.mxu0 0.0
        %4255 = vmatpush1.msra.mxu0 0.0
        %4256 = vmatprep.subr.mxu0 0.0
        %4257 = vmatpush1.msra.mxu0 0.0
        %4258 = vmatprep.subr.mxu0 0.0
        %4259 = vmatpush1.msra.mxu0 0.0
        %4260 = vmatprep.subr.mxu0 0.0
        %4261 = vmatpush1.msra.mxu0 0.0
        %4262 = vmatprep.subr.mxu0 0.0
        %4263 = vmatpush1.msra.mxu0 0.0
        %4264 = vmatprep.subr.mxu0 0.0
        %4265 = vmatpush1.msra.mxu0 0.0
        %4266 = vmatprep.subr.mxu0 0.0
        %4267 = vmatpush1.msra.mxu0 0.0
        %4268 = vmatprep.subr.mxu0 0.0
        %4269 = vmatpush1.msra.mxu0 0.0
        %4270 = vmatprep.subr.mxu0 0.0
        %4271 = vmatpush1.msra.mxu0 0.0
        %4272 = vmatprep.subr.mxu0 0.0
        %4273 = vmatpush1.msra.mxu0 0.0
        %4274 = vmatprep.subr.mxu0 0.0
        %4275 = vmatpush1.msra.mxu0 0.0
        %4276 = vmatprep.subr.mxu0 0.0
        %4277 = vmatpush1.msra.mxu0 0.0
        %4278 = vmatprep.subr.mxu0 0.0
        %4279 = vmatpush1.msra.mxu0 0.0
        %4280 = vmatprep.subr.mxu0 0.0
        %4281 = vmatpush1.msra.mxu0 0.0
        %4282 = vmatprep.subr.mxu0 0.0
        %4283 = vmatpush1.msra.mxu0 0.0
        %4284 = vmatprep.subr.mxu0 0.0
        %4285 = vmatpush1.msra.mxu0 0.0
        %4286 = vmatprep.subr.mxu0 0.0
        %4287 = vmatpush1.msra.mxu0 0.0
        %4288 = vmatprep.subr.mxu0 0.0
        %4289 = vmatpush1.msra.mxu0 0.0
        %4290 = vmatprep.subr.mxu0 0.0
        %4291 = vmatpush1.msra.mxu0 0.0
        %4292 = vmatprep.subr.mxu0 0.0
        %4293 = vmatpush1.msra.mxu0 0.0
        %4294 = vmatprep.subr.mxu0 0.0
        %4295 = vmatpush1.msra.mxu0 0.0
        %4296 = vmatprep.subr.mxu0 0.0
        %4297 = vmatpush1.msra.mxu0 0.0
        %4298 = vmatprep.subr.mxu0 0.0
        %4299 = vmatpush1.msra.mxu0 0.0
        %4300 = vmatprep.subr.mxu0 0.0
        %4301 = vmatpush1.msra.mxu0 0.0
        %4302 = vmatprep.subr.mxu0 0.0
        %4303 = vmatpush1.msra.mxu0 0.0
        %4304 = vmatprep.subr.mxu0 0.0
        %4305 = vmatpush1.msra.mxu0 0.0
        %4306 = vmatprep.subr.mxu0 0.0
        %4307 = vmatpush1.msra.mxu0 0.0
        %4308 = vmatprep.subr.mxu0 0.0
        %4309 = vmatpush1.msra.mxu0 0.0
        %4310 = vmatprep.mubr.f32.mxu0 0.0
        %4311 = vmatmul.mubr.f32.gmra.mrb[0].mxu0 %v2547
        %v4312 = vpop.f32.mrb[0].mxu0
        %v4313 = vadd.f32 0.0, %v4312
        %v4314 = vpop.f32.mrb[0].mxu0
        %v4315 = vadd.f32 0.0, %v4314
        %4316 = vmatprep.mubr.f32.mxu0 0.0
        %4317 = vmatmul.mubr.f32.gmra.mrb[0].mxu0 %v2550
        %v4318 = vpop.f32.mrb[0].mxu0
        %v4319 = vadd.f32 0.0, %v4318
        %v4320 = vpop.f32.mrb[0].mxu0
        %v4321 = vadd.f32 0.0, %v4320
        %4322 = vdwg.mxu0
        %4323 = vmatprep.subr.mxu0 %v1973
        %4324 = vmatpush1.msra.mxu0 %v1971
        %4325 = vmatprep.subr.mxu0 0.0
        %4326 = vmatpush1.msra.mxu0 0.0
        %4327 = vmatprep.subr.mxu0 0.0
        %4328 = vmatpush1.msra.mxu0 0.0
        %4329 = vmatprep.subr.mxu0 0.0
        %4330 = vmatpush1.msra.mxu0 0.0
        %4331 = vmatprep.subr.mxu0 0.0
        %4332 = vmatpush1.msra.mxu0 0.0
        %4333 = vmatprep.subr.mxu0 0.0
        %4334 = vmatpush1.msra.mxu0 0.0
        %4335 = vmatprep.subr.mxu0 0.0
        %4336 = vmatpush1.msra.mxu0 0.0
        %4337 = vmatprep.subr.mxu0 0.0
        %4338 = vmatpush1.msra.mxu0 0.0
        %4339 = vmatprep.subr.mxu0 0.0
        %4340 = vmatpush1.msra.mxu0 0.0
        %4341 = vmatprep.subr.mxu0 0.0
        %4342 = vmatpush1.msra.mxu0 0.0
        %4343 = vmatprep.subr.mxu0 0.0
        %4344 = vmatpush1.msra.mxu0 0.0
        %4345 = vmatprep.subr.mxu0 0.0
        %4346 = vmatpush1.msra.mxu0 0.0
        %4347 = vmatprep.subr.mxu0 0.0
        %4348 = vmatpush1.msra.mxu0 0.0
        %4349 = vmatprep.subr.mxu0 0.0
        %4350 = vmatpush1.msra.mxu0 0.0
        %4351 = vmatprep.subr.mxu0 0.0
        %4352 = vmatpush1.msra.mxu0 0.0
        %4353 = vmatprep.subr.mxu0 0.0
        %4354 = vmatpush1.msra.mxu0 0.0
        %4355 = vmatprep.subr.mxu0 0.0
        %4356 = vmatpush1.msra.mxu0 0.0
        %4357 = vmatprep.subr.mxu0 0.0
        %4358 = vmatpush1.msra.mxu0 0.0
        %4359 = vmatprep.subr.mxu0 0.0
        %4360 = vmatpush1.msra.mxu0 0.0
        %4361 = vmatprep.subr.mxu0 0.0
        %4362 = vmatpush1.msra.mxu0 0.0
        %4363 = vmatprep.subr.mxu0 0.0
        %4364 = vmatpush1.msra.mxu0 0.0
        %4365 = vmatprep.subr.mxu0 0.0
        %4366 = vmatpush1.msra.mxu0 0.0
        %4367 = vmatprep.subr.mxu0 0.0
        %4368 = vmatpush1.msra.mxu0 0.0
        %4369 = vmatprep.subr.mxu0 0.0
        %4370 = vmatpush1.msra.mxu0 0.0
        %4371 = vmatprep.subr.mxu0 0.0
        %4372 = vmatpush1.msra.mxu0 0.0
        %4373 = vmatprep.subr.mxu0 0.0
        %4374 = vmatpush1.msra.mxu0 0.0
        %4375 = vmatprep.subr.mxu0 0.0
        %4376 = vmatpush1.msra.mxu0 0.0
        %4377 = vmatprep.subr.mxu0 0.0
        %4378 = vmatpush1.msra.mxu0 0.0
        %4379 = vmatprep.subr.mxu0 0.0
        %4380 = vmatpush1.msra.mxu0 0.0
        %4381 = vmatprep.subr.mxu0 0.0
        %4382 = vmatpush1.msra.mxu0 0.0
        %4383 = vmatprep.subr.mxu0 0.0
        %4384 = vmatpush1.msra.mxu0 0.0
        %4385 = vmatprep.subr.mxu0 0.0
        %4386 = vmatpush1.msra.mxu0 0.0
        %4387 = vmatprep.mubr.f32.mxu0 0.0
        %4388 = vmatmul.mubr.f32.gmra.mrb[0].mxu0 %v2547
        %v4389 = vpop.f32.mrb[0].mxu0
        %v4390 = vadd.f32 0.0, %v4389
        %v4391 = vpop.f32.mrb[0].mxu0
        %v4392 = vadd.f32 0.0, %v4391
        %4393 = vmatprep.mubr.f32.mxu0 0.0
        %4394 = vmatmul.mubr.f32.gmra.mrb[0].mxu0 %v2550
        %v4395 = vpop.f32.mrb[0].mxu0
        %v4396 = vadd.f32 0.0, %v4395
        %v4397 = vpop.f32.mrb[0].mxu0
        %v4398 = vadd.f32 0.0, %v4397
        %4399 = vdwg.mxu0
        %4400 = vmatprep.subr.mxu0 %v2044
        %4401 = vmatpush1.msra.mxu0 %v2042
        %4402 = vmatprep.subr.mxu0 0.0
        %4403 = vmatpush1.msra.mxu0 0.0
        %4404 = vmatprep.subr.mxu0 0.0
        %4405 = vmatpush1.msra.mxu0 0.0
        %4406 = vmatprep.subr.mxu0 0.0
        %4407 = vmatpush1.msra.mxu0 0.0
        %4408 = vmatprep.subr.mxu0 0.0
        %4409 = vmatpush1.msra.mxu0 0.0
        %4410 = vmatprep.subr.mxu0 0.0
        %4411 = vmatpush1.msra.mxu0 0.0
        %4412 = vmatprep.subr.mxu0 0.0
        %4413 = vmatpush1.msra.mxu0 0.0
        %4414 = vmatprep.subr.mxu0 0.0
        %4415 = vmatpush1.msra.mxu0 0.0
        %4416 = vmatprep.subr.mxu0 0.0
        %4417 = vmatpush1.msra.mxu0 0.0
        %4418 = vmatprep.subr.mxu0 0.0
        %4419 = vmatpush1.msra.mxu0 0.0
        %4420 = vmatprep.subr.mxu0 0.0
        %4421 = vmatpush1.msra.mxu0 0.0
        %4422 = vmatprep.subr.mxu0 0.0
        %4423 = vmatpush1.msra.mxu0 0.0
        %4424 = vmatprep.subr.mxu0 0.0
        %4425 = vmatpush1.msra.mxu0 0.0
        %4426 = vmatprep.subr.mxu0 0.0
        %4427 = vmatpush1.msra.mxu0 0.0
        %4428 = vmatprep.subr.mxu0 0.0
        %4429 = vmatpush1.msra.mxu0 0.0
        %4430 = vmatprep.subr.mxu0 0.0
        %4431 = vmatpush1.msra.mxu0 0.0
        %4432 = vmatprep.subr.mxu0 0.0
        %4433 = vmatpush1.msra.mxu0 0.0
        %4434 = vmatprep.subr.mxu0 0.0
        %4435 = vmatpush1.msra.mxu0 0.0
        %4436 = vmatprep.subr.mxu0 0.0
        %4437 = vmatpush1.msra.mxu0 0.0
        %4438 = vmatprep.subr.mxu0 0.0
        %4439 = vmatpush1.msra.mxu0 0.0
        %4440 = vmatprep.subr.mxu0 0.0
        %4441 = vmatpush1.msra.mxu0 0.0
        %4442 = vmatprep.subr.mxu0 0.0
        %4443 = vmatpush1.msra.mxu0 0.0
        %4444 = vmatprep.subr.mxu0 0.0
        %4445 = vmatpush1.msra.mxu0 0.0
        %4446 = vmatprep.subr.mxu0 0.0
        %4447 = vmatpush1.msra.mxu0 0.0
        %4448 = vmatprep.subr.mxu0 0.0
        %4449 = vmatpush1.msra.mxu0 0.0
        %4450 = vmatprep.subr.mxu0 0.0
        %4451 = vmatpush1.msra.mxu0 0.0
        %4452 = vmatprep.subr.mxu0 0.0
        %4453 = vmatpush1.msra.mxu0 0.0
        %4454 = vmatprep.subr.mxu0 0.0
        %4455 = vmatpush1.msra.mxu0 0.0
        %4456 = vmatprep.subr.mxu0 0.0
        %4457 = vmatpush1.msra.mxu0 0.0
        %4458 = vmatprep.subr.mxu0 0.0
        %4459 = vmatpush1.msra.mxu0 0.0
        %4460 = vmatprep.subr.mxu0 0.0
        %4461 = vmatpush1.msra.mxu0 0.0
        %4462 = vmatprep.subr.mxu0 0.0
        %4463 = vmatpush1.msra.mxu0 0.0
        %4464 = vmatprep.mubr.f32.mxu0 0.0
        %4465 = vmatmul.mubr.f32.gmra.mrb[0].mxu0 %v2547
        %v4466 = vpop.f32.mrb[0].mxu0
        %v4467 = vadd.f32 0.0, %v4466
        %v4468 = vpop.f32.mrb[0].mxu0
        %v4469 = vadd.f32 0.0, %v4468
        %4470 = vmatprep.mubr.f32.mxu0 0.0
        %4471 = vmatmul.mubr.f32.gmra.mrb[0].mxu0 %v2550
        %v4472 = vpop.f32.mrb[0].mxu0
        %v4473 = vadd.f32 0.0, %v4472
        %v4474 = vpop.f32.mrb[0].mxu0
        %v4475 = vadd.f32 0.0, %v4474
        %4476 = vdwg.mxu0
        %4477 = vmatprep.subr.mxu0 %v2115
        %4478 = vmatpush1.msra.mxu0 %v2113
        %4479 = vmatprep.subr.mxu0 0.0
        %4480 = vmatpush1.msra.mxu0 0.0
        %4481 = vmatprep.subr.mxu0 0.0
        %4482 = vmatpush1.msra.mxu0 0.0
        %4483 = vmatprep.subr.mxu0 0.0
        %4484 = vmatpush1.msra.mxu0 0.0
        %4485 = vmatprep.subr.mxu0 0.0
        %4486 = vmatpush1.msra.mxu0 0.0
        %4487 = vmatprep.subr.mxu0 0.0
        %4488 = vmatpush1.msra.mxu0 0.0
        %4489 = vmatprep.subr.mxu0 0.0
        %4490 = vmatpush1.msra.mxu0 0.0
        %4491 = vmatprep.subr.mxu0 0.0
        %4492 = vmatpush1.msra.mxu0 0.0
        %4493 = vmatprep.subr.mxu0 0.0
        %4494 = vmatpush1.msra.mxu0 0.0
        %4495 = vmatprep.subr.mxu0 0.0
        %4496 = vmatpush1.msra.mxu0 0.0
        %4497 = vmatprep.subr.mxu0 0.0
        %4498 = vmatpush1.msra.mxu0 0.0
        %4499 = vmatprep.subr.mxu0 0.0
        %4500 = vmatpush1.msra.mxu0 0.0
        %4501 = vmatprep.subr.mxu0 0.0
        %4502 = vmatpush1.msra.mxu0 0.0
        %4503 = vmatprep.subr.mxu0 0.0
        %4504 = vmatpush1.msra.mxu0 0.0
        %4505 = vmatprep.subr.mxu0 0.0
        %4506 = vmatpush1.msra.mxu0 0.0
        %4507 = vmatprep.subr.mxu0 0.0
        %4508 = vmatpush1.msra.mxu0 0.0
        %4509 = vmatprep.subr.mxu0 0.0
        %4510 = vmatpush1.msra.mxu0 0.0
        %4511 = vmatprep.subr.mxu0 0.0
        %4512 = vmatpush1.msra.mxu0 0.0
        %4513 = vmatprep.subr.mxu0 0.0
        %4514 = vmatpush1.msra.mxu0 0.0
        %4515 = vmatprep.subr.mxu0 0.0
        %4516 = vmatpush1.msra.mxu0 0.0
        %4517 = vmatprep.subr.mxu0 0.0
        %4518 = vmatpush1.msra.mxu0 0.0
        %4519 = vmatprep.subr.mxu0 0.0
        %4520 = vmatpush1.msra.mxu0 0.0
        %4521 = vmatprep.subr.mxu0 0.0
        %4522 = vmatpush1.msra.mxu0 0.0
        %4523 = vmatprep.subr.mxu0 0.0
        %4524 = vmatpush1.msra.mxu0 0.0
        %4525 = vmatprep.subr.mxu0 0.0
        %4526 = vmatpush1.msra.mxu0 0.0
        %4527 = vmatprep.subr.mxu0 0.0
        %4528 = vmatpush1.msra.mxu0 0.0
        %4529 = vmatprep.subr.mxu0 0.0
        %4530 = vmatpush1.msra.mxu0 0.0
        %4531 = vmatprep.subr.mxu0 0.0
        %4532 = vmatpush1.msra.mxu0 0.0
        %4533 = vmatprep.subr.mxu0 0.0
        %4534 = vmatpush1.msra.mxu0 0.0
        %4535 = vmatprep.subr.mxu0 0.0
        %4536 = vmatpush1.msra.mxu0 0.0
        %4537 = vmatprep.subr.mxu0 0.0
        %4538 = vmatpush1.msra.mxu0 0.0
        %4539 = vmatprep.subr.mxu0 0.0
        %4540 = vmatpush1.msra.mxu0 0.0
        %4541 = vmatprep.mubr.f32.mxu0 0.0
        %4542 = vmatmul.mubr.f32.gmra.mrb[0].mxu0 %v2547
        %v4543 = vpop.f32.mrb[0].mxu0
        %v4544 = vadd.f32 0.0, %v4543
        %v4545 = vpop.f32.mrb[0].mxu0
        %v4546 = vadd.f32 0.0, %v4545
        %4547 = vmatprep.mubr.f32.mxu0 0.0
        %4548 = vmatmul.mubr.f32.gmra.mrb[0].mxu0 %v2550
        %v4549 = vpop.f32.mrb[0].mxu0
        %v4550 = vadd.f32 0.0, %v4549
        %v4551 = vpop.f32.mrb[0].mxu0
        %v4552 = vadd.f32 0.0, %v4551
        %4553 = vdwg.mxu0
        %4554 = vmatprep.subr.mxu0 %v2186
        %4555 = vmatpush1.msra.mxu0 %v2184
        %4556 = vmatprep.subr.mxu0 0.0
        %4557 = vmatpush1.msra.mxu0 0.0
        %4558 = vmatprep.subr.mxu0 0.0
        %4559 = vmatpush1.msra.mxu0 0.0
        %4560 = vmatprep.subr.mxu0 0.0
        %4561 = vmatpush1.msra.mxu0 0.0
        %4562 = vmatprep.subr.mxu0 0.0
        %4563 = vmatpush1.msra.mxu0 0.0
        %4564 = vmatprep.subr.mxu0 0.0
        %4565 = vmatpush1.msra.mxu0 0.0
        %4566 = vmatprep.subr.mxu0 0.0
        %4567 = vmatpush1.msra.mxu0 0.0
        %4568 = vmatprep.subr.mxu0 0.0
        %4569 = vmatpush1.msra.mxu0 0.0
        %4570 = vmatprep.subr.mxu0 0.0
        %4571 = vmatpush1.msra.mxu0 0.0
        %4572 = vmatprep.subr.mxu0 0.0
        %4573 = vmatpush1.msra.mxu0 0.0
        %4574 = vmatprep.subr.mxu0 0.0
        %4575 = vmatpush1.msra.mxu0 0.0
        %4576 = vmatprep.subr.mxu0 0.0
        %4577 = vmatpush1.msra.mxu0 0.0
        %4578 = vmatprep.subr.mxu0 0.0
        %4579 = vmatpush1.msra.mxu0 0.0
        %4580 = vmatprep.subr.mxu0 0.0
        %4581 = vmatpush1.msra.mxu0 0.0
        %4582 = vmatprep.subr.mxu0 0.0
        %4583 = vmatpush1.msra.mxu0 0.0
        %4584 = vmatprep.subr.mxu0 0.0
        %4585 = vmatpush1.msra.mxu0 0.0
        %4586 = vmatprep.subr.mxu0 0.0
        %4587 = vmatpush1.msra.mxu0 0.0
        %4588 = vmatprep.subr.mxu0 0.0
        %4589 = vmatpush1.msra.mxu0 0.0
        %4590 = vmatprep.subr.mxu0 0.0
        %4591 = vmatpush1.msra.mxu0 0.0
        %4592 = vmatprep.subr.mxu0 0.0
        %4593 = vmatpush1.msra.mxu0 0.0
        %4594 = vmatprep.subr.mxu0 0.0
        %4595 = vmatpush1.msra.mxu0 0.0
        %4596 = vmatprep.subr.mxu0 0.0
        %4597 = vmatpush1.msra.mxu0 0.0
        %4598 = vmatprep.subr.mxu0 0.0
        %4599 = vmatpush1.msra.mxu0 0.0
        %4600 = vmatprep.subr.mxu0 0.0
        %4601 = vmatpush1.msra.mxu0 0.0
        %4602 = vmatprep.subr.mxu0 0.0
        %4603 = vmatpush1.msra.mxu0 0.0
        %4604 = vmatprep.subr.mxu0 0.0
        %4605 = vmatpush1.msra.mxu0 0.0
        %4606 = vmatprep.subr.mxu0 0.0
        %4607 = vmatpush1.msra.mxu0 0.0
        %4608 = vmatprep.subr.mxu0 0.0
        %4609 = vmatpush1.msra.mxu0 0.0
        %4610 = vmatprep.subr.mxu0 0.0
        %4611 = vmatpush1.msra.mxu0 0.0
        %4612 = vmatprep.subr.mxu0 0.0
        %4613 = vmatpush1.msra.mxu0 0.0
        %4614 = vmatprep.subr.mxu0 0.0
        %4615 = vmatpush1.msra.mxu0 0.0
        %4616 = vmatprep.subr.mxu0 0.0
        %4617 = vmatpush1.msra.mxu0 0.0
        %4618 = vmatprep.mubr.f32.mxu0 0.0
        %4619 = vmatmul.mubr.f32.gmra.mrb[0].mxu0 %v2547
        %v4620 = vpop.f32.mrb[0].mxu0
        %v4621 = vadd.f32 0.0, %v4620
        %v4622 = vpop.f32.mrb[0].mxu0
        %v4623 = vadd.f32 0.0, %v4622
        %4624 = vmatprep.mubr.f32.mxu0 0.0
        %4625 = vmatmul.mubr.f32.gmra.mrb[0].mxu0 %v2550
        %v4626 = vpop.f32.mrb[0].mxu0
        %v4627 = vadd.f32 0.0, %v4626
        %v4628 = vpop.f32.mrb[0].mxu0
        %v4629 = vadd.f32 0.0, %v4628
        %4630 = vdwg.mxu0
        %4631 = vmatprep.subr.mxu0 %v2257
        %4632 = vmatpush1.msra.mxu0 %v2255
        %4633 = vmatprep.subr.mxu0 0.0
        %4634 = vmatpush1.msra.mxu0 0.0
        %4635 = vmatprep.subr.mxu0 0.0
        %4636 = vmatpush1.msra.mxu0 0.0
        %4637 = vmatprep.subr.mxu0 0.0
        %4638 = vmatpush1.msra.mxu0 0.0
        %4639 = vmatprep.subr.mxu0 0.0
        %4640 = vmatpush1.msra.mxu0 0.0
        %4641 = vmatprep.subr.mxu0 0.0
        %4642 = vmatpush1.msra.mxu0 0.0
        %4643 = vmatprep.subr.mxu0 0.0
        %4644 = vmatpush1.msra.mxu0 0.0
        %4645 = vmatprep.subr.mxu0 0.0
        %4646 = vmatpush1.msra.mxu0 0.0
        %4647 = vmatprep.subr.mxu0 0.0
        %4648 = vmatpush1.msra.mxu0 0.0
        %4649 = vmatprep.subr.mxu0 0.0
        %4650 = vmatpush1.msra.mxu0 0.0
        %4651 = vmatprep.subr.mxu0 0.0
        %4652 = vmatpush1.msra.mxu0 0.0
        %4653 = vmatprep.subr.mxu0 0.0
        %4654 = vmatpush1.msra.mxu0 0.0
        %4655 = vmatprep.subr.mxu0 0.0
        %4656 = vmatpush1.msra.mxu0 0.0
        %4657 = vmatprep.subr.mxu0 0.0
        %4658 = vmatpush1.msra.mxu0 0.0
        %4659 = vmatprep.subr.mxu0 0.0
        %4660 = vmatpush1.msra.mxu0 0.0
        %4661 = vmatprep.subr.mxu0 0.0
        %4662 = vmatpush1.msra.mxu0 0.0
        %4663 = vmatprep.subr.mxu0 0.0
        %4664 = vmatpush1.msra.mxu0 0.0
        %4665 = vmatprep.subr.mxu0 0.0
        %4666 = vmatpush1.msra.mxu0 0.0
        %4667 = vmatprep.subr.mxu0 0.0
        %4668 = vmatpush1.msra.mxu0 0.0
        %4669 = vmatprep.subr.mxu0 0.0
        %4670 = vmatpush1.msra.mxu0 0.0
        %4671 = vmatprep.subr.mxu0 0.0
        %4672 = vmatpush1.msra.mxu0 0.0
        %4673 = vmatprep.subr.mxu0 0.0
        %4674 = vmatpush1.msra.mxu0 0.0
        %4675 = vmatprep.subr.mxu0 0.0
        %4676 = vmatpush1.msra.mxu0 0.0
        %4677 = vmatprep.subr.mxu0 0.0
        %4678 = vmatpush1.msra.mxu0 0.0
        %4679 = vmatprep.subr.mxu0 0.0
        %4680 = vmatpush1.msra.mxu0 0.0
        %4681 = vmatprep.subr.mxu0 0.0
        %4682 = vmatpush1.msra.mxu0 0.0
        %4683 = vmatprep.subr.mxu0 0.0
        %4684 = vmatpush1.msra.mxu0 0.0
        %4685 = vmatprep.subr.mxu0 0.0
        %4686 = vmatpush1.msra.mxu0 0.0
        %4687 = vmatprep.subr.mxu0 0.0
        %4688 = vmatpush1.msra.mxu0 0.0
        %4689 = vmatprep.subr.mxu0 0.0
        %4690 = vmatpush1.msra.mxu0 0.0
        %4691 = vmatprep.subr.mxu0 0.0
        %4692 = vmatpush1.msra.mxu0 0.0
        %4693 = vmatprep.subr.mxu0 0.0
        %4694 = vmatpush1.msra.mxu0 0.0
        %4695 = vmatprep.mubr.f32.mxu0 0.0
        %4696 = vmatmul.mubr.f32.gmra.mrb[0].mxu0 %v2547
        %v4697 = vpop.f32.mrb[0].mxu0
        %v4698 = vadd.f32 0.0, %v4697
        %v4699 = vpop.f32.mrb[0].mxu0
        %v4700 = vadd.f32 0.0, %v4699
        %4701 = vmatprep.mubr.f32.mxu0 0.0
        %4702 = vmatmul.mubr.f32.gmra.mrb[0].mxu0 %v2550
        %v4703 = vpop.f32.mrb[0].mxu0
        %v4704 = vadd.f32 0.0, %v4703
        %v4705 = vpop.f32.mrb[0].mxu0
        %v4706 = vadd.f32 0.0, %v4705
        %4707 = vdwg.mxu0
        %4708 = vmatprep.subr.mxu0 %v2328
        %4709 = vmatpush1.msra.mxu0 %v2326
        %4710 = vmatprep.subr.mxu0 0.0
        %4711 = vmatpush1.msra.mxu0 0.0
        %4712 = vmatprep.subr.mxu0 0.0
        %4713 = vmatpush1.msra.mxu0 0.0
        %4714 = vmatprep.subr.mxu0 0.0
        %4715 = vmatpush1.msra.mxu0 0.0
        %4716 = vmatprep.subr.mxu0 0.0
        %4717 = vmatpush1.msra.mxu0 0.0
        %4718 = vmatprep.subr.mxu0 0.0
        %4719 = vmatpush1.msra.mxu0 0.0
        %4720 = vmatprep.subr.mxu0 0.0
        %4721 = vmatpush1.msra.mxu0 0.0
        %4722 = vmatprep.subr.mxu0 0.0
        %4723 = vmatpush1.msra.mxu0 0.0
        %4724 = vmatprep.subr.mxu0 0.0
        %4725 = vmatpush1.msra.mxu0 0.0
        %4726 = vmatprep.subr.mxu0 0.0
        %4727 = vmatpush1.msra.mxu0 0.0
        %4728 = vmatprep.subr.mxu0 0.0
        %4729 = vmatpush1.msra.mxu0 0.0
        %4730 = vmatprep.subr.mxu0 0.0
        %4731 = vmatpush1.msra.mxu0 0.0
        %4732 = vmatprep.subr.mxu0 0.0
        %4733 = vmatpush1.msra.mxu0 0.0
        %4734 = vmatprep.subr.mxu0 0.0
        %4735 = vmatpush1.msra.mxu0 0.0
        %4736 = vmatprep.subr.mxu0 0.0
        %4737 = vmatpush1.msra.mxu0 0.0
        %4738 = vmatprep.subr.mxu0 0.0
        %4739 = vmatpush1.msra.mxu0 0.0
        %4740 = vmatprep.subr.mxu0 0.0
        %4741 = vmatpush1.msra.mxu0 0.0
        %4742 = vmatprep.subr.mxu0 0.0
        %4743 = vmatpush1.msra.mxu0 0.0
        %4744 = vmatprep.subr.mxu0 0.0
        %4745 = vmatpush1.msra.mxu0 0.0
        %4746 = vmatprep.subr.mxu0 0.0
        %4747 = vmatpush1.msra.mxu0 0.0
        %4748 = vmatprep.subr.mxu0 0.0
        %4749 = vmatpush1.msra.mxu0 0.0
        %4750 = vmatprep.subr.mxu0 0.0
        %4751 = vmatpush1.msra.mxu0 0.0
        %4752 = vmatprep.subr.mxu0 0.0
        %4753 = vmatpush1.msra.mxu0 0.0
        %4754 = vmatprep.subr.mxu0 0.0
        %4755 = vmatpush1.msra.mxu0 0.0
        %4756 = vmatprep.subr.mxu0 0.0
        %4757 = vmatpush1.msra.mxu0 0.0
        %4758 = vmatprep.subr.mxu0 0.0
        %4759 = vmatpush1.msra.mxu0 0.0
        %4760 = vmatprep.subr.mxu0 0.0
        %4761 = vmatpush1.msra.mxu0 0.0
        %4762 = vmatprep.subr.mxu0 0.0
        %4763 = vmatpush1.msra.mxu0 0.0
        %4764 = vmatprep.subr.mxu0 0.0
        %4765 = vmatpush1.msra.mxu0 0.0
        %4766 = vmatprep.subr.mxu0 0.0
        %4767 = vmatpush1.msra.mxu0 0.0
        %4768 = vmatprep.subr.mxu0 0.0
        %4769 = vmatpush1.msra.mxu0 0.0
        %4770 = vmatprep.subr.mxu0 0.0
        %4771 = vmatpush1.msra.mxu0 0.0
        %4772 = vmatprep.mubr.f32.mxu0 0.0
        %4773 = vmatmul.mubr.f32.gmra.mrb[0].mxu0 %v2547
        %v4774 = vpop.f32.mrb[0].mxu0
        %v4775 = vadd.f32 0.0, %v4774
        %v4776 = vpop.f32.mrb[0].mxu0
        %v4777 = vadd.f32 0.0, %v4776
        %4778 = vmatprep.mubr.f32.mxu0 0.0
        %4779 = vmatmul.mubr.f32.gmra.mrb[0].mxu0 %v2550
        %v4780 = vpop.f32.mrb[0].mxu0
        %v4781 = vadd.f32 0.0, %v4780
        %v4782 = vpop.f32.mrb[0].mxu0
        %v4783 = vadd.f32 0.0, %v4782
        %4784 = vdwg.mxu0
        %4785 = vmatprep.subr.mxu0 %v2399
        %4786 = vmatpush1.msra.mxu0 %v2397
        %4787 = vmatprep.subr.mxu0 0.0
        %4788 = vmatpush1.msra.mxu0 0.0
        %4789 = vmatprep.subr.mxu0 0.0
        %4790 = vmatpush1.msra.mxu0 0.0
        %4791 = vmatprep.subr.mxu0 0.0
        %4792 = vmatpush1.msra.mxu0 0.0
        %4793 = vmatprep.subr.mxu0 0.0
        %4794 = vmatpush1.msra.mxu0 0.0
        %4795 = vmatprep.subr.mxu0 0.0
        %4796 = vmatpush1.msra.mxu0 0.0
        %4797 = vmatprep.subr.mxu0 0.0
        %4798 = vmatpush1.msra.mxu0 0.0
        %4799 = vmatprep.subr.mxu0 0.0
        %4800 = vmatpush1.msra.mxu0 0.0
        %4801 = vmatprep.subr.mxu0 0.0
        %4802 = vmatpush1.msra.mxu0 0.0
        %4803 = vmatprep.subr.mxu0 0.0
        %4804 = vmatpush1.msra.mxu0 0.0
        %4805 = vmatprep.subr.mxu0 0.0
        %4806 = vmatpush1.msra.mxu0 0.0
        %4807 = vmatprep.subr.mxu0 0.0
        %4808 = vmatpush1.msra.mxu0 0.0
        %4809 = vmatprep.subr.mxu0 0.0
        %4810 = vmatpush1.msra.mxu0 0.0
        %4811 = vmatprep.subr.mxu0 0.0
        %4812 = vmatpush1.msra.mxu0 0.0
        %4813 = vmatprep.subr.mxu0 0.0
        %4814 = vmatpush1.msra.mxu0 0.0
        %4815 = vmatprep.subr.mxu0 0.0
        %4816 = vmatpush1.msra.mxu0 0.0
        %4817 = vmatprep.subr.mxu0 0.0
        %4818 = vmatpush1.msra.mxu0 0.0
        %4819 = vmatprep.subr.mxu0 0.0
        %4820 = vmatpush1.msra.mxu0 0.0
        %4821 = vmatprep.subr.mxu0 0.0
        %4822 = vmatpush1.msra.mxu0 0.0
        %4823 = vmatprep.subr.mxu0 0.0
        %4824 = vmatpush1.msra.mxu0 0.0
        %4825 = vmatprep.subr.mxu0 0.0
        %4826 = vmatpush1.msra.mxu0 0.0
        %4827 = vmatprep.subr.mxu0 0.0
        %4828 = vmatpush1.msra.mxu0 0.0
        %4829 = vmatprep.subr.mxu0 0.0
        %4830 = vmatpush1.msra.mxu0 0.0
        %4831 = vmatprep.subr.mxu0 0.0
        %4832 = vmatpush1.msra.mxu0 0.0
        %4833 = vmatprep.subr.mxu0 0.0
        %4834 = vmatpush1.msra.mxu0 0.0
        %4835 = vmatprep.subr.mxu0 0.0
        %4836 = vmatpush1.msra.mxu0 0.0
        %4837 = vmatprep.subr.mxu0 0.0
        %4838 = vmatpush1.msra.mxu0 0.0
        %4839 = vmatprep.subr.mxu0 0.0
        %4840 = vmatpush1.msra.mxu0 0.0
        %4841 = vmatprep.subr.mxu0 0.0
        %4842 = vmatpush1.msra.mxu0 0.0
        %4843 = vmatprep.subr.mxu0 0.0
        %4844 = vmatpush1.msra.mxu0 0.0
        %4845 = vmatprep.subr.mxu0 0.0
        %4846 = vmatpush1.msra.mxu0 0.0
        %4847 = vmatprep.subr.mxu0 0.0
        %4848 = vmatpush1.msra.mxu0 0.0
        %4849 = vmatprep.mubr.f32.mxu0 0.0
        %4850 = vmatmul.mubr.f32.gmra.mrb[0].mxu0 %v2547
        %v4851 = vpop.f32.mrb[0].mxu0
        %v4852 = vadd.f32 0.0, %v4851
        %v4853 = vpop.f32.mrb[0].mxu0
        %v4854 = vadd.f32 0.0, %v4853
        %4855 = vmatprep.mubr.f32.mxu0 0.0
        %4856 = vmatmul.mubr.f32.gmra.mrb[0].mxu0 %v2550
        %v4857 = vpop.f32.mrb[0].mxu0
        %v4858 = vadd.f32 0.0, %v4857
        %v4859 = vpop.f32.mrb[0].mxu0
        %v4860 = vadd.f32 0.0, %v4859
        %4861 = vdwg.mxu0
        %4862 = vmatprep.subr.mxu0 %v2470
        %4863 = vmatpush1.msra.mxu0 %v2468
        %4864 = vmatprep.subr.mxu0 0.0
        %4865 = vmatpush1.msra.mxu0 0.0
        %4866 = vmatprep.subr.mxu0 0.0
        %4867 = vmatpush1.msra.mxu0 0.0
        %4868 = vmatprep.subr.mxu0 0.0
        %4869 = vmatpush1.msra.mxu0 0.0
        %4870 = vmatprep.subr.mxu0 0.0
        %4871 = vmatpush1.msra.mxu0 0.0
        %4872 = vmatprep.subr.mxu0 0.0
        %4873 = vmatpush1.msra.mxu0 0.0
        %4874 = vmatprep.subr.mxu0 0.0
        %4875 = vmatpush1.msra.mxu0 0.0
        %4876 = vmatprep.subr.mxu0 0.0
        %4877 = vmatpush1.msra.mxu0 0.0
        %4878 = vmatprep.subr.mxu0 0.0
        %4879 = vmatpush1.msra.mxu0 0.0
        %4880 = vmatprep.subr.mxu0 0.0
        %4881 = vmatpush1.msra.mxu0 0.0
        %4882 = vmatprep.subr.mxu0 0.0
        %4883 = vmatpush1.msra.mxu0 0.0
        %4884 = vmatprep.subr.mxu0 0.0
        %4885 = vmatpush1.msra.mxu0 0.0
        %4886 = vmatprep.subr.mxu0 0.0
        %4887 = vmatpush1.msra.mxu0 0.0
        %4888 = vmatprep.subr.mxu0 0.0
        %4889 = vmatpush1.msra.mxu0 0.0
        %4890 = vmatprep.subr.mxu0 0.0
        %4891 = vmatpush1.msra.mxu0 0.0
        %4892 = vmatprep.subr.mxu0 0.0
        %4893 = vmatpush1.msra.mxu0 0.0
        %4894 = vmatprep.subr.mxu0 0.0
        %4895 = vmatpush1.msra.mxu0 0.0
        %4896 = vmatprep.subr.mxu0 0.0
        %4897 = vmatpush1.msra.mxu0 0.0
        %4898 = vmatprep.subr.mxu0 0.0
        %4899 = vmatpush1.msra.mxu0 0.0
        %4900 = vmatprep.subr.mxu0 0.0
        %4901 = vmatpush1.msra.mxu0 0.0
        %4902 = vmatprep.subr.mxu0 0.0
        %4903 = vmatpush1.msra.mxu0 0.0
        %4904 = vmatprep.subr.mxu0 0.0
        %4905 = vmatpush1.msra.mxu0 0.0
        %4906 = vmatprep.subr.mxu0 0.0
        %4907 = vmatpush1.msra.mxu0 0.0
        %4908 = vmatprep.subr.mxu0 0.0
        %4909 = vmatpush1.msra.mxu0 0.0
        %4910 = vmatprep.subr.mxu0 0.0
        %4911 = vmatpush1.msra.mxu0 0.0
        %4912 = vmatprep.subr.mxu0 0.0
        %4913 = vmatpush1.msra.mxu0 0.0
        %4914 = vmatprep.subr.mxu0 0.0
        %4915 = vmatpush1.msra.mxu0 0.0
        %4916 = vmatprep.subr.mxu0 0.0
        %4917 = vmatpush1.msra.mxu0 0.0
        %4918 = vmatprep.subr.mxu0 0.0
        %4919 = vmatpush1.msra.mxu0 0.0
        %4920 = vmatprep.subr.mxu0 0.0
        %4921 = vmatpush1.msra.mxu0 0.0
        %4922 = vmatprep.subr.mxu0 0.0
        %4923 = vmatpush1.msra.mxu0 0.0
        %4924 = vmatprep.subr.mxu0 0.0
        %4925 = vmatpush1.msra.mxu0 0.0
        %4926 = vmatprep.mubr.f32.mxu0 0.0
        %4927 = vmatmul.mubr.f32.gmra.mrb[0].mxu0 %v2547
        %v4928 = vpop.f32.mrb[0].mxu0
        %v4929 = vadd.f32 0.0, %v4928
        %v4930 = vpop.f32.mrb[0].mxu0
        %v4931 = vadd.f32 0.0, %v4930
        %4932 = vmatprep.mubr.f32.mxu0 0.0
        %4933 = vmatmul.mubr.f32.gmra.mrb[0].mxu0 %v2550
        %v4934 = vpop.f32.mrb[0].mxu0
        %v4935 = vadd.f32 0.0, %v4934
        %v4936 = vpop.f32.mrb[0].mxu0
        %v4937 = vadd.f32 0.0, %v4936
        %4938 = vdwg.mxu0
        %4939 = vmatprep.subr.mxu0 %v2541
        %4940 = vmatpush1.msra.mxu0 %v2539
        %4941 = vmatprep.subr.mxu0 0.0
        %4942 = vmatpush1.msra.mxu0 0.0
        %4943 = vmatprep.subr.mxu0 0.0
        %4944 = vmatpush1.msra.mxu0 0.0
        %4945 = vmatprep.subr.mxu0 0.0
        %4946 = vmatpush1.msra.mxu0 0.0
        %4947 = vmatprep.subr.mxu0 0.0
        %4948 = vmatpush1.msra.mxu0 0.0
        %4949 = vmatprep.subr.mxu0 0.0
        %4950 = vmatpush1.msra.mxu0 0.0
        %4951 = vmatprep.subr.mxu0 0.0
        %4952 = vmatpush1.msra.mxu0 0.0
        %4953 = vmatprep.subr.mxu0 0.0
        %4954 = vmatpush1.msra.mxu0 0.0
        %4955 = vmatprep.subr.mxu0 0.0
        %4956 = vmatpush1.msra.mxu0 0.0
        %4957 = vmatprep.subr.mxu0 0.0
        %4958 = vmatpush1.msra.mxu0 0.0
        %4959 = vmatprep.subr.mxu0 0.0
        %4960 = vmatpush1.msra.mxu0 0.0
        %4961 = vmatprep.subr.mxu0 0.0
        %4962 = vmatpush1.msra.mxu0 0.0
        %4963 = vmatprep.subr.mxu0 0.0
        %4964 = vmatpush1.msra.mxu0 0.0
        %4965 = vmatprep.subr.mxu0 0.0
        %4966 = vmatpush1.msra.mxu0 0.0
        %4967 = vmatprep.subr.mxu0 0.0
        %4968 = vmatpush1.msra.mxu0 0.0
        %4969 = vmatprep.subr.mxu0 0.0
        %4970 = vmatpush1.msra.mxu0 0.0
        %4971 = vmatprep.subr.mxu0 0.0
        %4972 = vmatpush1.msra.mxu0 0.0
        %4973 = vmatprep.subr.mxu0 0.0
        %4974 = vmatpush1.msra.mxu0 0.0
        %4975 = vmatprep.subr.mxu0 0.0
        %4976 = vmatpush1.msra.mxu0 0.0
        %4977 = vmatprep.subr.mxu0 0.0
        %4978 = vmatpush1.msra.mxu0 0.0
        %4979 = vmatprep.subr.mxu0 0.0
        %4980 = vmatpush1.msra.mxu0 0.0
        %4981 = vmatprep.subr.mxu0 0.0
        %4982 = vmatpush1.msra.mxu0 0.0
        %4983 = vmatprep.subr.mxu0 0.0
        %4984 = vmatpush1.msra.mxu0 0.0
        %4985 = vmatprep.subr.mxu0 0.0
        %4986 = vmatpush1.msra.mxu0 0.0
        %4987 = vmatprep.subr.mxu0 0.0
        %4988 = vmatpush1.msra.mxu0 0.0
        %4989 = vmatprep.subr.mxu0 0.0
        %4990 = vmatpush1.msra.mxu0 0.0
        %4991 = vmatprep.subr.mxu0 0.0
        %4992 = vmatpush1.msra.mxu0 0.0
        %4993 = vmatprep.subr.mxu0 0.0
        %4994 = vmatpush1.msra.mxu0 0.0
        %4995 = vmatprep.subr.mxu0 0.0
        %4996 = vmatpush1.msra.mxu0 0.0
        %4997 = vmatprep.subr.mxu0 0.0
        %4998 = vmatpush1.msra.mxu0 0.0
        %4999 = vmatprep.subr.mxu0 0.0
        %5000 = vmatpush1.msra.mxu0 0.0
        %5001 = vmatprep.subr.mxu0 0.0
        %5002 = vmatpush1.msra.mxu0 0.0
        %5003 = vmatprep.mubr.f32.mxu0 0.0
        %5004 = vmatmul.mubr.f32.gmra.mrb[0].mxu0 %v2547
        %v5005 = vpop.f32.mrb[0].mxu0
        %v5006 = vadd.f32 0.0, %v5005
        %v5007 = vpop.f32.mrb[0].mxu0
        %v5008 = vadd.f32 0.0, %v5007
        %5009 = vmatprep.mubr.f32.mxu0 0.0
        %5010 = vmatmul.mubr.f32.gmra.mrb[0].mxu0 %v2550
        %v5011 = vpop.f32.mrb[0].mxu0
        %v5012 = vadd.f32 0.0, %v5011
        %v5013 = vpop.f32.mrb[0].mxu0
        %v5014 = vadd.f32 0.0, %v5013
        %5015 = vdwg.mxu0
        %v5016 = vmul.f32 %v2696, 0.0
        %v5017 = vmul.f32 %v2698, 0.0
        %v5018 = vmul.f32 %v2702, 0.0
        %v5019 = vmul.f32 %v2704, 0.0
        %v5020 = vmul.f32 %v3312, 0.0
        %v5021 = vmul.f32 %v3314, 0.0
        %v5022 = vmul.f32 %v3318, 0.0
        %v5023 = vmul.f32 %v3320, 0.0
        %v5024 = vmul.f32 %v3928, 0.0
        %v5025 = vmul.f32 %v3930, 0.0
        %v5026 = vmul.f32 %v3934, 0.0
        %v5027 = vmul.f32 %v3936, 0.0
        %v5028 = vmul.f32 %v4544, 0.0
        %v5029 = vmul.f32 %v4546, 0.0
        %v5030 = vmul.f32 %v4550, 0.0
        %v5031 = vmul.f32 %v4552, 0.0
        %v5032 = vadd.f32 %v2619, %v5016
        %v5033 = vadd.f32 %v2621, %v5017
        %v5034 = vadd.f32 %v2625, %v5018
        %v5035 = vadd.f32 %v2627, %v5019
        %v5036 = vadd.f32 %v3235, %v5020
        %v5037 = vadd.f32 %v3237, %v5021
        %v5038 = vadd.f32 %v3241, %v5022
        %v5039 = vadd.f32 %v3243, %v5023
        %v5040 = vadd.f32 %v3851, %v5024
        %v5041 = vadd.f32 %v3853, %v5025
        %v5042 = vadd.f32 %v3857, %v5026
        %v5043 = vadd.f32 %v3859, %v5027
        %v5044 = vadd.f32 %v4467, %v5028
        %v5045 = vadd.f32 %v4469, %v5029
        %v5046 = vadd.f32 %v4473, %v5030
        %v5047 = vadd.f32 %v4475, %v5031
        %5048 = vst [vmem:[%s204] sm:$0xff] %v5032
        %5049 = vst [vmem:[%s204 + $0x8] sm:$0xff] %v5033
        %5050 = vst [vmem:[%s204 + $0x10] sm:$0xff] %v5034
        %5051 = vst [vmem:[%s204 + $0x18] sm:$0xff] %v5035
        %5052 = vst [vmem:[%s204 + $0x200] sm:$0xff] %v5036
        %5053 = vst [vmem:[%s204 + $0x208] sm:$0xff] %v5037
        %5054 = vst [vmem:[%s204 + $0x210] sm:$0xff] %v5038
        %5055 = vst [vmem:[%s204 + $0x218] sm:$0xff] %v5039
        %5056 = vst [vmem:[%s204 + $0x400] sm:$0xff] %v5040
        %5057 = vst [vmem:[%s204 + $0x408] sm:$0xff] %v5041
        %5058 = vst [vmem:[%s204 + $0x410] sm:$0xff] %v5042
        %5059 = vst [vmem:[%s204 + $0x418] sm:$0xff] %v5043
        %5060 = vst [vmem:[%s204 + $0x600] sm:$0xff] %v5044
        %5061 = vst [vmem:[%s204 + $0x608] sm:$0xff] %v5045
        %5062 = vst [vmem:[%s204 + $0x610] sm:$0xff] %v5046
        %5063 = vst [vmem:[%s204 + $0x618] sm:$0xff] %v5047
        %v5064 = vmul.f32 %v2619, 0.53333336
        %v5065 = vmul.f32 %v2621, 0.53333336
        %v5066 = vmul.f32 %v2625, 0.53333336
        %v5067 = vmul.f32 %v2627, 0.53333336
        %v5068 = vmul.f32 %v3235, 0.53333336
        %v5069 = vmul.f32 %v3237, 0.53333336
        %v5070 = vmul.f32 %v3241, 0.53333336
        %v5071 = vmul.f32 %v3243, 0.53333336
        %v5072 = vmul.f32 %v3851, 0.53333336
        %v5073 = vmul.f32 %v3853, 0.53333336
        %v5074 = vmul.f32 %v3857, 0.53333336
        %v5075 = vmul.f32 %v3859, 0.53333336
        %v5076 = vmul.f32 %v4467, 0.53333336
        %v5077 = vmul.f32 %v4469, 0.53333336
        %v5078 = vmul.f32 %v4473, 0.53333336
        %v5079 = vmul.f32 %v4475, 0.53333336
        %v5080 = vmul.f32 %v2696, 0.46666667
        %v5081 = vmul.f32 %v2698, 0.46666667
        %v5082 = vmul.f32 %v2702, 0.46666667
        %v5083 = vmul.f32 %v2704, 0.46666667
        %v5084 = vmul.f32 %v3312, 0.46666667
        %v5085 = vmul.f32 %v3314, 0.46666667
        %v5086 = vmul.f32 %v3318, 0.46666667
        %v5087 = vmul.f32 %v3320, 0.46666667
        %v5088 = vmul.f32 %v3928, 0.46666667
        %v5089 = vmul.f32 %v3930, 0.46666667
        %v5090 = vmul.f32 %v3934, 0.46666667
        %v5091 = vmul.f32 %v3936, 0.46666667
        %v5092 = vmul.f32 %v4544, 0.46666667
        %v5093 = vmul.f32 %v4546, 0.46666667
        %v5094 = vmul.f32 %v4550, 0.46666667
        %v5095 = vmul.f32 %v4552, 0.46666667
        %v5096 = vadd.f32 %v5064, %v5080
        %v5097 = vadd.f32 %v5065, %v5081
        %v5098 = vadd.f32 %v5066, %v5082
        %v5099 = vadd.f32 %v5067, %v5083
        %v5100 = vadd.f32 %v5068, %v5084
        %v5101 = vadd.f32 %v5069, %v5085
        %v5102 = vadd.f32 %v5070, %v5086
        %v5103 = vadd.f32 %v5071, %v5087
        %v5104 = vadd.f32 %v5072, %v5088
        %v5105 = vadd.f32 %v5073, %v5089
        %v5106 = vadd.f32 %v5074, %v5090
        %v5107 = vadd.f32 %v5075, %v5091
        %v5108 = vadd.f32 %v5076, %v5092
        %v5109 = vadd.f32 %v5077, %v5093
        %v5110 = vadd.f32 %v5078, %v5094
        %v5111 = vadd.f32 %v5079, %v5095
        %s5112 = scalar_lea.vmem %s204, 32 [#allocation7]
        %5113 = vst [vmem:[%s5112] sm:$0xff] %v5096
        %5114 = vst [vmem:[%s5112 + $0x8] sm:$0xff] %v5097
        %5115 = vst [vmem:[%s5112 + $0x10] sm:$0xff] %v5098
        %5116 = vst [vmem:[%s5112 + $0x18] sm:$0xff] %v5099
        %5117 = vst [vmem:[%s5112 + $0x200] sm:$0xff] %v5100
        %5118 = vst [vmem:[%s5112 + $0x208] sm:$0xff] %v5101
        %5119 = vst [vmem:[%s5112 + $0x210] sm:$0xff] %v5102
        %5120 = vst [vmem:[%s5112 + $0x218] sm:$0xff] %v5103
        %5121 = vst [vmem:[%s5112 + $0x400] sm:$0xff] %v5104
        %5122 = vst [vmem:[%s5112 + $0x408] sm:$0xff] %v5105
        %5123 = vst [vmem:[%s5112 + $0x410] sm:$0xff] %v5106
        %5124 = vst [vmem:[%s5112 + $0x418] sm:$0xff] %v5107
        %5125 = vst [vmem:[%s5112 + $0x600] sm:$0xff] %v5108
        %5126 = vst [vmem:[%s5112 + $0x608] sm:$0xff] %v5109
        %5127 = vst [vmem:[%s5112 + $0x610] sm:$0xff] %v5110
        %5128 = vst [vmem:[%s5112 + $0x618] sm:$0xff] %v5111
        %v5129 = vmul.f32 %v2619, 0.06666667
        %v5130 = vmul.f32 %v2621, 0.06666667
        %v5131 = vmul.f32 %v2625, 0.06666667
        %v5132 = vmul.f32 %v2627, 0.06666667
        %v5133 = vmul.f32 %v3235, 0.06666667
        %v5134 = vmul.f32 %v3237, 0.06666667
        %v5135 = vmul.f32 %v3241, 0.06666667
        %v5136 = vmul.f32 %v3243, 0.06666667
        %v5137 = vmul.f32 %v3851, 0.06666667
        %v5138 = vmul.f32 %v3853, 0.06666667
        %v5139 = vmul.f32 %v3857, 0.06666667
        %v5140 = vmul.f32 %v3859, 0.06666667
        %v5141 = vmul.f32 %v4467, 0.06666667
        %v5142 = vmul.f32 %v4469, 0.06666667
        %v5143 = vmul.f32 %v4473, 0.06666667
        %v5144 = vmul.f32 %v4475, 0.06666667
        %v5145 = vmul.f32 %v2696, 0.93333334
        %v5146 = vmul.f32 %v2698, 0.93333334
        %v5147 = vmul.f32 %v2702, 0.93333334
        %v5148 = vmul.f32 %v2704, 0.93333334
        %v5149 = vmul.f32 %v3312, 0.93333334
        %v5150 = vmul.f32 %v3314, 0.93333334
        %v5151 = vmul.f32 %v3318, 0.93333334
        %v5152 = vmul.f32 %v3320, 0.93333334
        %v5153 = vmul.f32 %v3928, 0.93333334
        %v5154 = vmul.f32 %v3930, 0.93333334
        %v5155 = vmul.f32 %v3934, 0.93333334
        %v5156 = vmul.f32 %v3936, 0.93333334
        %v5157 = vmul.f32 %v4544, 0.93333334
        %v5158 = vmul.f32 %v4546, 0.93333334
        %v5159 = vmul.f32 %v4550, 0.93333334
        %v5160 = vmul.f32 %v4552, 0.93333334
        %v5161 = vadd.f32 %v5129, %v5145
        %v5162 = vadd.f32 %v5130, %v5146
        %v5163 = vadd.f32 %v5131, %v5147
        %v5164 = vadd.f32 %v5132, %v5148
        %v5165 = vadd.f32 %v5133, %v5149
        %v5166 = vadd.f32 %v5134, %v5150
        %v5167 = vadd.f32 %v5135, %v5151
        %v5168 = vadd.f32 %v5136, %v5152
        %v5169 = vadd.f32 %v5137, %v5153
        %v5170 = vadd.f32 %v5138, %v5154
        %v5171 = vadd.f32 %v5139, %v5155
        %v5172 = vadd.f32 %v5140, %v5156
        %v5173 = vadd.f32 %v5141, %v5157
        %v5174 = vadd.f32 %v5142, %v5158
        %v5175 = vadd.f32 %v5143, %v5159
        %v5176 = vadd.f32 %v5144, %v5160
        %s5177 = scalar_lea.vmem %s204, 64 [#allocation7]
        %5178 = vst [vmem:[%s5177] sm:$0xff] %v5161
        %5179 = vst [vmem:[%s5177 + $0x8] sm:$0xff] %v5162
        %5180 = vst [vmem:[%s5177 + $0x10] sm:$0xff] %v5163
        %5181 = vst [vmem:[%s5177 + $0x18] sm:$0xff] %v5164
        %5182 = vst [vmem:[%s5177 + $0x200] sm:$0xff] %v5165
        %5183 = vst [vmem:[%s5177 + $0x208] sm:$0xff] %v5166
        %5184 = vst [vmem:[%s5177 + $0x210] sm:$0xff] %v5167
        %5185 = vst [vmem:[%s5177 + $0x218] sm:$0xff] %v5168
        %5186 = vst [vmem:[%s5177 + $0x400] sm:$0xff] %v5169
        %5187 = vst [vmem:[%s5177 + $0x408] sm:$0xff] %v5170
        %5188 = vst [vmem:[%s5177 + $0x410] sm:$0xff] %v5171
        %5189 = vst [vmem:[%s5177 + $0x418] sm:$0xff] %v5172
        %5190 = vst [vmem:[%s5177 + $0x600] sm:$0xff] %v5173
        %5191 = vst [vmem:[%s5177 + $0x608] sm:$0xff] %v5174
        %5192 = vst [vmem:[%s5177 + $0x610] sm:$0xff] %v5175
        %5193 = vst [vmem:[%s5177 + $0x618] sm:$0xff] %v5176
        %v5194 = vmul.f32 %v2696, 0.6
        %v5195 = vmul.f32 %v2698, 0.6
        %v5196 = vmul.f32 %v2702, 0.6
        %v5197 = vmul.f32 %v2704, 0.6
        %v5198 = vmul.f32 %v3312, 0.6
        %v5199 = vmul.f32 %v3314, 0.6
        %v5200 = vmul.f32 %v3318, 0.6
        %v5201 = vmul.f32 %v3320, 0.6
        %v5202 = vmul.f32 %v3928, 0.6
        %v5203 = vmul.f32 %v3930, 0.6
        %v5204 = vmul.f32 %v3934, 0.6
        %v5205 = vmul.f32 %v3936, 0.6
        %v5206 = vmul.f32 %v4544, 0.6
        %v5207 = vmul.f32 %v4546, 0.6
        %v5208 = vmul.f32 %v4550, 0.6
        %v5209 = vmul.f32 %v4552, 0.6
        %v5210 = vmul.f32 %v2773, 0.4
        %v5211 = vmul.f32 %v2775, 0.4
        %v5212 = vmul.f32 %v2779, 0.4
        %v5213 = vmul.f32 %v2781, 0.4
        %v5214 = vmul.f32 %v3389, 0.4
        %v5215 = vmul.f32 %v3391, 0.4
        %v5216 = vmul.f32 %v3395, 0.4
        %v5217 = vmul.f32 %v3397, 0.4
        %v5218 = vmul.f32 %v4005, 0.4
        %v5219 = vmul.f32 %v4007, 0.4
        %v5220 = vmul.f32 %v4011, 0.4
        %v5221 = vmul.f32 %v4013, 0.4
        %v5222 = vmul.f32 %v4621, 0.4
        %v5223 = vmul.f32 %v4623, 0.4
        %v5224 = vmul.f32 %v4627, 0.4
        %v5225 = vmul.f32 %v4629, 0.4
        %v5226 = vadd.f32 %v5194, %v5210
        %v5227 = vadd.f32 %v5195, %v5211
        %v5228 = vadd.f32 %v5196, %v5212
        %v5229 = vadd.f32 %v5197, %v5213
        %v5230 = vadd.f32 %v5198, %v5214
        %v5231 = vadd.f32 %v5199, %v5215
        %v5232 = vadd.f32 %v5200, %v5216
        %v5233 = vadd.f32 %v5201, %v5217
        %v5234 = vadd.f32 %v5202, %v5218
        %v5235 = vadd.f32 %v5203, %v5219
        %v5236 = vadd.f32 %v5204, %v5220
        %v5237 = vadd.f32 %v5205, %v5221
        %v5238 = vadd.f32 %v5206, %v5222
        %v5239 = vadd.f32 %v5207, %v5223
        %v5240 = vadd.f32 %v5208, %v5224
        %v5241 = vadd.f32 %v5209, %v5225
        %s5242 = scalar_lea.vmem %s204, 96 [#allocation7]
        %5243 = vst [vmem:[%s5242] sm:$0xff] %v5226
        %5244 = vst [vmem:[%s5242 + $0x8] sm:$0xff] %v5227
        %5245 = vst [vmem:[%s5242 + $0x10] sm:$0xff] %v5228
        %5246 = vst [vmem:[%s5242 + $0x18] sm:$0xff] %v5229
        %5247 = vst [vmem:[%s5242 + $0x200] sm:$0xff] %v5230
        %5248 = vst [vmem:[%s5242 + $0x208] sm:$0xff] %v5231
        %5249 = vst [vmem:[%s5242 + $0x210] sm:$0xff] %v5232
        %5250 = vst [vmem:[%s5242 + $0x218] sm:$0xff] %v5233
        %5251 = vst [vmem:[%s5242 + $0x400] sm:$0xff] %v5234
        %5252 = vst [vmem:[%s5242 + $0x408] sm:$0xff] %v5235
        %5253 = vst [vmem:[%s5242 + $0x410] sm:$0xff] %v5236
        %5254 = vst [vmem:[%s5242 + $0x418] sm:$0xff] %v5237
        %5255 = vst [vmem:[%s5242 + $0x600] sm:$0xff] %v5238
        %5256 = vst [vmem:[%s5242 + $0x608] sm:$0xff] %v5239
        %5257 = vst [vmem:[%s5242 + $0x610] sm:$0xff] %v5240
        %5258 = vst [vmem:[%s5242 + $0x618] sm:$0xff] %v5241
        %v5259 = vmul.f32 %v2696, 0.13333334
        %v5260 = vmul.f32 %v2698, 0.13333334
        %v5261 = vmul.f32 %v2702, 0.13333334
        %v5262 = vmul.f32 %v2704, 0.13333334
        %v5263 = vmul.f32 %v3312, 0.13333334
        %v5264 = vmul.f32 %v3314, 0.13333334
        %v5265 = vmul.f32 %v3318, 0.13333334
        %v5266 = vmul.f32 %v3320, 0.13333334
        %v5267 = vmul.f32 %v3928, 0.13333334
        %v5268 = vmul.f32 %v3930, 0.13333334
        %v5269 = vmul.f32 %v3934, 0.13333334
        %v5270 = vmul.f32 %v3936, 0.13333334
        %v5271 = vmul.f32 %v4544, 0.13333334
        %v5272 = vmul.f32 %v4546, 0.13333334
        %v5273 = vmul.f32 %v4550, 0.13333334
        %v5274 = vmul.f32 %v4552, 0.13333334
        %v5275 = vmul.f32 %v2773, 0.8666667
        %v5276 = vmul.f32 %v2775, 0.8666667
        %v5277 = vmul.f32 %v2779, 0.8666667
        %v5278 = vmul.f32 %v2781, 0.8666667
        %v5279 = vmul.f32 %v3389, 0.8666667
        %v5280 = vmul.f32 %v3391, 0.8666667
        %v5281 = vmul.f32 %v3395, 0.8666667
        %v5282 = vmul.f32 %v3397, 0.8666667
        %v5283 = vmul.f32 %v4005, 0.8666667
        %v5284 = vmul.f32 %v4007, 0.8666667
        %v5285 = vmul.f32 %v4011, 0.8666667
        %v5286 = vmul.f32 %v4013, 0.8666667
        %v5287 = vmul.f32 %v4621, 0.8666667
        %v5288 = vmul.f32 %v4623, 0.8666667
        %v5289 = vmul.f32 %v4627, 0.8666667
        %v5290 = vmul.f32 %v4629, 0.8666667
        %v5291 = vadd.f32 %v5259, %v5275
        %v5292 = vadd.f32 %v5260, %v5276
        %v5293 = vadd.f32 %v5261, %v5277
        %v5294 = vadd.f32 %v5262, %v5278
        %v5295 = vadd.f32 %v5263, %v5279
        %v5296 = vadd.f32 %v5264, %v5280
        %v5297 = vadd.f32 %v5265, %v5281
        %v5298 = vadd.f32 %v5266, %v5282
        %v5299 = vadd.f32 %v5267, %v5283
        %v5300 = vadd.f32 %v5268, %v5284
        %v5301 = vadd.f32 %v5269, %v5285
        %v5302 = vadd.f32 %v5270, %v5286
        %v5303 = vadd.f32 %v5271, %v5287
        %v5304 = vadd.f32 %v5272, %v5288
        %v5305 = vadd.f32 %v5273, %v5289
        %v5306 = vadd.f32 %v5274, %v5290
        %s5307 = scalar_lea.vmem %s204, 128 [#allocation7]
        %5308 = vst [vmem:[%s5307] sm:$0xff] %v5291
        %5309 = vst [vmem:[%s5307 + $0x8] sm:$0xff] %v5292
        %5310 = vst [vmem:[%s5307 + $0x10] sm:$0xff] %v5293
        %5311 = vst [vmem:[%s5307 + $0x18] sm:$0xff] %v5294
        %5312 = vst [vmem:[%s5307 + $0x200] sm:$0xff] %v5295
        %5313 = vst [vmem:[%s5307 + $0x208] sm:$0xff] %v5296
        %5314 = vst [vmem:[%s5307 + $0x210] sm:$0xff] %v5297
        %5315 = vst [vmem:[%s5307 + $0x218] sm:$0xff] %v5298
        %5316 = vst [vmem:[%s5307 + $0x400] sm:$0xff] %v5299
        %5317 = vst [vmem:[%s5307 + $0x408] sm:$0xff] %v5300
        %5318 = vst [vmem:[%s5307 + $0x410] sm:$0xff] %v5301
        %5319 = vst [vmem:[%s5307 + $0x418] sm:$0xff] %v5302
        %5320 = vst [vmem:[%s5307 + $0x600] sm:$0xff] %v5303
        %5321 = vst [vmem:[%s5307 + $0x608] sm:$0xff] %v5304
        %5322 = vst [vmem:[%s5307 + $0x610] sm:$0xff] %v5305
        %5323 = vst [vmem:[%s5307 + $0x618] sm:$0xff] %v5306
        %v5324 = vmul.f32 %v2773, 0.6666667
        %v5325 = vmul.f32 %v2775, 0.6666667
        %v5326 = vmul.f32 %v2779, 0.6666667
        %v5327 = vmul.f32 %v2781, 0.6666667
        %v5328 = vmul.f32 %v3389, 0.6666667
        %v5329 = vmul.f32 %v3391, 0.6666667
        %v5330 = vmul.f32 %v3395, 0.6666667
        %v5331 = vmul.f32 %v3397, 0.6666667
        %v5332 = vmul.f32 %v4005, 0.6666667
        %v5333 = vmul.f32 %v4007, 0.6666667
        %v5334 = vmul.f32 %v4011, 0.6666667
        %v5335 = vmul.f32 %v4013, 0.6666667
        %v5336 = vmul.f32 %v4621, 0.6666667
        %v5337 = vmul.f32 %v4623, 0.6666667
        %v5338 = vmul.f32 %v4627, 0.6666667
        %v5339 = vmul.f32 %v4629, 0.6666667
        %v5340 = vmul.f32 %v2850, 0.33333334
        %v5341 = vmul.f32 %v2852, 0.33333334
        %v5342 = vmul.f32 %v2856, 0.33333334
        %v5343 = vmul.f32 %v2858, 0.33333334
        %v5344 = vmul.f32 %v3466, 0.33333334
        %v5345 = vmul.f32 %v3468, 0.33333334
        %v5346 = vmul.f32 %v3472, 0.33333334
        %v5347 = vmul.f32 %v3474, 0.33333334
        %v5348 = vmul.f32 %v4082, 0.33333334
        %v5349 = vmul.f32 %v4084, 0.33333334
        %v5350 = vmul.f32 %v4088, 0.33333334
        %v5351 = vmul.f32 %v4090, 0.33333334
        %v5352 = vmul.f32 %v4698, 0.33333334
        %v5353 = vmul.f32 %v4700, 0.33333334
        %v5354 = vmul.f32 %v4704, 0.33333334
        %v5355 = vmul.f32 %v4706, 0.33333334
        %v5356 = vadd.f32 %v5324, %v5340
        %v5357 = vadd.f32 %v5325, %v5341
        %v5358 = vadd.f32 %v5326, %v5342
        %v5359 = vadd.f32 %v5327, %v5343
        %v5360 = vadd.f32 %v5328, %v5344
        %v5361 = vadd.f32 %v5329, %v5345
        %v5362 = vadd.f32 %v5330, %v5346
        %v5363 = vadd.f32 %v5331, %v5347
        %v5364 = vadd.f32 %v5332, %v5348
        %v5365 = vadd.f32 %v5333, %v5349
        %v5366 = vadd.f32 %v5334, %v5350
        %v5367 = vadd.f32 %v5335, %v5351
        %v5368 = vadd.f32 %v5336, %v5352
        %v5369 = vadd.f32 %v5337, %v5353
        %v5370 = vadd.f32 %v5338, %v5354
        %v5371 = vadd.f32 %v5339, %v5355
        %s5372 = scalar_lea.vmem %s204, 160 [#allocation7]
        %5373 = vst [vmem:[%s5372] sm:$0xff] %v5356
        %5374 = vst [vmem:[%s5372 + $0x8] sm:$0xff] %v5357
        %5375 = vst [vmem:[%s5372 + $0x10] sm:$0xff] %v5358
        %5376 = vst [vmem:[%s5372 + $0x18] sm:$0xff] %v5359
        %5377 = vst [vmem:[%s5372 + $0x200] sm:$0xff] %v5360
        %5378 = vst [vmem:[%s5372 + $0x208] sm:$0xff] %v5361
        %5379 = vst [vmem:[%s5372 + $0x210] sm:$0xff] %v5362
        %5380 = vst [vmem:[%s5372 + $0x218] sm:$0xff] %v5363
        %5381 = vst [vmem:[%s5372 + $0x400] sm:$0xff] %v5364
        %5382 = vst [vmem:[%s5372 + $0x408] sm:$0xff] %v5365
        %5383 = vst [vmem:[%s5372 + $0x410] sm:$0xff] %v5366
        %5384 = vst [vmem:[%s5372 + $0x418] sm:$0xff] %v5367
        %5385 = vst [vmem:[%s5372 + $0x600] sm:$0xff] %v5368
        %5386 = vst [vmem:[%s5372 + $0x608] sm:$0xff] %v5369
        %5387 = vst [vmem:[%s5372 + $0x610] sm:$0xff] %v5370
        %5388 = vst [vmem:[%s5372 + $0x618] sm:$0xff] %v5371
        %v5389 = vmul.f32 %v2773, 0.2
        %v5390 = vmul.f32 %v2775, 0.2
        %v5391 = vmul.f32 %v2779, 0.2
        %v5392 = vmul.f32 %v2781, 0.2
        %v5393 = vmul.f32 %v3389, 0.2
        %v5394 = vmul.f32 %v3391, 0.2
        %v5395 = vmul.f32 %v3395, 0.2
        %v5396 = vmul.f32 %v3397, 0.2
        %v5397 = vmul.f32 %v4005, 0.2
        %v5398 = vmul.f32 %v4007, 0.2
        %v5399 = vmul.f32 %v4011, 0.2
        %v5400 = vmul.f32 %v4013, 0.2
        %v5401 = vmul.f32 %v4621, 0.2
        %v5402 = vmul.f32 %v4623, 0.2
        %v5403 = vmul.f32 %v4627, 0.2
        %v5404 = vmul.f32 %v4629, 0.2
        %v5405 = vmul.f32 %v2850, 0.8
        %v5406 = vmul.f32 %v2852, 0.8
        %v5407 = vmul.f32 %v2856, 0.8
        %v5408 = vmul.f32 %v2858, 0.8
        %v5409 = vmul.f32 %v3466, 0.8
        %v5410 = vmul.f32 %v3468, 0.8
        %v5411 = vmul.f32 %v3472, 0.8
        %v5412 = vmul.f32 %v3474, 0.8
        %v5413 = vmul.f32 %v4082, 0.8
        %v5414 = vmul.f32 %v4084, 0.8
        %v5415 = vmul.f32 %v4088, 0.8
        %v5416 = vmul.f32 %v4090, 0.8
        %v5417 = vmul.f32 %v4698, 0.8
        %v5418 = vmul.f32 %v4700, 0.8
        %v5419 = vmul.f32 %v4704, 0.8
        %v5420 = vmul.f32 %v4706, 0.8
        %v5421 = vadd.f32 %v5389, %v5405
        %v5422 = vadd.f32 %v5390, %v5406
        %v5423 = vadd.f32 %v5391, %v5407
        %v5424 = vadd.f32 %v5392, %v5408
        %v5425 = vadd.f32 %v5393, %v5409
        %v5426 = vadd.f32 %v5394, %v5410
        %v5427 = vadd.f32 %v5395, %v5411
        %v5428 = vadd.f32 %v5396, %v5412
        %v5429 = vadd.f32 %v5397, %v5413
        %v5430 = vadd.f32 %v5398, %v5414
        %v5431 = vadd.f32 %v5399, %v5415
        %v5432 = vadd.f32 %v5400, %v5416
        %v5433 = vadd.f32 %v5401, %v5417
        %v5434 = vadd.f32 %v5402, %v5418
        %v5435 = vadd.f32 %v5403, %v5419
        %v5436 = vadd.f32 %v5404, %v5420
        %s5437 = scalar_lea.vmem %s204, 192 [#allocation7]
        %5438 = vst [vmem:[%s5437] sm:$0xff] %v5421
        %5439 = vst [vmem:[%s5437 + $0x8] sm:$0xff] %v5422
        %5440 = vst [vmem:[%s5437 + $0x10] sm:$0xff] %v5423
        %5441 = vst [vmem:[%s5437 + $0x18] sm:$0xff] %v5424
        %5442 = vst [vmem:[%s5437 + $0x200] sm:$0xff] %v5425
        %5443 = vst [vmem:[%s5437 + $0x208] sm:$0xff] %v5426
        %5444 = vst [vmem:[%s5437 + $0x210] sm:$0xff] %v5427
        %5445 = vst [vmem:[%s5437 + $0x218] sm:$0xff] %v5428
        %5446 = vst [vmem:[%s5437 + $0x400] sm:$0xff] %v5429
        %5447 = vst [vmem:[%s5437 + $0x408] sm:$0xff] %v5430
        %5448 = vst [vmem:[%s5437 + $0x410] sm:$0xff] %v5431
        %5449 = vst [vmem:[%s5437 + $0x418] sm:$0xff] %v5432
        %5450 = vst [vmem:[%s5437 + $0x600] sm:$0xff] %v5433
        %5451 = vst [vmem:[%s5437 + $0x608] sm:$0xff] %v5434
        %5452 = vst [vmem:[%s5437 + $0x610] sm:$0xff] %v5435
        %5453 = vst [vmem:[%s5437 + $0x618] sm:$0xff] %v5436
        %v5454 = vmul.f32 %v2850, 0.73333335
        %v5455 = vmul.f32 %v2852, 0.73333335
        %v5456 = vmul.f32 %v2856, 0.73333335
        %v5457 = vmul.f32 %v2858, 0.73333335
        %v5458 = vmul.f32 %v3466, 0.73333335
        %v5459 = vmul.f32 %v3468, 0.73333335
        %v5460 = vmul.f32 %v3472, 0.73333335
        %v5461 = vmul.f32 %v3474, 0.73333335
        %v5462 = vmul.f32 %v4082, 0.73333335
        %v5463 = vmul.f32 %v4084, 0.73333335
        %v5464 = vmul.f32 %v4088, 0.73333335
        %v5465 = vmul.f32 %v4090, 0.73333335
        %v5466 = vmul.f32 %v4698, 0.73333335
        %v5467 = vmul.f32 %v4700, 0.73333335
        %v5468 = vmul.f32 %v4704, 0.73333335
        %v5469 = vmul.f32 %v4706, 0.73333335
        %v5470 = vmul.f32 %v2927, 0.26666668
        %v5471 = vmul.f32 %v2929, 0.26666668
        %v5472 = vmul.f32 %v2933, 0.26666668
        %v5473 = vmul.f32 %v2935, 0.26666668
        %v5474 = vmul.f32 %v3543, 0.26666668
        %v5475 = vmul.f32 %v3545, 0.26666668
        %v5476 = vmul.f32 %v3549, 0.26666668
        %v5477 = vmul.f32 %v3551, 0.26666668
        %v5478 = vmul.f32 %v4159, 0.26666668
        %v5479 = vmul.f32 %v4161, 0.26666668
        %v5480 = vmul.f32 %v4165, 0.26666668
        %v5481 = vmul.f32 %v4167, 0.26666668
        %v5482 = vmul.f32 %v4775, 0.26666668
        %v5483 = vmul.f32 %v4777, 0.26666668
        %v5484 = vmul.f32 %v4781, 0.26666668
        %v5485 = vmul.f32 %v4783, 0.26666668
        %v5486 = vadd.f32 %v5454, %v5470
        %v5487 = vadd.f32 %v5455, %v5471
        %v5488 = vadd.f32 %v5456, %v5472
        %v5489 = vadd.f32 %v5457, %v5473
        %v5490 = vadd.f32 %v5458, %v5474
        %v5491 = vadd.f32 %v5459, %v5475
        %v5492 = vadd.f32 %v5460, %v5476
        %v5493 = vadd.f32 %v5461, %v5477
        %v5494 = vadd.f32 %v5462, %v5478
        %v5495 = vadd.f32 %v5463, %v5479
        %v5496 = vadd.f32 %v5464, %v5480
        %v5497 = vadd.f32 %v5465, %v5481
        %v5498 = vadd.f32 %v5466, %v5482
        %v5499 = vadd.f32 %v5467, %v5483
        %v5500 = vadd.f32 %v5468, %v5484
        %v5501 = vadd.f32 %v5469, %v5485
        %s5502 = scalar_lea.vmem %s204, 224 [#allocation7]
        %5503 = vst [vmem:[%s5502] sm:$0xff] %v5486
        %5504 = vst [vmem:[%s5502 + $0x8] sm:$0xff] %v5487
        %5505 = vst [vmem:[%s5502 + $0x10] sm:$0xff] %v5488
        %5506 = vst [vmem:[%s5502 + $0x18] sm:$0xff] %v5489
        %5507 = vst [vmem:[%s5502 + $0x200] sm:$0xff] %v5490
        %5508 = vst [vmem:[%s5502 + $0x208] sm:$0xff] %v5491
        %5509 = vst [vmem:[%s5502 + $0x210] sm:$0xff] %v5492
        %5510 = vst [vmem:[%s5502 + $0x218] sm:$0xff] %v5493
        %5511 = vst [vmem:[%s5502 + $0x400] sm:$0xff] %v5494
        %5512 = vst [vmem:[%s5502 + $0x408] sm:$0xff] %v5495
        %5513 = vst [vmem:[%s5502 + $0x410] sm:$0xff] %v5496
        %5514 = vst [vmem:[%s5502 + $0x418] sm:$0xff] %v5497
        %5515 = vst [vmem:[%s5502 + $0x600] sm:$0xff] %v5498
        %5516 = vst [vmem:[%s5502 + $0x608] sm:$0xff] %v5499
        %5517 = vst [vmem:[%s5502 + $0x610] sm:$0xff] %v5500
        %5518 = vst [vmem:[%s5502 + $0x618] sm:$0xff] %v5501
        %v5519 = vmul.f32 %v2850, 0.26666668
        %v5520 = vmul.f32 %v2852, 0.26666668
        %v5521 = vmul.f32 %v2856, 0.26666668
        %v5522 = vmul.f32 %v2858, 0.26666668
        %v5523 = vmul.f32 %v3466, 0.26666668
        %v5524 = vmul.f32 %v3468, 0.26666668
        %v5525 = vmul.f32 %v3472, 0.26666668
        %v5526 = vmul.f32 %v3474, 0.26666668
        %v5527 = vmul.f32 %v4082, 0.26666668
        %v5528 = vmul.f32 %v4084, 0.26666668
        %v5529 = vmul.f32 %v4088, 0.26666668
        %v5530 = vmul.f32 %v4090, 0.26666668
        %v5531 = vmul.f32 %v4698, 0.26666668
        %v5532 = vmul.f32 %v4700, 0.26666668
        %v5533 = vmul.f32 %v4704, 0.26666668
        %v5534 = vmul.f32 %v4706, 0.26666668
        %v5535 = vmul.f32 %v2927, 0.73333335
        %v5536 = vmul.f32 %v2929, 0.73333335
        %v5537 = vmul.f32 %v2933, 0.73333335
        %v5538 = vmul.f32 %v2935, 0.73333335
        %v5539 = vmul.f32 %v3543, 0.73333335
        %v5540 = vmul.f32 %v3545, 0.73333335
        %v5541 = vmul.f32 %v3549, 0.73333335
        %v5542 = vmul.f32 %v3551, 0.73333335
        %v5543 = vmul.f32 %v4159, 0.73333335
        %v5544 = vmul.f32 %v4161, 0.73333335
        %v5545 = vmul.f32 %v4165, 0.73333335
        %v5546 = vmul.f32 %v4167, 0.73333335
        %v5547 = vmul.f32 %v4775, 0.73333335
        %v5548 = vmul.f32 %v4777, 0.73333335
        %v5549 = vmul.f32 %v4781, 0.73333335
        %v5550 = vmul.f32 %v4783, 0.73333335
        %v5551 = vadd.f32 %v5519, %v5535
        %v5552 = vadd.f32 %v5520, %v5536
        %v5553 = vadd.f32 %v5521, %v5537
        %v5554 = vadd.f32 %v5522, %v5538
        %v5555 = vadd.f32 %v5523, %v5539
        %v5556 = vadd.f32 %v5524, %v5540
        %v5557 = vadd.f32 %v5525, %v5541
        %v5558 = vadd.f32 %v5526, %v5542
        %v5559 = vadd.f32 %v5527, %v5543
        %v5560 = vadd.f32 %v5528, %v5544
        %v5561 = vadd.f32 %v5529, %v5545
        %v5562 = vadd.f32 %v5530, %v5546
        %v5563 = vadd.f32 %v5531, %v5547
        %v5564 = vadd.f32 %v5532, %v5548
        %v5565 = vadd.f32 %v5533, %v5549
        %v5566 = vadd.f32 %v5534, %v5550
        %s5567 = scalar_lea.vmem %s204, 256 [#allocation7]
        %5568 = vst [vmem:[%s5567] sm:$0xff] %v5551
        %5569 = vst [vmem:[%s5567 + $0x8] sm:$0xff] %v5552
        %5570 = vst [vmem:[%s5567 + $0x10] sm:$0xff] %v5553
        %5571 = vst [vmem:[%s5567 + $0x18] sm:$0xff] %v5554
        %5572 = vst [vmem:[%s5567 + $0x200] sm:$0xff] %v5555
        %5573 = vst [vmem:[%s5567 + $0x208] sm:$0xff] %v5556
        %5574 = vst [vmem:[%s5567 + $0x210] sm:$0xff] %v5557
        %5575 = vst [vmem:[%s5567 + $0x218] sm:$0xff] %v5558
        %5576 = vst [vmem:[%s5567 + $0x400] sm:$0xff] %v5559
        %5577 = vst [vmem:[%s5567 + $0x408] sm:$0xff] %v5560
        %5578 = vst [vmem:[%s5567 + $0x410] sm:$0xff] %v5561
        %5579 = vst [vmem:[%s5567 + $0x418] sm:$0xff] %v5562
        %5580 = vst [vmem:[%s5567 + $0x600] sm:$0xff] %v5563
        %5581 = vst [vmem:[%s5567 + $0x608] sm:$0xff] %v5564
        %5582 = vst [vmem:[%s5567 + $0x610] sm:$0xff] %v5565
        %5583 = vst [vmem:[%s5567 + $0x618] sm:$0xff] %v5566
        %v5584 = vmul.f32 %v2927, 0.8
        %v5585 = vmul.f32 %v2929, 0.8
        %v5586 = vmul.f32 %v2933, 0.8
        %v5587 = vmul.f32 %v2935, 0.8
        %v5588 = vmul.f32 %v3543, 0.8
        %v5589 = vmul.f32 %v3545, 0.8
        %v5590 = vmul.f32 %v3549, 0.8
        %v5591 = vmul.f32 %v3551, 0.8
        %v5592 = vmul.f32 %v4159, 0.8
        %v5593 = vmul.f32 %v4161, 0.8
        %v5594 = vmul.f32 %v4165, 0.8
        %v5595 = vmul.f32 %v4167, 0.8
        %v5596 = vmul.f32 %v4775, 0.8
        %v5597 = vmul.f32 %v4777, 0.8
        %v5598 = vmul.f32 %v4781, 0.8
        %v5599 = vmul.f32 %v4783, 0.8
        %v5600 = vmul.f32 %v3004, 0.2
        %v5601 = vmul.f32 %v3006, 0.2
        %v5602 = vmul.f32 %v3010, 0.2
        %v5603 = vmul.f32 %v3012, 0.2
        %v5604 = vmul.f32 %v3620, 0.2
        %v5605 = vmul.f32 %v3622, 0.2
        %v5606 = vmul.f32 %v3626, 0.2
        %v5607 = vmul.f32 %v3628, 0.2
        %v5608 = vmul.f32 %v4236, 0.2
        %v5609 = vmul.f32 %v4238, 0.2
        %v5610 = vmul.f32 %v4242, 0.2
        %v5611 = vmul.f32 %v4244, 0.2
        %v5612 = vmul.f32 %v4852, 0.2
        %v5613 = vmul.f32 %v4854, 0.2
        %v5614 = vmul.f32 %v4858, 0.2
        %v5615 = vmul.f32 %v4860, 0.2
        %v5616 = vadd.f32 %v5584, %v5600
        %v5617 = vadd.f32 %v5585, %v5601
        %v5618 = vadd.f32 %v5586, %v5602
        %v5619 = vadd.f32 %v5587, %v5603
        %v5620 = vadd.f32 %v5588, %v5604
        %v5621 = vadd.f32 %v5589, %v5605
        %v5622 = vadd.f32 %v5590, %v5606
        %v5623 = vadd.f32 %v5591, %v5607
        %v5624 = vadd.f32 %v5592, %v5608
        %v5625 = vadd.f32 %v5593, %v5609
        %v5626 = vadd.f32 %v5594, %v5610
        %v5627 = vadd.f32 %v5595, %v5611
        %v5628 = vadd.f32 %v5596, %v5612
        %v5629 = vadd.f32 %v5597, %v5613
        %v5630 = vadd.f32 %v5598, %v5614
        %v5631 = vadd.f32 %v5599, %v5615
        %s5632 = scalar_lea.vmem %s204, 288 [#allocation7]
        %5633 = vst [vmem:[%s5632] sm:$0xff] %v5616
        %5634 = vst [vmem:[%s5632 + $0x8] sm:$0xff] %v5617
        %5635 = vst [vmem:[%s5632 + $0x10] sm:$0xff] %v5618
        %5636 = vst [vmem:[%s5632 + $0x18] sm:$0xff] %v5619
        %5637 = vst [vmem:[%s5632 + $0x200] sm:$0xff] %v5620
        %5638 = vst [vmem:[%s5632 + $0x208] sm:$0xff] %v5621
        %5639 = vst [vmem:[%s5632 + $0x210] sm:$0xff] %v5622
        %5640 = vst [vmem:[%s5632 + $0x218] sm:$0xff] %v5623
        %5641 = vst [vmem:[%s5632 + $0x400] sm:$0xff] %v5624
        %5642 = vst [vmem:[%s5632 + $0x408] sm:$0xff] %v5625
        %5643 = vst [vmem:[%s5632 + $0x410] sm:$0xff] %v5626
        %5644 = vst [vmem:[%s5632 + $0x418] sm:$0xff] %v5627
        %5645 = vst [vmem:[%s5632 + $0x600] sm:$0xff] %v5628
        %5646 = vst [vmem:[%s5632 + $0x608] sm:$0xff] %v5629
        %5647 = vst [vmem:[%s5632 + $0x610] sm:$0xff] %v5630
        %5648 = vst [vmem:[%s5632 + $0x618] sm:$0xff] %v5631
        %v5649 = vmul.f32 %v2927, 0.33333334
        %v5650 = vmul.f32 %v2929, 0.33333334
        %v5651 = vmul.f32 %v2933, 0.33333334
        %v5652 = vmul.f32 %v2935, 0.33333334
        %v5653 = vmul.f32 %v3543, 0.33333334
        %v5654 = vmul.f32 %v3545, 0.33333334
        %v5655 = vmul.f32 %v3549, 0.33333334
        %v5656 = vmul.f32 %v3551, 0.33333334
        %v5657 = vmul.f32 %v4159, 0.33333334
        %v5658 = vmul.f32 %v4161, 0.33333334
        %v5659 = vmul.f32 %v4165, 0.33333334
        %v5660 = vmul.f32 %v4167, 0.33333334
        %v5661 = vmul.f32 %v4775, 0.33333334
        %v5662 = vmul.f32 %v4777, 0.33333334
        %v5663 = vmul.f32 %v4781, 0.33333334
        %v5664 = vmul.f32 %v4783, 0.33333334
        %v5665 = vmul.f32 %v3004, 0.6666667
        %v5666 = vmul.f32 %v3006, 0.6666667
        %v5667 = vmul.f32 %v3010, 0.6666667
        %v5668 = vmul.f32 %v3012, 0.6666667
        %v5669 = vmul.f32 %v3620, 0.6666667
        %v5670 = vmul.f32 %v3622, 0.6666667
        %v5671 = vmul.f32 %v3626, 0.6666667
        %v5672 = vmul.f32 %v3628, 0.6666667
        %v5673 = vmul.f32 %v4236, 0.6666667
        %v5674 = vmul.f32 %v4238, 0.6666667
        %v5675 = vmul.f32 %v4242, 0.6666667
        %v5676 = vmul.f32 %v4244, 0.6666667
        %v5677 = vmul.f32 %v4852, 0.6666667
        %v5678 = vmul.f32 %v4854, 0.6666667
        %v5679 = vmul.f32 %v4858, 0.6666667
        %v5680 = vmul.f32 %v4860, 0.6666667
        %v5681 = vadd.f32 %v5649, %v5665
        %v5682 = vadd.f32 %v5650, %v5666
        %v5683 = vadd.f32 %v5651, %v5667
        %v5684 = vadd.f32 %v5652, %v5668
        %v5685 = vadd.f32 %v5653, %v5669
        %v5686 = vadd.f32 %v5654, %v5670
        %v5687 = vadd.f32 %v5655, %v5671
        %v5688 = vadd.f32 %v5656, %v5672
        %v5689 = vadd.f32 %v5657, %v5673
        %v5690 = vadd.f32 %v5658, %v5674
        %v5691 = vadd.f32 %v5659, %v5675
        %v5692 = vadd.f32 %v5660, %v5676
        %v5693 = vadd.f32 %v5661, %v5677
        %v5694 = vadd.f32 %v5662, %v5678
        %v5695 = vadd.f32 %v5663, %v5679
        %v5696 = vadd.f32 %v5664, %v5680
        %s5697 = scalar_lea.vmem %s204, 320 [#allocation7]
        %5698 = vst [vmem:[%s5697] sm:$0xff] %v5681
        %5699 = vst [vmem:[%s5697 + $0x8] sm:$0xff] %v5682
        %5700 = vst [vmem:[%s5697 + $0x10] sm:$0xff] %v5683
        %5701 = vst [vmem:[%s5697 + $0x18] sm:$0xff] %v5684
        %5702 = vst [vmem:[%s5697 + $0x200] sm:$0xff] %v5685
        %5703 = vst [vmem:[%s5697 + $0x208] sm:$0xff] %v5686
        %5704 = vst [vmem:[%s5697 + $0x210] sm:$0xff] %v5687
        %5705 = vst [vmem:[%s5697 + $0x218] sm:$0xff] %v5688
        %5706 = vst [vmem:[%s5697 + $0x400] sm:$0xff] %v5689
        %5707 = vst [vmem:[%s5697 + $0x408] sm:$0xff] %v5690
        %5708 = vst [vmem:[%s5697 + $0x410] sm:$0xff] %v5691
        %5709 = vst [vmem:[%s5697 + $0x418] sm:$0xff] %v5692
        %5710 = vst [vmem:[%s5697 + $0x600] sm:$0xff] %v5693
        %5711 = vst [vmem:[%s5697 + $0x608] sm:$0xff] %v5694
        %5712 = vst [vmem:[%s5697 + $0x610] sm:$0xff] %v5695
        %5713 = vst [vmem:[%s5697 + $0x618] sm:$0xff] %v5696
        %v5714 = vmul.f32 %v3004, 0.8666667
        %v5715 = vmul.f32 %v3006, 0.8666667
        %v5716 = vmul.f32 %v3010, 0.8666667
        %v5717 = vmul.f32 %v3012, 0.8666667
        %v5718 = vmul.f32 %v3620, 0.8666667
        %v5719 = vmul.f32 %v3622, 0.8666667
        %v5720 = vmul.f32 %v3626, 0.8666667
        %v5721 = vmul.f32 %v3628, 0.8666667
        %v5722 = vmul.f32 %v4236, 0.8666667
        %v5723 = vmul.f32 %v4238, 0.8666667
        %v5724 = vmul.f32 %v4242, 0.8666667
        %v5725 = vmul.f32 %v4244, 0.8666667
        %v5726 = vmul.f32 %v4852, 0.8666667
        %v5727 = vmul.f32 %v4854, 0.8666667
        %v5728 = vmul.f32 %v4858, 0.8666667
        %v5729 = vmul.f32 %v4860, 0.8666667
        %v5730 = vmul.f32 %v3081, 0.13333334
        %v5731 = vmul.f32 %v3083, 0.13333334
        %v5732 = vmul.f32 %v3087, 0.13333334
        %v5733 = vmul.f32 %v3089, 0.13333334
        %v5734 = vmul.f32 %v3697, 0.13333334
        %v5735 = vmul.f32 %v3699, 0.13333334
        %v5736 = vmul.f32 %v3703, 0.13333334
        %v5737 = vmul.f32 %v3705, 0.13333334
        %v5738 = vmul.f32 %v4313, 0.13333334
        %v5739 = vmul.f32 %v4315, 0.13333334
        %v5740 = vmul.f32 %v4319, 0.13333334
        %v5741 = vmul.f32 %v4321, 0.13333334
        %v5742 = vmul.f32 %v4929, 0.13333334
        %v5743 = vmul.f32 %v4931, 0.13333334
        %v5744 = vmul.f32 %v4935, 0.13333334
        %v5745 = vmul.f32 %v4937, 0.13333334
        %v5746 = vadd.f32 %v5714, %v5730
        %v5747 = vadd.f32 %v5715, %v5731
        %v5748 = vadd.f32 %v5716, %v5732
        %v5749 = vadd.f32 %v5717, %v5733
        %v5750 = vadd.f32 %v5718, %v5734
        %v5751 = vadd.f32 %v5719, %v5735
        %v5752 = vadd.f32 %v5720, %v5736
        %v5753 = vadd.f32 %v5721, %v5737
        %v5754 = vadd.f32 %v5722, %v5738
        %v5755 = vadd.f32 %v5723, %v5739
        %v5756 = vadd.f32 %v5724, %v5740
        %v5757 = vadd.f32 %v5725, %v5741
        %v5758 = vadd.f32 %v5726, %v5742
        %v5759 = vadd.f32 %v5727, %v5743
        %v5760 = vadd.f32 %v5728, %v5744
        %v5761 = vadd.f32 %v5729, %v5745
        %s5762 = scalar_lea.vmem %s204, 352 [#allocation7]
        %5763 = vst [vmem:[%s5762] sm:$0xff] %v5746
        %5764 = vst [vmem:[%s5762 + $0x8] sm:$0xff] %v5747
        %5765 = vst [vmem:[%s5762 + $0x10] sm:$0xff] %v5748
        %5766 = vst [vmem:[%s5762 + $0x18] sm:$0xff] %v5749
        %5767 = vst [vmem:[%s5762 + $0x200] sm:$0xff] %v5750
        %5768 = vst [vmem:[%s5762 + $0x208] sm:$0xff] %v5751
        %5769 = vst [vmem:[%s5762 + $0x210] sm:$0xff] %v5752
        %5770 = vst [vmem:[%s5762 + $0x218] sm:$0xff] %v5753
        %5771 = vst [vmem:[%s5762 + $0x400] sm:$0xff] %v5754
        %5772 = vst [vmem:[%s5762 + $0x408] sm:$0xff] %v5755
        %5773 = vst [vmem:[%s5762 + $0x410] sm:$0xff] %v5756
        %5774 = vst [vmem:[%s5762 + $0x418] sm:$0xff] %v5757
        %5775 = vst [vmem:[%s5762 + $0x600] sm:$0xff] %v5758
        %5776 = vst [vmem:[%s5762 + $0x608] sm:$0xff] %v5759
        %5777 = vst [vmem:[%s5762 + $0x610] sm:$0xff] %v5760
        %5778 = vst [vmem:[%s5762 + $0x618] sm:$0xff] %v5761
        %v5779 = vmul.f32 %v3004, 0.4
        %v5780 = vmul.f32 %v3006, 0.4
        %v5781 = vmul.f32 %v3010, 0.4
        %v5782 = vmul.f32 %v3012, 0.4
        %v5783 = vmul.f32 %v3620, 0.4
        %v5784 = vmul.f32 %v3622, 0.4
        %v5785 = vmul.f32 %v3626, 0.4
        %v5786 = vmul.f32 %v3628, 0.4
        %v5787 = vmul.f32 %v4236, 0.4
        %v5788 = vmul.f32 %v4238, 0.4
        %v5789 = vmul.f32 %v4242, 0.4
        %v5790 = vmul.f32 %v4244, 0.4
        %v5791 = vmul.f32 %v4852, 0.4
        %v5792 = vmul.f32 %v4854, 0.4
        %v5793 = vmul.f32 %v4858, 0.4
        %v5794 = vmul.f32 %v4860, 0.4
        %v5795 = vmul.f32 %v3081, 0.6
        %v5796 = vmul.f32 %v3083, 0.6
        %v5797 = vmul.f32 %v3087, 0.6
        %v5798 = vmul.f32 %v3089, 0.6
        %v5799 = vmul.f32 %v3697, 0.6
        %v5800 = vmul.f32 %v3699, 0.6
        %v5801 = vmul.f32 %v3703, 0.6
        %v5802 = vmul.f32 %v3705, 0.6
        %v5803 = vmul.f32 %v4313, 0.6
        %v5804 = vmul.f32 %v4315, 0.6
        %v5805 = vmul.f32 %v4319, 0.6
        %v5806 = vmul.f32 %v4321, 0.6
        %v5807 = vmul.f32 %v4929, 0.6
        %v5808 = vmul.f32 %v4931, 0.6
        %v5809 = vmul.f32 %v4935, 0.6
        %v5810 = vmul.f32 %v4937, 0.6
        %v5811 = vadd.f32 %v5779, %v5795
        %v5812 = vadd.f32 %v5780, %v5796
        %v5813 = vadd.f32 %v5781, %v5797
        %v5814 = vadd.f32 %v5782, %v5798
        %v5815 = vadd.f32 %v5783, %v5799
        %v5816 = vadd.f32 %v5784, %v5800
        %v5817 = vadd.f32 %v5785, %v5801
        %v5818 = vadd.f32 %v5786, %v5802
        %v5819 = vadd.f32 %v5787, %v5803
        %v5820 = vadd.f32 %v5788, %v5804
        %v5821 = vadd.f32 %v5789, %v5805
        %v5822 = vadd.f32 %v5790, %v5806
        %v5823 = vadd.f32 %v5791, %v5807
        %v5824 = vadd.f32 %v5792, %v5808
        %v5825 = vadd.f32 %v5793, %v5809
        %v5826 = vadd.f32 %v5794, %v5810
        %s5827 = scalar_lea.vmem %s204, 384 [#allocation7]
        %5828 = vst [vmem:[%s5827] sm:$0xff] %v5811
        %5829 = vst [vmem:[%s5827 + $0x8] sm:$0xff] %v5812
        %5830 = vst [vmem:[%s5827 + $0x10] sm:$0xff] %v5813
        %5831 = vst [vmem:[%s5827 + $0x18] sm:$0xff] %v5814
        %5832 = vst [vmem:[%s5827 + $0x200] sm:$0xff] %v5815
        %5833 = vst [vmem:[%s5827 + $0x208] sm:$0xff] %v5816
        %5834 = vst [vmem:[%s5827 + $0x210] sm:$0xff] %v5817
        %5835 = vst [vmem:[%s5827 + $0x218] sm:$0xff] %v5818
        %5836 = vst [vmem:[%s5827 + $0x400] sm:$0xff] %v5819
        %5837 = vst [vmem:[%s5827 + $0x408] sm:$0xff] %v5820
        %5838 = vst [vmem:[%s5827 + $0x410] sm:$0xff] %v5821
        %5839 = vst [vmem:[%s5827 + $0x418] sm:$0xff] %v5822
        %5840 = vst [vmem:[%s5827 + $0x600] sm:$0xff] %v5823
        %5841 = vst [vmem:[%s5827 + $0x608] sm:$0xff] %v5824
        %5842 = vst [vmem:[%s5827 + $0x610] sm:$0xff] %v5825
        %5843 = vst [vmem:[%s5827 + $0x618] sm:$0xff] %v5826
        %v5844 = vmul.f32 %v3081, 0.93333334
        %v5845 = vmul.f32 %v3083, 0.93333334
        %v5846 = vmul.f32 %v3087, 0.93333334
        %v5847 = vmul.f32 %v3089, 0.93333334
        %v5848 = vmul.f32 %v3697, 0.93333334
        %v5849 = vmul.f32 %v3699, 0.93333334
        %v5850 = vmul.f32 %v3703, 0.93333334
        %v5851 = vmul.f32 %v3705, 0.93333334
        %v5852 = vmul.f32 %v4313, 0.93333334
        %v5853 = vmul.f32 %v4315, 0.93333334
        %v5854 = vmul.f32 %v4319, 0.93333334
        %v5855 = vmul.f32 %v4321, 0.93333334
        %v5856 = vmul.f32 %v4929, 0.93333334
        %v5857 = vmul.f32 %v4931, 0.93333334
        %v5858 = vmul.f32 %v4935, 0.93333334
        %v5859 = vmul.f32 %v4937, 0.93333334
        %v5860 = vmul.f32 %v3158, 0.06666667
        %v5861 = vmul.f32 %v3160, 0.06666667
        %v5862 = vmul.f32 %v3164, 0.06666667
        %v5863 = vmul.f32 %v3166, 0.06666667
        %v5864 = vmul.f32 %v3774, 0.06666667
        %v5865 = vmul.f32 %v3776, 0.06666667
        %v5866 = vmul.f32 %v3780, 0.06666667
        %v5867 = vmul.f32 %v3782, 0.06666667
        %v5868 = vmul.f32 %v4390, 0.06666667
        %v5869 = vmul.f32 %v4392, 0.06666667
        %v5870 = vmul.f32 %v4396, 0.06666667
        %v5871 = vmul.f32 %v4398, 0.06666667
        %v5872 = vmul.f32 %v5006, 0.06666667
        %v5873 = vmul.f32 %v5008, 0.06666667
        %v5874 = vmul.f32 %v5012, 0.06666667
        %v5875 = vmul.f32 %v5014, 0.06666667
        %v5876 = vadd.f32 %v5844, %v5860
        %v5877 = vadd.f32 %v5845, %v5861
        %v5878 = vadd.f32 %v5846, %v5862
        %v5879 = vadd.f32 %v5847, %v5863
        %v5880 = vadd.f32 %v5848, %v5864
        %v5881 = vadd.f32 %v5849, %v5865
        %v5882 = vadd.f32 %v5850, %v5866
        %v5883 = vadd.f32 %v5851, %v5867
        %v5884 = vadd.f32 %v5852, %v5868
        %v5885 = vadd.f32 %v5853, %v5869
        %v5886 = vadd.f32 %v5854, %v5870
        %v5887 = vadd.f32 %v5855, %v5871
        %v5888 = vadd.f32 %v5856, %v5872
        %v5889 = vadd.f32 %v5857, %v5873
        %v5890 = vadd.f32 %v5858, %v5874
        %v5891 = vadd.f32 %v5859, %v5875
        %s5892 = scalar_lea.vmem %s204, 416 [#allocation7]
        %5893 = vst [vmem:[%s5892] sm:$0xff] %v5876
        %5894 = vst [vmem:[%s5892 + $0x8] sm:$0xff] %v5877
        %5895 = vst [vmem:[%s5892 + $0x10] sm:$0xff] %v5878
        %5896 = vst [vmem:[%s5892 + $0x18] sm:$0xff] %v5879
        %5897 = vst [vmem:[%s5892 + $0x200] sm:$0xff] %v5880
        %5898 = vst [vmem:[%s5892 + $0x208] sm:$0xff] %v5881
        %5899 = vst [vmem:[%s5892 + $0x210] sm:$0xff] %v5882
        %5900 = vst [vmem:[%s5892 + $0x218] sm:$0xff] %v5883
        %5901 = vst [vmem:[%s5892 + $0x400] sm:$0xff] %v5884
        %5902 = vst [vmem:[%s5892 + $0x408] sm:$0xff] %v5885
        %5903 = vst [vmem:[%s5892 + $0x410] sm:$0xff] %v5886
        %5904 = vst [vmem:[%s5892 + $0x418] sm:$0xff] %v5887
        %5905 = vst [vmem:[%s5892 + $0x600] sm:$0xff] %v5888
        %5906 = vst [vmem:[%s5892 + $0x608] sm:$0xff] %v5889
        %5907 = vst [vmem:[%s5892 + $0x610] sm:$0xff] %v5890
        %5908 = vst [vmem:[%s5892 + $0x618] sm:$0xff] %v5891
        %v5909 = vmul.f32 %v3081, 0.46666667
        %v5910 = vmul.f32 %v3083, 0.46666667
        %v5911 = vmul.f32 %v3087, 0.46666667
        %v5912 = vmul.f32 %v3089, 0.46666667
        %v5913 = vmul.f32 %v3697, 0.46666667
        %v5914 = vmul.f32 %v3699, 0.46666667
        %v5915 = vmul.f32 %v3703, 0.46666667
        %v5916 = vmul.f32 %v3705, 0.46666667
        %v5917 = vmul.f32 %v4313, 0.46666667
        %v5918 = vmul.f32 %v4315, 0.46666667
        %v5919 = vmul.f32 %v4319, 0.46666667
        %v5920 = vmul.f32 %v4321, 0.46666667
        %v5921 = vmul.f32 %v4929, 0.46666667
        %v5922 = vmul.f32 %v4931, 0.46666667
        %v5923 = vmul.f32 %v4935, 0.46666667
        %v5924 = vmul.f32 %v4937, 0.46666667
        %v5925 = vmul.f32 %v3158, 0.53333336
        %v5926 = vmul.f32 %v3160, 0.53333336
        %v5927 = vmul.f32 %v3164, 0.53333336
        %v5928 = vmul.f32 %v3166, 0.53333336
        %v5929 = vmul.f32 %v3774, 0.53333336
        %v5930 = vmul.f32 %v3776, 0.53333336
        %v5931 = vmul.f32 %v3780, 0.53333336
        %v5932 = vmul.f32 %v3782, 0.53333336
        %v5933 = vmul.f32 %v4390, 0.53333336
        %v5934 = vmul.f32 %v4392, 0.53333336
        %v5935 = vmul.f32 %v4396, 0.53333336
        %v5936 = vmul.f32 %v4398, 0.53333336
        %v5937 = vmul.f32 %v5006, 0.53333336
        %v5938 = vmul.f32 %v5008, 0.53333336
        %v5939 = vmul.f32 %v5012, 0.53333336
        %v5940 = vmul.f32 %v5014, 0.53333336
        %v5941 = vadd.f32 %v5909, %v5925
        %v5942 = vadd.f32 %v5910, %v5926
        %v5943 = vadd.f32 %v5911, %v5927
        %v5944 = vadd.f32 %v5912, %v5928
        %v5945 = vadd.f32 %v5913, %v5929
        %v5946 = vadd.f32 %v5914, %v5930
        %v5947 = vadd.f32 %v5915, %v5931
        %v5948 = vadd.f32 %v5916, %v5932
        %v5949 = vadd.f32 %v5917, %v5933
        %v5950 = vadd.f32 %v5918, %v5934
        %v5951 = vadd.f32 %v5919, %v5935
        %v5952 = vadd.f32 %v5920, %v5936
        %v5953 = vadd.f32 %v5921, %v5937
        %v5954 = vadd.f32 %v5922, %v5938
        %v5955 = vadd.f32 %v5923, %v5939
        %v5956 = vadd.f32 %v5924, %v5940
        %s5957 = scalar_lea.vmem %s204, 448 [#allocation7]
        %5958 = vst [vmem:[%s5957] sm:$0xff] %v5941
        %5959 = vst [vmem:[%s5957 + $0x8] sm:$0xff] %v5942
        %5960 = vst [vmem:[%s5957 + $0x10] sm:$0xff] %v5943
        %5961 = vst [vmem:[%s5957 + $0x18] sm:$0xff] %v5944
        %5962 = vst [vmem:[%s5957 + $0x200] sm:$0xff] %v5945
        %5963 = vst [vmem:[%s5957 + $0x208] sm:$0xff] %v5946
        %5964 = vst [vmem:[%s5957 + $0x210] sm:$0xff] %v5947
        %5965 = vst [vmem:[%s5957 + $0x218] sm:$0xff] %v5948
        %5966 = vst [vmem:[%s5957 + $0x400] sm:$0xff] %v5949
        %5967 = vst [vmem:[%s5957 + $0x408] sm:$0xff] %v5950
        %5968 = vst [vmem:[%s5957 + $0x410] sm:$0xff] %v5951
        %5969 = vst [vmem:[%s5957 + $0x418] sm:$0xff] %v5952
        %5970 = vst [vmem:[%s5957 + $0x600] sm:$0xff] %v5953
        %5971 = vst [vmem:[%s5957 + $0x608] sm:$0xff] %v5954
        %5972 = vst [vmem:[%s5957 + $0x610] sm:$0xff] %v5955
        %5973 = vst [vmem:[%s5957 + $0x618] sm:$0xff] %v5956
        %v5974 = vmul.f32 %v3158, 0.0
        %v5975 = vmul.f32 %v3160, 0.0
        %v5976 = vmul.f32 %v3164, 0.0
        %v5977 = vmul.f32 %v3166, 0.0
        %v5978 = vmul.f32 %v3774, 0.0
        %v5979 = vmul.f32 %v3776, 0.0
        %v5980 = vmul.f32 %v3780, 0.0
        %v5981 = vmul.f32 %v3782, 0.0
        %v5982 = vmul.f32 %v4390, 0.0
        %v5983 = vmul.f32 %v4392, 0.0
        %v5984 = vmul.f32 %v4396, 0.0
        %v5985 = vmul.f32 %v4398, 0.0
        %v5986 = vmul.f32 %v5006, 0.0
        %v5987 = vmul.f32 %v5008, 0.0
        %v5988 = vmul.f32 %v5012, 0.0
        %v5989 = vmul.f32 %v5014, 0.0
        %v5990 = vadd.f32 %v3158, %v5974
        %v5991 = vadd.f32 %v3160, %v5975
        %v5992 = vadd.f32 %v3164, %v5976
        %v5993 = vadd.f32 %v3166, %v5977
        %v5994 = vadd.f32 %v3774, %v5978
        %v5995 = vadd.f32 %v3776, %v5979
        %v5996 = vadd.f32 %v3780, %v5980
        %v5997 = vadd.f32 %v3782, %v5981
        %v5998 = vadd.f32 %v4390, %v5982
        %v5999 = vadd.f32 %v4392, %v5983
        %v6000 = vadd.f32 %v4396, %v5984
        %v6001 = vadd.f32 %v4398, %v5985
        %v6002 = vadd.f32 %v5006, %v5986
        %v6003 = vadd.f32 %v5008, %v5987
        %v6004 = vadd.f32 %v5012, %v5988
        %v6005 = vadd.f32 %v5014, %v5989
        %s6006 = scalar_lea.vmem %s204, 480 [#allocation7]
        %6007 = vst [vmem:[%s6006] sm:$0xff] %v5990
        %6008 = vst [vmem:[%s6006 + $0x8] sm:$0xff] %v5991
        %6009 = vst [vmem:[%s6006 + $0x10] sm:$0xff] %v5992
        %6010 = vst [vmem:[%s6006 + $0x18] sm:$0xff] %v5993
        %6011 = vst [vmem:[%s6006 + $0x200] sm:$0xff] %v5994
        %6012 = vst [vmem:[%s6006 + $0x208] sm:$0xff] %v5995
        %6013 = vst [vmem:[%s6006 + $0x210] sm:$0xff] %v5996
        %6014 = vst [vmem:[%s6006 + $0x218] sm:$0xff] %v5997
        %6015 = vst [vmem:[%s6006 + $0x400] sm:$0xff] %v5998
        %6016 = vst [vmem:[%s6006 + $0x408] sm:$0xff] %v5999
        %6017 = vst [vmem:[%s6006 + $0x410] sm:$0xff] %v6000
        %6018 = vst [vmem:[%s6006 + $0x418] sm:$0xff] %v6001
        %6019 = vst [vmem:[%s6006 + $0x600] sm:$0xff] %v6002
        %6020 = vst [vmem:[%s6006 + $0x608] sm:$0xff] %v6003
        %6021 = vst [vmem:[%s6006 + $0x610] sm:$0xff] %v6004
        %6022 = vst [vmem:[%s6006 + $0x618] sm:$0xff] %v6005
        %s6023 = sand.u32 %s97, 1
        %s6024 = scalar_lea.sflag [#allocation4], %s6023
        %s6025 = sand.u32 %s97, 1
        %s6026 = smul.addr %s6025, 2048
        %s6027 = scalar_lea.vmem [#allocation7], %s6026
        // Predicated region
        $region41: #{tpu_custom_call.1} parent=31 // pred_check
          %p6028 = pneg %p107
        $region42: #{tpu_custom_call.1} parent=31 // pred_check_branch
          %6030 = sbr.rel (%p6028) target = $region44
        $region43: #{tpu_custom_call.1} parent=31 // pred_region
          %s6031 = smul.u32 4, %s21
          %s6033 = ssub.s32 32768, 32768
          %6034 = vsyncadd %s6024, %s6033
          %s6035 = smul.addr %s6031, 64
          %s6036 = smul.addr %s6035, 128
          %s6037 = scalar_lea.hbm %s3, %s6036
          %s6038 = sshll.u32 %s6027, 4
          %s6039 = int_to_ptr.vmem [resolvable:$true] %s6038
          %6044 = dma.vmem_to_hbm [thread:$0]  %s6039, 32768, %s6037, %s6024, 256, 256, 16
        $region44: #{tpu_custom_call.1} parent=31 // pred_fallthru
          _
      $region32: #{tpu_custom_call.1} parent=5 // pred_fallthru
        _
      %p6045 = scmp.le.s32.totalorder 2, %s16
      // Predicated region
      $region45: #{tpu_custom_call.1} parent=5 // pred_check
        %p6046 = pneg %p6045
      $region46: #{tpu_custom_call.1} parent=5 // pred_check_branch
        %6048 = sbr.rel (%p6046) target = $region48
      $region47: #{tpu_custom_call.1} parent=5 // pred_region
        %s6049 = ssub.s32 %s16, 2
        // Predicated region
        $region49: #{tpu_custom_call.1} parent=47 // pred_check
          %p6050 = pneg %p113
        $region50: #{tpu_custom_call.1} parent=47 // pred_check_branch
          %6052 = sbr.rel (%p6050) target = $region52
        $region51: #{tpu_custom_call.1} parent=47 // pred_region
          %s6053 = sand.u32 %s98, 1
          %s6054 = scalar_lea.sflag [#allocation4], %s6053
          %s6055 = sand.u32 %s98, 1
          %s6056 = smul.addr %s6055, 2048
          %s6057 = scalar_lea.vmem [#allocation7], %s6056
          %6058 = dma.done %s6054, 32768
        $region52: #{tpu_custom_call.1} parent=47 // pred_fallthru
          _
      $region48: #{tpu_custom_call.1} parent=5 // pred_fallthru
        _
    $region6: #{tpu_custom_call.1} parent=1 // loop_footer
      %s20 = sadd.s32 1, %s16
    $region7: #{tpu_custom_call.1} parent=1 // loop_footer_branch
      %15 = sbr.rel target = $region3
    $region8: #{tpu_custom_call.1} parent=1 // loop_exit
      _
    %6059 = vsyncpa [#allocation3], 1
    %s6060 = scalar_lea.sflag [#allocation3], 1
    %6061 = vsyncpa %s6060, 1
    %6062 = vsyncpa [#allocation6], 1
    %s6063 = scalar_lea.sflag [#allocation6], 1
    %6064 = vsyncpa %s6063, 1
    %6065 = vsyncpa [#allocation4], 1
    %s6066 = scalar_lea.sflag [#allocation4], 1
    %6067 = vsyncpa %s6066, 1

</llo_original>
